<compile_context>
chip_gen: v5e
topology: v5e:2x2
jax: 0.10.0
libtpu: 0.0.40
codegen_flags: <defaults>
</compile_context>

<pallas_src>
import jax
import jax.numpy as jnp
from jax.experimental import pallas as pl
from jax.experimental.pallas import tpu as pltpu  # noqa: F401  (kept for future tiling)


# ----------------------------------------------------------------------------
# Single fused kernel: pool -> proj -> linear1 -> relu -> all-task linear2.
# ----------------------------------------------------------------------------
def _fused_kernel(x_ref, wp_ref, w1_ref, b1_ref, w2c_ref, b2c_ref, out_ref):
    # x_ref:   [B, C, H*W]   image, spatial flattened onto the lane axis
    # wp_ref:  [C, F]        backbone stand-in projection (C -> 2048)
    # w1_ref:  [F, Hd], b1_ref: [1, Hd]
    # w2c_ref: [Hd, T*NC], b2c_ref: [1, T*NC]  task heads concatenated on lanes
    # out_ref: [B, T*NC]

    # Global average pool over spatial (lane reduce).
    pooled = jnp.mean(x_ref[...], axis=-1)                        # [B, C]

    # C -> F projection as a VPU broadcast-FMA; C is tiny (4), so the MXU
    # would be <1% utilized here and only add pipeline-fill latency.
    C = wp_ref.shape[0]
    feat = pooled[:, 0:1] * wp_ref[0:1, :]                        # [B, F]
    for c in range(1, C):  # static unroll, C small
        feat = feat + pooled[:, c:c + 1] * wp_ref[c:c + 1, :]

    # linear1 + ReLU (the only non-trivial MXU matmul, K = 2048).
    hidden = jnp.dot(feat, w1_ref[...],
                     preferred_element_type=jnp.float32) + b1_ref[...]
    hidden = jnp.maximum(hidden, 0.0)

    # All task heads fused into one lane-concatenated matmul (N = T*NC).
    out_ref[...] = jnp.dot(hidden, w2c_ref[...],
                           preferred_element_type=jnp.float32) + b2c_ref[...]


def _forward_tasks(img, params):
    """Returns a tuple of per-task logits; one fused kernel, one dispatch."""
    B, C, H, W = img.shape
    x_flat = img.reshape(B, C, H * W)
    T, Hd, NC = params["w2"].shape
    # Concatenate task heads along the output (lane) axis:
    #   w2c[h, t*NC + n] = w2[t, h, n]
    w2c = params["w2"].transpose(1, 0, 2).reshape(Hd, T * NC)
    b2c = params["b2"].reshape(1, T * NC)

    out = pl.pallas_call(
        _fused_kernel,
        out_shape=jax.ShapeDtypeStruct((B, T * NC), jnp.float32),
    )(x_flat, params["wp"], params["w1"], params["b1"], w2c, b2c)

    # Per-task split inside jit (fused by XLA, no extra host dispatches).
    return tuple(out[:, t * NC:(t + 1) * NC] for t in range(T))


_forward_tasks_jit = jax.jit(_forward_tasks)


def image_cnn_forward(img, params):
    """Mirrors Image_CNN.forward: dict of per-task logits."""
    outs = _forward_tasks_jit(img, params)
    return {t: outs[t] for t in range(len(outs))}


# ----------------------------------------------------------------------------
# Parameter construction (PyTorch weights pre-transposed to x @ W layout).
# ----------------------------------------------------------------------------
def init_params(key, in_channels, feat_dim, hidden_dim, num_classes, num_tasks):
    k = jax.random.split(key, 5)
    # Stand-in backbone projection (C -> 2048).
    wp = jax.random.normal(k[0], (in_channels, feat_dim), jnp.float32) * 0.02
    # linear1: nn.Linear(2048, hidden_dim); stored as [in, out].
    w1 = jax.random.normal(k[1], (feat_dim, hidden_dim), jnp.float32) * 0.02
    b1 = jax.random.normal(k[2], (1, hidden_dim), jnp.float32) * 0.01
    # linear2: ModuleList of num_tasks x nn.Linear(hidden_dim, num_classes),
    # stacked and pre-transposed to [T, hidden_dim, num_classes].
    w2 = jax.random.normal(k[3], (num_tasks, hidden_dim, num_classes),
                           jnp.float32) * 0.02
    b2 = jax.random.normal(k[4], (num_tasks, num_classes), jnp.float32) * 0.01
    return {"wp": wp, "w1": w1, "b1": b1, "w2": w2, "b2": b2}


if __name__ == "__main__":
    # Small shapes consistent with the module's forward:
    B, C, H, W = 2, 4, 16, 16            # NCHW image input
    FEAT_DIM = 2048                      # resnet50 feature width
    NUM_TASKS, HIDDEN_DIM, NUM_CLASSES = 3, 32, 16

    key = jax.random.PRNGKey(0)
    kx, kp = jax.random.split(key)
    img = jax.random.normal(kx, (B, C, H, W), jnp.float32)
    params = init_params(kp, C, FEAT_DIM, HIDDEN_DIM, NUM_CLASSES, NUM_TASKS)

    logits = image_cnn_forward(img, params)
    for t in range(NUM_TASKS):
        jax.block_until_ready(logits[t])
        assert logits[t].shape == (B, NUM_CLASSES)

    # Reference check in plain JAX (same math).
    pooled = img.reshape(B, C, H * W).mean(-1)
    feat_ref = pooled @ params["wp"]
    hid_ref = jnp.maximum(feat_ref @ params["w1"] + params["b1"], 0.0)
    for t in range(NUM_TASKS):
        ref = hid_ref @ params["w2"][t] + params["b2"][t]
        assert jnp.allclose(logits[t], ref, atol=1e-4, rtol=1e-4)

    print("KERNEL_OK")
</pallas_src>

<mosaic_0001>
module attributes {stable_mosaic.version = 11 : i64} {
  func.func @_fused_kernel(%arg0: memref<2x4x256xf32, #tpu.memory_space<vmem>>, %arg1: memref<4x2048xf32, #tpu.memory_space<vmem>>, %arg2: memref<2048x32xf32, #tpu.memory_space<vmem>>, %arg3: memref<1x32xf32, #tpu.memory_space<vmem>>, %arg4: memref<32x48xf32, #tpu.memory_space<vmem>>, %arg5: memref<1x48xf32, #tpu.memory_space<vmem>>, %arg6: memref<2x48xf32, #tpu.memory_space<vmem>>) attributes {dimension_semantics = [], scalar_prefetch = 0 : i64, scratch_operands = 0 : i64, tpu.core_type = #tpu.core_type<tc>} {
    %c0 = arith.constant 0 : index
    %c0_0 = arith.constant 0 : index
    %c0_1 = arith.constant 0 : index
    %0 = vector.load %arg0[%c0, %c0_0, %c0_1] : memref<2x4x256xf32, #tpu.memory_space<vmem>>, vector<2x4x256xf32>
    %cst = arith.constant dense<0.000000e+00> : vector<2x4xf32>
    %1 = vector.multi_reduction <add>, %0, %cst [2] : vector<2x4x256xf32> to vector<2x4xf32>
    %cst_2 = arith.constant 2.560000e+02 : f32
    %2 = vector.broadcast %cst_2 : f32 to vector<2x4xf32>
    %3 = arith.divf %1, %2 : vector<2x4xf32>
    %4 = vector.extract_strided_slice %3 {offsets = [0, 0], sizes = [2, 1], strides = [1, 1]} : vector<2x4xf32> to vector<2x1xf32>
    %c0_3 = arith.constant 0 : index
    %c0_4 = arith.constant 0 : index
    %5 = vector.load %arg1[%c0_3, %c0_4] : memref<4x2048xf32, #tpu.memory_space<vmem>>, vector<1x2048xf32>
    %6 = vector.broadcast %4 : vector<2x1xf32> to vector<2x2048xf32>
    %7 = vector.broadcast %5 : vector<1x2048xf32> to vector<2x2048xf32>
    %8 = arith.mulf %6, %7 : vector<2x2048xf32>
    %9 = vector.extract_strided_slice %3 {offsets = [0, 1], sizes = [2, 1], strides = [1, 1]} : vector<2x4xf32> to vector<2x1xf32>
    %c1 = arith.constant 1 : index
    %c0_5 = arith.constant 0 : index
    %10 = vector.load %arg1[%c1, %c0_5] : memref<4x2048xf32, #tpu.memory_space<vmem>>, vector<1x2048xf32>
    %11 = vector.broadcast %9 : vector<2x1xf32> to vector<2x2048xf32>
    %12 = vector.broadcast %10 : vector<1x2048xf32> to vector<2x2048xf32>
    %13 = arith.mulf %11, %12 : vector<2x2048xf32>
    %14 = arith.addf %8, %13 : vector<2x2048xf32>
    %15 = vector.extract_strided_slice %3 {offsets = [0, 2], sizes = [2, 1], strides = [1, 1]} : vector<2x4xf32> to vector<2x1xf32>
    %c2 = arith.constant 2 : index
    %c0_6 = arith.constant 0 : index
    %16 = vector.load %arg1[%c2, %c0_6] : memref<4x2048xf32, #tpu.memory_space<vmem>>, vector<1x2048xf32>
    %17 = vector.broadcast %15 : vector<2x1xf32> to vector<2x2048xf32>
    %18 = vector.broadcast %16 : vector<1x2048xf32> to vector<2x2048xf32>
    %19 = arith.mulf %17, %18 : vector<2x2048xf32>
    %20 = arith.addf %14, %19 : vector<2x2048xf32>
    %21 = vector.extract_strided_slice %3 {offsets = [0, 3], sizes = [2, 1], strides = [1, 1]} : vector<2x4xf32> to vector<2x1xf32>
    %c3 = arith.constant 3 : index
    %c0_7 = arith.constant 0 : index
    %22 = vector.load %arg1[%c3, %c0_7] : memref<4x2048xf32, #tpu.memory_space<vmem>>, vector<1x2048xf32>
    %23 = vector.broadcast %21 : vector<2x1xf32> to vector<2x2048xf32>
    %24 = vector.broadcast %22 : vector<1x2048xf32> to vector<2x2048xf32>
    %25 = arith.mulf %23, %24 : vector<2x2048xf32>
    %26 = arith.addf %20, %25 : vector<2x2048xf32>
    %c0_8 = arith.constant 0 : index
    %c0_9 = arith.constant 0 : index
    %27 = vector.load %arg2[%c0_8, %c0_9] : memref<2048x32xf32, #tpu.memory_space<vmem>>, vector<2048x32xf32>
    %cst_10 = arith.constant dense<0.000000e+00> : vector<2x32xf32>
    %28 = tpu.matmul %26, %27, %cst_10 {dimension_numbers = #tpu.dot_dimension_numbers<[1], [0], [0], [1], [0, 0, 1, 1], [], []>} : vector<2x2048xf32>, vector<2048x32xf32>, vector<2x32xf32> -> vector<2x32xf32>
    %c0_11 = arith.constant 0 : index
    %c0_12 = arith.constant 0 : index
    %29 = vector.load %arg3[%c0_11, %c0_12] : memref<1x32xf32, #tpu.memory_space<vmem>>, vector<1x32xf32>
    %30 = vector.broadcast %29 : vector<1x32xf32> to vector<2x32xf32>
    %31 = arith.addf %28, %30 : vector<2x32xf32>
    %cst_13 = arith.constant 0.000000e+00 : f32
    %32 = vector.broadcast %cst_13 : f32 to vector<2x32xf32>
    %33 = arith.maximumf %31, %32 : vector<2x32xf32>
    %c0_14 = arith.constant 0 : index
    %c0_15 = arith.constant 0 : index
    %34 = vector.load %arg4[%c0_14, %c0_15] : memref<32x48xf32, #tpu.memory_space<vmem>>, vector<32x48xf32>
    %cst_16 = arith.constant dense<0.000000e+00> : vector<2x48xf32>
    %35 = tpu.matmul %33, %34, %cst_16 {dimension_numbers = #tpu.dot_dimension_numbers<[1], [0], [0], [1], [0, 0, 1, 1], [], []>} : vector<2x32xf32>, vector<32x48xf32>, vector<2x48xf32> -> vector<2x48xf32>
    %c0_17 = arith.constant 0 : index
    %c0_18 = arith.constant 0 : index
    %36 = vector.load %arg5[%c0_17, %c0_18] : memref<1x48xf32, #tpu.memory_space<vmem>>, vector<1x48xf32>
    %37 = vector.broadcast %36 : vector<1x48xf32> to vector<2x48xf32>
    %38 = arith.addf %35, %37 : vector<2x48xf32>
    %c0_19 = arith.constant 0 : index
    %c0_20 = arith.constant 0 : index
    %39 = vector.load %arg6[%c0_19, %c0_20] : memref<2x48xf32, #tpu.memory_space<vmem>>, vector<2x48xf32>
    tpu.vector_store %arg6[%c0_19, %c0_20], %38 {strides = array<i32>} : memref<2x48xf32, #tpu.memory_space<vmem>>, vector<2x48xf32>,
    return
  }
}

</mosaic_0001>

<llo_original>
// kernel: _forward_tasks.1
$region0: #{_forward_tasks.1}
  #allocation0 [shape = 'u32[]', space=smem, size = 0x4, offset = 0x4, fixed_abs, tag = 'smem constant byte address 0x4 - core index']
  #allocation1 [shape = 'u32[72,128]{1,0:T(1,128)}', space=vmem, size = 0x9000, scoped, tag = 'internal scratch']
  %s0 = inlined_call_operand.vmem [shape: f32[2,4,256], index: 0, kind: input, shape index: {}]
  %s1 = inlined_call_operand.vmem [shape: f32[4,2048], index: 1, kind: input, shape index: {}]
  %s2 = inlined_call_operand.vmem [shape: f32[2048,32], index: 2, kind: input, shape index: {}]
  %s3 = inlined_call_operand.vmem [shape: f32[1,32], index: 3, kind: input, shape index: {}]
  %s4 = inlined_call_operand.vmem [shape: f32[32,48], index: 4, kind: input, shape index: {}]
  %s5 = inlined_call_operand.vmem [shape: f32[1,48], index: 5, kind: input, shape index: {}]
  %s6 = inlined_call_operand.vmem [shape: f32[2,48], index: 6, kind: output, shape index: {}]
  %s7 = sld [smem:[#allocation0]]
  $region34: #{_forward_tasks.1} parent=0
    _
  %s9 = ssub.s32 1, %s7
  %s10 = scalar_select 0, %s9, %s7
  // Predicated region
  $region2: #{_forward_tasks.1} parent=0 // pred_check
    _
  $region3: #{_forward_tasks.1} parent=0 // pred_check_branch
    %12 = sbr.rel (0) target = $region5
  $region4: #{_forward_tasks.1} parent=0 // pred_region
    _
  $region5: #{_forward_tasks.1} parent=0 // pred_fallthru
    _
  // Predicated region
  $region6: #{_forward_tasks.1} parent=0 // pred_check
    _
  $region7: #{_forward_tasks.1} parent=0 // pred_check_branch
    %14 = sbr.rel (0) target = $region9
  $region8: #{_forward_tasks.1} parent=0 // pred_region
    _
  $region9: #{_forward_tasks.1} parent=0 // pred_fallthru
    _
  // Predicated region
  $region10: #{_forward_tasks.1} parent=0 // pred_check
    _
  $region11: #{_forward_tasks.1} parent=0 // pred_check_branch
    %16 = sbr.rel (0) target = $region13
  $region12: #{_forward_tasks.1} parent=0 // pred_region
    _
  $region13: #{_forward_tasks.1} parent=0 // pred_fallthru
    _
  // Predicated region
  $region14: #{_forward_tasks.1} parent=0 // pred_check
    _
  $region15: #{_forward_tasks.1} parent=0 // pred_check_branch
    %18 = sbr.rel (0) target = $region17
  $region16: #{_forward_tasks.1} parent=0 // pred_region
    _
  $region17: #{_forward_tasks.1} parent=0 // pred_fallthru
    _
  // Predicated region
  $region18: #{_forward_tasks.1} parent=0 // pred_check
    _
  $region19: #{_forward_tasks.1} parent=0 // pred_check_branch
    %20 = sbr.rel (0) target = $region21
  $region20: #{_forward_tasks.1} parent=0 // pred_region
    _
  $region21: #{_forward_tasks.1} parent=0 // pred_fallthru
    _
  // Predicated region
  $region22: #{_forward_tasks.1} parent=0 // pred_check
    _
  $region23: #{_forward_tasks.1} parent=0 // pred_check_branch
    %22 = sbr.rel (0) target = $region25
  $region24: #{_forward_tasks.1} parent=0 // pred_region
    _
  $region25: #{_forward_tasks.1} parent=0 // pred_fallthru
    _
  %v23 = vld [vmem:[%s0] sm:$0xff]
  %v24 = vld [vmem:[%s0 + $0x8] sm:$0xff]
  %27 = vst [vmem:[#allocation1] ss:$2 sm:$0xff] %v23
  %v28 = vld.sshfl [vmem:[#allocation1] sm:$0xff pattern:$0x75316420]
  %v29 = vld.sshfl [vmem:[#allocation1 + $0x8] sm:$0xff pattern:$0x75316420]
  %s30 = scalar_lea.vmem [#allocation1], 16
  %31 = vst [vmem:[%s30] ss:$2 sm:$0xff] %v24
  %v32 = vld.sshfl [vmem:[#allocation1 + $0x10] sm:$0xff pattern:$0x75316420]
  %v33 = vld.sshfl [vmem:[#allocation1 + $0x18] sm:$0xff pattern:$0x75316420]
  %vm38 = vcmask 1043456
  %v39 = vsel %vm38, %v28, 0.0
  %v40 = vsel %vm38, %v29, 0.0
  %v41 = vadd.f32 %v39, %v40
  %42 = vadd.xlane.f32.xlu0 %v41
  %v43 = vpop.xlane.xlu0 %42
  %v44 = vsel %vm38, %v32, 0.0
  %v45 = vsel %vm38, %v33, 0.0
  %v46 = vadd.f32 %v44, %v45
  %47 = vadd.xlane.f32.xlu0 %v46
  %v48 = vpop.xlane.xlu0 %47
  %v49 = vrcp.pop 256.0
  %v50 = vmul.f32 256.0, %v49
  %v51 = vsub.f32 1.0, %v50
  %v52 = vmul.f32 %v49, %v51
  %v53 = vadd.f32 %v49, %v52
  %vm54 = vweird.f32 %v49
  %v55 = vsel %vm54, %v49, %v53
  %v56 = vmul.f32 %v43, %v55
  %v57 = vmul.f32 %v48, %v55
  %v58 = vld [vmem:[%s1] ss:$4 sm:$0xff]
  %s59 = scalar_lea.vmem %s1, 32
  %v60 = vld [vmem:[%s59] ss:$4 sm:$0xff]
  %v61 = vperm.slane %v56, 0
  %v62 = vperm.slane %v57, 0
  %v65 = vperm.slane %v58, 0
  %v66 = vperm.slane %v58, 1
  %v67 = vperm.slane %v58, 2
  %v68 = vperm.slane %v58, 3
  %v69 = vperm.slane %v58, 4
  %v70 = vperm.slane %v58, 5
  %v71 = vperm.slane %v58, 6
  %v72 = vperm.slane %v58, 7
  %v73 = vperm.slane %v60, 0
  %v74 = vperm.slane %v60, 1
  %v75 = vperm.slane %v60, 2
  %v76 = vperm.slane %v60, 3
  %v77 = vperm.slane %v60, 4
  %v78 = vperm.slane %v60, 5
  %v79 = vperm.slane %v60, 6
  %v80 = vperm.slane %v60, 7
  %v81 = vlaneseq
  %v82 = vshrl.u32 %v81, 7
  %84 = vset.pattern.permute.xlu0 %v82
  %85 = vperm.xlu0 %84, %v65
  %v86 = vpop.permute.xlu0 %85
  %v87 = vlaneseq
  %v88 = vshrl.u32 %v87, 7
  %v89 = vadd.s32 %v88, 8
  %90 = vset.pattern.permute.xlu0 %v89
  %91 = vperm.xlu0 %90, %v65
  %v92 = vpop.permute.xlu0 %91
  %v93 = vlaneseq
  %v94 = vshrl.u32 %v93, 7
  %v95 = vadd.s32 %v94, 16
  %96 = vset.pattern.permute.xlu0 %v95
  %97 = vperm.xlu0 %96, %v65
  %v98 = vpop.permute.xlu0 %97
  %v99 = vlaneseq
  %v100 = vshrl.u32 %v99, 7
  %v101 = vadd.s32 %v100, 24
  %102 = vset.pattern.permute.xlu0 %v101
  %103 = vperm.xlu0 %102, %v65
  %v104 = vpop.permute.xlu0 %103
  %v105 = vlaneseq
  %v106 = vshrl.u32 %v105, 7
  %v107 = vadd.s32 %v106, 32
  %108 = vset.pattern.permute.xlu0 %v107
  %109 = vperm.xlu0 %108, %v65
  %v110 = vpop.permute.xlu0 %109
  %v111 = vlaneseq
  %v112 = vshrl.u32 %v111, 7
  %v113 = vadd.s32 %v112, 40
  %114 = vset.pattern.permute.xlu0 %v113
  %115 = vperm.xlu0 %114, %v65
  %v116 = vpop.permute.xlu0 %115
  %v117 = vlaneseq
  %v118 = vshrl.u32 %v117, 7
  %v119 = vadd.s32 %v118, 48
  %120 = vset.pattern.permute.xlu0 %v119
  %121 = vperm.xlu0 %120, %v65
  %v122 = vpop.permute.xlu0 %121
  %v123 = vlaneseq
  %v124 = vshrl.u32 %v123, 7
  %v125 = vadd.s32 %v124, 56
  %126 = vset.pattern.permute.xlu0 %v125
  %127 = vperm.xlu0 %126, %v65
  %v128 = vpop.permute.xlu0 %127
  %v129 = vlaneseq
  %v130 = vshrl.u32 %v129, 7
  %v131 = vadd.s32 %v130, 64
  %132 = vset.pattern.permute.xlu0 %v131
  %133 = vperm.xlu0 %132, %v65
  %v134 = vpop.permute.xlu0 %133
  %v135 = vlaneseq
  %v136 = vshrl.u32 %v135, 7
  %v137 = vadd.s32 %v136, 72
  %138 = vset.pattern.permute.xlu0 %v137
  %139 = vperm.xlu0 %138, %v65
  %v140 = vpop.permute.xlu0 %139
  %v141 = vlaneseq
  %v142 = vshrl.u32 %v141, 7
  %v143 = vadd.s32 %v142, 80
  %144 = vset.pattern.permute.xlu0 %v143
  %145 = vperm.xlu0 %144, %v65
  %v146 = vpop.permute.xlu0 %145
  %v147 = vlaneseq
  %v148 = vshrl.u32 %v147, 7
  %v149 = vadd.s32 %v148, 88
  %150 = vset.pattern.permute.xlu0 %v149
  %151 = vperm.xlu0 %150, %v65
  %v152 = vpop.permute.xlu0 %151
  %v153 = vlaneseq
  %v154 = vshrl.u32 %v153, 7
  %v155 = vadd.s32 %v154, 96
  %156 = vset.pattern.permute.xlu0 %v155
  %157 = vperm.xlu0 %156, %v65
  %v158 = vpop.permute.xlu0 %157
  %v159 = vlaneseq
  %v160 = vshrl.u32 %v159, 7
  %v161 = vadd.s32 %v160, 104
  %162 = vset.pattern.permute.xlu0 %v161
  %163 = vperm.xlu0 %162, %v65
  %v164 = vpop.permute.xlu0 %163
  %v165 = vlaneseq
  %v166 = vshrl.u32 %v165, 7
  %v167 = vadd.s32 %v166, 112
  %168 = vset.pattern.permute.xlu0 %v167
  %169 = vperm.xlu0 %168, %v65
  %v170 = vpop.permute.xlu0 %169
  %v171 = vlaneseq
  %v172 = vshrl.u32 %v171, 7
  %v173 = vadd.s32 %v172, 120
  %174 = vset.pattern.permute.xlu0 %v173
  %175 = vperm.xlu0 %174, %v65
  %v176 = vpop.permute.xlu0 %175
  %v177 = vlaneseq
  %v178 = vshrl.u32 %v177, 7
  %180 = vset.pattern.permute.xlu0 %v178
  %181 = vperm.xlu0 %180, %v66
  %v182 = vpop.permute.xlu0 %181
  %v183 = vlaneseq
  %v184 = vshrl.u32 %v183, 7
  %v185 = vadd.s32 %v184, 8
  %186 = vset.pattern.permute.xlu0 %v185
  %187 = vperm.xlu0 %186, %v66
  %v188 = vpop.permute.xlu0 %187
  %v189 = vlaneseq
  %v190 = vshrl.u32 %v189, 7
  %v191 = vadd.s32 %v190, 16
  %192 = vset.pattern.permute.xlu0 %v191
  %193 = vperm.xlu0 %192, %v66
  %v194 = vpop.permute.xlu0 %193
  %v195 = vlaneseq
  %v196 = vshrl.u32 %v195, 7
  %v197 = vadd.s32 %v196, 24
  %198 = vset.pattern.permute.xlu0 %v197
  %199 = vperm.xlu0 %198, %v66
  %v200 = vpop.permute.xlu0 %199
  %v201 = vlaneseq
  %v202 = vshrl.u32 %v201, 7
  %v203 = vadd.s32 %v202, 32
  %204 = vset.pattern.permute.xlu0 %v203
  %205 = vperm.xlu0 %204, %v66
  %v206 = vpop.permute.xlu0 %205
  %v207 = vlaneseq
  %v208 = vshrl.u32 %v207, 7
  %v209 = vadd.s32 %v208, 40
  %210 = vset.pattern.permute.xlu0 %v209
  %211 = vperm.xlu0 %210, %v66
  %v212 = vpop.permute.xlu0 %211
  %v213 = vlaneseq
  %v214 = vshrl.u32 %v213, 7
  %v215 = vadd.s32 %v214, 48
  %216 = vset.pattern.permute.xlu0 %v215
  %217 = vperm.xlu0 %216, %v66
  %v218 = vpop.permute.xlu0 %217
  %v219 = vlaneseq
  %v220 = vshrl.u32 %v219, 7
  %v221 = vadd.s32 %v220, 56
  %222 = vset.pattern.permute.xlu0 %v221
  %223 = vperm.xlu0 %222, %v66
  %v224 = vpop.permute.xlu0 %223
  %v225 = vlaneseq
  %v226 = vshrl.u32 %v225, 7
  %v227 = vadd.s32 %v226, 64
  %228 = vset.pattern.permute.xlu0 %v227
  %229 = vperm.xlu0 %228, %v66
  %v230 = vpop.permute.xlu0 %229
  %v231 = vlaneseq
  %v232 = vshrl.u32 %v231, 7
  %v233 = vadd.s32 %v232, 72
  %234 = vset.pattern.permute.xlu0 %v233
  %235 = vperm.xlu0 %234, %v66
  %v236 = vpop.permute.xlu0 %235
  %v237 = vlaneseq
  %v238 = vshrl.u32 %v237, 7
  %v239 = vadd.s32 %v238, 80
  %240 = vset.pattern.permute.xlu0 %v239
  %241 = vperm.xlu0 %240, %v66
  %v242 = vpop.permute.xlu0 %241
  %v243 = vlaneseq
  %v244 = vshrl.u32 %v243, 7
  %v245 = vadd.s32 %v244, 88
  %246 = vset.pattern.permute.xlu0 %v245
  %247 = vperm.xlu0 %246, %v66
  %v248 = vpop.permute.xlu0 %247
  %v249 = vlaneseq
  %v250 = vshrl.u32 %v249, 7
  %v251 = vadd.s32 %v250, 96
  %252 = vset.pattern.permute.xlu0 %v251
  %253 = vperm.xlu0 %252, %v66
  %v254 = vpop.permute.xlu0 %253
  %v255 = vlaneseq
  %v256 = vshrl.u32 %v255, 7
  %v257 = vadd.s32 %v256, 104
  %258 = vset.pattern.permute.xlu0 %v257
  %259 = vperm.xlu0 %258, %v66
  %v260 = vpop.permute.xlu0 %259
  %v261 = vlaneseq
  %v262 = vshrl.u32 %v261, 7
  %v263 = vadd.s32 %v262, 112
  %264 = vset.pattern.permute.xlu0 %v263
  %265 = vperm.xlu0 %264, %v66
  %v266 = vpop.permute.xlu0 %265
  %v267 = vlaneseq
  %v268 = vshrl.u32 %v267, 7
  %v269 = vadd.s32 %v268, 120
  %270 = vset.pattern.permute.xlu0 %v269
  %271 = vperm.xlu0 %270, %v66
  %v272 = vpop.permute.xlu0 %271
  %v273 = vlaneseq
  %v274 = vshrl.u32 %v273, 7
  %276 = vset.pattern.permute.xlu0 %v274
  %277 = vperm.xlu0 %276, %v67
  %v278 = vpop.permute.xlu0 %277
  %v279 = vlaneseq
  %v280 = vshrl.u32 %v279, 7
  %v281 = vadd.s32 %v280, 8
  %282 = vset.pattern.permute.xlu0 %v281
  %283 = vperm.xlu0 %282, %v67
  %v284 = vpop.permute.xlu0 %283
  %v285 = vlaneseq
  %v286 = vshrl.u32 %v285, 7
  %v287 = vadd.s32 %v286, 16
  %288 = vset.pattern.permute.xlu0 %v287
  %289 = vperm.xlu0 %288, %v67
  %v290 = vpop.permute.xlu0 %289
  %v291 = vlaneseq
  %v292 = vshrl.u32 %v291, 7
  %v293 = vadd.s32 %v292, 24
  %294 = vset.pattern.permute.xlu0 %v293
  %295 = vperm.xlu0 %294, %v67
  %v296 = vpop.permute.xlu0 %295
  %v297 = vlaneseq
  %v298 = vshrl.u32 %v297, 7
  %v299 = vadd.s32 %v298, 32
  %300 = vset.pattern.permute.xlu0 %v299
  %301 = vperm.xlu0 %300, %v67
  %v302 = vpop.permute.xlu0 %301
  %v303 = vlaneseq
  %v304 = vshrl.u32 %v303, 7
  %v305 = vadd.s32 %v304, 40
  %306 = vset.pattern.permute.xlu0 %v305
  %307 = vperm.xlu0 %306, %v67
  %v308 = vpop.permute.xlu0 %307
  %v309 = vlaneseq
  %v310 = vshrl.u32 %v309, 7
  %v311 = vadd.s32 %v310, 48
  %312 = vset.pattern.permute.xlu0 %v311
  %313 = vperm.xlu0 %312, %v67
  %v314 = vpop.permute.xlu0 %313
  %v315 = vlaneseq
  %v316 = vshrl.u32 %v315, 7
  %v317 = vadd.s32 %v316, 56
  %318 = vset.pattern.permute.xlu0 %v317
  %319 = vperm.xlu0 %318, %v67
  %v320 = vpop.permute.xlu0 %319
  %v321 = vlaneseq
  %v322 = vshrl.u32 %v321, 7
  %v323 = vadd.s32 %v322, 64
  %324 = vset.pattern.permute.xlu0 %v323
  %325 = vperm.xlu0 %324, %v67
  %v326 = vpop.permute.xlu0 %325
  %v327 = vlaneseq
  %v328 = vshrl.u32 %v327, 7
  %v329 = vadd.s32 %v328, 72
  %330 = vset.pattern.permute.xlu0 %v329
  %331 = vperm.xlu0 %330, %v67
  %v332 = vpop.permute.xlu0 %331
  %v333 = vlaneseq
  %v334 = vshrl.u32 %v333, 7
  %v335 = vadd.s32 %v334, 80
  %336 = vset.pattern.permute.xlu0 %v335
  %337 = vperm.xlu0 %336, %v67
  %v338 = vpop.permute.xlu0 %337
  %v339 = vlaneseq
  %v340 = vshrl.u32 %v339, 7
  %v341 = vadd.s32 %v340, 88
  %342 = vset.pattern.permute.xlu0 %v341
  %343 = vperm.xlu0 %342, %v67
  %v344 = vpop.permute.xlu0 %343
  %v345 = vlaneseq
  %v346 = vshrl.u32 %v345, 7
  %v347 = vadd.s32 %v346, 96
  %348 = vset.pattern.permute.xlu0 %v347
  %349 = vperm.xlu0 %348, %v67
  %v350 = vpop.permute.xlu0 %349
  %v351 = vlaneseq
  %v352 = vshrl.u32 %v351, 7
  %v353 = vadd.s32 %v352, 104
  %354 = vset.pattern.permute.xlu0 %v353
  %355 = vperm.xlu0 %354, %v67
  %v356 = vpop.permute.xlu0 %355
  %v357 = vlaneseq
  %v358 = vshrl.u32 %v357, 7
  %v359 = vadd.s32 %v358, 112
  %360 = vset.pattern.permute.xlu0 %v359
  %361 = vperm.xlu0 %360, %v67
  %v362 = vpop.permute.xlu0 %361
  %v363 = vlaneseq
  %v364 = vshrl.u32 %v363, 7
  %v365 = vadd.s32 %v364, 120
  %366 = vset.pattern.permute.xlu0 %v365
  %367 = vperm.xlu0 %366, %v67
  %v368 = vpop.permute.xlu0 %367
  %v369 = vlaneseq
  %v370 = vshrl.u32 %v369, 7
  %372 = vset.pattern.permute.xlu0 %v370
  %373 = vperm.xlu0 %372, %v68
  %v374 = vpop.permute.xlu0 %373
  %v375 = vlaneseq
  %v376 = vshrl.u32 %v375, 7
  %v377 = vadd.s32 %v376, 8
  %378 = vset.pattern.permute.xlu0 %v377
  %379 = vperm.xlu0 %378, %v68
  %v380 = vpop.permute.xlu0 %379
  %v381 = vlaneseq
  %v382 = vshrl.u32 %v381, 7
  %v383 = vadd.s32 %v382, 16
  %384 = vset.pattern.permute.xlu0 %v383
  %385 = vperm.xlu0 %384, %v68
  %v386 = vpop.permute.xlu0 %385
  %v387 = vlaneseq
  %v388 = vshrl.u32 %v387, 7
  %v389 = vadd.s32 %v388, 24
  %390 = vset.pattern.permute.xlu0 %v389
  %391 = vperm.xlu0 %390, %v68
  %v392 = vpop.permute.xlu0 %391
  %v393 = vlaneseq
  %v394 = vshrl.u32 %v393, 7
  %v395 = vadd.s32 %v394, 32
  %396 = vset.pattern.permute.xlu0 %v395
  %397 = vperm.xlu0 %396, %v68
  %v398 = vpop.permute.xlu0 %397
  %v399 = vlaneseq
  %v400 = vshrl.u32 %v399, 7
  %v401 = vadd.s32 %v400, 40
  %402 = vset.pattern.permute.xlu0 %v401
  %403 = vperm.xlu0 %402, %v68
  %v404 = vpop.permute.xlu0 %403
  %v405 = vlaneseq
  %v406 = vshrl.u32 %v405, 7
  %v407 = vadd.s32 %v406, 48
  %408 = vset.pattern.permute.xlu0 %v407
  %409 = vperm.xlu0 %408, %v68
  %v410 = vpop.permute.xlu0 %409
  %v411 = vlaneseq
  %v412 = vshrl.u32 %v411, 7
  %v413 = vadd.s32 %v412, 56
  %414 = vset.pattern.permute.xlu0 %v413
  %415 = vperm.xlu0 %414, %v68
  %v416 = vpop.permute.xlu0 %415
  %v417 = vlaneseq
  %v418 = vshrl.u32 %v417, 7
  %v419 = vadd.s32 %v418, 64
  %420 = vset.pattern.permute.xlu0 %v419
  %421 = vperm.xlu0 %420, %v68
  %v422 = vpop.permute.xlu0 %421
  %v423 = vlaneseq
  %v424 = vshrl.u32 %v423, 7
  %v425 = vadd.s32 %v424, 72
  %426 = vset.pattern.permute.xlu0 %v425
  %427 = vperm.xlu0 %426, %v68
  %v428 = vpop.permute.xlu0 %427
  %v429 = vlaneseq
  %v430 = vshrl.u32 %v429, 7
  %v431 = vadd.s32 %v430, 80
  %432 = vset.pattern.permute.xlu0 %v431
  %433 = vperm.xlu0 %432, %v68
  %v434 = vpop.permute.xlu0 %433
  %v435 = vlaneseq
  %v436 = vshrl.u32 %v435, 7
  %v437 = vadd.s32 %v436, 88
  %438 = vset.pattern.permute.xlu0 %v437
  %439 = vperm.xlu0 %438, %v68
  %v440 = vpop.permute.xlu0 %439
  %v441 = vlaneseq
  %v442 = vshrl.u32 %v441, 7
  %v443 = vadd.s32 %v442, 96
  %444 = vset.pattern.permute.xlu0 %v443
  %445 = vperm.xlu0 %444, %v68
  %v446 = vpop.permute.xlu0 %445
  %v447 = vlaneseq
  %v448 = vshrl.u32 %v447, 7
  %v449 = vadd.s32 %v448, 104
  %450 = vset.pattern.permute.xlu0 %v449
  %451 = vperm.xlu0 %450, %v68
  %v452 = vpop.permute.xlu0 %451
  %v453 = vlaneseq
  %v454 = vshrl.u32 %v453, 7
  %v455 = vadd.s32 %v454, 112
  %456 = vset.pattern.permute.xlu0 %v455
  %457 = vperm.xlu0 %456, %v68
  %v458 = vpop.permute.xlu0 %457
  %v459 = vlaneseq
  %v460 = vshrl.u32 %v459, 7
  %v461 = vadd.s32 %v460, 120
  %462 = vset.pattern.permute.xlu0 %v461
  %463 = vperm.xlu0 %462, %v68
  %v464 = vpop.permute.xlu0 %463
  %v465 = vlaneseq
  %v466 = vshrl.u32 %v465, 7
  %468 = vset.pattern.permute.xlu0 %v466
  %469 = vperm.xlu0 %468, %v69
  %v470 = vpop.permute.xlu0 %469
  %v471 = vlaneseq
  %v472 = vshrl.u32 %v471, 7
  %v473 = vadd.s32 %v472, 8
  %474 = vset.pattern.permute.xlu0 %v473
  %475 = vperm.xlu0 %474, %v69
  %v476 = vpop.permute.xlu0 %475
  %v477 = vlaneseq
  %v478 = vshrl.u32 %v477, 7
  %v479 = vadd.s32 %v478, 16
  %480 = vset.pattern.permute.xlu0 %v479
  %481 = vperm.xlu0 %480, %v69
  %v482 = vpop.permute.xlu0 %481
  %v483 = vlaneseq
  %v484 = vshrl.u32 %v483, 7
  %v485 = vadd.s32 %v484, 24
  %486 = vset.pattern.permute.xlu0 %v485
  %487 = vperm.xlu0 %486, %v69
  %v488 = vpop.permute.xlu0 %487
  %v489 = vlaneseq
  %v490 = vshrl.u32 %v489, 7
  %v491 = vadd.s32 %v490, 32
  %492 = vset.pattern.permute.xlu0 %v491
  %493 = vperm.xlu0 %492, %v69
  %v494 = vpop.permute.xlu0 %493
  %v495 = vlaneseq
  %v496 = vshrl.u32 %v495, 7
  %v497 = vadd.s32 %v496, 40
  %498 = vset.pattern.permute.xlu0 %v497
  %499 = vperm.xlu0 %498, %v69
  %v500 = vpop.permute.xlu0 %499
  %v501 = vlaneseq
  %v502 = vshrl.u32 %v501, 7
  %v503 = vadd.s32 %v502, 48
  %504 = vset.pattern.permute.xlu0 %v503
  %505 = vperm.xlu0 %504, %v69
  %v506 = vpop.permute.xlu0 %505
  %v507 = vlaneseq
  %v508 = vshrl.u32 %v507, 7
  %v509 = vadd.s32 %v508, 56
  %510 = vset.pattern.permute.xlu0 %v509
  %511 = vperm.xlu0 %510, %v69
  %v512 = vpop.permute.xlu0 %511
  %v513 = vlaneseq
  %v514 = vshrl.u32 %v513, 7
  %v515 = vadd.s32 %v514, 64
  %516 = vset.pattern.permute.xlu0 %v515
  %517 = vperm.xlu0 %516, %v69
  %v518 = vpop.permute.xlu0 %517
  %v519 = vlaneseq
  %v520 = vshrl.u32 %v519, 7
  %v521 = vadd.s32 %v520, 72
  %522 = vset.pattern.permute.xlu0 %v521
  %523 = vperm.xlu0 %522, %v69
  %v524 = vpop.permute.xlu0 %523
  %v525 = vlaneseq
  %v526 = vshrl.u32 %v525, 7
  %v527 = vadd.s32 %v526, 80
  %528 = vset.pattern.permute.xlu0 %v527
  %529 = vperm.xlu0 %528, %v69
  %v530 = vpop.permute.xlu0 %529
  %v531 = vlaneseq
  %v532 = vshrl.u32 %v531, 7
  %v533 = vadd.s32 %v532, 88
  %534 = vset.pattern.permute.xlu0 %v533
  %535 = vperm.xlu0 %534, %v69
  %v536 = vpop.permute.xlu0 %535
  %v537 = vlaneseq
  %v538 = vshrl.u32 %v537, 7
  %v539 = vadd.s32 %v538, 96
  %540 = vset.pattern.permute.xlu0 %v539
  %541 = vperm.xlu0 %540, %v69
  %v542 = vpop.permute.xlu0 %541
  %v543 = vlaneseq
  %v544 = vshrl.u32 %v543, 7
  %v545 = vadd.s32 %v544, 104
  %546 = vset.pattern.permute.xlu0 %v545
  %547 = vperm.xlu0 %546, %v69
  %v548 = vpop.permute.xlu0 %547
  %v549 = vlaneseq
  %v550 = vshrl.u32 %v549, 7
  %v551 = vadd.s32 %v550, 112
  %552 = vset.pattern.permute.xlu0 %v551
  %553 = vperm.xlu0 %552, %v69
  %v554 = vpop.permute.xlu0 %553
  %v555 = vlaneseq
  %v556 = vshrl.u32 %v555, 7
  %v557 = vadd.s32 %v556, 120
  %558 = vset.pattern.permute.xlu0 %v557
  %559 = vperm.xlu0 %558, %v69
  %v560 = vpop.permute.xlu0 %559
  %v561 = vlaneseq
  %v562 = vshrl.u32 %v561, 7
  %564 = vset.pattern.permute.xlu0 %v562
  %565 = vperm.xlu0 %564, %v70
  %v566 = vpop.permute.xlu0 %565
  %v567 = vlaneseq
  %v568 = vshrl.u32 %v567, 7
  %v569 = vadd.s32 %v568, 8
  %570 = vset.pattern.permute.xlu0 %v569
  %571 = vperm.xlu0 %570, %v70
  %v572 = vpop.permute.xlu0 %571
  %v573 = vlaneseq
  %v574 = vshrl.u32 %v573, 7
  %v575 = vadd.s32 %v574, 16
  %576 = vset.pattern.permute.xlu0 %v575
  %577 = vperm.xlu0 %576, %v70
  %v578 = vpop.permute.xlu0 %577
  %v579 = vlaneseq
  %v580 = vshrl.u32 %v579, 7
  %v581 = vadd.s32 %v580, 24
  %582 = vset.pattern.permute.xlu0 %v581
  %583 = vperm.xlu0 %582, %v70
  %v584 = vpop.permute.xlu0 %583
  %v585 = vlaneseq
  %v586 = vshrl.u32 %v585, 7
  %v587 = vadd.s32 %v586, 32
  %588 = vset.pattern.permute.xlu0 %v587
  %589 = vperm.xlu0 %588, %v70
  %v590 = vpop.permute.xlu0 %589
  %v591 = vlaneseq
  %v592 = vshrl.u32 %v591, 7
  %v593 = vadd.s32 %v592, 40
  %594 = vset.pattern.permute.xlu0 %v593
  %595 = vperm.xlu0 %594, %v70
  %v596 = vpop.permute.xlu0 %595
  %v597 = vlaneseq
  %v598 = vshrl.u32 %v597, 7
  %v599 = vadd.s32 %v598, 48
  %600 = vset.pattern.permute.xlu0 %v599
  %601 = vperm.xlu0 %600, %v70
  %v602 = vpop.permute.xlu0 %601
  %v603 = vlaneseq
  %v604 = vshrl.u32 %v603, 7
  %v605 = vadd.s32 %v604, 56
  %606 = vset.pattern.permute.xlu0 %v605
  %607 = vperm.xlu0 %606, %v70
  %v608 = vpop.permute.xlu0 %607
  %v609 = vlaneseq
  %v610 = vshrl.u32 %v609, 7
  %v611 = vadd.s32 %v610, 64
  %612 = vset.pattern.permute.xlu0 %v611
  %613 = vperm.xlu0 %612, %v70
  %v614 = vpop.permute.xlu0 %613
  %v615 = vlaneseq
  %v616 = vshrl.u32 %v615, 7
  %v617 = vadd.s32 %v616, 72
  %618 = vset.pattern.permute.xlu0 %v617
  %619 = vperm.xlu0 %618, %v70
  %v620 = vpop.permute.xlu0 %619
  %v621 = vlaneseq
  %v622 = vshrl.u32 %v621, 7
  %v623 = vadd.s32 %v622, 80
  %624 = vset.pattern.permute.xlu0 %v623
  %625 = vperm.xlu0 %624, %v70
  %v626 = vpop.permute.xlu0 %625
  %v627 = vlaneseq
  %v628 = vshrl.u32 %v627, 7
  %v629 = vadd.s32 %v628, 88
  %630 = vset.pattern.permute.xlu0 %v629
  %631 = vperm.xlu0 %630, %v70
  %v632 = vpop.permute.xlu0 %631
  %v633 = vlaneseq
  %v634 = vshrl.u32 %v633, 7
  %v635 = vadd.s32 %v634, 96
  %636 = vset.pattern.permute.xlu0 %v635
  %637 = vperm.xlu0 %636, %v70
  %v638 = vpop.permute.xlu0 %637
  %v639 = vlaneseq
  %v640 = vshrl.u32 %v639, 7
  %v641 = vadd.s32 %v640, 104
  %642 = vset.pattern.permute.xlu0 %v641
  %643 = vperm.xlu0 %642, %v70
  %v644 = vpop.permute.xlu0 %643
  %v645 = vlaneseq
  %v646 = vshrl.u32 %v645, 7
  %v647 = vadd.s32 %v646, 112
  %648 = vset.pattern.permute.xlu0 %v647
  %649 = vperm.xlu0 %648, %v70
  %v650 = vpop.permute.xlu0 %649
  %v651 = vlaneseq
  %v652 = vshrl.u32 %v651, 7
  %v653 = vadd.s32 %v652, 120
  %654 = vset.pattern.permute.xlu0 %v653
  %655 = vperm.xlu0 %654, %v70
  %v656 = vpop.permute.xlu0 %655
  %v657 = vlaneseq
  %v658 = vshrl.u32 %v657, 7
  %660 = vset.pattern.permute.xlu0 %v658
  %661 = vperm.xlu0 %660, %v71
  %v662 = vpop.permute.xlu0 %661
  %v663 = vlaneseq
  %v664 = vshrl.u32 %v663, 7
  %v665 = vadd.s32 %v664, 8
  %666 = vset.pattern.permute.xlu0 %v665
  %667 = vperm.xlu0 %666, %v71
  %v668 = vpop.permute.xlu0 %667
  %v669 = vlaneseq
  %v670 = vshrl.u32 %v669, 7
  %v671 = vadd.s32 %v670, 16
  %672 = vset.pattern.permute.xlu0 %v671
  %673 = vperm.xlu0 %672, %v71
  %v674 = vpop.permute.xlu0 %673
  %v675 = vlaneseq
  %v676 = vshrl.u32 %v675, 7
  %v677 = vadd.s32 %v676, 24
  %678 = vset.pattern.permute.xlu0 %v677
  %679 = vperm.xlu0 %678, %v71
  %v680 = vpop.permute.xlu0 %679
  %v681 = vlaneseq
  %v682 = vshrl.u32 %v681, 7
  %v683 = vadd.s32 %v682, 32
  %684 = vset.pattern.permute.xlu0 %v683
  %685 = vperm.xlu0 %684, %v71
  %v686 = vpop.permute.xlu0 %685
  %v687 = vlaneseq
  %v688 = vshrl.u32 %v687, 7
  %v689 = vadd.s32 %v688, 40
  %690 = vset.pattern.permute.xlu0 %v689
  %691 = vperm.xlu0 %690, %v71
  %v692 = vpop.permute.xlu0 %691
  %v693 = vlaneseq
  %v694 = vshrl.u32 %v693, 7
  %v695 = vadd.s32 %v694, 48
  %696 = vset.pattern.permute.xlu0 %v695
  %697 = vperm.xlu0 %696, %v71
  %v698 = vpop.permute.xlu0 %697
  %v699 = vlaneseq
  %v700 = vshrl.u32 %v699, 7
  %v701 = vadd.s32 %v700, 56
  %702 = vset.pattern.permute.xlu0 %v701
  %703 = vperm.xlu0 %702, %v71
  %v704 = vpop.permute.xlu0 %703
  %v705 = vlaneseq
  %v706 = vshrl.u32 %v705, 7
  %v707 = vadd.s32 %v706, 64
  %708 = vset.pattern.permute.xlu0 %v707
  %709 = vperm.xlu0 %708, %v71
  %v710 = vpop.permute.xlu0 %709
  %v711 = vlaneseq
  %v712 = vshrl.u32 %v711, 7
  %v713 = vadd.s32 %v712, 72
  %714 = vset.pattern.permute.xlu0 %v713
  %715 = vperm.xlu0 %714, %v71
  %v716 = vpop.permute.xlu0 %715
  %v717 = vlaneseq
  %v718 = vshrl.u32 %v717, 7
  %v719 = vadd.s32 %v718, 80
  %720 = vset.pattern.permute.xlu0 %v719
  %721 = vperm.xlu0 %720, %v71
  %v722 = vpop.permute.xlu0 %721
  %v723 = vlaneseq
  %v724 = vshrl.u32 %v723, 7
  %v725 = vadd.s32 %v724, 88
  %726 = vset.pattern.permute.xlu0 %v725
  %727 = vperm.xlu0 %726, %v71
  %v728 = vpop.permute.xlu0 %727
  %v729 = vlaneseq
  %v730 = vshrl.u32 %v729, 7
  %v731 = vadd.s32 %v730, 96
  %732 = vset.pattern.permute.xlu0 %v731
  %733 = vperm.xlu0 %732, %v71
  %v734 = vpop.permute.xlu0 %733
  %v735 = vlaneseq
  %v736 = vshrl.u32 %v735, 7
  %v737 = vadd.s32 %v736, 104
  %738 = vset.pattern.permute.xlu0 %v737
  %739 = vperm.xlu0 %738, %v71
  %v740 = vpop.permute.xlu0 %739
  %v741 = vlaneseq
  %v742 = vshrl.u32 %v741, 7
  %v743 = vadd.s32 %v742, 112
  %744 = vset.pattern.permute.xlu0 %v743
  %745 = vperm.xlu0 %744, %v71
  %v746 = vpop.permute.xlu0 %745
  %v747 = vlaneseq
  %v748 = vshrl.u32 %v747, 7
  %v749 = vadd.s32 %v748, 120
  %750 = vset.pattern.permute.xlu0 %v749
  %751 = vperm.xlu0 %750, %v71
  %v752 = vpop.permute.xlu0 %751
  %v753 = vlaneseq
  %v754 = vshrl.u32 %v753, 7
  %756 = vset.pattern.permute.xlu0 %v754
  %757 = vperm.xlu0 %756, %v72
  %v758 = vpop.permute.xlu0 %757
  %v759 = vlaneseq
  %v760 = vshrl.u32 %v759, 7
  %v761 = vadd.s32 %v760, 8
  %762 = vset.pattern.permute.xlu0 %v761
  %763 = vperm.xlu0 %762, %v72
  %v764 = vpop.permute.xlu0 %763
  %v765 = vlaneseq
  %v766 = vshrl.u32 %v765, 7
  %v767 = vadd.s32 %v766, 16
  %768 = vset.pattern.permute.xlu0 %v767
  %769 = vperm.xlu0 %768, %v72
  %v770 = vpop.permute.xlu0 %769
  %v771 = vlaneseq
  %v772 = vshrl.u32 %v771, 7
  %v773 = vadd.s32 %v772, 24
  %774 = vset.pattern.permute.xlu0 %v773
  %775 = vperm.xlu0 %774, %v72
  %v776 = vpop.permute.xlu0 %775
  %v777 = vlaneseq
  %v778 = vshrl.u32 %v777, 7
  %v779 = vadd.s32 %v778, 32
  %780 = vset.pattern.permute.xlu0 %v779
  %781 = vperm.xlu0 %780, %v72
  %v782 = vpop.permute.xlu0 %781
  %v783 = vlaneseq
  %v784 = vshrl.u32 %v783, 7
  %v785 = vadd.s32 %v784, 40
  %786 = vset.pattern.permute.xlu0 %v785
  %787 = vperm.xlu0 %786, %v72
  %v788 = vpop.permute.xlu0 %787
  %v789 = vlaneseq
  %v790 = vshrl.u32 %v789, 7
  %v791 = vadd.s32 %v790, 48
  %792 = vset.pattern.permute.xlu0 %v791
  %793 = vperm.xlu0 %792, %v72
  %v794 = vpop.permute.xlu0 %793
  %v795 = vlaneseq
  %v796 = vshrl.u32 %v795, 7
  %v797 = vadd.s32 %v796, 56
  %798 = vset.pattern.permute.xlu0 %v797
  %799 = vperm.xlu0 %798, %v72
  %v800 = vpop.permute.xlu0 %799
  %v801 = vlaneseq
  %v802 = vshrl.u32 %v801, 7
  %v803 = vadd.s32 %v802, 64
  %804 = vset.pattern.permute.xlu0 %v803
  %805 = vperm.xlu0 %804, %v72
  %v806 = vpop.permute.xlu0 %805
  %v807 = vlaneseq
  %v808 = vshrl.u32 %v807, 7
  %v809 = vadd.s32 %v808, 72
  %810 = vset.pattern.permute.xlu0 %v809
  %811 = vperm.xlu0 %810, %v72
  %v812 = vpop.permute.xlu0 %811
  %v813 = vlaneseq
  %v814 = vshrl.u32 %v813, 7
  %v815 = vadd.s32 %v814, 80
  %816 = vset.pattern.permute.xlu0 %v815
  %817 = vperm.xlu0 %816, %v72
  %v818 = vpop.permute.xlu0 %817
  %v819 = vlaneseq
  %v820 = vshrl.u32 %v819, 7
  %v821 = vadd.s32 %v820, 88
  %822 = vset.pattern.permute.xlu0 %v821
  %823 = vperm.xlu0 %822, %v72
  %v824 = vpop.permute.xlu0 %823
  %v825 = vlaneseq
  %v826 = vshrl.u32 %v825, 7
  %v827 = vadd.s32 %v826, 96
  %828 = vset.pattern.permute.xlu0 %v827
  %829 = vperm.xlu0 %828, %v72
  %v830 = vpop.permute.xlu0 %829
  %v831 = vlaneseq
  %v832 = vshrl.u32 %v831, 7
  %v833 = vadd.s32 %v832, 104
  %834 = vset.pattern.permute.xlu0 %v833
  %835 = vperm.xlu0 %834, %v72
  %v836 = vpop.permute.xlu0 %835
  %v837 = vlaneseq
  %v838 = vshrl.u32 %v837, 7
  %v839 = vadd.s32 %v838, 112
  %840 = vset.pattern.permute.xlu0 %v839
  %841 = vperm.xlu0 %840, %v72
  %v842 = vpop.permute.xlu0 %841
  %v843 = vlaneseq
  %v844 = vshrl.u32 %v843, 7
  %v845 = vadd.s32 %v844, 120
  %846 = vset.pattern.permute.xlu0 %v845
  %847 = vperm.xlu0 %846, %v72
  %v848 = vpop.permute.xlu0 %847
  %v849 = vlaneseq
  %v850 = vshrl.u32 %v849, 7
  %852 = vset.pattern.permute.xlu0 %v850
  %853 = vperm.xlu0 %852, %v73
  %v854 = vpop.permute.xlu0 %853
  %v855 = vlaneseq
  %v856 = vshrl.u32 %v855, 7
  %v857 = vadd.s32 %v856, 8
  %858 = vset.pattern.permute.xlu0 %v857
  %859 = vperm.xlu0 %858, %v73
  %v860 = vpop.permute.xlu0 %859
  %v861 = vlaneseq
  %v862 = vshrl.u32 %v861, 7
  %v863 = vadd.s32 %v862, 16
  %864 = vset.pattern.permute.xlu0 %v863
  %865 = vperm.xlu0 %864, %v73
  %v866 = vpop.permute.xlu0 %865
  %v867 = vlaneseq
  %v868 = vshrl.u32 %v867, 7
  %v869 = vadd.s32 %v868, 24
  %870 = vset.pattern.permute.xlu0 %v869
  %871 = vperm.xlu0 %870, %v73
  %v872 = vpop.permute.xlu0 %871
  %v873 = vlaneseq
  %v874 = vshrl.u32 %v873, 7
  %v875 = vadd.s32 %v874, 32
  %876 = vset.pattern.permute.xlu0 %v875
  %877 = vperm.xlu0 %876, %v73
  %v878 = vpop.permute.xlu0 %877
  %v879 = vlaneseq
  %v880 = vshrl.u32 %v879, 7
  %v881 = vadd.s32 %v880, 40
  %882 = vset.pattern.permute.xlu0 %v881
  %883 = vperm.xlu0 %882, %v73
  %v884 = vpop.permute.xlu0 %883
  %v885 = vlaneseq
  %v886 = vshrl.u32 %v885, 7
  %v887 = vadd.s32 %v886, 48
  %888 = vset.pattern.permute.xlu0 %v887
  %889 = vperm.xlu0 %888, %v73
  %v890 = vpop.permute.xlu0 %889
  %v891 = vlaneseq
  %v892 = vshrl.u32 %v891, 7
  %v893 = vadd.s32 %v892, 56
  %894 = vset.pattern.permute.xlu0 %v893
  %895 = vperm.xlu0 %894, %v73
  %v896 = vpop.permute.xlu0 %895
  %v897 = vlaneseq
  %v898 = vshrl.u32 %v897, 7
  %v899 = vadd.s32 %v898, 64
  %900 = vset.pattern.permute.xlu0 %v899
  %901 = vperm.xlu0 %900, %v73
  %v902 = vpop.permute.xlu0 %901
  %v903 = vlaneseq
  %v904 = vshrl.u32 %v903, 7
  %v905 = vadd.s32 %v904, 72
  %906 = vset.pattern.permute.xlu0 %v905
  %907 = vperm.xlu0 %906, %v73
  %v908 = vpop.permute.xlu0 %907
  %v909 = vlaneseq
  %v910 = vshrl.u32 %v909, 7
  %v911 = vadd.s32 %v910, 80
  %912 = vset.pattern.permute.xlu0 %v911
  %913 = vperm.xlu0 %912, %v73
  %v914 = vpop.permute.xlu0 %913
  %v915 = vlaneseq
  %v916 = vshrl.u32 %v915, 7
  %v917 = vadd.s32 %v916, 88
  %918 = vset.pattern.permute.xlu0 %v917
  %919 = vperm.xlu0 %918, %v73
  %v920 = vpop.permute.xlu0 %919
  %v921 = vlaneseq
  %v922 = vshrl.u32 %v921, 7
  %v923 = vadd.s32 %v922, 96
  %924 = vset.pattern.permute.xlu0 %v923
  %925 = vperm.xlu0 %924, %v73
  %v926 = vpop.permute.xlu0 %925
  %v927 = vlaneseq
  %v928 = vshrl.u32 %v927, 7
  %v929 = vadd.s32 %v928, 104
  %930 = vset.pattern.permute.xlu0 %v929
  %931 = vperm.xlu0 %930, %v73
  %v932 = vpop.permute.xlu0 %931
  %v933 = vlaneseq
  %v934 = vshrl.u32 %v933, 7
  %v935 = vadd.s32 %v934, 112
  %936 = vset.pattern.permute.xlu0 %v935
  %937 = vperm.xlu0 %936, %v73
  %v938 = vpop.permute.xlu0 %937
  %v939 = vlaneseq
  %v940 = vshrl.u32 %v939, 7
  %v941 = vadd.s32 %v940, 120
  %942 = vset.pattern.permute.xlu0 %v941
  %943 = vperm.xlu0 %942, %v73
  %v944 = vpop.permute.xlu0 %943
  %v945 = vlaneseq
  %v946 = vshrl.u32 %v945, 7
  %948 = vset.pattern.permute.xlu0 %v946
  %949 = vperm.xlu0 %948, %v74
  %v950 = vpop.permute.xlu0 %949
  %v951 = vlaneseq
  %v952 = vshrl.u32 %v951, 7
  %v953 = vadd.s32 %v952, 8
  %954 = vset.pattern.permute.xlu0 %v953
  %955 = vperm.xlu0 %954, %v74
  %v956 = vpop.permute.xlu0 %955
  %v957 = vlaneseq
  %v958 = vshrl.u32 %v957, 7
  %v959 = vadd.s32 %v958, 16
  %960 = vset.pattern.permute.xlu0 %v959
  %961 = vperm.xlu0 %960, %v74
  %v962 = vpop.permute.xlu0 %961
  %v963 = vlaneseq
  %v964 = vshrl.u32 %v963, 7
  %v965 = vadd.s32 %v964, 24
  %966 = vset.pattern.permute.xlu0 %v965
  %967 = vperm.xlu0 %966, %v74
  %v968 = vpop.permute.xlu0 %967
  %v969 = vlaneseq
  %v970 = vshrl.u32 %v969, 7
  %v971 = vadd.s32 %v970, 32
  %972 = vset.pattern.permute.xlu0 %v971
  %973 = vperm.xlu0 %972, %v74
  %v974 = vpop.permute.xlu0 %973
  %v975 = vlaneseq
  %v976 = vshrl.u32 %v975, 7
  %v977 = vadd.s32 %v976, 40
  %978 = vset.pattern.permute.xlu0 %v977
  %979 = vperm.xlu0 %978, %v74
  %v980 = vpop.permute.xlu0 %979
  %v981 = vlaneseq
  %v982 = vshrl.u32 %v981, 7
  %v983 = vadd.s32 %v982, 48
  %984 = vset.pattern.permute.xlu0 %v983
  %985 = vperm.xlu0 %984, %v74
  %v986 = vpop.permute.xlu0 %985
  %v987 = vlaneseq
  %v988 = vshrl.u32 %v987, 7
  %v989 = vadd.s32 %v988, 56
  %990 = vset.pattern.permute.xlu0 %v989
  %991 = vperm.xlu0 %990, %v74
  %v992 = vpop.permute.xlu0 %991
  %v993 = vlaneseq
  %v994 = vshrl.u32 %v993, 7
  %v995 = vadd.s32 %v994, 64
  %996 = vset.pattern.permute.xlu0 %v995
  %997 = vperm.xlu0 %996, %v74
  %v998 = vpop.permute.xlu0 %997
  %v999 = vlaneseq
  %v1000 = vshrl.u32 %v999, 7
  %v1001 = vadd.s32 %v1000, 72
  %1002 = vset.pattern.permute.xlu0 %v1001
  %1003 = vperm.xlu0 %1002, %v74
  %v1004 = vpop.permute.xlu0 %1003
  %v1005 = vlaneseq
  %v1006 = vshrl.u32 %v1005, 7
  %v1007 = vadd.s32 %v1006, 80
  %1008 = vset.pattern.permute.xlu0 %v1007
  %1009 = vperm.xlu0 %1008, %v74
  %v1010 = vpop.permute.xlu0 %1009
  %v1011 = vlaneseq
  %v1012 = vshrl.u32 %v1011, 7
  %v1013 = vadd.s32 %v1012, 88
  %1014 = vset.pattern.permute.xlu0 %v1013
  %1015 = vperm.xlu0 %1014, %v74
  %v1016 = vpop.permute.xlu0 %1015
  %v1017 = vlaneseq
  %v1018 = vshrl.u32 %v1017, 7
  %v1019 = vadd.s32 %v1018, 96
  %1020 = vset.pattern.permute.xlu0 %v1019
  %1021 = vperm.xlu0 %1020, %v74
  %v1022 = vpop.permute.xlu0 %1021
  %v1023 = vlaneseq
  %v1024 = vshrl.u32 %v1023, 7
  %v1025 = vadd.s32 %v1024, 104
  %1026 = vset.pattern.permute.xlu0 %v1025
  %1027 = vperm.xlu0 %1026, %v74
  %v1028 = vpop.permute.xlu0 %1027
  %v1029 = vlaneseq
  %v1030 = vshrl.u32 %v1029, 7
  %v1031 = vadd.s32 %v1030, 112
  %1032 = vset.pattern.permute.xlu0 %v1031
  %1033 = vperm.xlu0 %1032, %v74
  %v1034 = vpop.permute.xlu0 %1033
  %v1035 = vlaneseq
  %v1036 = vshrl.u32 %v1035, 7
  %v1037 = vadd.s32 %v1036, 120
  %1038 = vset.pattern.permute.xlu0 %v1037
  %1039 = vperm.xlu0 %1038, %v74
  %v1040 = vpop.permute.xlu0 %1039
  %v1041 = vlaneseq
  %v1042 = vshrl.u32 %v1041, 7
  %1044 = vset.pattern.permute.xlu0 %v1042
  %1045 = vperm.xlu0 %1044, %v75
  %v1046 = vpop.permute.xlu0 %1045
  %v1047 = vlaneseq
  %v1048 = vshrl.u32 %v1047, 7
  %v1049 = vadd.s32 %v1048, 8
  %1050 = vset.pattern.permute.xlu0 %v1049
  %1051 = vperm.xlu0 %1050, %v75
  %v1052 = vpop.permute.xlu0 %1051
  %v1053 = vlaneseq
  %v1054 = vshrl.u32 %v1053, 7
  %v1055 = vadd.s32 %v1054, 16
  %1056 = vset.pattern.permute.xlu0 %v1055
  %1057 = vperm.xlu0 %1056, %v75
  %v1058 = vpop.permute.xlu0 %1057
  %v1059 = vlaneseq
  %v1060 = vshrl.u32 %v1059, 7
  %v1061 = vadd.s32 %v1060, 24
  %1062 = vset.pattern.permute.xlu0 %v1061
  %1063 = vperm.xlu0 %1062, %v75
  %v1064 = vpop.permute.xlu0 %1063
  %v1065 = vlaneseq
  %v1066 = vshrl.u32 %v1065, 7
  %v1067 = vadd.s32 %v1066, 32
  %1068 = vset.pattern.permute.xlu0 %v1067
  %1069 = vperm.xlu0 %1068, %v75
  %v1070 = vpop.permute.xlu0 %1069
  %v1071 = vlaneseq
  %v1072 = vshrl.u32 %v1071, 7
  %v1073 = vadd.s32 %v1072, 40
  %1074 = vset.pattern.permute.xlu0 %v1073
  %1075 = vperm.xlu0 %1074, %v75
  %v1076 = vpop.permute.xlu0 %1075
  %v1077 = vlaneseq
  %v1078 = vshrl.u32 %v1077, 7
  %v1079 = vadd.s32 %v1078, 48
  %1080 = vset.pattern.permute.xlu0 %v1079
  %1081 = vperm.xlu0 %1080, %v75
  %v1082 = vpop.permute.xlu0 %1081
  %v1083 = vlaneseq
  %v1084 = vshrl.u32 %v1083, 7
  %v1085 = vadd.s32 %v1084, 56
  %1086 = vset.pattern.permute.xlu0 %v1085
  %1087 = vperm.xlu0 %1086, %v75
  %v1088 = vpop.permute.xlu0 %1087
  %v1089 = vlaneseq
  %v1090 = vshrl.u32 %v1089, 7
  %v1091 = vadd.s32 %v1090, 64
  %1092 = vset.pattern.permute.xlu0 %v1091
  %1093 = vperm.xlu0 %1092, %v75
  %v1094 = vpop.permute.xlu0 %1093
  %v1095 = vlaneseq
  %v1096 = vshrl.u32 %v1095, 7
  %v1097 = vadd.s32 %v1096, 72
  %1098 = vset.pattern.permute.xlu0 %v1097
  %1099 = vperm.xlu0 %1098, %v75
  %v1100 = vpop.permute.xlu0 %1099
  %v1101 = vlaneseq
  %v1102 = vshrl.u32 %v1101, 7
  %v1103 = vadd.s32 %v1102, 80
  %1104 = vset.pattern.permute.xlu0 %v1103
  %1105 = vperm.xlu0 %1104, %v75
  %v1106 = vpop.permute.xlu0 %1105
  %v1107 = vlaneseq
  %v1108 = vshrl.u32 %v1107, 7
  %v1109 = vadd.s32 %v1108, 88
  %1110 = vset.pattern.permute.xlu0 %v1109
  %1111 = vperm.xlu0 %1110, %v75
  %v1112 = vpop.permute.xlu0 %1111
  %v1113 = vlaneseq
  %v1114 = vshrl.u32 %v1113, 7
  %v1115 = vadd.s32 %v1114, 96
  %1116 = vset.pattern.permute.xlu0 %v1115
  %1117 = vperm.xlu0 %1116, %v75
  %v1118 = vpop.permute.xlu0 %1117
  %v1119 = vlaneseq
  %v1120 = vshrl.u32 %v1119, 7
  %v1121 = vadd.s32 %v1120, 104
  %1122 = vset.pattern.permute.xlu0 %v1121
  %1123 = vperm.xlu0 %1122, %v75
  %v1124 = vpop.permute.xlu0 %1123
  %v1125 = vlaneseq
  %v1126 = vshrl.u32 %v1125, 7
  %v1127 = vadd.s32 %v1126, 112
  %1128 = vset.pattern.permute.xlu0 %v1127
  %1129 = vperm.xlu0 %1128, %v75
  %v1130 = vpop.permute.xlu0 %1129
  %v1131 = vlaneseq
  %v1132 = vshrl.u32 %v1131, 7
  %v1133 = vadd.s32 %v1132, 120
  %1134 = vset.pattern.permute.xlu0 %v1133
  %1135 = vperm.xlu0 %1134, %v75
  %v1136 = vpop.permute.xlu0 %1135
  %v1137 = vlaneseq
  %v1138 = vshrl.u32 %v1137, 7
  %1140 = vset.pattern.permute.xlu0 %v1138
  %1141 = vperm.xlu0 %1140, %v76
  %v1142 = vpop.permute.xlu0 %1141
  %v1143 = vlaneseq
  %v1144 = vshrl.u32 %v1143, 7
  %v1145 = vadd.s32 %v1144, 8
  %1146 = vset.pattern.permute.xlu0 %v1145
  %1147 = vperm.xlu0 %1146, %v76
  %v1148 = vpop.permute.xlu0 %1147
  %v1149 = vlaneseq
  %v1150 = vshrl.u32 %v1149, 7
  %v1151 = vadd.s32 %v1150, 16
  %1152 = vset.pattern.permute.xlu0 %v1151
  %1153 = vperm.xlu0 %1152, %v76
  %v1154 = vpop.permute.xlu0 %1153
  %v1155 = vlaneseq
  %v1156 = vshrl.u32 %v1155, 7
  %v1157 = vadd.s32 %v1156, 24
  %1158 = vset.pattern.permute.xlu0 %v1157
  %1159 = vperm.xlu0 %1158, %v76
  %v1160 = vpop.permute.xlu0 %1159
  %v1161 = vlaneseq
  %v1162 = vshrl.u32 %v1161, 7
  %v1163 = vadd.s32 %v1162, 32
  %1164 = vset.pattern.permute.xlu0 %v1163
  %1165 = vperm.xlu0 %1164, %v76
  %v1166 = vpop.permute.xlu0 %1165
  %v1167 = vlaneseq
  %v1168 = vshrl.u32 %v1167, 7
  %v1169 = vadd.s32 %v1168, 40
  %1170 = vset.pattern.permute.xlu0 %v1169
  %1171 = vperm.xlu0 %1170, %v76
  %v1172 = vpop.permute.xlu0 %1171
  %v1173 = vlaneseq
  %v1174 = vshrl.u32 %v1173, 7
  %v1175 = vadd.s32 %v1174, 48
  %1176 = vset.pattern.permute.xlu0 %v1175
  %1177 = vperm.xlu0 %1176, %v76
  %v1178 = vpop.permute.xlu0 %1177
  %v1179 = vlaneseq
  %v1180 = vshrl.u32 %v1179, 7
  %v1181 = vadd.s32 %v1180, 56
  %1182 = vset.pattern.permute.xlu0 %v1181
  %1183 = vperm.xlu0 %1182, %v76
  %v1184 = vpop.permute.xlu0 %1183
  %v1185 = vlaneseq
  %v1186 = vshrl.u32 %v1185, 7
  %v1187 = vadd.s32 %v1186, 64
  %1188 = vset.pattern.permute.xlu0 %v1187
  %1189 = vperm.xlu0 %1188, %v76
  %v1190 = vpop.permute.xlu0 %1189
  %v1191 = vlaneseq
  %v1192 = vshrl.u32 %v1191, 7
  %v1193 = vadd.s32 %v1192, 72
  %1194 = vset.pattern.permute.xlu0 %v1193
  %1195 = vperm.xlu0 %1194, %v76
  %v1196 = vpop.permute.xlu0 %1195
  %v1197 = vlaneseq
  %v1198 = vshrl.u32 %v1197, 7
  %v1199 = vadd.s32 %v1198, 80
  %1200 = vset.pattern.permute.xlu0 %v1199
  %1201 = vperm.xlu0 %1200, %v76
  %v1202 = vpop.permute.xlu0 %1201
  %v1203 = vlaneseq
  %v1204 = vshrl.u32 %v1203, 7
  %v1205 = vadd.s32 %v1204, 88
  %1206 = vset.pattern.permute.xlu0 %v1205
  %1207 = vperm.xlu0 %1206, %v76
  %v1208 = vpop.permute.xlu0 %1207
  %v1209 = vlaneseq
  %v1210 = vshrl.u32 %v1209, 7
  %v1211 = vadd.s32 %v1210, 96
  %1212 = vset.pattern.permute.xlu0 %v1211
  %1213 = vperm.xlu0 %1212, %v76
  %v1214 = vpop.permute.xlu0 %1213
  %v1215 = vlaneseq
  %v1216 = vshrl.u32 %v1215, 7
  %v1217 = vadd.s32 %v1216, 104
  %1218 = vset.pattern.permute.xlu0 %v1217
  %1219 = vperm.xlu0 %1218, %v76
  %v1220 = vpop.permute.xlu0 %1219
  %v1221 = vlaneseq
  %v1222 = vshrl.u32 %v1221, 7
  %v1223 = vadd.s32 %v1222, 112
  %1224 = vset.pattern.permute.xlu0 %v1223
  %1225 = vperm.xlu0 %1224, %v76
  %v1226 = vpop.permute.xlu0 %1225
  %v1227 = vlaneseq
  %v1228 = vshrl.u32 %v1227, 7
  %v1229 = vadd.s32 %v1228, 120
  %1230 = vset.pattern.permute.xlu0 %v1229
  %1231 = vperm.xlu0 %1230, %v76
  %v1232 = vpop.permute.xlu0 %1231
  %v1233 = vlaneseq
  %v1234 = vshrl.u32 %v1233, 7
  %1236 = vset.pattern.permute.xlu0 %v1234
  %1237 = vperm.xlu0 %1236, %v77
  %v1238 = vpop.permute.xlu0 %1237
  %v1239 = vlaneseq
  %v1240 = vshrl.u32 %v1239, 7
  %v1241 = vadd.s32 %v1240, 8
  %1242 = vset.pattern.permute.xlu0 %v1241
  %1243 = vperm.xlu0 %1242, %v77
  %v1244 = vpop.permute.xlu0 %1243
  %v1245 = vlaneseq
  %v1246 = vshrl.u32 %v1245, 7
  %v1247 = vadd.s32 %v1246, 16
  %1248 = vset.pattern.permute.xlu0 %v1247
  %1249 = vperm.xlu0 %1248, %v77
  %v1250 = vpop.permute.xlu0 %1249
  %v1251 = vlaneseq
  %v1252 = vshrl.u32 %v1251, 7
  %v1253 = vadd.s32 %v1252, 24
  %1254 = vset.pattern.permute.xlu0 %v1253
  %1255 = vperm.xlu0 %1254, %v77
  %v1256 = vpop.permute.xlu0 %1255
  %v1257 = vlaneseq
  %v1258 = vshrl.u32 %v1257, 7
  %v1259 = vadd.s32 %v1258, 32
  %1260 = vset.pattern.permute.xlu0 %v1259
  %1261 = vperm.xlu0 %1260, %v77
  %v1262 = vpop.permute.xlu0 %1261
  %v1263 = vlaneseq
  %v1264 = vshrl.u32 %v1263, 7
  %v1265 = vadd.s32 %v1264, 40
  %1266 = vset.pattern.permute.xlu0 %v1265
  %1267 = vperm.xlu0 %1266, %v77
  %v1268 = vpop.permute.xlu0 %1267
  %v1269 = vlaneseq
  %v1270 = vshrl.u32 %v1269, 7
  %v1271 = vadd.s32 %v1270, 48
  %1272 = vset.pattern.permute.xlu0 %v1271
  %1273 = vperm.xlu0 %1272, %v77
  %v1274 = vpop.permute.xlu0 %1273
  %v1275 = vlaneseq
  %v1276 = vshrl.u32 %v1275, 7
  %v1277 = vadd.s32 %v1276, 56
  %1278 = vset.pattern.permute.xlu0 %v1277
  %1279 = vperm.xlu0 %1278, %v77
  %v1280 = vpop.permute.xlu0 %1279
  %v1281 = vlaneseq
  %v1282 = vshrl.u32 %v1281, 7
  %v1283 = vadd.s32 %v1282, 64
  %1284 = vset.pattern.permute.xlu0 %v1283
  %1285 = vperm.xlu0 %1284, %v77
  %v1286 = vpop.permute.xlu0 %1285
  %v1287 = vlaneseq
  %v1288 = vshrl.u32 %v1287, 7
  %v1289 = vadd.s32 %v1288, 72
  %1290 = vset.pattern.permute.xlu0 %v1289
  %1291 = vperm.xlu0 %1290, %v77
  %v1292 = vpop.permute.xlu0 %1291
  %v1293 = vlaneseq
  %v1294 = vshrl.u32 %v1293, 7
  %v1295 = vadd.s32 %v1294, 80
  %1296 = vset.pattern.permute.xlu0 %v1295
  %1297 = vperm.xlu0 %1296, %v77
  %v1298 = vpop.permute.xlu0 %1297
  %v1299 = vlaneseq
  %v1300 = vshrl.u32 %v1299, 7
  %v1301 = vadd.s32 %v1300, 88
  %1302 = vset.pattern.permute.xlu0 %v1301
  %1303 = vperm.xlu0 %1302, %v77
  %v1304 = vpop.permute.xlu0 %1303
  %v1305 = vlaneseq
  %v1306 = vshrl.u32 %v1305, 7
  %v1307 = vadd.s32 %v1306, 96
  %1308 = vset.pattern.permute.xlu0 %v1307
  %1309 = vperm.xlu0 %1308, %v77
  %v1310 = vpop.permute.xlu0 %1309
  %v1311 = vlaneseq
  %v1312 = vshrl.u32 %v1311, 7
  %v1313 = vadd.s32 %v1312, 104
  %1314 = vset.pattern.permute.xlu0 %v1313
  %1315 = vperm.xlu0 %1314, %v77
  %v1316 = vpop.permute.xlu0 %1315
  %v1317 = vlaneseq
  %v1318 = vshrl.u32 %v1317, 7
  %v1319 = vadd.s32 %v1318, 112
  %1320 = vset.pattern.permute.xlu0 %v1319
  %1321 = vperm.xlu0 %1320, %v77
  %v1322 = vpop.permute.xlu0 %1321
  %v1323 = vlaneseq
  %v1324 = vshrl.u32 %v1323, 7
  %v1325 = vadd.s32 %v1324, 120
  %1326 = vset.pattern.permute.xlu0 %v1325
  %1327 = vperm.xlu0 %1326, %v77
  %v1328 = vpop.permute.xlu0 %1327
  %v1329 = vlaneseq
  %v1330 = vshrl.u32 %v1329, 7
  %1332 = vset.pattern.permute.xlu0 %v1330
  %1333 = vperm.xlu0 %1332, %v78
  %v1334 = vpop.permute.xlu0 %1333
  %v1335 = vlaneseq
  %v1336 = vshrl.u32 %v1335, 7
  %v1337 = vadd.s32 %v1336, 8
  %1338 = vset.pattern.permute.xlu0 %v1337
  %1339 = vperm.xlu0 %1338, %v78
  %v1340 = vpop.permute.xlu0 %1339
  %v1341 = vlaneseq
  %v1342 = vshrl.u32 %v1341, 7
  %v1343 = vadd.s32 %v1342, 16
  %1344 = vset.pattern.permute.xlu0 %v1343
  %1345 = vperm.xlu0 %1344, %v78
  %v1346 = vpop.permute.xlu0 %1345
  %v1347 = vlaneseq
  %v1348 = vshrl.u32 %v1347, 7
  %v1349 = vadd.s32 %v1348, 24
  %1350 = vset.pattern.permute.xlu0 %v1349
  %1351 = vperm.xlu0 %1350, %v78
  %v1352 = vpop.permute.xlu0 %1351
  %v1353 = vlaneseq
  %v1354 = vshrl.u32 %v1353, 7
  %v1355 = vadd.s32 %v1354, 32
  %1356 = vset.pattern.permute.xlu0 %v1355
  %1357 = vperm.xlu0 %1356, %v78
  %v1358 = vpop.permute.xlu0 %1357
  %v1359 = vlaneseq
  %v1360 = vshrl.u32 %v1359, 7
  %v1361 = vadd.s32 %v1360, 40
  %1362 = vset.pattern.permute.xlu0 %v1361
  %1363 = vperm.xlu0 %1362, %v78
  %v1364 = vpop.permute.xlu0 %1363
  %v1365 = vlaneseq
  %v1366 = vshrl.u32 %v1365, 7
  %v1367 = vadd.s32 %v1366, 48
  %1368 = vset.pattern.permute.xlu0 %v1367
  %1369 = vperm.xlu0 %1368, %v78
  %v1370 = vpop.permute.xlu0 %1369
  %v1371 = vlaneseq
  %v1372 = vshrl.u32 %v1371, 7
  %v1373 = vadd.s32 %v1372, 56
  %1374 = vset.pattern.permute.xlu0 %v1373
  %1375 = vperm.xlu0 %1374, %v78
  %v1376 = vpop.permute.xlu0 %1375
  %v1377 = vlaneseq
  %v1378 = vshrl.u32 %v1377, 7
  %v1379 = vadd.s32 %v1378, 64
  %1380 = vset.pattern.permute.xlu0 %v1379
  %1381 = vperm.xlu0 %1380, %v78
  %v1382 = vpop.permute.xlu0 %1381
  %v1383 = vlaneseq
  %v1384 = vshrl.u32 %v1383, 7
  %v1385 = vadd.s32 %v1384, 72
  %1386 = vset.pattern.permute.xlu0 %v1385
  %1387 = vperm.xlu0 %1386, %v78
  %v1388 = vpop.permute.xlu0 %1387
  %v1389 = vlaneseq
  %v1390 = vshrl.u32 %v1389, 7
  %v1391 = vadd.s32 %v1390, 80
  %1392 = vset.pattern.permute.xlu0 %v1391
  %1393 = vperm.xlu0 %1392, %v78
  %v1394 = vpop.permute.xlu0 %1393
  %v1395 = vlaneseq
  %v1396 = vshrl.u32 %v1395, 7
  %v1397 = vadd.s32 %v1396, 88
  %1398 = vset.pattern.permute.xlu0 %v1397
  %1399 = vperm.xlu0 %1398, %v78
  %v1400 = vpop.permute.xlu0 %1399
  %v1401 = vlaneseq
  %v1402 = vshrl.u32 %v1401, 7
  %v1403 = vadd.s32 %v1402, 96
  %1404 = vset.pattern.permute.xlu0 %v1403
  %1405 = vperm.xlu0 %1404, %v78
  %v1406 = vpop.permute.xlu0 %1405
  %v1407 = vlaneseq
  %v1408 = vshrl.u32 %v1407, 7
  %v1409 = vadd.s32 %v1408, 104
  %1410 = vset.pattern.permute.xlu0 %v1409
  %1411 = vperm.xlu0 %1410, %v78
  %v1412 = vpop.permute.xlu0 %1411
  %v1413 = vlaneseq
  %v1414 = vshrl.u32 %v1413, 7
  %v1415 = vadd.s32 %v1414, 112
  %1416 = vset.pattern.permute.xlu0 %v1415
  %1417 = vperm.xlu0 %1416, %v78
  %v1418 = vpop.permute.xlu0 %1417
  %v1419 = vlaneseq
  %v1420 = vshrl.u32 %v1419, 7
  %v1421 = vadd.s32 %v1420, 120
  %1422 = vset.pattern.permute.xlu0 %v1421
  %1423 = vperm.xlu0 %1422, %v78
  %v1424 = vpop.permute.xlu0 %1423
  %v1425 = vlaneseq
  %v1426 = vshrl.u32 %v1425, 7
  %1428 = vset.pattern.permute.xlu0 %v1426
  %1429 = vperm.xlu0 %1428, %v79
  %v1430 = vpop.permute.xlu0 %1429
  %v1431 = vlaneseq
  %v1432 = vshrl.u32 %v1431, 7
  %v1433 = vadd.s32 %v1432, 8
  %1434 = vset.pattern.permute.xlu0 %v1433
  %1435 = vperm.xlu0 %1434, %v79
  %v1436 = vpop.permute.xlu0 %1435
  %v1437 = vlaneseq
  %v1438 = vshrl.u32 %v1437, 7
  %v1439 = vadd.s32 %v1438, 16
  %1440 = vset.pattern.permute.xlu0 %v1439
  %1441 = vperm.xlu0 %1440, %v79
  %v1442 = vpop.permute.xlu0 %1441
  %v1443 = vlaneseq
  %v1444 = vshrl.u32 %v1443, 7
  %v1445 = vadd.s32 %v1444, 24
  %1446 = vset.pattern.permute.xlu0 %v1445
  %1447 = vperm.xlu0 %1446, %v79
  %v1448 = vpop.permute.xlu0 %1447
  %v1449 = vlaneseq
  %v1450 = vshrl.u32 %v1449, 7
  %v1451 = vadd.s32 %v1450, 32
  %1452 = vset.pattern.permute.xlu0 %v1451
  %1453 = vperm.xlu0 %1452, %v79
  %v1454 = vpop.permute.xlu0 %1453
  %v1455 = vlaneseq
  %v1456 = vshrl.u32 %v1455, 7
  %v1457 = vadd.s32 %v1456, 40
  %1458 = vset.pattern.permute.xlu0 %v1457
  %1459 = vperm.xlu0 %1458, %v79
  %v1460 = vpop.permute.xlu0 %1459
  %v1461 = vlaneseq
  %v1462 = vshrl.u32 %v1461, 7
  %v1463 = vadd.s32 %v1462, 48
  %1464 = vset.pattern.permute.xlu0 %v1463
  %1465 = vperm.xlu0 %1464, %v79
  %v1466 = vpop.permute.xlu0 %1465
  %v1467 = vlaneseq
  %v1468 = vshrl.u32 %v1467, 7
  %v1469 = vadd.s32 %v1468, 56
  %1470 = vset.pattern.permute.xlu0 %v1469
  %1471 = vperm.xlu0 %1470, %v79
  %v1472 = vpop.permute.xlu0 %1471
  %v1473 = vlaneseq
  %v1474 = vshrl.u32 %v1473, 7
  %v1475 = vadd.s32 %v1474, 64
  %1476 = vset.pattern.permute.xlu0 %v1475
  %1477 = vperm.xlu0 %1476, %v79
  %v1478 = vpop.permute.xlu0 %1477
  %v1479 = vlaneseq
  %v1480 = vshrl.u32 %v1479, 7
  %v1481 = vadd.s32 %v1480, 72
  %1482 = vset.pattern.permute.xlu0 %v1481
  %1483 = vperm.xlu0 %1482, %v79
  %v1484 = vpop.permute.xlu0 %1483
  %v1485 = vlaneseq
  %v1486 = vshrl.u32 %v1485, 7
  %v1487 = vadd.s32 %v1486, 80
  %1488 = vset.pattern.permute.xlu0 %v1487
  %1489 = vperm.xlu0 %1488, %v79
  %v1490 = vpop.permute.xlu0 %1489
  %v1491 = vlaneseq
  %v1492 = vshrl.u32 %v1491, 7
  %v1493 = vadd.s32 %v1492, 88
  %1494 = vset.pattern.permute.xlu0 %v1493
  %1495 = vperm.xlu0 %1494, %v79
  %v1496 = vpop.permute.xlu0 %1495
  %v1497 = vlaneseq
  %v1498 = vshrl.u32 %v1497, 7
  %v1499 = vadd.s32 %v1498, 96
  %1500 = vset.pattern.permute.xlu0 %v1499
  %1501 = vperm.xlu0 %1500, %v79
  %v1502 = vpop.permute.xlu0 %1501
  %v1503 = vlaneseq
  %v1504 = vshrl.u32 %v1503, 7
  %v1505 = vadd.s32 %v1504, 104
  %1506 = vset.pattern.permute.xlu0 %v1505
  %1507 = vperm.xlu0 %1506, %v79
  %v1508 = vpop.permute.xlu0 %1507
  %v1509 = vlaneseq
  %v1510 = vshrl.u32 %v1509, 7
  %v1511 = vadd.s32 %v1510, 112
  %1512 = vset.pattern.permute.xlu0 %v1511
  %1513 = vperm.xlu0 %1512, %v79
  %v1514 = vpop.permute.xlu0 %1513
  %v1515 = vlaneseq
  %v1516 = vshrl.u32 %v1515, 7
  %v1517 = vadd.s32 %v1516, 120
  %1518 = vset.pattern.permute.xlu0 %v1517
  %1519 = vperm.xlu0 %1518, %v79
  %v1520 = vpop.permute.xlu0 %1519
  %v1521 = vlaneseq
  %v1522 = vshrl.u32 %v1521, 7
  %1524 = vset.pattern.permute.xlu0 %v1522
  %1525 = vperm.xlu0 %1524, %v80
  %v1526 = vpop.permute.xlu0 %1525
  %v1527 = vlaneseq
  %v1528 = vshrl.u32 %v1527, 7
  %v1529 = vadd.s32 %v1528, 8
  %1530 = vset.pattern.permute.xlu0 %v1529
  %1531 = vperm.xlu0 %1530, %v80
  %v1532 = vpop.permute.xlu0 %1531
  %v1533 = vlaneseq
  %v1534 = vshrl.u32 %v1533, 7
  %v1535 = vadd.s32 %v1534, 16
  %1536 = vset.pattern.permute.xlu0 %v1535
  %1537 = vperm.xlu0 %1536, %v80
  %v1538 = vpop.permute.xlu0 %1537
  %v1539 = vlaneseq
  %v1540 = vshrl.u32 %v1539, 7
  %v1541 = vadd.s32 %v1540, 24
  %1542 = vset.pattern.permute.xlu0 %v1541
  %1543 = vperm.xlu0 %1542, %v80
  %v1544 = vpop.permute.xlu0 %1543
  %v1545 = vlaneseq
  %v1546 = vshrl.u32 %v1545, 7
  %v1547 = vadd.s32 %v1546, 32
  %1548 = vset.pattern.permute.xlu0 %v1547
  %1549 = vperm.xlu0 %1548, %v80
  %v1550 = vpop.permute.xlu0 %1549
  %v1551 = vlaneseq
  %v1552 = vshrl.u32 %v1551, 7
  %v1553 = vadd.s32 %v1552, 40
  %1554 = vset.pattern.permute.xlu0 %v1553
  %1555 = vperm.xlu0 %1554, %v80
  %v1556 = vpop.permute.xlu0 %1555
  %v1557 = vlaneseq
  %v1558 = vshrl.u32 %v1557, 7
  %v1559 = vadd.s32 %v1558, 48
  %1560 = vset.pattern.permute.xlu0 %v1559
  %1561 = vperm.xlu0 %1560, %v80
  %v1562 = vpop.permute.xlu0 %1561
  %v1563 = vlaneseq
  %v1564 = vshrl.u32 %v1563, 7
  %v1565 = vadd.s32 %v1564, 56
  %1566 = vset.pattern.permute.xlu0 %v1565
  %1567 = vperm.xlu0 %1566, %v80
  %v1568 = vpop.permute.xlu0 %1567
  %v1569 = vlaneseq
  %v1570 = vshrl.u32 %v1569, 7
  %v1571 = vadd.s32 %v1570, 64
  %1572 = vset.pattern.permute.xlu0 %v1571
  %1573 = vperm.xlu0 %1572, %v80
  %v1574 = vpop.permute.xlu0 %1573
  %v1575 = vlaneseq
  %v1576 = vshrl.u32 %v1575, 7
  %v1577 = vadd.s32 %v1576, 72
  %1578 = vset.pattern.permute.xlu0 %v1577
  %1579 = vperm.xlu0 %1578, %v80
  %v1580 = vpop.permute.xlu0 %1579
  %v1581 = vlaneseq
  %v1582 = vshrl.u32 %v1581, 7
  %v1583 = vadd.s32 %v1582, 80
  %1584 = vset.pattern.permute.xlu0 %v1583
  %1585 = vperm.xlu0 %1584, %v80
  %v1586 = vpop.permute.xlu0 %1585
  %v1587 = vlaneseq
  %v1588 = vshrl.u32 %v1587, 7
  %v1589 = vadd.s32 %v1588, 88
  %1590 = vset.pattern.permute.xlu0 %v1589
  %1591 = vperm.xlu0 %1590, %v80
  %v1592 = vpop.permute.xlu0 %1591
  %v1593 = vlaneseq
  %v1594 = vshrl.u32 %v1593, 7
  %v1595 = vadd.s32 %v1594, 96
  %1596 = vset.pattern.permute.xlu0 %v1595
  %1597 = vperm.xlu0 %1596, %v80
  %v1598 = vpop.permute.xlu0 %1597
  %v1599 = vlaneseq
  %v1600 = vshrl.u32 %v1599, 7
  %v1601 = vadd.s32 %v1600, 104
  %1602 = vset.pattern.permute.xlu0 %v1601
  %1603 = vperm.xlu0 %1602, %v80
  %v1604 = vpop.permute.xlu0 %1603
  %v1605 = vlaneseq
  %v1606 = vshrl.u32 %v1605, 7
  %v1607 = vadd.s32 %v1606, 112
  %1608 = vset.pattern.permute.xlu0 %v1607
  %1609 = vperm.xlu0 %1608, %v80
  %v1610 = vpop.permute.xlu0 %1609
  %v1611 = vlaneseq
  %v1612 = vshrl.u32 %v1611, 7
  %v1613 = vadd.s32 %v1612, 120
  %1614 = vset.pattern.permute.xlu0 %v1613
  %1615 = vperm.xlu0 %1614, %v80
  %v1616 = vpop.permute.xlu0 %1615
  %v1873 = vmul.f32 %v61, %v86
  %v1874 = vmul.f32 %v61, %v92
  %v1875 = vmul.f32 %v61, %v98
  %v1876 = vmul.f32 %v61, %v104
  %v1877 = vmul.f32 %v61, %v110
  %v1878 = vmul.f32 %v61, %v116
  %v1879 = vmul.f32 %v61, %v122
  %v1880 = vmul.f32 %v61, %v128
  %v1881 = vmul.f32 %v61, %v134
  %v1882 = vmul.f32 %v61, %v140
  %v1883 = vmul.f32 %v61, %v146
  %v1884 = vmul.f32 %v61, %v152
  %v1885 = vmul.f32 %v61, %v158
  %v1886 = vmul.f32 %v61, %v164
  %v1887 = vmul.f32 %v61, %v170
  %v1888 = vmul.f32 %v61, %v176
  %v1889 = vmul.f32 %v61, %v182
  %v1890 = vmul.f32 %v61, %v188
  %v1891 = vmul.f32 %v61, %v194
  %v1892 = vmul.f32 %v61, %v200
  %v1893 = vmul.f32 %v61, %v206
  %v1894 = vmul.f32 %v61, %v212
  %v1895 = vmul.f32 %v61, %v218
  %v1896 = vmul.f32 %v61, %v224
  %v1897 = vmul.f32 %v61, %v230
  %v1898 = vmul.f32 %v61, %v236
  %v1899 = vmul.f32 %v61, %v242
  %v1900 = vmul.f32 %v61, %v248
  %v1901 = vmul.f32 %v61, %v254
  %v1902 = vmul.f32 %v61, %v260
  %v1903 = vmul.f32 %v61, %v266
  %v1904 = vmul.f32 %v61, %v272
  %v1905 = vmul.f32 %v61, %v278
  %v1906 = vmul.f32 %v61, %v284
  %v1907 = vmul.f32 %v61, %v290
  %v1908 = vmul.f32 %v61, %v296
  %v1909 = vmul.f32 %v61, %v302
  %v1910 = vmul.f32 %v61, %v308
  %v1911 = vmul.f32 %v61, %v314
  %v1912 = vmul.f32 %v61, %v320
  %v1913 = vmul.f32 %v61, %v326
  %v1914 = vmul.f32 %v61, %v332
  %v1915 = vmul.f32 %v61, %v338
  %v1916 = vmul.f32 %v61, %v344
  %v1917 = vmul.f32 %v61, %v350
  %v1918 = vmul.f32 %v61, %v356
  %v1919 = vmul.f32 %v61, %v362
  %v1920 = vmul.f32 %v61, %v368
  %v1921 = vmul.f32 %v61, %v374
  %v1922 = vmul.f32 %v61, %v380
  %v1923 = vmul.f32 %v61, %v386
  %v1924 = vmul.f32 %v61, %v392
  %v1925 = vmul.f32 %v61, %v398
  %v1926 = vmul.f32 %v61, %v404
  %v1927 = vmul.f32 %v61, %v410
  %v1928 = vmul.f32 %v61, %v416
  %v1929 = vmul.f32 %v61, %v422
  %v1930 = vmul.f32 %v61, %v428
  %v1931 = vmul.f32 %v61, %v434
  %v1932 = vmul.f32 %v61, %v440
  %v1933 = vmul.f32 %v61, %v446
  %v1934 = vmul.f32 %v61, %v452
  %v1935 = vmul.f32 %v61, %v458
  %v1936 = vmul.f32 %v61, %v464
  %v1937 = vmul.f32 %v61, %v470
  %v1938 = vmul.f32 %v61, %v476
  %v1939 = vmul.f32 %v61, %v482
  %v1940 = vmul.f32 %v61, %v488
  %v1941 = vmul.f32 %v61, %v494
  %v1942 = vmul.f32 %v61, %v500
  %v1943 = vmul.f32 %v61, %v506
  %v1944 = vmul.f32 %v61, %v512
  %v1945 = vmul.f32 %v61, %v518
  %v1946 = vmul.f32 %v61, %v524
  %v1947 = vmul.f32 %v61, %v530
  %v1948 = vmul.f32 %v61, %v536
  %v1949 = vmul.f32 %v61, %v542
  %v1950 = vmul.f32 %v61, %v548
  %v1951 = vmul.f32 %v61, %v554
  %v1952 = vmul.f32 %v61, %v560
  %v1953 = vmul.f32 %v61, %v566
  %v1954 = vmul.f32 %v61, %v572
  %v1955 = vmul.f32 %v61, %v578
  %v1956 = vmul.f32 %v61, %v584
  %v1957 = vmul.f32 %v61, %v590
  %v1958 = vmul.f32 %v61, %v596
  %v1959 = vmul.f32 %v61, %v602
  %v1960 = vmul.f32 %v61, %v608
  %v1961 = vmul.f32 %v61, %v614
  %v1962 = vmul.f32 %v61, %v620
  %v1963 = vmul.f32 %v61, %v626
  %v1964 = vmul.f32 %v61, %v632
  %v1965 = vmul.f32 %v61, %v638
  %v1966 = vmul.f32 %v61, %v644
  %v1967 = vmul.f32 %v61, %v650
  %v1968 = vmul.f32 %v61, %v656
  %v1969 = vmul.f32 %v61, %v662
  %v1970 = vmul.f32 %v61, %v668
  %v1971 = vmul.f32 %v61, %v674
  %v1972 = vmul.f32 %v61, %v680
  %v1973 = vmul.f32 %v61, %v686
  %v1974 = vmul.f32 %v61, %v692
  %v1975 = vmul.f32 %v61, %v698
  %v1976 = vmul.f32 %v61, %v704
  %v1977 = vmul.f32 %v61, %v710
  %v1978 = vmul.f32 %v61, %v716
  %v1979 = vmul.f32 %v61, %v722
  %v1980 = vmul.f32 %v61, %v728
  %v1981 = vmul.f32 %v61, %v734
  %v1982 = vmul.f32 %v61, %v740
  %v1983 = vmul.f32 %v61, %v746
  %v1984 = vmul.f32 %v61, %v752
  %v1985 = vmul.f32 %v61, %v758
  %v1986 = vmul.f32 %v61, %v764
  %v1987 = vmul.f32 %v61, %v770
  %v1988 = vmul.f32 %v61, %v776
  %v1989 = vmul.f32 %v61, %v782
  %v1990 = vmul.f32 %v61, %v788
  %v1991 = vmul.f32 %v61, %v794
  %v1992 = vmul.f32 %v61, %v800
  %v1993 = vmul.f32 %v61, %v806
  %v1994 = vmul.f32 %v61, %v812
  %v1995 = vmul.f32 %v61, %v818
  %v1996 = vmul.f32 %v61, %v824
  %v1997 = vmul.f32 %v61, %v830
  %v1998 = vmul.f32 %v61, %v836
  %v1999 = vmul.f32 %v61, %v842
  %v2000 = vmul.f32 %v61, %v848
  %v2001 = vmul.f32 %v61, %v854
  %v2002 = vmul.f32 %v61, %v860
  %v2003 = vmul.f32 %v61, %v866
  %v2004 = vmul.f32 %v61, %v872
  %v2005 = vmul.f32 %v61, %v878
  %v2006 = vmul.f32 %v61, %v884
  %v2007 = vmul.f32 %v61, %v890
  %v2008 = vmul.f32 %v61, %v896
  %v2009 = vmul.f32 %v61, %v902
  %v2010 = vmul.f32 %v61, %v908
  %v2011 = vmul.f32 %v61, %v914
  %v2012 = vmul.f32 %v61, %v920
  %v2013 = vmul.f32 %v61, %v926
  %v2014 = vmul.f32 %v61, %v932
  %v2015 = vmul.f32 %v61, %v938
  %v2016 = vmul.f32 %v61, %v944
  %v2017 = vmul.f32 %v61, %v950
  %v2018 = vmul.f32 %v61, %v956
  %v2019 = vmul.f32 %v61, %v962
  %v2020 = vmul.f32 %v61, %v968
  %v2021 = vmul.f32 %v61, %v974
  %v2022 = vmul.f32 %v61, %v980
  %v2023 = vmul.f32 %v61, %v986
  %v2024 = vmul.f32 %v61, %v992
  %v2025 = vmul.f32 %v61, %v998
  %v2026 = vmul.f32 %v61, %v1004
  %v2027 = vmul.f32 %v61, %v1010
  %v2028 = vmul.f32 %v61, %v1016
  %v2029 = vmul.f32 %v61, %v1022
  %v2030 = vmul.f32 %v61, %v1028
  %v2031 = vmul.f32 %v61, %v1034
  %v2032 = vmul.f32 %v61, %v1040
  %v2033 = vmul.f32 %v61, %v1046
  %v2034 = vmul.f32 %v61, %v1052
  %v2035 = vmul.f32 %v61, %v1058
  %v2036 = vmul.f32 %v61, %v1064
  %v2037 = vmul.f32 %v61, %v1070
  %v2038 = vmul.f32 %v61, %v1076
  %v2039 = vmul.f32 %v61, %v1082
  %v2040 = vmul.f32 %v61, %v1088
  %v2041 = vmul.f32 %v61, %v1094
  %v2042 = vmul.f32 %v61, %v1100
  %v2043 = vmul.f32 %v61, %v1106
  %v2044 = vmul.f32 %v61, %v1112
  %v2045 = vmul.f32 %v61, %v1118
  %v2046 = vmul.f32 %v61, %v1124
  %v2047 = vmul.f32 %v61, %v1130
  %v2048 = vmul.f32 %v61, %v1136
  %v2049 = vmul.f32 %v61, %v1142
  %v2050 = vmul.f32 %v61, %v1148
  %v2051 = vmul.f32 %v61, %v1154
  %v2052 = vmul.f32 %v61, %v1160
  %v2053 = vmul.f32 %v61, %v1166
  %v2054 = vmul.f32 %v61, %v1172
  %v2055 = vmul.f32 %v61, %v1178
  %v2056 = vmul.f32 %v61, %v1184
  %v2057 = vmul.f32 %v61, %v1190
  %v2058 = vmul.f32 %v61, %v1196
  %v2059 = vmul.f32 %v61, %v1202
  %v2060 = vmul.f32 %v61, %v1208
  %v2061 = vmul.f32 %v61, %v1214
  %v2062 = vmul.f32 %v61, %v1220
  %v2063 = vmul.f32 %v61, %v1226
  %v2064 = vmul.f32 %v61, %v1232
  %v2065 = vmul.f32 %v61, %v1238
  %v2066 = vmul.f32 %v61, %v1244
  %v2067 = vmul.f32 %v61, %v1250
  %v2068 = vmul.f32 %v61, %v1256
  %v2069 = vmul.f32 %v61, %v1262
  %v2070 = vmul.f32 %v61, %v1268
  %v2071 = vmul.f32 %v61, %v1274
  %v2072 = vmul.f32 %v61, %v1280
  %v2073 = vmul.f32 %v61, %v1286
  %v2074 = vmul.f32 %v61, %v1292
  %v2075 = vmul.f32 %v61, %v1298
  %v2076 = vmul.f32 %v61, %v1304
  %v2077 = vmul.f32 %v61, %v1310
  %v2078 = vmul.f32 %v61, %v1316
  %v2079 = vmul.f32 %v61, %v1322
  %v2080 = vmul.f32 %v61, %v1328
  %v2081 = vmul.f32 %v61, %v1334
  %v2082 = vmul.f32 %v61, %v1340
  %v2083 = vmul.f32 %v61, %v1346
  %v2084 = vmul.f32 %v61, %v1352
  %v2085 = vmul.f32 %v61, %v1358
  %v2086 = vmul.f32 %v61, %v1364
  %v2087 = vmul.f32 %v61, %v1370
  %v2088 = vmul.f32 %v61, %v1376
  %v2089 = vmul.f32 %v61, %v1382
  %v2090 = vmul.f32 %v61, %v1388
  %v2091 = vmul.f32 %v61, %v1394
  %v2092 = vmul.f32 %v61, %v1400
  %v2093 = vmul.f32 %v61, %v1406
  %v2094 = vmul.f32 %v61, %v1412
  %v2095 = vmul.f32 %v61, %v1418
  %v2096 = vmul.f32 %v61, %v1424
  %v2097 = vmul.f32 %v61, %v1430
  %v2098 = vmul.f32 %v61, %v1436
  %v2099 = vmul.f32 %v61, %v1442
  %v2100 = vmul.f32 %v61, %v1448
  %v2101 = vmul.f32 %v61, %v1454
  %v2102 = vmul.f32 %v61, %v1460
  %v2103 = vmul.f32 %v61, %v1466
  %v2104 = vmul.f32 %v61, %v1472
  %v2105 = vmul.f32 %v61, %v1478
  %v2106 = vmul.f32 %v61, %v1484
  %v2107 = vmul.f32 %v61, %v1490
  %v2108 = vmul.f32 %v61, %v1496
  %v2109 = vmul.f32 %v61, %v1502
  %v2110 = vmul.f32 %v61, %v1508
  %v2111 = vmul.f32 %v61, %v1514
  %v2112 = vmul.f32 %v61, %v1520
  %v2113 = vmul.f32 %v61, %v1526
  %v2114 = vmul.f32 %v61, %v1532
  %v2115 = vmul.f32 %v61, %v1538
  %v2116 = vmul.f32 %v61, %v1544
  %v2117 = vmul.f32 %v61, %v1550
  %v2118 = vmul.f32 %v61, %v1556
  %v2119 = vmul.f32 %v61, %v1562
  %v2120 = vmul.f32 %v61, %v1568
  %v2121 = vmul.f32 %v61, %v1574
  %v2122 = vmul.f32 %v61, %v1580
  %v2123 = vmul.f32 %v61, %v1586
  %v2124 = vmul.f32 %v61, %v1592
  %v2125 = vmul.f32 %v61, %v1598
  %v2126 = vmul.f32 %v61, %v1604
  %v2127 = vmul.f32 %v61, %v1610
  %v2128 = vmul.f32 %v61, %v1616
  %v2129 = vmul.f32 %v62, %v86
  %v2130 = vmul.f32 %v62, %v92
  %v2131 = vmul.f32 %v62, %v98
  %v2132 = vmul.f32 %v62, %v104
  %v2133 = vmul.f32 %v62, %v110
  %v2134 = vmul.f32 %v62, %v116
  %v2135 = vmul.f32 %v62, %v122
  %v2136 = vmul.f32 %v62, %v128
  %v2137 = vmul.f32 %v62, %v134
  %v2138 = vmul.f32 %v62, %v140
  %v2139 = vmul.f32 %v62, %v146
  %v2140 = vmul.f32 %v62, %v152
  %v2141 = vmul.f32 %v62, %v158
  %v2142 = vmul.f32 %v62, %v164
  %v2143 = vmul.f32 %v62, %v170
  %v2144 = vmul.f32 %v62, %v176
  %v2145 = vmul.f32 %v62, %v182
  %v2146 = vmul.f32 %v62, %v188
  %v2147 = vmul.f32 %v62, %v194
  %v2148 = vmul.f32 %v62, %v200
  %v2149 = vmul.f32 %v62, %v206
  %v2150 = vmul.f32 %v62, %v212
  %v2151 = vmul.f32 %v62, %v218
  %v2152 = vmul.f32 %v62, %v224
  %v2153 = vmul.f32 %v62, %v230
  %v2154 = vmul.f32 %v62, %v236
  %v2155 = vmul.f32 %v62, %v242
  %v2156 = vmul.f32 %v62, %v248
  %v2157 = vmul.f32 %v62, %v254
  %v2158 = vmul.f32 %v62, %v260
  %v2159 = vmul.f32 %v62, %v266
  %v2160 = vmul.f32 %v62, %v272
  %v2161 = vmul.f32 %v62, %v278
  %v2162 = vmul.f32 %v62, %v284
  %v2163 = vmul.f32 %v62, %v290
  %v2164 = vmul.f32 %v62, %v296
  %v2165 = vmul.f32 %v62, %v302
  %v2166 = vmul.f32 %v62, %v308
  %v2167 = vmul.f32 %v62, %v314
  %v2168 = vmul.f32 %v62, %v320
  %v2169 = vmul.f32 %v62, %v326
  %v2170 = vmul.f32 %v62, %v332
  %v2171 = vmul.f32 %v62, %v338
  %v2172 = vmul.f32 %v62, %v344
  %v2173 = vmul.f32 %v62, %v350
  %v2174 = vmul.f32 %v62, %v356
  %v2175 = vmul.f32 %v62, %v362
  %v2176 = vmul.f32 %v62, %v368
  %v2177 = vmul.f32 %v62, %v374
  %v2178 = vmul.f32 %v62, %v380
  %v2179 = vmul.f32 %v62, %v386
  %v2180 = vmul.f32 %v62, %v392
  %v2181 = vmul.f32 %v62, %v398
  %v2182 = vmul.f32 %v62, %v404
  %v2183 = vmul.f32 %v62, %v410
  %v2184 = vmul.f32 %v62, %v416
  %v2185 = vmul.f32 %v62, %v422
  %v2186 = vmul.f32 %v62, %v428
  %v2187 = vmul.f32 %v62, %v434
  %v2188 = vmul.f32 %v62, %v440
  %v2189 = vmul.f32 %v62, %v446
  %v2190 = vmul.f32 %v62, %v452
  %v2191 = vmul.f32 %v62, %v458
  %v2192 = vmul.f32 %v62, %v464
  %v2193 = vmul.f32 %v62, %v470
  %v2194 = vmul.f32 %v62, %v476
  %v2195 = vmul.f32 %v62, %v482
  %v2196 = vmul.f32 %v62, %v488
  %v2197 = vmul.f32 %v62, %v494
  %v2198 = vmul.f32 %v62, %v500
  %v2199 = vmul.f32 %v62, %v506
  %v2200 = vmul.f32 %v62, %v512
  %v2201 = vmul.f32 %v62, %v518
  %v2202 = vmul.f32 %v62, %v524
  %v2203 = vmul.f32 %v62, %v530
  %v2204 = vmul.f32 %v62, %v536
  %v2205 = vmul.f32 %v62, %v542
  %v2206 = vmul.f32 %v62, %v548
  %v2207 = vmul.f32 %v62, %v554
  %v2208 = vmul.f32 %v62, %v560
  %v2209 = vmul.f32 %v62, %v566
  %v2210 = vmul.f32 %v62, %v572
  %v2211 = vmul.f32 %v62, %v578
  %v2212 = vmul.f32 %v62, %v584
  %v2213 = vmul.f32 %v62, %v590
  %v2214 = vmul.f32 %v62, %v596
  %v2215 = vmul.f32 %v62, %v602
  %v2216 = vmul.f32 %v62, %v608
  %v2217 = vmul.f32 %v62, %v614
  %v2218 = vmul.f32 %v62, %v620
  %v2219 = vmul.f32 %v62, %v626
  %v2220 = vmul.f32 %v62, %v632
  %v2221 = vmul.f32 %v62, %v638
  %v2222 = vmul.f32 %v62, %v644
  %v2223 = vmul.f32 %v62, %v650
  %v2224 = vmul.f32 %v62, %v656
  %v2225 = vmul.f32 %v62, %v662
  %v2226 = vmul.f32 %v62, %v668
  %v2227 = vmul.f32 %v62, %v674
  %v2228 = vmul.f32 %v62, %v680
  %v2229 = vmul.f32 %v62, %v686
  %v2230 = vmul.f32 %v62, %v692
  %v2231 = vmul.f32 %v62, %v698
  %v2232 = vmul.f32 %v62, %v704
  %v2233 = vmul.f32 %v62, %v710
  %v2234 = vmul.f32 %v62, %v716
  %v2235 = vmul.f32 %v62, %v722
  %v2236 = vmul.f32 %v62, %v728
  %v2237 = vmul.f32 %v62, %v734
  %v2238 = vmul.f32 %v62, %v740
  %v2239 = vmul.f32 %v62, %v746
  %v2240 = vmul.f32 %v62, %v752
  %v2241 = vmul.f32 %v62, %v758
  %v2242 = vmul.f32 %v62, %v764
  %v2243 = vmul.f32 %v62, %v770
  %v2244 = vmul.f32 %v62, %v776
  %v2245 = vmul.f32 %v62, %v782
  %v2246 = vmul.f32 %v62, %v788
  %v2247 = vmul.f32 %v62, %v794
  %v2248 = vmul.f32 %v62, %v800
  %v2249 = vmul.f32 %v62, %v806
  %v2250 = vmul.f32 %v62, %v812
  %v2251 = vmul.f32 %v62, %v818
  %v2252 = vmul.f32 %v62, %v824
  %v2253 = vmul.f32 %v62, %v830
  %v2254 = vmul.f32 %v62, %v836
  %v2255 = vmul.f32 %v62, %v842
  %v2256 = vmul.f32 %v62, %v848
  %v2257 = vmul.f32 %v62, %v854
  %v2258 = vmul.f32 %v62, %v860
  %v2259 = vmul.f32 %v62, %v866
  %v2260 = vmul.f32 %v62, %v872
  %v2261 = vmul.f32 %v62, %v878
  %v2262 = vmul.f32 %v62, %v884
  %v2263 = vmul.f32 %v62, %v890
  %v2264 = vmul.f32 %v62, %v896
  %v2265 = vmul.f32 %v62, %v902
  %v2266 = vmul.f32 %v62, %v908
  %v2267 = vmul.f32 %v62, %v914
  %v2268 = vmul.f32 %v62, %v920
  %v2269 = vmul.f32 %v62, %v926
  %v2270 = vmul.f32 %v62, %v932
  %v2271 = vmul.f32 %v62, %v938
  %v2272 = vmul.f32 %v62, %v944
  %v2273 = vmul.f32 %v62, %v950
  %v2274 = vmul.f32 %v62, %v956
  %v2275 = vmul.f32 %v62, %v962
  %v2276 = vmul.f32 %v62, %v968
  %v2277 = vmul.f32 %v62, %v974
  %v2278 = vmul.f32 %v62, %v980
  %v2279 = vmul.f32 %v62, %v986
  %v2280 = vmul.f32 %v62, %v992
  %v2281 = vmul.f32 %v62, %v998
  %v2282 = vmul.f32 %v62, %v1004
  %v2283 = vmul.f32 %v62, %v1010
  %v2284 = vmul.f32 %v62, %v1016
  %v2285 = vmul.f32 %v62, %v1022
  %v2286 = vmul.f32 %v62, %v1028
  %v2287 = vmul.f32 %v62, %v1034
  %v2288 = vmul.f32 %v62, %v1040
  %v2289 = vmul.f32 %v62, %v1046
  %v2290 = vmul.f32 %v62, %v1052
  %v2291 = vmul.f32 %v62, %v1058
  %v2292 = vmul.f32 %v62, %v1064
  %v2293 = vmul.f32 %v62, %v1070
  %v2294 = vmul.f32 %v62, %v1076
  %v2295 = vmul.f32 %v62, %v1082
  %v2296 = vmul.f32 %v62, %v1088
  %v2297 = vmul.f32 %v62, %v1094
  %v2298 = vmul.f32 %v62, %v1100
  %v2299 = vmul.f32 %v62, %v1106
  %v2300 = vmul.f32 %v62, %v1112
  %v2301 = vmul.f32 %v62, %v1118
  %v2302 = vmul.f32 %v62, %v1124
  %v2303 = vmul.f32 %v62, %v1130
  %v2304 = vmul.f32 %v62, %v1136
  %v2305 = vmul.f32 %v62, %v1142
  %v2306 = vmul.f32 %v62, %v1148
  %v2307 = vmul.f32 %v62, %v1154
  %v2308 = vmul.f32 %v62, %v1160
  %v2309 = vmul.f32 %v62, %v1166
  %v2310 = vmul.f32 %v62, %v1172
  %v2311 = vmul.f32 %v62, %v1178
  %v2312 = vmul.f32 %v62, %v1184
  %v2313 = vmul.f32 %v62, %v1190
  %v2314 = vmul.f32 %v62, %v1196
  %v2315 = vmul.f32 %v62, %v1202
  %v2316 = vmul.f32 %v62, %v1208
  %v2317 = vmul.f32 %v62, %v1214
  %v2318 = vmul.f32 %v62, %v1220
  %v2319 = vmul.f32 %v62, %v1226
  %v2320 = vmul.f32 %v62, %v1232
  %v2321 = vmul.f32 %v62, %v1238
  %v2322 = vmul.f32 %v62, %v1244
  %v2323 = vmul.f32 %v62, %v1250
  %v2324 = vmul.f32 %v62, %v1256
  %v2325 = vmul.f32 %v62, %v1262
  %v2326 = vmul.f32 %v62, %v1268
  %v2327 = vmul.f32 %v62, %v1274
  %v2328 = vmul.f32 %v62, %v1280
  %v2329 = vmul.f32 %v62, %v1286
  %v2330 = vmul.f32 %v62, %v1292
  %v2331 = vmul.f32 %v62, %v1298
  %v2332 = vmul.f32 %v62, %v1304
  %v2333 = vmul.f32 %v62, %v1310
  %v2334 = vmul.f32 %v62, %v1316
  %v2335 = vmul.f32 %v62, %v1322
  %v2336 = vmul.f32 %v62, %v1328
  %v2337 = vmul.f32 %v62, %v1334
  %v2338 = vmul.f32 %v62, %v1340
  %v2339 = vmul.f32 %v62, %v1346
  %v2340 = vmul.f32 %v62, %v1352
  %v2341 = vmul.f32 %v62, %v1358
  %v2342 = vmul.f32 %v62, %v1364
  %v2343 = vmul.f32 %v62, %v1370
  %v2344 = vmul.f32 %v62, %v1376
  %v2345 = vmul.f32 %v62, %v1382
  %v2346 = vmul.f32 %v62, %v1388
  %v2347 = vmul.f32 %v62, %v1394
  %v2348 = vmul.f32 %v62, %v1400
  %v2349 = vmul.f32 %v62, %v1406
  %v2350 = vmul.f32 %v62, %v1412
  %v2351 = vmul.f32 %v62, %v1418
  %v2352 = vmul.f32 %v62, %v1424
  %v2353 = vmul.f32 %v62, %v1430
  %v2354 = vmul.f32 %v62, %v1436
  %v2355 = vmul.f32 %v62, %v1442
  %v2356 = vmul.f32 %v62, %v1448
  %v2357 = vmul.f32 %v62, %v1454
  %v2358 = vmul.f32 %v62, %v1460
  %v2359 = vmul.f32 %v62, %v1466
  %v2360 = vmul.f32 %v62, %v1472
  %v2361 = vmul.f32 %v62, %v1478
  %v2362 = vmul.f32 %v62, %v1484
  %v2363 = vmul.f32 %v62, %v1490
  %v2364 = vmul.f32 %v62, %v1496
  %v2365 = vmul.f32 %v62, %v1502
  %v2366 = vmul.f32 %v62, %v1508
  %v2367 = vmul.f32 %v62, %v1514
  %v2368 = vmul.f32 %v62, %v1520
  %v2369 = vmul.f32 %v62, %v1526
  %v2370 = vmul.f32 %v62, %v1532
  %v2371 = vmul.f32 %v62, %v1538
  %v2372 = vmul.f32 %v62, %v1544
  %v2373 = vmul.f32 %v62, %v1550
  %v2374 = vmul.f32 %v62, %v1556
  %v2375 = vmul.f32 %v62, %v1562
  %v2376 = vmul.f32 %v62, %v1568
  %v2377 = vmul.f32 %v62, %v1574
  %v2378 = vmul.f32 %v62, %v1580
  %v2379 = vmul.f32 %v62, %v1586
  %v2380 = vmul.f32 %v62, %v1592
  %v2381 = vmul.f32 %v62, %v1598
  %v2382 = vmul.f32 %v62, %v1604
  %v2383 = vmul.f32 %v62, %v1610
  %v2384 = vmul.f32 %v62, %v1616
  %s2385 = scalar_lea.vmem %s1, 1
  %v2386 = vld [vmem:[%s2385] ss:$4 sm:$0xff]
  %s2387 = scalar_lea.vmem %s1, 33
  %v2388 = vld [vmem:[%s2387] ss:$4 sm:$0xff]
  %v2389 = vperm.slane %v56, 1
  %v2390 = vperm.slane %v57, 1
  %v2393 = vperm.slane %v2386, 0
  %v2394 = vperm.slane %v2386, 1
  %v2395 = vperm.slane %v2386, 2
  %v2396 = vperm.slane %v2386, 3
  %v2397 = vperm.slane %v2386, 4
  %v2398 = vperm.slane %v2386, 5
  %v2399 = vperm.slane %v2386, 6
  %v2400 = vperm.slane %v2386, 7
  %v2401 = vperm.slane %v2388, 0
  %v2402 = vperm.slane %v2388, 1
  %v2403 = vperm.slane %v2388, 2
  %v2404 = vperm.slane %v2388, 3
  %v2405 = vperm.slane %v2388, 4
  %v2406 = vperm.slane %v2388, 5
  %v2407 = vperm.slane %v2388, 6
  %v2408 = vperm.slane %v2388, 7
  %v2409 = vlaneseq
  %v2410 = vshrl.u32 %v2409, 7
  %2412 = vset.pattern.permute.xlu0 %v2410
  %2413 = vperm.xlu0 %2412, %v2393
  %v2414 = vpop.permute.xlu0 %2413
  %v2415 = vlaneseq
  %v2416 = vshrl.u32 %v2415, 7
  %v2417 = vadd.s32 %v2416, 8
  %2418 = vset.pattern.permute.xlu0 %v2417
  %2419 = vperm.xlu0 %2418, %v2393
  %v2420 = vpop.permute.xlu0 %2419
  %v2421 = vlaneseq
  %v2422 = vshrl.u32 %v2421, 7
  %v2423 = vadd.s32 %v2422, 16
  %2424 = vset.pattern.permute.xlu0 %v2423
  %2425 = vperm.xlu0 %2424, %v2393
  %v2426 = vpop.permute.xlu0 %2425
  %v2427 = vlaneseq
  %v2428 = vshrl.u32 %v2427, 7
  %v2429 = vadd.s32 %v2428, 24
  %2430 = vset.pattern.permute.xlu0 %v2429
  %2431 = vperm.xlu0 %2430, %v2393
  %v2432 = vpop.permute.xlu0 %2431
  %v2433 = vlaneseq
  %v2434 = vshrl.u32 %v2433, 7
  %v2435 = vadd.s32 %v2434, 32
  %2436 = vset.pattern.permute.xlu0 %v2435
  %2437 = vperm.xlu0 %2436, %v2393
  %v2438 = vpop.permute.xlu0 %2437
  %v2439 = vlaneseq
  %v2440 = vshrl.u32 %v2439, 7
  %v2441 = vadd.s32 %v2440, 40
  %2442 = vset.pattern.permute.xlu0 %v2441
  %2443 = vperm.xlu0 %2442, %v2393
  %v2444 = vpop.permute.xlu0 %2443
  %v2445 = vlaneseq
  %v2446 = vshrl.u32 %v2445, 7
  %v2447 = vadd.s32 %v2446, 48
  %2448 = vset.pattern.permute.xlu0 %v2447
  %2449 = vperm.xlu0 %2448, %v2393
  %v2450 = vpop.permute.xlu0 %2449
  %v2451 = vlaneseq
  %v2452 = vshrl.u32 %v2451, 7
  %v2453 = vadd.s32 %v2452, 56
  %2454 = vset.pattern.permute.xlu0 %v2453
  %2455 = vperm.xlu0 %2454, %v2393
  %v2456 = vpop.permute.xlu0 %2455
  %v2457 = vlaneseq
  %v2458 = vshrl.u32 %v2457, 7
  %v2459 = vadd.s32 %v2458, 64
  %2460 = vset.pattern.permute.xlu0 %v2459
  %2461 = vperm.xlu0 %2460, %v2393
  %v2462 = vpop.permute.xlu0 %2461
  %v2463 = vlaneseq
  %v2464 = vshrl.u32 %v2463, 7
  %v2465 = vadd.s32 %v2464, 72
  %2466 = vset.pattern.permute.xlu0 %v2465
  %2467 = vperm.xlu0 %2466, %v2393
  %v2468 = vpop.permute.xlu0 %2467
  %v2469 = vlaneseq
  %v2470 = vshrl.u32 %v2469, 7
  %v2471 = vadd.s32 %v2470, 80
  %2472 = vset.pattern.permute.xlu0 %v2471
  %2473 = vperm.xlu0 %2472, %v2393
  %v2474 = vpop.permute.xlu0 %2473
  %v2475 = vlaneseq
  %v2476 = vshrl.u32 %v2475, 7
  %v2477 = vadd.s32 %v2476, 88
  %2478 = vset.pattern.permute.xlu0 %v2477
  %2479 = vperm.xlu0 %2478, %v2393
  %v2480 = vpop.permute.xlu0 %2479
  %v2481 = vlaneseq
  %v2482 = vshrl.u32 %v2481, 7
  %v2483 = vadd.s32 %v2482, 96
  %2484 = vset.pattern.permute.xlu0 %v2483
  %2485 = vperm.xlu0 %2484, %v2393
  %v2486 = vpop.permute.xlu0 %2485
  %v2487 = vlaneseq
  %v2488 = vshrl.u32 %v2487, 7
  %v2489 = vadd.s32 %v2488, 104
  %2490 = vset.pattern.permute.xlu0 %v2489
  %2491 = vperm.xlu0 %2490, %v2393
  %v2492 = vpop.permute.xlu0 %2491
  %v2493 = vlaneseq
  %v2494 = vshrl.u32 %v2493, 7
  %v2495 = vadd.s32 %v2494, 112
  %2496 = vset.pattern.permute.xlu0 %v2495
  %2497 = vperm.xlu0 %2496, %v2393
  %v2498 = vpop.permute.xlu0 %2497
  %v2499 = vlaneseq
  %v2500 = vshrl.u32 %v2499, 7
  %v2501 = vadd.s32 %v2500, 120
  %2502 = vset.pattern.permute.xlu0 %v2501
  %2503 = vperm.xlu0 %2502, %v2393
  %v2504 = vpop.permute.xlu0 %2503
  %v2505 = vlaneseq
  %v2506 = vshrl.u32 %v2505, 7
  %2508 = vset.pattern.permute.xlu0 %v2506
  %2509 = vperm.xlu0 %2508, %v2394
  %v2510 = vpop.permute.xlu0 %2509
  %v2511 = vlaneseq
  %v2512 = vshrl.u32 %v2511, 7
  %v2513 = vadd.s32 %v2512, 8
  %2514 = vset.pattern.permute.xlu0 %v2513
  %2515 = vperm.xlu0 %2514, %v2394
  %v2516 = vpop.permute.xlu0 %2515
  %v2517 = vlaneseq
  %v2518 = vshrl.u32 %v2517, 7
  %v2519 = vadd.s32 %v2518, 16
  %2520 = vset.pattern.permute.xlu0 %v2519
  %2521 = vperm.xlu0 %2520, %v2394
  %v2522 = vpop.permute.xlu0 %2521
  %v2523 = vlaneseq
  %v2524 = vshrl.u32 %v2523, 7
  %v2525 = vadd.s32 %v2524, 24
  %2526 = vset.pattern.permute.xlu0 %v2525
  %2527 = vperm.xlu0 %2526, %v2394
  %v2528 = vpop.permute.xlu0 %2527
  %v2529 = vlaneseq
  %v2530 = vshrl.u32 %v2529, 7
  %v2531 = vadd.s32 %v2530, 32
  %2532 = vset.pattern.permute.xlu0 %v2531
  %2533 = vperm.xlu0 %2532, %v2394
  %v2534 = vpop.permute.xlu0 %2533
  %v2535 = vlaneseq
  %v2536 = vshrl.u32 %v2535, 7
  %v2537 = vadd.s32 %v2536, 40
  %2538 = vset.pattern.permute.xlu0 %v2537
  %2539 = vperm.xlu0 %2538, %v2394
  %v2540 = vpop.permute.xlu0 %2539
  %v2541 = vlaneseq
  %v2542 = vshrl.u32 %v2541, 7
  %v2543 = vadd.s32 %v2542, 48
  %2544 = vset.pattern.permute.xlu0 %v2543
  %2545 = vperm.xlu0 %2544, %v2394
  %v2546 = vpop.permute.xlu0 %2545
  %v2547 = vlaneseq
  %v2548 = vshrl.u32 %v2547, 7
  %v2549 = vadd.s32 %v2548, 56
  %2550 = vset.pattern.permute.xlu0 %v2549
  %2551 = vperm.xlu0 %2550, %v2394
  %v2552 = vpop.permute.xlu0 %2551
  %v2553 = vlaneseq
  %v2554 = vshrl.u32 %v2553, 7
  %v2555 = vadd.s32 %v2554, 64
  %2556 = vset.pattern.permute.xlu0 %v2555
  %2557 = vperm.xlu0 %2556, %v2394
  %v2558 = vpop.permute.xlu0 %2557
  %v2559 = vlaneseq
  %v2560 = vshrl.u32 %v2559, 7
  %v2561 = vadd.s32 %v2560, 72
  %2562 = vset.pattern.permute.xlu0 %v2561
  %2563 = vperm.xlu0 %2562, %v2394
  %v2564 = vpop.permute.xlu0 %2563
  %v2565 = vlaneseq
  %v2566 = vshrl.u32 %v2565, 7
  %v2567 = vadd.s32 %v2566, 80
  %2568 = vset.pattern.permute.xlu0 %v2567
  %2569 = vperm.xlu0 %2568, %v2394
  %v2570 = vpop.permute.xlu0 %2569
  %v2571 = vlaneseq
  %v2572 = vshrl.u32 %v2571, 7
  %v2573 = vadd.s32 %v2572, 88
  %2574 = vset.pattern.permute.xlu0 %v2573
  %2575 = vperm.xlu0 %2574, %v2394
  %v2576 = vpop.permute.xlu0 %2575
  %v2577 = vlaneseq
  %v2578 = vshrl.u32 %v2577, 7
  %v2579 = vadd.s32 %v2578, 96
  %2580 = vset.pattern.permute.xlu0 %v2579
  %2581 = vperm.xlu0 %2580, %v2394
  %v2582 = vpop.permute.xlu0 %2581
  %v2583 = vlaneseq
  %v2584 = vshrl.u32 %v2583, 7
  %v2585 = vadd.s32 %v2584, 104
  %2586 = vset.pattern.permute.xlu0 %v2585
  %2587 = vperm.xlu0 %2586, %v2394
  %v2588 = vpop.permute.xlu0 %2587
  %v2589 = vlaneseq
  %v2590 = vshrl.u32 %v2589, 7
  %v2591 = vadd.s32 %v2590, 112
  %2592 = vset.pattern.permute.xlu0 %v2591
  %2593 = vperm.xlu0 %2592, %v2394
  %v2594 = vpop.permute.xlu0 %2593
  %v2595 = vlaneseq
  %v2596 = vshrl.u32 %v2595, 7
  %v2597 = vadd.s32 %v2596, 120
  %2598 = vset.pattern.permute.xlu0 %v2597
  %2599 = vperm.xlu0 %2598, %v2394
  %v2600 = vpop.permute.xlu0 %2599
  %v2601 = vlaneseq
  %v2602 = vshrl.u32 %v2601, 7
  %2604 = vset.pattern.permute.xlu0 %v2602
  %2605 = vperm.xlu0 %2604, %v2395
  %v2606 = vpop.permute.xlu0 %2605
  %v2607 = vlaneseq
  %v2608 = vshrl.u32 %v2607, 7
  %v2609 = vadd.s32 %v2608, 8
  %2610 = vset.pattern.permute.xlu0 %v2609
  %2611 = vperm.xlu0 %2610, %v2395
  %v2612 = vpop.permute.xlu0 %2611
  %v2613 = vlaneseq
  %v2614 = vshrl.u32 %v2613, 7
  %v2615 = vadd.s32 %v2614, 16
  %2616 = vset.pattern.permute.xlu0 %v2615
  %2617 = vperm.xlu0 %2616, %v2395
  %v2618 = vpop.permute.xlu0 %2617
  %v2619 = vlaneseq
  %v2620 = vshrl.u32 %v2619, 7
  %v2621 = vadd.s32 %v2620, 24
  %2622 = vset.pattern.permute.xlu0 %v2621
  %2623 = vperm.xlu0 %2622, %v2395
  %v2624 = vpop.permute.xlu0 %2623
  %v2625 = vlaneseq
  %v2626 = vshrl.u32 %v2625, 7
  %v2627 = vadd.s32 %v2626, 32
  %2628 = vset.pattern.permute.xlu0 %v2627
  %2629 = vperm.xlu0 %2628, %v2395
  %v2630 = vpop.permute.xlu0 %2629
  %v2631 = vlaneseq
  %v2632 = vshrl.u32 %v2631, 7
  %v2633 = vadd.s32 %v2632, 40
  %2634 = vset.pattern.permute.xlu0 %v2633
  %2635 = vperm.xlu0 %2634, %v2395
  %v2636 = vpop.permute.xlu0 %2635
  %v2637 = vlaneseq
  %v2638 = vshrl.u32 %v2637, 7
  %v2639 = vadd.s32 %v2638, 48
  %2640 = vset.pattern.permute.xlu0 %v2639
  %2641 = vperm.xlu0 %2640, %v2395
  %v2642 = vpop.permute.xlu0 %2641
  %v2643 = vlaneseq
  %v2644 = vshrl.u32 %v2643, 7
  %v2645 = vadd.s32 %v2644, 56
  %2646 = vset.pattern.permute.xlu0 %v2645
  %2647 = vperm.xlu0 %2646, %v2395
  %v2648 = vpop.permute.xlu0 %2647
  %v2649 = vlaneseq
  %v2650 = vshrl.u32 %v2649, 7
  %v2651 = vadd.s32 %v2650, 64
  %2652 = vset.pattern.permute.xlu0 %v2651
  %2653 = vperm.xlu0 %2652, %v2395
  %v2654 = vpop.permute.xlu0 %2653
  %v2655 = vlaneseq
  %v2656 = vshrl.u32 %v2655, 7
  %v2657 = vadd.s32 %v2656, 72
  %2658 = vset.pattern.permute.xlu0 %v2657
  %2659 = vperm.xlu0 %2658, %v2395
  %v2660 = vpop.permute.xlu0 %2659
  %v2661 = vlaneseq
  %v2662 = vshrl.u32 %v2661, 7
  %v2663 = vadd.s32 %v2662, 80
  %2664 = vset.pattern.permute.xlu0 %v2663
  %2665 = vperm.xlu0 %2664, %v2395
  %v2666 = vpop.permute.xlu0 %2665
  %v2667 = vlaneseq
  %v2668 = vshrl.u32 %v2667, 7
  %v2669 = vadd.s32 %v2668, 88
  %2670 = vset.pattern.permute.xlu0 %v2669
  %2671 = vperm.xlu0 %2670, %v2395
  %v2672 = vpop.permute.xlu0 %2671
  %v2673 = vlaneseq
  %v2674 = vshrl.u32 %v2673, 7
  %v2675 = vadd.s32 %v2674, 96
  %2676 = vset.pattern.permute.xlu0 %v2675
  %2677 = vperm.xlu0 %2676, %v2395
  %v2678 = vpop.permute.xlu0 %2677
  %v2679 = vlaneseq
  %v2680 = vshrl.u32 %v2679, 7
  %v2681 = vadd.s32 %v2680, 104
  %2682 = vset.pattern.permute.xlu0 %v2681
  %2683 = vperm.xlu0 %2682, %v2395
  %v2684 = vpop.permute.xlu0 %2683
  %v2685 = vlaneseq
  %v2686 = vshrl.u32 %v2685, 7
  %v2687 = vadd.s32 %v2686, 112
  %2688 = vset.pattern.permute.xlu0 %v2687
  %2689 = vperm.xlu0 %2688, %v2395
  %v2690 = vpop.permute.xlu0 %2689
  %v2691 = vlaneseq
  %v2692 = vshrl.u32 %v2691, 7
  %v2693 = vadd.s32 %v2692, 120
  %2694 = vset.pattern.permute.xlu0 %v2693
  %2695 = vperm.xlu0 %2694, %v2395
  %v2696 = vpop.permute.xlu0 %2695
  %v2697 = vlaneseq
  %v2698 = vshrl.u32 %v2697, 7
  %2700 = vset.pattern.permute.xlu0 %v2698
  %2701 = vperm.xlu0 %2700, %v2396
  %v2702 = vpop.permute.xlu0 %2701
  %v2703 = vlaneseq
  %v2704 = vshrl.u32 %v2703, 7
  %v2705 = vadd.s32 %v2704, 8
  %2706 = vset.pattern.permute.xlu0 %v2705
  %2707 = vperm.xlu0 %2706, %v2396
  %v2708 = vpop.permute.xlu0 %2707
  %v2709 = vlaneseq
  %v2710 = vshrl.u32 %v2709, 7
  %v2711 = vadd.s32 %v2710, 16
  %2712 = vset.pattern.permute.xlu0 %v2711
  %2713 = vperm.xlu0 %2712, %v2396
  %v2714 = vpop.permute.xlu0 %2713
  %v2715 = vlaneseq
  %v2716 = vshrl.u32 %v2715, 7
  %v2717 = vadd.s32 %v2716, 24
  %2718 = vset.pattern.permute.xlu0 %v2717
  %2719 = vperm.xlu0 %2718, %v2396
  %v2720 = vpop.permute.xlu0 %2719
  %v2721 = vlaneseq
  %v2722 = vshrl.u32 %v2721, 7
  %v2723 = vadd.s32 %v2722, 32
  %2724 = vset.pattern.permute.xlu0 %v2723
  %2725 = vperm.xlu0 %2724, %v2396
  %v2726 = vpop.permute.xlu0 %2725
  %v2727 = vlaneseq
  %v2728 = vshrl.u32 %v2727, 7
  %v2729 = vadd.s32 %v2728, 40
  %2730 = vset.pattern.permute.xlu0 %v2729
  %2731 = vperm.xlu0 %2730, %v2396
  %v2732 = vpop.permute.xlu0 %2731
  %v2733 = vlaneseq
  %v2734 = vshrl.u32 %v2733, 7
  %v2735 = vadd.s32 %v2734, 48
  %2736 = vset.pattern.permute.xlu0 %v2735
  %2737 = vperm.xlu0 %2736, %v2396
  %v2738 = vpop.permute.xlu0 %2737
  %v2739 = vlaneseq
  %v2740 = vshrl.u32 %v2739, 7
  %v2741 = vadd.s32 %v2740, 56
  %2742 = vset.pattern.permute.xlu0 %v2741
  %2743 = vperm.xlu0 %2742, %v2396
  %v2744 = vpop.permute.xlu0 %2743
  %v2745 = vlaneseq
  %v2746 = vshrl.u32 %v2745, 7
  %v2747 = vadd.s32 %v2746, 64
  %2748 = vset.pattern.permute.xlu0 %v2747
  %2749 = vperm.xlu0 %2748, %v2396
  %v2750 = vpop.permute.xlu0 %2749
  %v2751 = vlaneseq
  %v2752 = vshrl.u32 %v2751, 7
  %v2753 = vadd.s32 %v2752, 72
  %2754 = vset.pattern.permute.xlu0 %v2753
  %2755 = vperm.xlu0 %2754, %v2396
  %v2756 = vpop.permute.xlu0 %2755
  %v2757 = vlaneseq
  %v2758 = vshrl.u32 %v2757, 7
  %v2759 = vadd.s32 %v2758, 80
  %2760 = vset.pattern.permute.xlu0 %v2759
  %2761 = vperm.xlu0 %2760, %v2396
  %v2762 = vpop.permute.xlu0 %2761
  %v2763 = vlaneseq
  %v2764 = vshrl.u32 %v2763, 7
  %v2765 = vadd.s32 %v2764, 88
  %2766 = vset.pattern.permute.xlu0 %v2765
  %2767 = vperm.xlu0 %2766, %v2396
  %v2768 = vpop.permute.xlu0 %2767
  %v2769 = vlaneseq
  %v2770 = vshrl.u32 %v2769, 7
  %v2771 = vadd.s32 %v2770, 96
  %2772 = vset.pattern.permute.xlu0 %v2771
  %2773 = vperm.xlu0 %2772, %v2396
  %v2774 = vpop.permute.xlu0 %2773
  %v2775 = vlaneseq
  %v2776 = vshrl.u32 %v2775, 7
  %v2777 = vadd.s32 %v2776, 104
  %2778 = vset.pattern.permute.xlu0 %v2777
  %2779 = vperm.xlu0 %2778, %v2396
  %v2780 = vpop.permute.xlu0 %2779
  %v2781 = vlaneseq
  %v2782 = vshrl.u32 %v2781, 7
  %v2783 = vadd.s32 %v2782, 112
  %2784 = vset.pattern.permute.xlu0 %v2783
  %2785 = vperm.xlu0 %2784, %v2396
  %v2786 = vpop.permute.xlu0 %2785
  %v2787 = vlaneseq
  %v2788 = vshrl.u32 %v2787, 7
  %v2789 = vadd.s32 %v2788, 120
  %2790 = vset.pattern.permute.xlu0 %v2789
  %2791 = vperm.xlu0 %2790, %v2396
  %v2792 = vpop.permute.xlu0 %2791
  %v2793 = vlaneseq
  %v2794 = vshrl.u32 %v2793, 7
  %2796 = vset.pattern.permute.xlu0 %v2794
  %2797 = vperm.xlu0 %2796, %v2397
  %v2798 = vpop.permute.xlu0 %2797
  %v2799 = vlaneseq
  %v2800 = vshrl.u32 %v2799, 7
  %v2801 = vadd.s32 %v2800, 8
  %2802 = vset.pattern.permute.xlu0 %v2801
  %2803 = vperm.xlu0 %2802, %v2397
  %v2804 = vpop.permute.xlu0 %2803
  %v2805 = vlaneseq
  %v2806 = vshrl.u32 %v2805, 7
  %v2807 = vadd.s32 %v2806, 16
  %2808 = vset.pattern.permute.xlu0 %v2807
  %2809 = vperm.xlu0 %2808, %v2397
  %v2810 = vpop.permute.xlu0 %2809
  %v2811 = vlaneseq
  %v2812 = vshrl.u32 %v2811, 7
  %v2813 = vadd.s32 %v2812, 24
  %2814 = vset.pattern.permute.xlu0 %v2813
  %2815 = vperm.xlu0 %2814, %v2397
  %v2816 = vpop.permute.xlu0 %2815
  %v2817 = vlaneseq
  %v2818 = vshrl.u32 %v2817, 7
  %v2819 = vadd.s32 %v2818, 32
  %2820 = vset.pattern.permute.xlu0 %v2819
  %2821 = vperm.xlu0 %2820, %v2397
  %v2822 = vpop.permute.xlu0 %2821
  %v2823 = vlaneseq
  %v2824 = vshrl.u32 %v2823, 7
  %v2825 = vadd.s32 %v2824, 40
  %2826 = vset.pattern.permute.xlu0 %v2825
  %2827 = vperm.xlu0 %2826, %v2397
  %v2828 = vpop.permute.xlu0 %2827
  %v2829 = vlaneseq
  %v2830 = vshrl.u32 %v2829, 7
  %v2831 = vadd.s32 %v2830, 48
  %2832 = vset.pattern.permute.xlu0 %v2831
  %2833 = vperm.xlu0 %2832, %v2397
  %v2834 = vpop.permute.xlu0 %2833
  %v2835 = vlaneseq
  %v2836 = vshrl.u32 %v2835, 7
  %v2837 = vadd.s32 %v2836, 56
  %2838 = vset.pattern.permute.xlu0 %v2837
  %2839 = vperm.xlu0 %2838, %v2397
  %v2840 = vpop.permute.xlu0 %2839
  %v2841 = vlaneseq
  %v2842 = vshrl.u32 %v2841, 7
  %v2843 = vadd.s32 %v2842, 64
  %2844 = vset.pattern.permute.xlu0 %v2843
  %2845 = vperm.xlu0 %2844, %v2397
  %v2846 = vpop.permute.xlu0 %2845
  %v2847 = vlaneseq
  %v2848 = vshrl.u32 %v2847, 7
  %v2849 = vadd.s32 %v2848, 72
  %2850 = vset.pattern.permute.xlu0 %v2849
  %2851 = vperm.xlu0 %2850, %v2397
  %v2852 = vpop.permute.xlu0 %2851
  %v2853 = vlaneseq
  %v2854 = vshrl.u32 %v2853, 7
  %v2855 = vadd.s32 %v2854, 80
  %2856 = vset.pattern.permute.xlu0 %v2855
  %2857 = vperm.xlu0 %2856, %v2397
  %v2858 = vpop.permute.xlu0 %2857
  %v2859 = vlaneseq
  %v2860 = vshrl.u32 %v2859, 7
  %v2861 = vadd.s32 %v2860, 88
  %2862 = vset.pattern.permute.xlu0 %v2861
  %2863 = vperm.xlu0 %2862, %v2397
  %v2864 = vpop.permute.xlu0 %2863
  %v2865 = vlaneseq
  %v2866 = vshrl.u32 %v2865, 7
  %v2867 = vadd.s32 %v2866, 96
  %2868 = vset.pattern.permute.xlu0 %v2867
  %2869 = vperm.xlu0 %2868, %v2397
  %v2870 = vpop.permute.xlu0 %2869
  %v2871 = vlaneseq
  %v2872 = vshrl.u32 %v2871, 7
  %v2873 = vadd.s32 %v2872, 104
  %2874 = vset.pattern.permute.xlu0 %v2873
  %2875 = vperm.xlu0 %2874, %v2397
  %v2876 = vpop.permute.xlu0 %2875
  %v2877 = vlaneseq
  %v2878 = vshrl.u32 %v2877, 7
  %v2879 = vadd.s32 %v2878, 112
  %2880 = vset.pattern.permute.xlu0 %v2879
  %2881 = vperm.xlu0 %2880, %v2397
  %v2882 = vpop.permute.xlu0 %2881
  %v2883 = vlaneseq
  %v2884 = vshrl.u32 %v2883, 7
  %v2885 = vadd.s32 %v2884, 120
  %2886 = vset.pattern.permute.xlu0 %v2885
  %2887 = vperm.xlu0 %2886, %v2397
  %v2888 = vpop.permute.xlu0 %2887
  %v2889 = vlaneseq
  %v2890 = vshrl.u32 %v2889, 7
  %2892 = vset.pattern.permute.xlu0 %v2890
  %2893 = vperm.xlu0 %2892, %v2398
  %v2894 = vpop.permute.xlu0 %2893
  %v2895 = vlaneseq
  %v2896 = vshrl.u32 %v2895, 7
  %v2897 = vadd.s32 %v2896, 8
  %2898 = vset.pattern.permute.xlu0 %v2897
  %2899 = vperm.xlu0 %2898, %v2398
  %v2900 = vpop.permute.xlu0 %2899
  %v2901 = vlaneseq
  %v2902 = vshrl.u32 %v2901, 7
  %v2903 = vadd.s32 %v2902, 16
  %2904 = vset.pattern.permute.xlu0 %v2903
  %2905 = vperm.xlu0 %2904, %v2398
  %v2906 = vpop.permute.xlu0 %2905
  %v2907 = vlaneseq
  %v2908 = vshrl.u32 %v2907, 7
  %v2909 = vadd.s32 %v2908, 24
  %2910 = vset.pattern.permute.xlu0 %v2909
  %2911 = vperm.xlu0 %2910, %v2398
  %v2912 = vpop.permute.xlu0 %2911
  %v2913 = vlaneseq
  %v2914 = vshrl.u32 %v2913, 7
  %v2915 = vadd.s32 %v2914, 32
  %2916 = vset.pattern.permute.xlu0 %v2915
  %2917 = vperm.xlu0 %2916, %v2398
  %v2918 = vpop.permute.xlu0 %2917
  %v2919 = vlaneseq
  %v2920 = vshrl.u32 %v2919, 7
  %v2921 = vadd.s32 %v2920, 40
  %2922 = vset.pattern.permute.xlu0 %v2921
  %2923 = vperm.xlu0 %2922, %v2398
  %v2924 = vpop.permute.xlu0 %2923
  %v2925 = vlaneseq
  %v2926 = vshrl.u32 %v2925, 7
  %v2927 = vadd.s32 %v2926, 48
  %2928 = vset.pattern.permute.xlu0 %v2927
  %2929 = vperm.xlu0 %2928, %v2398
  %v2930 = vpop.permute.xlu0 %2929
  %v2931 = vlaneseq
  %v2932 = vshrl.u32 %v2931, 7
  %v2933 = vadd.s32 %v2932, 56
  %2934 = vset.pattern.permute.xlu0 %v2933
  %2935 = vperm.xlu0 %2934, %v2398
  %v2936 = vpop.permute.xlu0 %2935
  %v2937 = vlaneseq
  %v2938 = vshrl.u32 %v2937, 7
  %v2939 = vadd.s32 %v2938, 64
  %2940 = vset.pattern.permute.xlu0 %v2939
  %2941 = vperm.xlu0 %2940, %v2398
  %v2942 = vpop.permute.xlu0 %2941
  %v2943 = vlaneseq
  %v2944 = vshrl.u32 %v2943, 7
  %v2945 = vadd.s32 %v2944, 72
  %2946 = vset.pattern.permute.xlu0 %v2945
  %2947 = vperm.xlu0 %2946, %v2398
  %v2948 = vpop.permute.xlu0 %2947
  %v2949 = vlaneseq
  %v2950 = vshrl.u32 %v2949, 7
  %v2951 = vadd.s32 %v2950, 80
  %2952 = vset.pattern.permute.xlu0 %v2951
  %2953 = vperm.xlu0 %2952, %v2398
  %v2954 = vpop.permute.xlu0 %2953
  %v2955 = vlaneseq
  %v2956 = vshrl.u32 %v2955, 7
  %v2957 = vadd.s32 %v2956, 88
  %2958 = vset.pattern.permute.xlu0 %v2957
  %2959 = vperm.xlu0 %2958, %v2398
  %v2960 = vpop.permute.xlu0 %2959
  %v2961 = vlaneseq
  %v2962 = vshrl.u32 %v2961, 7
  %v2963 = vadd.s32 %v2962, 96
  %2964 = vset.pattern.permute.xlu0 %v2963
  %2965 = vperm.xlu0 %2964, %v2398
  %v2966 = vpop.permute.xlu0 %2965
  %v2967 = vlaneseq
  %v2968 = vshrl.u32 %v2967, 7
  %v2969 = vadd.s32 %v2968, 104
  %2970 = vset.pattern.permute.xlu0 %v2969
  %2971 = vperm.xlu0 %2970, %v2398
  %v2972 = vpop.permute.xlu0 %2971
  %v2973 = vlaneseq
  %v2974 = vshrl.u32 %v2973, 7
  %v2975 = vadd.s32 %v2974, 112
  %2976 = vset.pattern.permute.xlu0 %v2975
  %2977 = vperm.xlu0 %2976, %v2398
  %v2978 = vpop.permute.xlu0 %2977
  %v2979 = vlaneseq
  %v2980 = vshrl.u32 %v2979, 7
  %v2981 = vadd.s32 %v2980, 120
  %2982 = vset.pattern.permute.xlu0 %v2981
  %2983 = vperm.xlu0 %2982, %v2398
  %v2984 = vpop.permute.xlu0 %2983
  %v2985 = vlaneseq
  %v2986 = vshrl.u32 %v2985, 7
  %2988 = vset.pattern.permute.xlu0 %v2986
  %2989 = vperm.xlu0 %2988, %v2399
  %v2990 = vpop.permute.xlu0 %2989
  %v2991 = vlaneseq
  %v2992 = vshrl.u32 %v2991, 7
  %v2993 = vadd.s32 %v2992, 8
  %2994 = vset.pattern.permute.xlu0 %v2993
  %2995 = vperm.xlu0 %2994, %v2399
  %v2996 = vpop.permute.xlu0 %2995
  %v2997 = vlaneseq
  %v2998 = vshrl.u32 %v2997, 7
  %v2999 = vadd.s32 %v2998, 16
  %3000 = vset.pattern.permute.xlu0 %v2999
  %3001 = vperm.xlu0 %3000, %v2399
  %v3002 = vpop.permute.xlu0 %3001
  %v3003 = vlaneseq
  %v3004 = vshrl.u32 %v3003, 7
  %v3005 = vadd.s32 %v3004, 24
  %3006 = vset.pattern.permute.xlu0 %v3005
  %3007 = vperm.xlu0 %3006, %v2399
  %v3008 = vpop.permute.xlu0 %3007
  %v3009 = vlaneseq
  %v3010 = vshrl.u32 %v3009, 7
  %v3011 = vadd.s32 %v3010, 32
  %3012 = vset.pattern.permute.xlu0 %v3011
  %3013 = vperm.xlu0 %3012, %v2399
  %v3014 = vpop.permute.xlu0 %3013
  %v3015 = vlaneseq
  %v3016 = vshrl.u32 %v3015, 7
  %v3017 = vadd.s32 %v3016, 40
  %3018 = vset.pattern.permute.xlu0 %v3017
  %3019 = vperm.xlu0 %3018, %v2399
  %v3020 = vpop.permute.xlu0 %3019
  %v3021 = vlaneseq
  %v3022 = vshrl.u32 %v3021, 7
  %v3023 = vadd.s32 %v3022, 48
  %3024 = vset.pattern.permute.xlu0 %v3023
  %3025 = vperm.xlu0 %3024, %v2399
  %v3026 = vpop.permute.xlu0 %3025
  %v3027 = vlaneseq
  %v3028 = vshrl.u32 %v3027, 7
  %v3029 = vadd.s32 %v3028, 56
  %3030 = vset.pattern.permute.xlu0 %v3029
  %3031 = vperm.xlu0 %3030, %v2399
  %v3032 = vpop.permute.xlu0 %3031
  %v3033 = vlaneseq
  %v3034 = vshrl.u32 %v3033, 7
  %v3035 = vadd.s32 %v3034, 64
  %3036 = vset.pattern.permute.xlu0 %v3035
  %3037 = vperm.xlu0 %3036, %v2399
  %v3038 = vpop.permute.xlu0 %3037
  %v3039 = vlaneseq
  %v3040 = vshrl.u32 %v3039, 7
  %v3041 = vadd.s32 %v3040, 72
  %3042 = vset.pattern.permute.xlu0 %v3041
  %3043 = vperm.xlu0 %3042, %v2399
  %v3044 = vpop.permute.xlu0 %3043
  %v3045 = vlaneseq
  %v3046 = vshrl.u32 %v3045, 7
  %v3047 = vadd.s32 %v3046, 80
  %3048 = vset.pattern.permute.xlu0 %v3047
  %3049 = vperm.xlu0 %3048, %v2399
  %v3050 = vpop.permute.xlu0 %3049
  %v3051 = vlaneseq
  %v3052 = vshrl.u32 %v3051, 7
  %v3053 = vadd.s32 %v3052, 88
  %3054 = vset.pattern.permute.xlu0 %v3053
  %3055 = vperm.xlu0 %3054, %v2399
  %v3056 = vpop.permute.xlu0 %3055
  %v3057 = vlaneseq
  %v3058 = vshrl.u32 %v3057, 7
  %v3059 = vadd.s32 %v3058, 96
  %3060 = vset.pattern.permute.xlu0 %v3059
  %3061 = vperm.xlu0 %3060, %v2399
  %v3062 = vpop.permute.xlu0 %3061
  %v3063 = vlaneseq
  %v3064 = vshrl.u32 %v3063, 7
  %v3065 = vadd.s32 %v3064, 104
  %3066 = vset.pattern.permute.xlu0 %v3065
  %3067 = vperm.xlu0 %3066, %v2399
  %v3068 = vpop.permute.xlu0 %3067
  %v3069 = vlaneseq
  %v3070 = vshrl.u32 %v3069, 7
  %v3071 = vadd.s32 %v3070, 112
  %3072 = vset.pattern.permute.xlu0 %v3071
  %3073 = vperm.xlu0 %3072, %v2399
  %v3074 = vpop.permute.xlu0 %3073
  %v3075 = vlaneseq
  %v3076 = vshrl.u32 %v3075, 7
  %v3077 = vadd.s32 %v3076, 120
  %3078 = vset.pattern.permute.xlu0 %v3077
  %3079 = vperm.xlu0 %3078, %v2399
  %v3080 = vpop.permute.xlu0 %3079
  %v3081 = vlaneseq
  %v3082 = vshrl.u32 %v3081, 7
  %3084 = vset.pattern.permute.xlu0 %v3082
  %3085 = vperm.xlu0 %3084, %v2400
  %v3086 = vpop.permute.xlu0 %3085
  %v3087 = vlaneseq
  %v3088 = vshrl.u32 %v3087, 7
  %v3089 = vadd.s32 %v3088, 8
  %3090 = vset.pattern.permute.xlu0 %v3089
  %3091 = vperm.xlu0 %3090, %v2400
  %v3092 = vpop.permute.xlu0 %3091
  %v3093 = vlaneseq
  %v3094 = vshrl.u32 %v3093, 7
  %v3095 = vadd.s32 %v3094, 16
  %3096 = vset.pattern.permute.xlu0 %v3095
  %3097 = vperm.xlu0 %3096, %v2400
  %v3098 = vpop.permute.xlu0 %3097
  %v3099 = vlaneseq
  %v3100 = vshrl.u32 %v3099, 7
  %v3101 = vadd.s32 %v3100, 24
  %3102 = vset.pattern.permute.xlu0 %v3101
  %3103 = vperm.xlu0 %3102, %v2400
  %v3104 = vpop.permute.xlu0 %3103
  %v3105 = vlaneseq
  %v3106 = vshrl.u32 %v3105, 7
  %v3107 = vadd.s32 %v3106, 32
  %3108 = vset.pattern.permute.xlu0 %v3107
  %3109 = vperm.xlu0 %3108, %v2400
  %v3110 = vpop.permute.xlu0 %3109
  %v3111 = vlaneseq
  %v3112 = vshrl.u32 %v3111, 7
  %v3113 = vadd.s32 %v3112, 40
  %3114 = vset.pattern.permute.xlu0 %v3113
  %3115 = vperm.xlu0 %3114, %v2400
  %v3116 = vpop.permute.xlu0 %3115
  %v3117 = vlaneseq
  %v3118 = vshrl.u32 %v3117, 7
  %v3119 = vadd.s32 %v3118, 48
  %3120 = vset.pattern.permute.xlu0 %v3119
  %3121 = vperm.xlu0 %3120, %v2400
  %v3122 = vpop.permute.xlu0 %3121
  %v3123 = vlaneseq
  %v3124 = vshrl.u32 %v3123, 7
  %v3125 = vadd.s32 %v3124, 56
  %3126 = vset.pattern.permute.xlu0 %v3125
  %3127 = vperm.xlu0 %3126, %v2400
  %v3128 = vpop.permute.xlu0 %3127
  %v3129 = vlaneseq
  %v3130 = vshrl.u32 %v3129, 7
  %v3131 = vadd.s32 %v3130, 64
  %3132 = vset.pattern.permute.xlu0 %v3131
  %3133 = vperm.xlu0 %3132, %v2400
  %v3134 = vpop.permute.xlu0 %3133
  %v3135 = vlaneseq
  %v3136 = vshrl.u32 %v3135, 7
  %v3137 = vadd.s32 %v3136, 72
  %3138 = vset.pattern.permute.xlu0 %v3137
  %3139 = vperm.xlu0 %3138, %v2400
  %v3140 = vpop.permute.xlu0 %3139
  %v3141 = vlaneseq
  %v3142 = vshrl.u32 %v3141, 7
  %v3143 = vadd.s32 %v3142, 80
  %3144 = vset.pattern.permute.xlu0 %v3143
  %3145 = vperm.xlu0 %3144, %v2400
  %v3146 = vpop.permute.xlu0 %3145
  %v3147 = vlaneseq
  %v3148 = vshrl.u32 %v3147, 7
  %v3149 = vadd.s32 %v3148, 88
  %3150 = vset.pattern.permute.xlu0 %v3149
  %3151 = vperm.xlu0 %3150, %v2400
  %v3152 = vpop.permute.xlu0 %3151
  %v3153 = vlaneseq
  %v3154 = vshrl.u32 %v3153, 7
  %v3155 = vadd.s32 %v3154, 96
  %3156 = vset.pattern.permute.xlu0 %v3155
  %3157 = vperm.xlu0 %3156, %v2400
  %v3158 = vpop.permute.xlu0 %3157
  %v3159 = vlaneseq
  %v3160 = vshrl.u32 %v3159, 7
  %v3161 = vadd.s32 %v3160, 104
  %3162 = vset.pattern.permute.xlu0 %v3161
  %3163 = vperm.xlu0 %3162, %v2400
  %v3164 = vpop.permute.xlu0 %3163
  %v3165 = vlaneseq
  %v3166 = vshrl.u32 %v3165, 7
  %v3167 = vadd.s32 %v3166, 112
  %3168 = vset.pattern.permute.xlu0 %v3167
  %3169 = vperm.xlu0 %3168, %v2400
  %v3170 = vpop.permute.xlu0 %3169
  %v3171 = vlaneseq
  %v3172 = vshrl.u32 %v3171, 7
  %v3173 = vadd.s32 %v3172, 120
  %3174 = vset.pattern.permute.xlu0 %v3173
  %3175 = vperm.xlu0 %3174, %v2400
  %v3176 = vpop.permute.xlu0 %3175
  %v3177 = vlaneseq
  %v3178 = vshrl.u32 %v3177, 7
  %3180 = vset.pattern.permute.xlu0 %v3178
  %3181 = vperm.xlu0 %3180, %v2401
  %v3182 = vpop.permute.xlu0 %3181
  %v3183 = vlaneseq
  %v3184 = vshrl.u32 %v3183, 7
  %v3185 = vadd.s32 %v3184, 8
  %3186 = vset.pattern.permute.xlu0 %v3185
  %3187 = vperm.xlu0 %3186, %v2401
  %v3188 = vpop.permute.xlu0 %3187
  %v3189 = vlaneseq
  %v3190 = vshrl.u32 %v3189, 7
  %v3191 = vadd.s32 %v3190, 16
  %3192 = vset.pattern.permute.xlu0 %v3191
  %3193 = vperm.xlu0 %3192, %v2401
  %v3194 = vpop.permute.xlu0 %3193
  %v3195 = vlaneseq
  %v3196 = vshrl.u32 %v3195, 7
  %v3197 = vadd.s32 %v3196, 24
  %3198 = vset.pattern.permute.xlu0 %v3197
  %3199 = vperm.xlu0 %3198, %v2401
  %v3200 = vpop.permute.xlu0 %3199
  %v3201 = vlaneseq
  %v3202 = vshrl.u32 %v3201, 7
  %v3203 = vadd.s32 %v3202, 32
  %3204 = vset.pattern.permute.xlu0 %v3203
  %3205 = vperm.xlu0 %3204, %v2401
  %v3206 = vpop.permute.xlu0 %3205
  %v3207 = vlaneseq
  %v3208 = vshrl.u32 %v3207, 7
  %v3209 = vadd.s32 %v3208, 40
  %3210 = vset.pattern.permute.xlu0 %v3209
  %3211 = vperm.xlu0 %3210, %v2401
  %v3212 = vpop.permute.xlu0 %3211
  %v3213 = vlaneseq
  %v3214 = vshrl.u32 %v3213, 7
  %v3215 = vadd.s32 %v3214, 48
  %3216 = vset.pattern.permute.xlu0 %v3215
  %3217 = vperm.xlu0 %3216, %v2401
  %v3218 = vpop.permute.xlu0 %3217
  %v3219 = vlaneseq
  %v3220 = vshrl.u32 %v3219, 7
  %v3221 = vadd.s32 %v3220, 56
  %3222 = vset.pattern.permute.xlu0 %v3221
  %3223 = vperm.xlu0 %3222, %v2401
  %v3224 = vpop.permute.xlu0 %3223
  %v3225 = vlaneseq
  %v3226 = vshrl.u32 %v3225, 7
  %v3227 = vadd.s32 %v3226, 64
  %3228 = vset.pattern.permute.xlu0 %v3227
  %3229 = vperm.xlu0 %3228, %v2401
  %v3230 = vpop.permute.xlu0 %3229
  %v3231 = vlaneseq
  %v3232 = vshrl.u32 %v3231, 7
  %v3233 = vadd.s32 %v3232, 72
  %3234 = vset.pattern.permute.xlu0 %v3233
  %3235 = vperm.xlu0 %3234, %v2401
  %v3236 = vpop.permute.xlu0 %3235
  %v3237 = vlaneseq
  %v3238 = vshrl.u32 %v3237, 7
  %v3239 = vadd.s32 %v3238, 80
  %3240 = vset.pattern.permute.xlu0 %v3239
  %3241 = vperm.xlu0 %3240, %v2401
  %v3242 = vpop.permute.xlu0 %3241
  %v3243 = vlaneseq
  %v3244 = vshrl.u32 %v3243, 7
  %v3245 = vadd.s32 %v3244, 88
  %3246 = vset.pattern.permute.xlu0 %v3245
  %3247 = vperm.xlu0 %3246, %v2401
  %v3248 = vpop.permute.xlu0 %3247
  %v3249 = vlaneseq
  %v3250 = vshrl.u32 %v3249, 7
  %v3251 = vadd.s32 %v3250, 96
  %3252 = vset.pattern.permute.xlu0 %v3251
  %3253 = vperm.xlu0 %3252, %v2401
  %v3254 = vpop.permute.xlu0 %3253
  %v3255 = vlaneseq
  %v3256 = vshrl.u32 %v3255, 7
  %v3257 = vadd.s32 %v3256, 104
  %3258 = vset.pattern.permute.xlu0 %v3257
  %3259 = vperm.xlu0 %3258, %v2401
  %v3260 = vpop.permute.xlu0 %3259
  %v3261 = vlaneseq
  %v3262 = vshrl.u32 %v3261, 7
  %v3263 = vadd.s32 %v3262, 112
  %3264 = vset.pattern.permute.xlu0 %v3263
  %3265 = vperm.xlu0 %3264, %v2401
  %v3266 = vpop.permute.xlu0 %3265
  %v3267 = vlaneseq
  %v3268 = vshrl.u32 %v3267, 7
  %v3269 = vadd.s32 %v3268, 120
  %3270 = vset.pattern.permute.xlu0 %v3269
  %3271 = vperm.xlu0 %3270, %v2401
  %v3272 = vpop.permute.xlu0 %3271
  %v3273 = vlaneseq
  %v3274 = vshrl.u32 %v3273, 7
  %3276 = vset.pattern.permute.xlu0 %v3274
  %3277 = vperm.xlu0 %3276, %v2402
  %v3278 = vpop.permute.xlu0 %3277
  %v3279 = vlaneseq
  %v3280 = vshrl.u32 %v3279, 7
  %v3281 = vadd.s32 %v3280, 8
  %3282 = vset.pattern.permute.xlu0 %v3281
  %3283 = vperm.xlu0 %3282, %v2402
  %v3284 = vpop.permute.xlu0 %3283
  %v3285 = vlaneseq
  %v3286 = vshrl.u32 %v3285, 7
  %v3287 = vadd.s32 %v3286, 16
  %3288 = vset.pattern.permute.xlu0 %v3287
  %3289 = vperm.xlu0 %3288, %v2402
  %v3290 = vpop.permute.xlu0 %3289
  %v3291 = vlaneseq
  %v3292 = vshrl.u32 %v3291, 7
  %v3293 = vadd.s32 %v3292, 24
  %3294 = vset.pattern.permute.xlu0 %v3293
  %3295 = vperm.xlu0 %3294, %v2402
  %v3296 = vpop.permute.xlu0 %3295
  %v3297 = vlaneseq
  %v3298 = vshrl.u32 %v3297, 7
  %v3299 = vadd.s32 %v3298, 32
  %3300 = vset.pattern.permute.xlu0 %v3299
  %3301 = vperm.xlu0 %3300, %v2402
  %v3302 = vpop.permute.xlu0 %3301
  %v3303 = vlaneseq
  %v3304 = vshrl.u32 %v3303, 7
  %v3305 = vadd.s32 %v3304, 40
  %3306 = vset.pattern.permute.xlu0 %v3305
  %3307 = vperm.xlu0 %3306, %v2402
  %v3308 = vpop.permute.xlu0 %3307
  %v3309 = vlaneseq
  %v3310 = vshrl.u32 %v3309, 7
  %v3311 = vadd.s32 %v3310, 48
  %3312 = vset.pattern.permute.xlu0 %v3311
  %3313 = vperm.xlu0 %3312, %v2402
  %v3314 = vpop.permute.xlu0 %3313
  %v3315 = vlaneseq
  %v3316 = vshrl.u32 %v3315, 7
  %v3317 = vadd.s32 %v3316, 56
  %3318 = vset.pattern.permute.xlu0 %v3317
  %3319 = vperm.xlu0 %3318, %v2402
  %v3320 = vpop.permute.xlu0 %3319
  %v3321 = vlaneseq
  %v3322 = vshrl.u32 %v3321, 7
  %v3323 = vadd.s32 %v3322, 64
  %3324 = vset.pattern.permute.xlu0 %v3323
  %3325 = vperm.xlu0 %3324, %v2402
  %v3326 = vpop.permute.xlu0 %3325
  %v3327 = vlaneseq
  %v3328 = vshrl.u32 %v3327, 7
  %v3329 = vadd.s32 %v3328, 72
  %3330 = vset.pattern.permute.xlu0 %v3329
  %3331 = vperm.xlu0 %3330, %v2402
  %v3332 = vpop.permute.xlu0 %3331
  %v3333 = vlaneseq
  %v3334 = vshrl.u32 %v3333, 7
  %v3335 = vadd.s32 %v3334, 80
  %3336 = vset.pattern.permute.xlu0 %v3335
  %3337 = vperm.xlu0 %3336, %v2402
  %v3338 = vpop.permute.xlu0 %3337
  %v3339 = vlaneseq
  %v3340 = vshrl.u32 %v3339, 7
  %v3341 = vadd.s32 %v3340, 88
  %3342 = vset.pattern.permute.xlu0 %v3341
  %3343 = vperm.xlu0 %3342, %v2402
  %v3344 = vpop.permute.xlu0 %3343
  %v3345 = vlaneseq
  %v3346 = vshrl.u32 %v3345, 7
  %v3347 = vadd.s32 %v3346, 96
  %3348 = vset.pattern.permute.xlu0 %v3347
  %3349 = vperm.xlu0 %3348, %v2402
  %v3350 = vpop.permute.xlu0 %3349
  %v3351 = vlaneseq
  %v3352 = vshrl.u32 %v3351, 7
  %v3353 = vadd.s32 %v3352, 104
  %3354 = vset.pattern.permute.xlu0 %v3353
  %3355 = vperm.xlu0 %3354, %v2402
  %v3356 = vpop.permute.xlu0 %3355
  %v3357 = vlaneseq
  %v3358 = vshrl.u32 %v3357, 7
  %v3359 = vadd.s32 %v3358, 112
  %3360 = vset.pattern.permute.xlu0 %v3359
  %3361 = vperm.xlu0 %3360, %v2402
  %v3362 = vpop.permute.xlu0 %3361
  %v3363 = vlaneseq
  %v3364 = vshrl.u32 %v3363, 7
  %v3365 = vadd.s32 %v3364, 120
  %3366 = vset.pattern.permute.xlu0 %v3365
  %3367 = vperm.xlu0 %3366, %v2402
  %v3368 = vpop.permute.xlu0 %3367
  %v3369 = vlaneseq
  %v3370 = vshrl.u32 %v3369, 7
  %3372 = vset.pattern.permute.xlu0 %v3370
  %3373 = vperm.xlu0 %3372, %v2403
  %v3374 = vpop.permute.xlu0 %3373
  %v3375 = vlaneseq
  %v3376 = vshrl.u32 %v3375, 7
  %v3377 = vadd.s32 %v3376, 8
  %3378 = vset.pattern.permute.xlu0 %v3377
  %3379 = vperm.xlu0 %3378, %v2403
  %v3380 = vpop.permute.xlu0 %3379
  %v3381 = vlaneseq
  %v3382 = vshrl.u32 %v3381, 7
  %v3383 = vadd.s32 %v3382, 16
  %3384 = vset.pattern.permute.xlu0 %v3383
  %3385 = vperm.xlu0 %3384, %v2403
  %v3386 = vpop.permute.xlu0 %3385
  %v3387 = vlaneseq
  %v3388 = vshrl.u32 %v3387, 7
  %v3389 = vadd.s32 %v3388, 24
  %3390 = vset.pattern.permute.xlu0 %v3389
  %3391 = vperm.xlu0 %3390, %v2403
  %v3392 = vpop.permute.xlu0 %3391
  %v3393 = vlaneseq
  %v3394 = vshrl.u32 %v3393, 7
  %v3395 = vadd.s32 %v3394, 32
  %3396 = vset.pattern.permute.xlu0 %v3395
  %3397 = vperm.xlu0 %3396, %v2403
  %v3398 = vpop.permute.xlu0 %3397
  %v3399 = vlaneseq
  %v3400 = vshrl.u32 %v3399, 7
  %v3401 = vadd.s32 %v3400, 40
  %3402 = vset.pattern.permute.xlu0 %v3401
  %3403 = vperm.xlu0 %3402, %v2403
  %v3404 = vpop.permute.xlu0 %3403
  %v3405 = vlaneseq
  %v3406 = vshrl.u32 %v3405, 7
  %v3407 = vadd.s32 %v3406, 48
  %3408 = vset.pattern.permute.xlu0 %v3407
  %3409 = vperm.xlu0 %3408, %v2403
  %v3410 = vpop.permute.xlu0 %3409
  %v3411 = vlaneseq
  %v3412 = vshrl.u32 %v3411, 7
  %v3413 = vadd.s32 %v3412, 56
  %3414 = vset.pattern.permute.xlu0 %v3413
  %3415 = vperm.xlu0 %3414, %v2403
  %v3416 = vpop.permute.xlu0 %3415
  %v3417 = vlaneseq
  %v3418 = vshrl.u32 %v3417, 7
  %v3419 = vadd.s32 %v3418, 64
  %3420 = vset.pattern.permute.xlu0 %v3419
  %3421 = vperm.xlu0 %3420, %v2403
  %v3422 = vpop.permute.xlu0 %3421
  %v3423 = vlaneseq
  %v3424 = vshrl.u32 %v3423, 7
  %v3425 = vadd.s32 %v3424, 72
  %3426 = vset.pattern.permute.xlu0 %v3425
  %3427 = vperm.xlu0 %3426, %v2403
  %v3428 = vpop.permute.xlu0 %3427
  %v3429 = vlaneseq
  %v3430 = vshrl.u32 %v3429, 7
  %v3431 = vadd.s32 %v3430, 80
  %3432 = vset.pattern.permute.xlu0 %v3431
  %3433 = vperm.xlu0 %3432, %v2403
  %v3434 = vpop.permute.xlu0 %3433
  %v3435 = vlaneseq
  %v3436 = vshrl.u32 %v3435, 7
  %v3437 = vadd.s32 %v3436, 88
  %3438 = vset.pattern.permute.xlu0 %v3437
  %3439 = vperm.xlu0 %3438, %v2403
  %v3440 = vpop.permute.xlu0 %3439
  %v3441 = vlaneseq
  %v3442 = vshrl.u32 %v3441, 7
  %v3443 = vadd.s32 %v3442, 96
  %3444 = vset.pattern.permute.xlu0 %v3443
  %3445 = vperm.xlu0 %3444, %v2403
  %v3446 = vpop.permute.xlu0 %3445
  %v3447 = vlaneseq
  %v3448 = vshrl.u32 %v3447, 7
  %v3449 = vadd.s32 %v3448, 104
  %3450 = vset.pattern.permute.xlu0 %v3449
  %3451 = vperm.xlu0 %3450, %v2403
  %v3452 = vpop.permute.xlu0 %3451
  %v3453 = vlaneseq
  %v3454 = vshrl.u32 %v3453, 7
  %v3455 = vadd.s32 %v3454, 112
  %3456 = vset.pattern.permute.xlu0 %v3455
  %3457 = vperm.xlu0 %3456, %v2403
  %v3458 = vpop.permute.xlu0 %3457
  %v3459 = vlaneseq
  %v3460 = vshrl.u32 %v3459, 7
  %v3461 = vadd.s32 %v3460, 120
  %3462 = vset.pattern.permute.xlu0 %v3461
  %3463 = vperm.xlu0 %3462, %v2403
  %v3464 = vpop.permute.xlu0 %3463
  %v3465 = vlaneseq
  %v3466 = vshrl.u32 %v3465, 7
  %3468 = vset.pattern.permute.xlu0 %v3466
  %3469 = vperm.xlu0 %3468, %v2404
  %v3470 = vpop.permute.xlu0 %3469
  %v3471 = vlaneseq
  %v3472 = vshrl.u32 %v3471, 7
  %v3473 = vadd.s32 %v3472, 8
  %3474 = vset.pattern.permute.xlu0 %v3473
  %3475 = vperm.xlu0 %3474, %v2404
  %v3476 = vpop.permute.xlu0 %3475
  %v3477 = vlaneseq
  %v3478 = vshrl.u32 %v3477, 7
  %v3479 = vadd.s32 %v3478, 16
  %3480 = vset.pattern.permute.xlu0 %v3479
  %3481 = vperm.xlu0 %3480, %v2404
  %v3482 = vpop.permute.xlu0 %3481
  %v3483 = vlaneseq
  %v3484 = vshrl.u32 %v3483, 7
  %v3485 = vadd.s32 %v3484, 24
  %3486 = vset.pattern.permute.xlu0 %v3485
  %3487 = vperm.xlu0 %3486, %v2404
  %v3488 = vpop.permute.xlu0 %3487
  %v3489 = vlaneseq
  %v3490 = vshrl.u32 %v3489, 7
  %v3491 = vadd.s32 %v3490, 32
  %3492 = vset.pattern.permute.xlu0 %v3491
  %3493 = vperm.xlu0 %3492, %v2404
  %v3494 = vpop.permute.xlu0 %3493
  %v3495 = vlaneseq
  %v3496 = vshrl.u32 %v3495, 7
  %v3497 = vadd.s32 %v3496, 40
  %3498 = vset.pattern.permute.xlu0 %v3497
  %3499 = vperm.xlu0 %3498, %v2404
  %v3500 = vpop.permute.xlu0 %3499
  %v3501 = vlaneseq
  %v3502 = vshrl.u32 %v3501, 7
  %v3503 = vadd.s32 %v3502, 48
  %3504 = vset.pattern.permute.xlu0 %v3503
  %3505 = vperm.xlu0 %3504, %v2404
  %v3506 = vpop.permute.xlu0 %3505
  %v3507 = vlaneseq
  %v3508 = vshrl.u32 %v3507, 7
  %v3509 = vadd.s32 %v3508, 56
  %3510 = vset.pattern.permute.xlu0 %v3509
  %3511 = vperm.xlu0 %3510, %v2404
  %v3512 = vpop.permute.xlu0 %3511
  %v3513 = vlaneseq
  %v3514 = vshrl.u32 %v3513, 7
  %v3515 = vadd.s32 %v3514, 64
  %3516 = vset.pattern.permute.xlu0 %v3515
  %3517 = vperm.xlu0 %3516, %v2404
  %v3518 = vpop.permute.xlu0 %3517
  %v3519 = vlaneseq
  %v3520 = vshrl.u32 %v3519, 7
  %v3521 = vadd.s32 %v3520, 72
  %3522 = vset.pattern.permute.xlu0 %v3521
  %3523 = vperm.xlu0 %3522, %v2404
  %v3524 = vpop.permute.xlu0 %3523
  %v3525 = vlaneseq
  %v3526 = vshrl.u32 %v3525, 7
  %v3527 = vadd.s32 %v3526, 80
  %3528 = vset.pattern.permute.xlu0 %v3527
  %3529 = vperm.xlu0 %3528, %v2404
  %v3530 = vpop.permute.xlu0 %3529
  %v3531 = vlaneseq
  %v3532 = vshrl.u32 %v3531, 7
  %v3533 = vadd.s32 %v3532, 88
  %3534 = vset.pattern.permute.xlu0 %v3533
  %3535 = vperm.xlu0 %3534, %v2404
  %v3536 = vpop.permute.xlu0 %3535
  %v3537 = vlaneseq
  %v3538 = vshrl.u32 %v3537, 7
  %v3539 = vadd.s32 %v3538, 96
  %3540 = vset.pattern.permute.xlu0 %v3539
  %3541 = vperm.xlu0 %3540, %v2404
  %v3542 = vpop.permute.xlu0 %3541
  %v3543 = vlaneseq
  %v3544 = vshrl.u32 %v3543, 7
  %v3545 = vadd.s32 %v3544, 104
  %3546 = vset.pattern.permute.xlu0 %v3545
  %3547 = vperm.xlu0 %3546, %v2404
  %v3548 = vpop.permute.xlu0 %3547
  %v3549 = vlaneseq
  %v3550 = vshrl.u32 %v3549, 7
  %v3551 = vadd.s32 %v3550, 112
  %3552 = vset.pattern.permute.xlu0 %v3551
  %3553 = vperm.xlu0 %3552, %v2404
  %v3554 = vpop.permute.xlu0 %3553
  %v3555 = vlaneseq
  %v3556 = vshrl.u32 %v3555, 7
  %v3557 = vadd.s32 %v3556, 120
  %3558 = vset.pattern.permute.xlu0 %v3557
  %3559 = vperm.xlu0 %3558, %v2404
  %v3560 = vpop.permute.xlu0 %3559
  %v3561 = vlaneseq
  %v3562 = vshrl.u32 %v3561, 7
  %3564 = vset.pattern.permute.xlu0 %v3562
  %3565 = vperm.xlu0 %3564, %v2405
  %v3566 = vpop.permute.xlu0 %3565
  %v3567 = vlaneseq
  %v3568 = vshrl.u32 %v3567, 7
  %v3569 = vadd.s32 %v3568, 8
  %3570 = vset.pattern.permute.xlu0 %v3569
  %3571 = vperm.xlu0 %3570, %v2405
  %v3572 = vpop.permute.xlu0 %3571
  %v3573 = vlaneseq
  %v3574 = vshrl.u32 %v3573, 7
  %v3575 = vadd.s32 %v3574, 16
  %3576 = vset.pattern.permute.xlu0 %v3575
  %3577 = vperm.xlu0 %3576, %v2405
  %v3578 = vpop.permute.xlu0 %3577
  %v3579 = vlaneseq
  %v3580 = vshrl.u32 %v3579, 7
  %v3581 = vadd.s32 %v3580, 24
  %3582 = vset.pattern.permute.xlu0 %v3581
  %3583 = vperm.xlu0 %3582, %v2405
  %v3584 = vpop.permute.xlu0 %3583
  %v3585 = vlaneseq
  %v3586 = vshrl.u32 %v3585, 7
  %v3587 = vadd.s32 %v3586, 32
  %3588 = vset.pattern.permute.xlu0 %v3587
  %3589 = vperm.xlu0 %3588, %v2405
  %v3590 = vpop.permute.xlu0 %3589
  %v3591 = vlaneseq
  %v3592 = vshrl.u32 %v3591, 7
  %v3593 = vadd.s32 %v3592, 40
  %3594 = vset.pattern.permute.xlu0 %v3593
  %3595 = vperm.xlu0 %3594, %v2405
  %v3596 = vpop.permute.xlu0 %3595
  %v3597 = vlaneseq
  %v3598 = vshrl.u32 %v3597, 7
  %v3599 = vadd.s32 %v3598, 48
  %3600 = vset.pattern.permute.xlu0 %v3599
  %3601 = vperm.xlu0 %3600, %v2405
  %v3602 = vpop.permute.xlu0 %3601
  %v3603 = vlaneseq
  %v3604 = vshrl.u32 %v3603, 7
  %v3605 = vadd.s32 %v3604, 56
  %3606 = vset.pattern.permute.xlu0 %v3605
  %3607 = vperm.xlu0 %3606, %v2405
  %v3608 = vpop.permute.xlu0 %3607
  %v3609 = vlaneseq
  %v3610 = vshrl.u32 %v3609, 7
  %v3611 = vadd.s32 %v3610, 64
  %3612 = vset.pattern.permute.xlu0 %v3611
  %3613 = vperm.xlu0 %3612, %v2405
  %v3614 = vpop.permute.xlu0 %3613
  %v3615 = vlaneseq
  %v3616 = vshrl.u32 %v3615, 7
  %v3617 = vadd.s32 %v3616, 72
  %3618 = vset.pattern.permute.xlu0 %v3617
  %3619 = vperm.xlu0 %3618, %v2405
  %v3620 = vpop.permute.xlu0 %3619
  %v3621 = vlaneseq
  %v3622 = vshrl.u32 %v3621, 7
  %v3623 = vadd.s32 %v3622, 80
  %3624 = vset.pattern.permute.xlu0 %v3623
  %3625 = vperm.xlu0 %3624, %v2405
  %v3626 = vpop.permute.xlu0 %3625
  %v3627 = vlaneseq
  %v3628 = vshrl.u32 %v3627, 7
  %v3629 = vadd.s32 %v3628, 88
  %3630 = vset.pattern.permute.xlu0 %v3629
  %3631 = vperm.xlu0 %3630, %v2405
  %v3632 = vpop.permute.xlu0 %3631
  %v3633 = vlaneseq
  %v3634 = vshrl.u32 %v3633, 7
  %v3635 = vadd.s32 %v3634, 96
  %3636 = vset.pattern.permute.xlu0 %v3635
  %3637 = vperm.xlu0 %3636, %v2405
  %v3638 = vpop.permute.xlu0 %3637
  %v3639 = vlaneseq
  %v3640 = vshrl.u32 %v3639, 7
  %v3641 = vadd.s32 %v3640, 104
  %3642 = vset.pattern.permute.xlu0 %v3641
  %3643 = vperm.xlu0 %3642, %v2405
  %v3644 = vpop.permute.xlu0 %3643
  %v3645 = vlaneseq
  %v3646 = vshrl.u32 %v3645, 7
  %v3647 = vadd.s32 %v3646, 112
  %3648 = vset.pattern.permute.xlu0 %v3647
  %3649 = vperm.xlu0 %3648, %v2405
  %v3650 = vpop.permute.xlu0 %3649
  %v3651 = vlaneseq
  %v3652 = vshrl.u32 %v3651, 7
  %v3653 = vadd.s32 %v3652, 120
  %3654 = vset.pattern.permute.xlu0 %v3653
  %3655 = vperm.xlu0 %3654, %v2405
  %v3656 = vpop.permute.xlu0 %3655
  %v3657 = vlaneseq
  %v3658 = vshrl.u32 %v3657, 7
  %3660 = vset.pattern.permute.xlu0 %v3658
  %3661 = vperm.xlu0 %3660, %v2406
  %v3662 = vpop.permute.xlu0 %3661
  %v3663 = vlaneseq
  %v3664 = vshrl.u32 %v3663, 7
  %v3665 = vadd.s32 %v3664, 8
  %3666 = vset.pattern.permute.xlu0 %v3665
  %3667 = vperm.xlu0 %3666, %v2406
  %v3668 = vpop.permute.xlu0 %3667
  %v3669 = vlaneseq
  %v3670 = vshrl.u32 %v3669, 7
  %v3671 = vadd.s32 %v3670, 16
  %3672 = vset.pattern.permute.xlu0 %v3671
  %3673 = vperm.xlu0 %3672, %v2406
  %v3674 = vpop.permute.xlu0 %3673
  %v3675 = vlaneseq
  %v3676 = vshrl.u32 %v3675, 7
  %v3677 = vadd.s32 %v3676, 24
  %3678 = vset.pattern.permute.xlu0 %v3677
  %3679 = vperm.xlu0 %3678, %v2406
  %v3680 = vpop.permute.xlu0 %3679
  %v3681 = vlaneseq
  %v3682 = vshrl.u32 %v3681, 7
  %v3683 = vadd.s32 %v3682, 32
  %3684 = vset.pattern.permute.xlu0 %v3683
  %3685 = vperm.xlu0 %3684, %v2406
  %v3686 = vpop.permute.xlu0 %3685
  %v3687 = vlaneseq
  %v3688 = vshrl.u32 %v3687, 7
  %v3689 = vadd.s32 %v3688, 40
  %3690 = vset.pattern.permute.xlu0 %v3689
  %3691 = vperm.xlu0 %3690, %v2406
  %v3692 = vpop.permute.xlu0 %3691
  %v3693 = vlaneseq
  %v3694 = vshrl.u32 %v3693, 7
  %v3695 = vadd.s32 %v3694, 48
  %3696 = vset.pattern.permute.xlu0 %v3695
  %3697 = vperm.xlu0 %3696, %v2406
  %v3698 = vpop.permute.xlu0 %3697
  %v3699 = vlaneseq
  %v3700 = vshrl.u32 %v3699, 7
  %v3701 = vadd.s32 %v3700, 56
  %3702 = vset.pattern.permute.xlu0 %v3701
  %3703 = vperm.xlu0 %3702, %v2406
  %v3704 = vpop.permute.xlu0 %3703
  %v3705 = vlaneseq
  %v3706 = vshrl.u32 %v3705, 7
  %v3707 = vadd.s32 %v3706, 64
  %3708 = vset.pattern.permute.xlu0 %v3707
  %3709 = vperm.xlu0 %3708, %v2406
  %v3710 = vpop.permute.xlu0 %3709
  %v3711 = vlaneseq
  %v3712 = vshrl.u32 %v3711, 7
  %v3713 = vadd.s32 %v3712, 72
  %3714 = vset.pattern.permute.xlu0 %v3713
  %3715 = vperm.xlu0 %3714, %v2406
  %v3716 = vpop.permute.xlu0 %3715
  %v3717 = vlaneseq
  %v3718 = vshrl.u32 %v3717, 7
  %v3719 = vadd.s32 %v3718, 80
  %3720 = vset.pattern.permute.xlu0 %v3719
  %3721 = vperm.xlu0 %3720, %v2406
  %v3722 = vpop.permute.xlu0 %3721
  %v3723 = vlaneseq
  %v3724 = vshrl.u32 %v3723, 7
  %v3725 = vadd.s32 %v3724, 88
  %3726 = vset.pattern.permute.xlu0 %v3725
  %3727 = vperm.xlu0 %3726, %v2406
  %v3728 = vpop.permute.xlu0 %3727
  %v3729 = vlaneseq
  %v3730 = vshrl.u32 %v3729, 7
  %v3731 = vadd.s32 %v3730, 96
  %3732 = vset.pattern.permute.xlu0 %v3731
  %3733 = vperm.xlu0 %3732, %v2406
  %v3734 = vpop.permute.xlu0 %3733
  %v3735 = vlaneseq
  %v3736 = vshrl.u32 %v3735, 7
  %v3737 = vadd.s32 %v3736, 104
  %3738 = vset.pattern.permute.xlu0 %v3737
  %3739 = vperm.xlu0 %3738, %v2406
  %v3740 = vpop.permute.xlu0 %3739
  %v3741 = vlaneseq
  %v3742 = vshrl.u32 %v3741, 7
  %v3743 = vadd.s32 %v3742, 112
  %3744 = vset.pattern.permute.xlu0 %v3743
  %3745 = vperm.xlu0 %3744, %v2406
  %v3746 = vpop.permute.xlu0 %3745
  %v3747 = vlaneseq
  %v3748 = vshrl.u32 %v3747, 7
  %v3749 = vadd.s32 %v3748, 120
  %3750 = vset.pattern.permute.xlu0 %v3749
  %3751 = vperm.xlu0 %3750, %v2406
  %v3752 = vpop.permute.xlu0 %3751
  %v3753 = vlaneseq
  %v3754 = vshrl.u32 %v3753, 7
  %3756 = vset.pattern.permute.xlu0 %v3754
  %3757 = vperm.xlu0 %3756, %v2407
  %v3758 = vpop.permute.xlu0 %3757
  %v3759 = vlaneseq
  %v3760 = vshrl.u32 %v3759, 7
  %v3761 = vadd.s32 %v3760, 8
  %3762 = vset.pattern.permute.xlu0 %v3761
  %3763 = vperm.xlu0 %3762, %v2407
  %v3764 = vpop.permute.xlu0 %3763
  %v3765 = vlaneseq
  %v3766 = vshrl.u32 %v3765, 7
  %v3767 = vadd.s32 %v3766, 16
  %3768 = vset.pattern.permute.xlu0 %v3767
  %3769 = vperm.xlu0 %3768, %v2407
  %v3770 = vpop.permute.xlu0 %3769
  %v3771 = vlaneseq
  %v3772 = vshrl.u32 %v3771, 7
  %v3773 = vadd.s32 %v3772, 24
  %3774 = vset.pattern.permute.xlu0 %v3773
  %3775 = vperm.xlu0 %3774, %v2407
  %v3776 = vpop.permute.xlu0 %3775
  %v3777 = vlaneseq
  %v3778 = vshrl.u32 %v3777, 7
  %v3779 = vadd.s32 %v3778, 32
  %3780 = vset.pattern.permute.xlu0 %v3779
  %3781 = vperm.xlu0 %3780, %v2407
  %v3782 = vpop.permute.xlu0 %3781
  %v3783 = vlaneseq
  %v3784 = vshrl.u32 %v3783, 7
  %v3785 = vadd.s32 %v3784, 40
  %3786 = vset.pattern.permute.xlu0 %v3785
  %3787 = vperm.xlu0 %3786, %v2407
  %v3788 = vpop.permute.xlu0 %3787
  %v3789 = vlaneseq
  %v3790 = vshrl.u32 %v3789, 7
  %v3791 = vadd.s32 %v3790, 48
  %3792 = vset.pattern.permute.xlu0 %v3791
  %3793 = vperm.xlu0 %3792, %v2407
  %v3794 = vpop.permute.xlu0 %3793
  %v3795 = vlaneseq
  %v3796 = vshrl.u32 %v3795, 7
  %v3797 = vadd.s32 %v3796, 56
  %3798 = vset.pattern.permute.xlu0 %v3797
  %3799 = vperm.xlu0 %3798, %v2407
  %v3800 = vpop.permute.xlu0 %3799
  %v3801 = vlaneseq
  %v3802 = vshrl.u32 %v3801, 7
  %v3803 = vadd.s32 %v3802, 64
  %3804 = vset.pattern.permute.xlu0 %v3803
  %3805 = vperm.xlu0 %3804, %v2407
  %v3806 = vpop.permute.xlu0 %3805
  %v3807 = vlaneseq
  %v3808 = vshrl.u32 %v3807, 7
  %v3809 = vadd.s32 %v3808, 72
  %3810 = vset.pattern.permute.xlu0 %v3809
  %3811 = vperm.xlu0 %3810, %v2407
  %v3812 = vpop.permute.xlu0 %3811
  %v3813 = vlaneseq
  %v3814 = vshrl.u32 %v3813, 7
  %v3815 = vadd.s32 %v3814, 80
  %3816 = vset.pattern.permute.xlu0 %v3815
  %3817 = vperm.xlu0 %3816, %v2407
  %v3818 = vpop.permute.xlu0 %3817
  %v3819 = vlaneseq
  %v3820 = vshrl.u32 %v3819, 7
  %v3821 = vadd.s32 %v3820, 88
  %3822 = vset.pattern.permute.xlu0 %v3821
  %3823 = vperm.xlu0 %3822, %v2407
  %v3824 = vpop.permute.xlu0 %3823
  %v3825 = vlaneseq
  %v3826 = vshrl.u32 %v3825, 7
  %v3827 = vadd.s32 %v3826, 96
  %3828 = vset.pattern.permute.xlu0 %v3827
  %3829 = vperm.xlu0 %3828, %v2407
  %v3830 = vpop.permute.xlu0 %3829
  %v3831 = vlaneseq
  %v3832 = vshrl.u32 %v3831, 7
  %v3833 = vadd.s32 %v3832, 104
  %3834 = vset.pattern.permute.xlu0 %v3833
  %3835 = vperm.xlu0 %3834, %v2407
  %v3836 = vpop.permute.xlu0 %3835
  %v3837 = vlaneseq
  %v3838 = vshrl.u32 %v3837, 7
  %v3839 = vadd.s32 %v3838, 112
  %3840 = vset.pattern.permute.xlu0 %v3839
  %3841 = vperm.xlu0 %3840, %v2407
  %v3842 = vpop.permute.xlu0 %3841
  %v3843 = vlaneseq
  %v3844 = vshrl.u32 %v3843, 7
  %v3845 = vadd.s32 %v3844, 120
  %3846 = vset.pattern.permute.xlu0 %v3845
  %3847 = vperm.xlu0 %3846, %v2407
  %v3848 = vpop.permute.xlu0 %3847
  %v3849 = vlaneseq
  %v3850 = vshrl.u32 %v3849, 7
  %3852 = vset.pattern.permute.xlu0 %v3850
  %3853 = vperm.xlu0 %3852, %v2408
  %v3854 = vpop.permute.xlu0 %3853
  %v3855 = vlaneseq
  %v3856 = vshrl.u32 %v3855, 7
  %v3857 = vadd.s32 %v3856, 8
  %3858 = vset.pattern.permute.xlu0 %v3857
  %3859 = vperm.xlu0 %3858, %v2408
  %v3860 = vpop.permute.xlu0 %3859
  %v3861 = vlaneseq
  %v3862 = vshrl.u32 %v3861, 7
  %v3863 = vadd.s32 %v3862, 16
  %3864 = vset.pattern.permute.xlu0 %v3863
  %3865 = vperm.xlu0 %3864, %v2408
  %v3866 = vpop.permute.xlu0 %3865
  %v3867 = vlaneseq
  %v3868 = vshrl.u32 %v3867, 7
  %v3869 = vadd.s32 %v3868, 24
  %3870 = vset.pattern.permute.xlu0 %v3869
  %3871 = vperm.xlu0 %3870, %v2408
  %v3872 = vpop.permute.xlu0 %3871
  %v3873 = vlaneseq
  %v3874 = vshrl.u32 %v3873, 7
  %v3875 = vadd.s32 %v3874, 32
  %3876 = vset.pattern.permute.xlu0 %v3875
  %3877 = vperm.xlu0 %3876, %v2408
  %v3878 = vpop.permute.xlu0 %3877
  %v3879 = vlaneseq
  %v3880 = vshrl.u32 %v3879, 7
  %v3881 = vadd.s32 %v3880, 40
  %3882 = vset.pattern.permute.xlu0 %v3881
  %3883 = vperm.xlu0 %3882, %v2408
  %v3884 = vpop.permute.xlu0 %3883
  %v3885 = vlaneseq
  %v3886 = vshrl.u32 %v3885, 7
  %v3887 = vadd.s32 %v3886, 48
  %3888 = vset.pattern.permute.xlu0 %v3887
  %3889 = vperm.xlu0 %3888, %v2408
  %v3890 = vpop.permute.xlu0 %3889
  %v3891 = vlaneseq
  %v3892 = vshrl.u32 %v3891, 7
  %v3893 = vadd.s32 %v3892, 56
  %3894 = vset.pattern.permute.xlu0 %v3893
  %3895 = vperm.xlu0 %3894, %v2408
  %v3896 = vpop.permute.xlu0 %3895
  %v3897 = vlaneseq
  %v3898 = vshrl.u32 %v3897, 7
  %v3899 = vadd.s32 %v3898, 64
  %3900 = vset.pattern.permute.xlu0 %v3899
  %3901 = vperm.xlu0 %3900, %v2408
  %v3902 = vpop.permute.xlu0 %3901
  %v3903 = vlaneseq
  %v3904 = vshrl.u32 %v3903, 7
  %v3905 = vadd.s32 %v3904, 72
  %3906 = vset.pattern.permute.xlu0 %v3905
  %3907 = vperm.xlu0 %3906, %v2408
  %v3908 = vpop.permute.xlu0 %3907
  %v3909 = vlaneseq
  %v3910 = vshrl.u32 %v3909, 7
  %v3911 = vadd.s32 %v3910, 80
  %3912 = vset.pattern.permute.xlu0 %v3911
  %3913 = vperm.xlu0 %3912, %v2408
  %v3914 = vpop.permute.xlu0 %3913
  %v3915 = vlaneseq
  %v3916 = vshrl.u32 %v3915, 7
  %v3917 = vadd.s32 %v3916, 88
  %3918 = vset.pattern.permute.xlu0 %v3917
  %3919 = vperm.xlu0 %3918, %v2408
  %v3920 = vpop.permute.xlu0 %3919
  %v3921 = vlaneseq
  %v3922 = vshrl.u32 %v3921, 7
  %v3923 = vadd.s32 %v3922, 96
  %3924 = vset.pattern.permute.xlu0 %v3923
  %3925 = vperm.xlu0 %3924, %v2408
  %v3926 = vpop.permute.xlu0 %3925
  %v3927 = vlaneseq
  %v3928 = vshrl.u32 %v3927, 7
  %v3929 = vadd.s32 %v3928, 104
  %3930 = vset.pattern.permute.xlu0 %v3929
  %3931 = vperm.xlu0 %3930, %v2408
  %v3932 = vpop.permute.xlu0 %3931
  %v3933 = vlaneseq
  %v3934 = vshrl.u32 %v3933, 7
  %v3935 = vadd.s32 %v3934, 112
  %3936 = vset.pattern.permute.xlu0 %v3935
  %3937 = vperm.xlu0 %3936, %v2408
  %v3938 = vpop.permute.xlu0 %3937
  %v3939 = vlaneseq
  %v3940 = vshrl.u32 %v3939, 7
  %v3941 = vadd.s32 %v3940, 120
  %3942 = vset.pattern.permute.xlu0 %v3941
  %3943 = vperm.xlu0 %3942, %v2408
  %v3944 = vpop.permute.xlu0 %3943
  %v4201 = vmul.f32 %v2389, %v2414
  %v4202 = vmul.f32 %v2389, %v2420
  %v4203 = vmul.f32 %v2389, %v2426
  %v4204 = vmul.f32 %v2389, %v2432
  %v4205 = vmul.f32 %v2389, %v2438
  %v4206 = vmul.f32 %v2389, %v2444
  %v4207 = vmul.f32 %v2389, %v2450
  %v4208 = vmul.f32 %v2389, %v2456
  %v4209 = vmul.f32 %v2389, %v2462
  %v4210 = vmul.f32 %v2389, %v2468
  %v4211 = vmul.f32 %v2389, %v2474
  %v4212 = vmul.f32 %v2389, %v2480
  %v4213 = vmul.f32 %v2389, %v2486
  %v4214 = vmul.f32 %v2389, %v2492
  %v4215 = vmul.f32 %v2389, %v2498
  %v4216 = vmul.f32 %v2389, %v2504
  %v4217 = vmul.f32 %v2389, %v2510
  %v4218 = vmul.f32 %v2389, %v2516
  %v4219 = vmul.f32 %v2389, %v2522
  %v4220 = vmul.f32 %v2389, %v2528
  %v4221 = vmul.f32 %v2389, %v2534
  %v4222 = vmul.f32 %v2389, %v2540
  %v4223 = vmul.f32 %v2389, %v2546
  %v4224 = vmul.f32 %v2389, %v2552
  %v4225 = vmul.f32 %v2389, %v2558
  %v4226 = vmul.f32 %v2389, %v2564
  %v4227 = vmul.f32 %v2389, %v2570
  %v4228 = vmul.f32 %v2389, %v2576
  %v4229 = vmul.f32 %v2389, %v2582
  %v4230 = vmul.f32 %v2389, %v2588
  %v4231 = vmul.f32 %v2389, %v2594
  %v4232 = vmul.f32 %v2389, %v2600
  %v4233 = vmul.f32 %v2389, %v2606
  %v4234 = vmul.f32 %v2389, %v2612
  %v4235 = vmul.f32 %v2389, %v2618
  %v4236 = vmul.f32 %v2389, %v2624
  %v4237 = vmul.f32 %v2389, %v2630
  %v4238 = vmul.f32 %v2389, %v2636
  %v4239 = vmul.f32 %v2389, %v2642
  %v4240 = vmul.f32 %v2389, %v2648
  %v4241 = vmul.f32 %v2389, %v2654
  %v4242 = vmul.f32 %v2389, %v2660
  %v4243 = vmul.f32 %v2389, %v2666
  %v4244 = vmul.f32 %v2389, %v2672
  %v4245 = vmul.f32 %v2389, %v2678
  %v4246 = vmul.f32 %v2389, %v2684
  %v4247 = vmul.f32 %v2389, %v2690
  %v4248 = vmul.f32 %v2389, %v2696
  %v4249 = vmul.f32 %v2389, %v2702
  %v4250 = vmul.f32 %v2389, %v2708
  %v4251 = vmul.f32 %v2389, %v2714
  %v4252 = vmul.f32 %v2389, %v2720
  %v4253 = vmul.f32 %v2389, %v2726
  %v4254 = vmul.f32 %v2389, %v2732
  %v4255 = vmul.f32 %v2389, %v2738
  %v4256 = vmul.f32 %v2389, %v2744
  %v4257 = vmul.f32 %v2389, %v2750
  %v4258 = vmul.f32 %v2389, %v2756
  %v4259 = vmul.f32 %v2389, %v2762
  %v4260 = vmul.f32 %v2389, %v2768
  %v4261 = vmul.f32 %v2389, %v2774
  %v4262 = vmul.f32 %v2389, %v2780
  %v4263 = vmul.f32 %v2389, %v2786
  %v4264 = vmul.f32 %v2389, %v2792
  %v4265 = vmul.f32 %v2389, %v2798
  %v4266 = vmul.f32 %v2389, %v2804
  %v4267 = vmul.f32 %v2389, %v2810
  %v4268 = vmul.f32 %v2389, %v2816
  %v4269 = vmul.f32 %v2389, %v2822
  %v4270 = vmul.f32 %v2389, %v2828
  %v4271 = vmul.f32 %v2389, %v2834
  %v4272 = vmul.f32 %v2389, %v2840
  %v4273 = vmul.f32 %v2389, %v2846
  %v4274 = vmul.f32 %v2389, %v2852
  %v4275 = vmul.f32 %v2389, %v2858
  %v4276 = vmul.f32 %v2389, %v2864
  %v4277 = vmul.f32 %v2389, %v2870
  %v4278 = vmul.f32 %v2389, %v2876
  %v4279 = vmul.f32 %v2389, %v2882
  %v4280 = vmul.f32 %v2389, %v2888
  %v4281 = vmul.f32 %v2389, %v2894
  %v4282 = vmul.f32 %v2389, %v2900
  %v4283 = vmul.f32 %v2389, %v2906
  %v4284 = vmul.f32 %v2389, %v2912
  %v4285 = vmul.f32 %v2389, %v2918
  %v4286 = vmul.f32 %v2389, %v2924
  %v4287 = vmul.f32 %v2389, %v2930
  %v4288 = vmul.f32 %v2389, %v2936
  %v4289 = vmul.f32 %v2389, %v2942
  %v4290 = vmul.f32 %v2389, %v2948
  %v4291 = vmul.f32 %v2389, %v2954
  %v4292 = vmul.f32 %v2389, %v2960
  %v4293 = vmul.f32 %v2389, %v2966
  %v4294 = vmul.f32 %v2389, %v2972
  %v4295 = vmul.f32 %v2389, %v2978
  %v4296 = vmul.f32 %v2389, %v2984
  %v4297 = vmul.f32 %v2389, %v2990
  %v4298 = vmul.f32 %v2389, %v2996
  %v4299 = vmul.f32 %v2389, %v3002
  %v4300 = vmul.f32 %v2389, %v3008
  %v4301 = vmul.f32 %v2389, %v3014
  %v4302 = vmul.f32 %v2389, %v3020
  %v4303 = vmul.f32 %v2389, %v3026
  %v4304 = vmul.f32 %v2389, %v3032
  %v4305 = vmul.f32 %v2389, %v3038
  %v4306 = vmul.f32 %v2389, %v3044
  %v4307 = vmul.f32 %v2389, %v3050
  %v4308 = vmul.f32 %v2389, %v3056
  %v4309 = vmul.f32 %v2389, %v3062
  %v4310 = vmul.f32 %v2389, %v3068
  %v4311 = vmul.f32 %v2389, %v3074
  %v4312 = vmul.f32 %v2389, %v3080
  %v4313 = vmul.f32 %v2389, %v3086
  %v4314 = vmul.f32 %v2389, %v3092
  %v4315 = vmul.f32 %v2389, %v3098
  %v4316 = vmul.f32 %v2389, %v3104
  %v4317 = vmul.f32 %v2389, %v3110
  %v4318 = vmul.f32 %v2389, %v3116
  %v4319 = vmul.f32 %v2389, %v3122
  %v4320 = vmul.f32 %v2389, %v3128
  %v4321 = vmul.f32 %v2389, %v3134
  %v4322 = vmul.f32 %v2389, %v3140
  %v4323 = vmul.f32 %v2389, %v3146
  %v4324 = vmul.f32 %v2389, %v3152
  %v4325 = vmul.f32 %v2389, %v3158
  %v4326 = vmul.f32 %v2389, %v3164
  %v4327 = vmul.f32 %v2389, %v3170
  %v4328 = vmul.f32 %v2389, %v3176
  %v4329 = vmul.f32 %v2389, %v3182
  %v4330 = vmul.f32 %v2389, %v3188
  %v4331 = vmul.f32 %v2389, %v3194
  %v4332 = vmul.f32 %v2389, %v3200
  %v4333 = vmul.f32 %v2389, %v3206
  %v4334 = vmul.f32 %v2389, %v3212
  %v4335 = vmul.f32 %v2389, %v3218
  %v4336 = vmul.f32 %v2389, %v3224
  %v4337 = vmul.f32 %v2389, %v3230
  %v4338 = vmul.f32 %v2389, %v3236
  %v4339 = vmul.f32 %v2389, %v3242
  %v4340 = vmul.f32 %v2389, %v3248
  %v4341 = vmul.f32 %v2389, %v3254
  %v4342 = vmul.f32 %v2389, %v3260
  %v4343 = vmul.f32 %v2389, %v3266
  %v4344 = vmul.f32 %v2389, %v3272
  %v4345 = vmul.f32 %v2389, %v3278
  %v4346 = vmul.f32 %v2389, %v3284
  %v4347 = vmul.f32 %v2389, %v3290
  %v4348 = vmul.f32 %v2389, %v3296
  %v4349 = vmul.f32 %v2389, %v3302
  %v4350 = vmul.f32 %v2389, %v3308
  %v4351 = vmul.f32 %v2389, %v3314
  %v4352 = vmul.f32 %v2389, %v3320
  %v4353 = vmul.f32 %v2389, %v3326
  %v4354 = vmul.f32 %v2389, %v3332
  %v4355 = vmul.f32 %v2389, %v3338
  %v4356 = vmul.f32 %v2389, %v3344
  %v4357 = vmul.f32 %v2389, %v3350
  %v4358 = vmul.f32 %v2389, %v3356
  %v4359 = vmul.f32 %v2389, %v3362
  %v4360 = vmul.f32 %v2389, %v3368
  %v4361 = vmul.f32 %v2389, %v3374
  %v4362 = vmul.f32 %v2389, %v3380
  %v4363 = vmul.f32 %v2389, %v3386
  %v4364 = vmul.f32 %v2389, %v3392
  %v4365 = vmul.f32 %v2389, %v3398
  %v4366 = vmul.f32 %v2389, %v3404
  %v4367 = vmul.f32 %v2389, %v3410
  %v4368 = vmul.f32 %v2389, %v3416
  %v4369 = vmul.f32 %v2389, %v3422
  %v4370 = vmul.f32 %v2389, %v3428
  %v4371 = vmul.f32 %v2389, %v3434
  %v4372 = vmul.f32 %v2389, %v3440
  %v4373 = vmul.f32 %v2389, %v3446
  %v4374 = vmul.f32 %v2389, %v3452
  %v4375 = vmul.f32 %v2389, %v3458
  %v4376 = vmul.f32 %v2389, %v3464
  %v4377 = vmul.f32 %v2389, %v3470
  %v4378 = vmul.f32 %v2389, %v3476
  %v4379 = vmul.f32 %v2389, %v3482
  %v4380 = vmul.f32 %v2389, %v3488
  %v4381 = vmul.f32 %v2389, %v3494
  %v4382 = vmul.f32 %v2389, %v3500
  %v4383 = vmul.f32 %v2389, %v3506
  %v4384 = vmul.f32 %v2389, %v3512
  %v4385 = vmul.f32 %v2389, %v3518
  %v4386 = vmul.f32 %v2389, %v3524
  %v4387 = vmul.f32 %v2389, %v3530
  %v4388 = vmul.f32 %v2389, %v3536
  %v4389 = vmul.f32 %v2389, %v3542
  %v4390 = vmul.f32 %v2389, %v3548
  %v4391 = vmul.f32 %v2389, %v3554
  %v4392 = vmul.f32 %v2389, %v3560
  %v4393 = vmul.f32 %v2389, %v3566
  %v4394 = vmul.f32 %v2389, %v3572
  %v4395 = vmul.f32 %v2389, %v3578
  %v4396 = vmul.f32 %v2389, %v3584
  %v4397 = vmul.f32 %v2389, %v3590
  %v4398 = vmul.f32 %v2389, %v3596
  %v4399 = vmul.f32 %v2389, %v3602
  %v4400 = vmul.f32 %v2389, %v3608
  %v4401 = vmul.f32 %v2389, %v3614
  %v4402 = vmul.f32 %v2389, %v3620
  %v4403 = vmul.f32 %v2389, %v3626
  %v4404 = vmul.f32 %v2389, %v3632
  %v4405 = vmul.f32 %v2389, %v3638
  %v4406 = vmul.f32 %v2389, %v3644
  %v4407 = vmul.f32 %v2389, %v3650
  %v4408 = vmul.f32 %v2389, %v3656
  %v4409 = vmul.f32 %v2389, %v3662
  %v4410 = vmul.f32 %v2389, %v3668
  %v4411 = vmul.f32 %v2389, %v3674
  %v4412 = vmul.f32 %v2389, %v3680
  %v4413 = vmul.f32 %v2389, %v3686
  %v4414 = vmul.f32 %v2389, %v3692
  %v4415 = vmul.f32 %v2389, %v3698
  %v4416 = vmul.f32 %v2389, %v3704
  %v4417 = vmul.f32 %v2389, %v3710
  %v4418 = vmul.f32 %v2389, %v3716
  %v4419 = vmul.f32 %v2389, %v3722
  %v4420 = vmul.f32 %v2389, %v3728
  %v4421 = vmul.f32 %v2389, %v3734
  %v4422 = vmul.f32 %v2389, %v3740
  %v4423 = vmul.f32 %v2389, %v3746
  %v4424 = vmul.f32 %v2389, %v3752
  %v4425 = vmul.f32 %v2389, %v3758
  %v4426 = vmul.f32 %v2389, %v3764
  %v4427 = vmul.f32 %v2389, %v3770
  %v4428 = vmul.f32 %v2389, %v3776
  %v4429 = vmul.f32 %v2389, %v3782
  %v4430 = vmul.f32 %v2389, %v3788
  %v4431 = vmul.f32 %v2389, %v3794
  %v4432 = vmul.f32 %v2389, %v3800
  %v4433 = vmul.f32 %v2389, %v3806
  %v4434 = vmul.f32 %v2389, %v3812
  %v4435 = vmul.f32 %v2389, %v3818
  %v4436 = vmul.f32 %v2389, %v3824
  %v4437 = vmul.f32 %v2389, %v3830
  %v4438 = vmul.f32 %v2389, %v3836
  %v4439 = vmul.f32 %v2389, %v3842
  %v4440 = vmul.f32 %v2389, %v3848
  %v4441 = vmul.f32 %v2389, %v3854
  %v4442 = vmul.f32 %v2389, %v3860
  %v4443 = vmul.f32 %v2389, %v3866
  %v4444 = vmul.f32 %v2389, %v3872
  %v4445 = vmul.f32 %v2389, %v3878
  %v4446 = vmul.f32 %v2389, %v3884
  %v4447 = vmul.f32 %v2389, %v3890
  %v4448 = vmul.f32 %v2389, %v3896
  %v4449 = vmul.f32 %v2389, %v3902
  %v4450 = vmul.f32 %v2389, %v3908
  %v4451 = vmul.f32 %v2389, %v3914
  %v4452 = vmul.f32 %v2389, %v3920
  %v4453 = vmul.f32 %v2389, %v3926
  %v4454 = vmul.f32 %v2389, %v3932
  %v4455 = vmul.f32 %v2389, %v3938
  %v4456 = vmul.f32 %v2389, %v3944
  %v4457 = vmul.f32 %v2390, %v2414
  %v4458 = vmul.f32 %v2390, %v2420
  %v4459 = vmul.f32 %v2390, %v2426
  %v4460 = vmul.f32 %v2390, %v2432
  %v4461 = vmul.f32 %v2390, %v2438
  %v4462 = vmul.f32 %v2390, %v2444
  %v4463 = vmul.f32 %v2390, %v2450
  %v4464 = vmul.f32 %v2390, %v2456
  %v4465 = vmul.f32 %v2390, %v2462
  %v4466 = vmul.f32 %v2390, %v2468
  %v4467 = vmul.f32 %v2390, %v2474
  %v4468 = vmul.f32 %v2390, %v2480
  %v4469 = vmul.f32 %v2390, %v2486
  %v4470 = vmul.f32 %v2390, %v2492
  %v4471 = vmul.f32 %v2390, %v2498
  %v4472 = vmul.f32 %v2390, %v2504
  %v4473 = vmul.f32 %v2390, %v2510
  %v4474 = vmul.f32 %v2390, %v2516
  %v4475 = vmul.f32 %v2390, %v2522
  %v4476 = vmul.f32 %v2390, %v2528
  %v4477 = vmul.f32 %v2390, %v2534
  %v4478 = vmul.f32 %v2390, %v2540
  %v4479 = vmul.f32 %v2390, %v2546
  %v4480 = vmul.f32 %v2390, %v2552
  %v4481 = vmul.f32 %v2390, %v2558
  %v4482 = vmul.f32 %v2390, %v2564
  %v4483 = vmul.f32 %v2390, %v2570
  %v4484 = vmul.f32 %v2390, %v2576
  %v4485 = vmul.f32 %v2390, %v2582
  %v4486 = vmul.f32 %v2390, %v2588
  %v4487 = vmul.f32 %v2390, %v2594
  %v4488 = vmul.f32 %v2390, %v2600
  %v4489 = vmul.f32 %v2390, %v2606
  %v4490 = vmul.f32 %v2390, %v2612
  %v4491 = vmul.f32 %v2390, %v2618
  %v4492 = vmul.f32 %v2390, %v2624
  %v4493 = vmul.f32 %v2390, %v2630
  %v4494 = vmul.f32 %v2390, %v2636
  %v4495 = vmul.f32 %v2390, %v2642
  %v4496 = vmul.f32 %v2390, %v2648
  %v4497 = vmul.f32 %v2390, %v2654
  %v4498 = vmul.f32 %v2390, %v2660
  %v4499 = vmul.f32 %v2390, %v2666
  %v4500 = vmul.f32 %v2390, %v2672
  %v4501 = vmul.f32 %v2390, %v2678
  %v4502 = vmul.f32 %v2390, %v2684
  %v4503 = vmul.f32 %v2390, %v2690
  %v4504 = vmul.f32 %v2390, %v2696
  %v4505 = vmul.f32 %v2390, %v2702
  %v4506 = vmul.f32 %v2390, %v2708
  %v4507 = vmul.f32 %v2390, %v2714
  %v4508 = vmul.f32 %v2390, %v2720
  %v4509 = vmul.f32 %v2390, %v2726
  %v4510 = vmul.f32 %v2390, %v2732
  %v4511 = vmul.f32 %v2390, %v2738
  %v4512 = vmul.f32 %v2390, %v2744
  %v4513 = vmul.f32 %v2390, %v2750
  %v4514 = vmul.f32 %v2390, %v2756
  %v4515 = vmul.f32 %v2390, %v2762
  %v4516 = vmul.f32 %v2390, %v2768
  %v4517 = vmul.f32 %v2390, %v2774
  %v4518 = vmul.f32 %v2390, %v2780
  %v4519 = vmul.f32 %v2390, %v2786
  %v4520 = vmul.f32 %v2390, %v2792
  %v4521 = vmul.f32 %v2390, %v2798
  %v4522 = vmul.f32 %v2390, %v2804
  %v4523 = vmul.f32 %v2390, %v2810
  %v4524 = vmul.f32 %v2390, %v2816
  %v4525 = vmul.f32 %v2390, %v2822
  %v4526 = vmul.f32 %v2390, %v2828
  %v4527 = vmul.f32 %v2390, %v2834
  %v4528 = vmul.f32 %v2390, %v2840
  %v4529 = vmul.f32 %v2390, %v2846
  %v4530 = vmul.f32 %v2390, %v2852
  %v4531 = vmul.f32 %v2390, %v2858
  %v4532 = vmul.f32 %v2390, %v2864
  %v4533 = vmul.f32 %v2390, %v2870
  %v4534 = vmul.f32 %v2390, %v2876
  %v4535 = vmul.f32 %v2390, %v2882
  %v4536 = vmul.f32 %v2390, %v2888
  %v4537 = vmul.f32 %v2390, %v2894
  %v4538 = vmul.f32 %v2390, %v2900
  %v4539 = vmul.f32 %v2390, %v2906
  %v4540 = vmul.f32 %v2390, %v2912
  %v4541 = vmul.f32 %v2390, %v2918
  %v4542 = vmul.f32 %v2390, %v2924
  %v4543 = vmul.f32 %v2390, %v2930
  %v4544 = vmul.f32 %v2390, %v2936
  %v4545 = vmul.f32 %v2390, %v2942
  %v4546 = vmul.f32 %v2390, %v2948
  %v4547 = vmul.f32 %v2390, %v2954
  %v4548 = vmul.f32 %v2390, %v2960
  %v4549 = vmul.f32 %v2390, %v2966
  %v4550 = vmul.f32 %v2390, %v2972
  %v4551 = vmul.f32 %v2390, %v2978
  %v4552 = vmul.f32 %v2390, %v2984
  %v4553 = vmul.f32 %v2390, %v2990
  %v4554 = vmul.f32 %v2390, %v2996
  %v4555 = vmul.f32 %v2390, %v3002
  %v4556 = vmul.f32 %v2390, %v3008
  %v4557 = vmul.f32 %v2390, %v3014
  %v4558 = vmul.f32 %v2390, %v3020
  %v4559 = vmul.f32 %v2390, %v3026
  %v4560 = vmul.f32 %v2390, %v3032
  %v4561 = vmul.f32 %v2390, %v3038
  %v4562 = vmul.f32 %v2390, %v3044
  %v4563 = vmul.f32 %v2390, %v3050
  %v4564 = vmul.f32 %v2390, %v3056
  %v4565 = vmul.f32 %v2390, %v3062
  %v4566 = vmul.f32 %v2390, %v3068
  %v4567 = vmul.f32 %v2390, %v3074
  %v4568 = vmul.f32 %v2390, %v3080
  %v4569 = vmul.f32 %v2390, %v3086
  %v4570 = vmul.f32 %v2390, %v3092
  %v4571 = vmul.f32 %v2390, %v3098
  %v4572 = vmul.f32 %v2390, %v3104
  %v4573 = vmul.f32 %v2390, %v3110
  %v4574 = vmul.f32 %v2390, %v3116
  %v4575 = vmul.f32 %v2390, %v3122
  %v4576 = vmul.f32 %v2390, %v3128
  %v4577 = vmul.f32 %v2390, %v3134
  %v4578 = vmul.f32 %v2390, %v3140
  %v4579 = vmul.f32 %v2390, %v3146
  %v4580 = vmul.f32 %v2390, %v3152
  %v4581 = vmul.f32 %v2390, %v3158
  %v4582 = vmul.f32 %v2390, %v3164
  %v4583 = vmul.f32 %v2390, %v3170
  %v4584 = vmul.f32 %v2390, %v3176
  %v4585 = vmul.f32 %v2390, %v3182
  %v4586 = vmul.f32 %v2390, %v3188
  %v4587 = vmul.f32 %v2390, %v3194
  %v4588 = vmul.f32 %v2390, %v3200
  %v4589 = vmul.f32 %v2390, %v3206
  %v4590 = vmul.f32 %v2390, %v3212
  %v4591 = vmul.f32 %v2390, %v3218
  %v4592 = vmul.f32 %v2390, %v3224
  %v4593 = vmul.f32 %v2390, %v3230
  %v4594 = vmul.f32 %v2390, %v3236
  %v4595 = vmul.f32 %v2390, %v3242
  %v4596 = vmul.f32 %v2390, %v3248
  %v4597 = vmul.f32 %v2390, %v3254
  %v4598 = vmul.f32 %v2390, %v3260
  %v4599 = vmul.f32 %v2390, %v3266
  %v4600 = vmul.f32 %v2390, %v3272
  %v4601 = vmul.f32 %v2390, %v3278
  %v4602 = vmul.f32 %v2390, %v3284
  %v4603 = vmul.f32 %v2390, %v3290
  %v4604 = vmul.f32 %v2390, %v3296
  %v4605 = vmul.f32 %v2390, %v3302
  %v4606 = vmul.f32 %v2390, %v3308
  %v4607 = vmul.f32 %v2390, %v3314
  %v4608 = vmul.f32 %v2390, %v3320
  %v4609 = vmul.f32 %v2390, %v3326
  %v4610 = vmul.f32 %v2390, %v3332
  %v4611 = vmul.f32 %v2390, %v3338
  %v4612 = vmul.f32 %v2390, %v3344
  %v4613 = vmul.f32 %v2390, %v3350
  %v4614 = vmul.f32 %v2390, %v3356
  %v4615 = vmul.f32 %v2390, %v3362
  %v4616 = vmul.f32 %v2390, %v3368
  %v4617 = vmul.f32 %v2390, %v3374
  %v4618 = vmul.f32 %v2390, %v3380
  %v4619 = vmul.f32 %v2390, %v3386
  %v4620 = vmul.f32 %v2390, %v3392
  %v4621 = vmul.f32 %v2390, %v3398
  %v4622 = vmul.f32 %v2390, %v3404
  %v4623 = vmul.f32 %v2390, %v3410
  %v4624 = vmul.f32 %v2390, %v3416
  %v4625 = vmul.f32 %v2390, %v3422
  %v4626 = vmul.f32 %v2390, %v3428
  %v4627 = vmul.f32 %v2390, %v3434
  %v4628 = vmul.f32 %v2390, %v3440
  %v4629 = vmul.f32 %v2390, %v3446
  %v4630 = vmul.f32 %v2390, %v3452
  %v4631 = vmul.f32 %v2390, %v3458
  %v4632 = vmul.f32 %v2390, %v3464
  %v4633 = vmul.f32 %v2390, %v3470
  %v4634 = vmul.f32 %v2390, %v3476
  %v4635 = vmul.f32 %v2390, %v3482
  %v4636 = vmul.f32 %v2390, %v3488
  %v4637 = vmul.f32 %v2390, %v3494
  %v4638 = vmul.f32 %v2390, %v3500
  %v4639 = vmul.f32 %v2390, %v3506
  %v4640 = vmul.f32 %v2390, %v3512
  %v4641 = vmul.f32 %v2390, %v3518
  %v4642 = vmul.f32 %v2390, %v3524
  %v4643 = vmul.f32 %v2390, %v3530
  %v4644 = vmul.f32 %v2390, %v3536
  %v4645 = vmul.f32 %v2390, %v3542
  %v4646 = vmul.f32 %v2390, %v3548
  %v4647 = vmul.f32 %v2390, %v3554
  %v4648 = vmul.f32 %v2390, %v3560
  %v4649 = vmul.f32 %v2390, %v3566
  %v4650 = vmul.f32 %v2390, %v3572
  %v4651 = vmul.f32 %v2390, %v3578
  %v4652 = vmul.f32 %v2390, %v3584
  %v4653 = vmul.f32 %v2390, %v3590
  %v4654 = vmul.f32 %v2390, %v3596
  %v4655 = vmul.f32 %v2390, %v3602
  %v4656 = vmul.f32 %v2390, %v3608
  %v4657 = vmul.f32 %v2390, %v3614
  %v4658 = vmul.f32 %v2390, %v3620
  %v4659 = vmul.f32 %v2390, %v3626
  %v4660 = vmul.f32 %v2390, %v3632
  %v4661 = vmul.f32 %v2390, %v3638
  %v4662 = vmul.f32 %v2390, %v3644
  %v4663 = vmul.f32 %v2390, %v3650
  %v4664 = vmul.f32 %v2390, %v3656
  %v4665 = vmul.f32 %v2390, %v3662
  %v4666 = vmul.f32 %v2390, %v3668
  %v4667 = vmul.f32 %v2390, %v3674
  %v4668 = vmul.f32 %v2390, %v3680
  %v4669 = vmul.f32 %v2390, %v3686
  %v4670 = vmul.f32 %v2390, %v3692
  %v4671 = vmul.f32 %v2390, %v3698
  %v4672 = vmul.f32 %v2390, %v3704
  %v4673 = vmul.f32 %v2390, %v3710
  %v4674 = vmul.f32 %v2390, %v3716
  %v4675 = vmul.f32 %v2390, %v3722
  %v4676 = vmul.f32 %v2390, %v3728
  %v4677 = vmul.f32 %v2390, %v3734
  %v4678 = vmul.f32 %v2390, %v3740
  %v4679 = vmul.f32 %v2390, %v3746
  %v4680 = vmul.f32 %v2390, %v3752
  %v4681 = vmul.f32 %v2390, %v3758
  %v4682 = vmul.f32 %v2390, %v3764
  %v4683 = vmul.f32 %v2390, %v3770
  %v4684 = vmul.f32 %v2390, %v3776
  %v4685 = vmul.f32 %v2390, %v3782
  %v4686 = vmul.f32 %v2390, %v3788
  %v4687 = vmul.f32 %v2390, %v3794
  %v4688 = vmul.f32 %v2390, %v3800
  %v4689 = vmul.f32 %v2390, %v3806
  %v4690 = vmul.f32 %v2390, %v3812
  %v4691 = vmul.f32 %v2390, %v3818
  %v4692 = vmul.f32 %v2390, %v3824
  %v4693 = vmul.f32 %v2390, %v3830
  %v4694 = vmul.f32 %v2390, %v3836
  %v4695 = vmul.f32 %v2390, %v3842
  %v4696 = vmul.f32 %v2390, %v3848
  %v4697 = vmul.f32 %v2390, %v3854
  %v4698 = vmul.f32 %v2390, %v3860
  %v4699 = vmul.f32 %v2390, %v3866
  %v4700 = vmul.f32 %v2390, %v3872
  %v4701 = vmul.f32 %v2390, %v3878
  %v4702 = vmul.f32 %v2390, %v3884
  %v4703 = vmul.f32 %v2390, %v3890
  %v4704 = vmul.f32 %v2390, %v3896
  %v4705 = vmul.f32 %v2390, %v3902
  %v4706 = vmul.f32 %v2390, %v3908
  %v4707 = vmul.f32 %v2390, %v3914
  %v4708 = vmul.f32 %v2390, %v3920
  %v4709 = vmul.f32 %v2390, %v3926
  %v4710 = vmul.f32 %v2390, %v3932
  %v4711 = vmul.f32 %v2390, %v3938
  %v4712 = vmul.f32 %v2390, %v3944
  %v4713 = vadd.f32 %v1873, %v4201
  %v4714 = vadd.f32 %v1874, %v4202
  %v4715 = vadd.f32 %v1875, %v4203
  %v4716 = vadd.f32 %v1876, %v4204
  %v4717 = vadd.f32 %v1877, %v4205
  %v4718 = vadd.f32 %v1878, %v4206
  %v4719 = vadd.f32 %v1879, %v4207
  %v4720 = vadd.f32 %v1880, %v4208
  %v4721 = vadd.f32 %v1881, %v4209
  %v4722 = vadd.f32 %v1882, %v4210
  %v4723 = vadd.f32 %v1883, %v4211
  %v4724 = vadd.f32 %v1884, %v4212
  %v4725 = vadd.f32 %v1885, %v4213
  %v4726 = vadd.f32 %v1886, %v4214
  %v4727 = vadd.f32 %v1887, %v4215
  %v4728 = vadd.f32 %v1888, %v4216
  %v4729 = vadd.f32 %v1889, %v4217
  %v4730 = vadd.f32 %v1890, %v4218
  %v4731 = vadd.f32 %v1891, %v4219
  %v4732 = vadd.f32 %v1892, %v4220
  %v4733 = vadd.f32 %v1893, %v4221
  %v4734 = vadd.f32 %v1894, %v4222
  %v4735 = vadd.f32 %v1895, %v4223
  %v4736 = vadd.f32 %v1896, %v4224
  %v4737 = vadd.f32 %v1897, %v4225
  %v4738 = vadd.f32 %v1898, %v4226
  %v4739 = vadd.f32 %v1899, %v4227
  %v4740 = vadd.f32 %v1900, %v4228
  %v4741 = vadd.f32 %v1901, %v4229
  %v4742 = vadd.f32 %v1902, %v4230
  %v4743 = vadd.f32 %v1903, %v4231
  %v4744 = vadd.f32 %v1904, %v4232
  %v4745 = vadd.f32 %v1905, %v4233
  %v4746 = vadd.f32 %v1906, %v4234
  %v4747 = vadd.f32 %v1907, %v4235
  %v4748 = vadd.f32 %v1908, %v4236
  %v4749 = vadd.f32 %v1909, %v4237
  %v4750 = vadd.f32 %v1910, %v4238
  %v4751 = vadd.f32 %v1911, %v4239
  %v4752 = vadd.f32 %v1912, %v4240
  %v4753 = vadd.f32 %v1913, %v4241
  %v4754 = vadd.f32 %v1914, %v4242
  %v4755 = vadd.f32 %v1915, %v4243
  %v4756 = vadd.f32 %v1916, %v4244
  %v4757 = vadd.f32 %v1917, %v4245
  %v4758 = vadd.f32 %v1918, %v4246
  %v4759 = vadd.f32 %v1919, %v4247
  %v4760 = vadd.f32 %v1920, %v4248
  %v4761 = vadd.f32 %v1921, %v4249
  %v4762 = vadd.f32 %v1922, %v4250
  %v4763 = vadd.f32 %v1923, %v4251
  %v4764 = vadd.f32 %v1924, %v4252
  %v4765 = vadd.f32 %v1925, %v4253
  %v4766 = vadd.f32 %v1926, %v4254
  %v4767 = vadd.f32 %v1927, %v4255
  %v4768 = vadd.f32 %v1928, %v4256
  %v4769 = vadd.f32 %v1929, %v4257
  %v4770 = vadd.f32 %v1930, %v4258
  %v4771 = vadd.f32 %v1931, %v4259
  %v4772 = vadd.f32 %v1932, %v4260
  %v4773 = vadd.f32 %v1933, %v4261
  %v4774 = vadd.f32 %v1934, %v4262
  %v4775 = vadd.f32 %v1935, %v4263
  %v4776 = vadd.f32 %v1936, %v4264
  %v4777 = vadd.f32 %v1937, %v4265
  %v4778 = vadd.f32 %v1938, %v4266
  %v4779 = vadd.f32 %v1939, %v4267
  %v4780 = vadd.f32 %v1940, %v4268
  %v4781 = vadd.f32 %v1941, %v4269
  %v4782 = vadd.f32 %v1942, %v4270
  %v4783 = vadd.f32 %v1943, %v4271
  %v4784 = vadd.f32 %v1944, %v4272
  %v4785 = vadd.f32 %v1945, %v4273
  %v4786 = vadd.f32 %v1946, %v4274
  %v4787 = vadd.f32 %v1947, %v4275
  %v4788 = vadd.f32 %v1948, %v4276
  %v4789 = vadd.f32 %v1949, %v4277
  %v4790 = vadd.f32 %v1950, %v4278
  %v4791 = vadd.f32 %v1951, %v4279
  %v4792 = vadd.f32 %v1952, %v4280
  %v4793 = vadd.f32 %v1953, %v4281
  %v4794 = vadd.f32 %v1954, %v4282
  %v4795 = vadd.f32 %v1955, %v4283
  %v4796 = vadd.f32 %v1956, %v4284
  %v4797 = vadd.f32 %v1957, %v4285
  %v4798 = vadd.f32 %v1958, %v4286
  %v4799 = vadd.f32 %v1959, %v4287
  %v4800 = vadd.f32 %v1960, %v4288
  %v4801 = vadd.f32 %v1961, %v4289
  %v4802 = vadd.f32 %v1962, %v4290
  %v4803 = vadd.f32 %v1963, %v4291
  %v4804 = vadd.f32 %v1964, %v4292
  %v4805 = vadd.f32 %v1965, %v4293
  %v4806 = vadd.f32 %v1966, %v4294
  %v4807 = vadd.f32 %v1967, %v4295
  %v4808 = vadd.f32 %v1968, %v4296
  %v4809 = vadd.f32 %v1969, %v4297
  %v4810 = vadd.f32 %v1970, %v4298
  %v4811 = vadd.f32 %v1971, %v4299
  %v4812 = vadd.f32 %v1972, %v4300
  %v4813 = vadd.f32 %v1973, %v4301
  %v4814 = vadd.f32 %v1974, %v4302
  %v4815 = vadd.f32 %v1975, %v4303
  %v4816 = vadd.f32 %v1976, %v4304
  %v4817 = vadd.f32 %v1977, %v4305
  %v4818 = vadd.f32 %v1978, %v4306
  %v4819 = vadd.f32 %v1979, %v4307
  %v4820 = vadd.f32 %v1980, %v4308
  %v4821 = vadd.f32 %v1981, %v4309
  %v4822 = vadd.f32 %v1982, %v4310
  %v4823 = vadd.f32 %v1983, %v4311
  %v4824 = vadd.f32 %v1984, %v4312
  %v4825 = vadd.f32 %v1985, %v4313
  %v4826 = vadd.f32 %v1986, %v4314
  %v4827 = vadd.f32 %v1987, %v4315
  %v4828 = vadd.f32 %v1988, %v4316
  %v4829 = vadd.f32 %v1989, %v4317
  %v4830 = vadd.f32 %v1990, %v4318
  %v4831 = vadd.f32 %v1991, %v4319
  %v4832 = vadd.f32 %v1992, %v4320
  %v4833 = vadd.f32 %v1993, %v4321
  %v4834 = vadd.f32 %v1994, %v4322
  %v4835 = vadd.f32 %v1995, %v4323
  %v4836 = vadd.f32 %v1996, %v4324
  %v4837 = vadd.f32 %v1997, %v4325
  %v4838 = vadd.f32 %v1998, %v4326
  %v4839 = vadd.f32 %v1999, %v4327
  %v4840 = vadd.f32 %v2000, %v4328
  %v4841 = vadd.f32 %v2001, %v4329
  %v4842 = vadd.f32 %v2002, %v4330
  %v4843 = vadd.f32 %v2003, %v4331
  %v4844 = vadd.f32 %v2004, %v4332
  %v4845 = vadd.f32 %v2005, %v4333
  %v4846 = vadd.f32 %v2006, %v4334
  %v4847 = vadd.f32 %v2007, %v4335
  %v4848 = vadd.f32 %v2008, %v4336
  %v4849 = vadd.f32 %v2009, %v4337
  %v4850 = vadd.f32 %v2010, %v4338
  %v4851 = vadd.f32 %v2011, %v4339
  %v4852 = vadd.f32 %v2012, %v4340
  %v4853 = vadd.f32 %v2013, %v4341
  %v4854 = vadd.f32 %v2014, %v4342
  %v4855 = vadd.f32 %v2015, %v4343
  %v4856 = vadd.f32 %v2016, %v4344
  %v4857 = vadd.f32 %v2017, %v4345
  %v4858 = vadd.f32 %v2018, %v4346
  %v4859 = vadd.f32 %v2019, %v4347
  %v4860 = vadd.f32 %v2020, %v4348
  %v4861 = vadd.f32 %v2021, %v4349
  %v4862 = vadd.f32 %v2022, %v4350
  %v4863 = vadd.f32 %v2023, %v4351
  %v4864 = vadd.f32 %v2024, %v4352
  %v4865 = vadd.f32 %v2025, %v4353
  %v4866 = vadd.f32 %v2026, %v4354
  %v4867 = vadd.f32 %v2027, %v4355
  %v4868 = vadd.f32 %v2028, %v4356
  %v4869 = vadd.f32 %v2029, %v4357
  %v4870 = vadd.f32 %v2030, %v4358
  %v4871 = vadd.f32 %v2031, %v4359
  %v4872 = vadd.f32 %v2032, %v4360
  %v4873 = vadd.f32 %v2033, %v4361
  %v4874 = vadd.f32 %v2034, %v4362
  %v4875 = vadd.f32 %v2035, %v4363
  %v4876 = vadd.f32 %v2036, %v4364
  %v4877 = vadd.f32 %v2037, %v4365
  %v4878 = vadd.f32 %v2038, %v4366
  %v4879 = vadd.f32 %v2039, %v4367
  %v4880 = vadd.f32 %v2040, %v4368
  %v4881 = vadd.f32 %v2041, %v4369
  %v4882 = vadd.f32 %v2042, %v4370
  %v4883 = vadd.f32 %v2043, %v4371
  %v4884 = vadd.f32 %v2044, %v4372
  %v4885 = vadd.f32 %v2045, %v4373
  %v4886 = vadd.f32 %v2046, %v4374
  %v4887 = vadd.f32 %v2047, %v4375
  %v4888 = vadd.f32 %v2048, %v4376
  %v4889 = vadd.f32 %v2049, %v4377
  %v4890 = vadd.f32 %v2050, %v4378
  %v4891 = vadd.f32 %v2051, %v4379
  %v4892 = vadd.f32 %v2052, %v4380
  %v4893 = vadd.f32 %v2053, %v4381
  %v4894 = vadd.f32 %v2054, %v4382
  %v4895 = vadd.f32 %v2055, %v4383
  %v4896 = vadd.f32 %v2056, %v4384
  %v4897 = vadd.f32 %v2057, %v4385
  %v4898 = vadd.f32 %v2058, %v4386
  %v4899 = vadd.f32 %v2059, %v4387
  %v4900 = vadd.f32 %v2060, %v4388
  %v4901 = vadd.f32 %v2061, %v4389
  %v4902 = vadd.f32 %v2062, %v4390
  %v4903 = vadd.f32 %v2063, %v4391
  %v4904 = vadd.f32 %v2064, %v4392
  %v4905 = vadd.f32 %v2065, %v4393
  %v4906 = vadd.f32 %v2066, %v4394
  %v4907 = vadd.f32 %v2067, %v4395
  %v4908 = vadd.f32 %v2068, %v4396
  %v4909 = vadd.f32 %v2069, %v4397
  %v4910 = vadd.f32 %v2070, %v4398
  %v4911 = vadd.f32 %v2071, %v4399
  %v4912 = vadd.f32 %v2072, %v4400
  %v4913 = vadd.f32 %v2073, %v4401
  %v4914 = vadd.f32 %v2074, %v4402
  %v4915 = vadd.f32 %v2075, %v4403
  %v4916 = vadd.f32 %v2076, %v4404
  %v4917 = vadd.f32 %v2077, %v4405
  %v4918 = vadd.f32 %v2078, %v4406
  %v4919 = vadd.f32 %v2079, %v4407
  %v4920 = vadd.f32 %v2080, %v4408
  %v4921 = vadd.f32 %v2081, %v4409
  %v4922 = vadd.f32 %v2082, %v4410
  %v4923 = vadd.f32 %v2083, %v4411
  %v4924 = vadd.f32 %v2084, %v4412
  %v4925 = vadd.f32 %v2085, %v4413
  %v4926 = vadd.f32 %v2086, %v4414
  %v4927 = vadd.f32 %v2087, %v4415
  %v4928 = vadd.f32 %v2088, %v4416
  %v4929 = vadd.f32 %v2089, %v4417
  %v4930 = vadd.f32 %v2090, %v4418
  %v4931 = vadd.f32 %v2091, %v4419
  %v4932 = vadd.f32 %v2092, %v4420
  %v4933 = vadd.f32 %v2093, %v4421
  %v4934 = vadd.f32 %v2094, %v4422
  %v4935 = vadd.f32 %v2095, %v4423
  %v4936 = vadd.f32 %v2096, %v4424
  %v4937 = vadd.f32 %v2097, %v4425
  %v4938 = vadd.f32 %v2098, %v4426
  %v4939 = vadd.f32 %v2099, %v4427
  %v4940 = vadd.f32 %v2100, %v4428
  %v4941 = vadd.f32 %v2101, %v4429
  %v4942 = vadd.f32 %v2102, %v4430
  %v4943 = vadd.f32 %v2103, %v4431
  %v4944 = vadd.f32 %v2104, %v4432
  %v4945 = vadd.f32 %v2105, %v4433
  %v4946 = vadd.f32 %v2106, %v4434
  %v4947 = vadd.f32 %v2107, %v4435
  %v4948 = vadd.f32 %v2108, %v4436
  %v4949 = vadd.f32 %v2109, %v4437
  %v4950 = vadd.f32 %v2110, %v4438
  %v4951 = vadd.f32 %v2111, %v4439
  %v4952 = vadd.f32 %v2112, %v4440
  %v4953 = vadd.f32 %v2113, %v4441
  %v4954 = vadd.f32 %v2114, %v4442
  %v4955 = vadd.f32 %v2115, %v4443
  %v4956 = vadd.f32 %v2116, %v4444
  %v4957 = vadd.f32 %v2117, %v4445
  %v4958 = vadd.f32 %v2118, %v4446
  %v4959 = vadd.f32 %v2119, %v4447
  %v4960 = vadd.f32 %v2120, %v4448
  %v4961 = vadd.f32 %v2121, %v4449
  %v4962 = vadd.f32 %v2122, %v4450
  %v4963 = vadd.f32 %v2123, %v4451
  %v4964 = vadd.f32 %v2124, %v4452
  %v4965 = vadd.f32 %v2125, %v4453
  %v4966 = vadd.f32 %v2126, %v4454
  %v4967 = vadd.f32 %v2127, %v4455
  %v4968 = vadd.f32 %v2128, %v4456
  %v4969 = vadd.f32 %v2129, %v4457
  %v4970 = vadd.f32 %v2130, %v4458
  %v4971 = vadd.f32 %v2131, %v4459
  %v4972 = vadd.f32 %v2132, %v4460
  %v4973 = vadd.f32 %v2133, %v4461
  %v4974 = vadd.f32 %v2134, %v4462
  %v4975 = vadd.f32 %v2135, %v4463
  %v4976 = vadd.f32 %v2136, %v4464
  %v4977 = vadd.f32 %v2137, %v4465
  %v4978 = vadd.f32 %v2138, %v4466
  %v4979 = vadd.f32 %v2139, %v4467
  %v4980 = vadd.f32 %v2140, %v4468
  %v4981 = vadd.f32 %v2141, %v4469
  %v4982 = vadd.f32 %v2142, %v4470
  %v4983 = vadd.f32 %v2143, %v4471
  %v4984 = vadd.f32 %v2144, %v4472
  %v4985 = vadd.f32 %v2145, %v4473
  %v4986 = vadd.f32 %v2146, %v4474
  %v4987 = vadd.f32 %v2147, %v4475
  %v4988 = vadd.f32 %v2148, %v4476
  %v4989 = vadd.f32 %v2149, %v4477
  %v4990 = vadd.f32 %v2150, %v4478
  %v4991 = vadd.f32 %v2151, %v4479
  %v4992 = vadd.f32 %v2152, %v4480
  %v4993 = vadd.f32 %v2153, %v4481
  %v4994 = vadd.f32 %v2154, %v4482
  %v4995 = vadd.f32 %v2155, %v4483
  %v4996 = vadd.f32 %v2156, %v4484
  %v4997 = vadd.f32 %v2157, %v4485
  %v4998 = vadd.f32 %v2158, %v4486
  %v4999 = vadd.f32 %v2159, %v4487
  %v5000 = vadd.f32 %v2160, %v4488
  %v5001 = vadd.f32 %v2161, %v4489
  %v5002 = vadd.f32 %v2162, %v4490
  %v5003 = vadd.f32 %v2163, %v4491
  %v5004 = vadd.f32 %v2164, %v4492
  %v5005 = vadd.f32 %v2165, %v4493
  %v5006 = vadd.f32 %v2166, %v4494
  %v5007 = vadd.f32 %v2167, %v4495
  %v5008 = vadd.f32 %v2168, %v4496
  %v5009 = vadd.f32 %v2169, %v4497
  %v5010 = vadd.f32 %v2170, %v4498
  %v5011 = vadd.f32 %v2171, %v4499
  %v5012 = vadd.f32 %v2172, %v4500
  %v5013 = vadd.f32 %v2173, %v4501
  %v5014 = vadd.f32 %v2174, %v4502
  %v5015 = vadd.f32 %v2175, %v4503
  %v5016 = vadd.f32 %v2176, %v4504
  %v5017 = vadd.f32 %v2177, %v4505
  %v5018 = vadd.f32 %v2178, %v4506
  %v5019 = vadd.f32 %v2179, %v4507
  %v5020 = vadd.f32 %v2180, %v4508
  %v5021 = vadd.f32 %v2181, %v4509
  %v5022 = vadd.f32 %v2182, %v4510
  %v5023 = vadd.f32 %v2183, %v4511
  %v5024 = vadd.f32 %v2184, %v4512
  %v5025 = vadd.f32 %v2185, %v4513
  %v5026 = vadd.f32 %v2186, %v4514
  %v5027 = vadd.f32 %v2187, %v4515
  %v5028 = vadd.f32 %v2188, %v4516
  %v5029 = vadd.f32 %v2189, %v4517
  %v5030 = vadd.f32 %v2190, %v4518
  %v5031 = vadd.f32 %v2191, %v4519
  %v5032 = vadd.f32 %v2192, %v4520
  %v5033 = vadd.f32 %v2193, %v4521
  %v5034 = vadd.f32 %v2194, %v4522
  %v5035 = vadd.f32 %v2195, %v4523
  %v5036 = vadd.f32 %v2196, %v4524
  %v5037 = vadd.f32 %v2197, %v4525
  %v5038 = vadd.f32 %v2198, %v4526
  %v5039 = vadd.f32 %v2199, %v4527
  %v5040 = vadd.f32 %v2200, %v4528
  %v5041 = vadd.f32 %v2201, %v4529
  %v5042 = vadd.f32 %v2202, %v4530
  %v5043 = vadd.f32 %v2203, %v4531
  %v5044 = vadd.f32 %v2204, %v4532
  %v5045 = vadd.f32 %v2205, %v4533
  %v5046 = vadd.f32 %v2206, %v4534
  %v5047 = vadd.f32 %v2207, %v4535
  %v5048 = vadd.f32 %v2208, %v4536
  %v5049 = vadd.f32 %v2209, %v4537
  %v5050 = vadd.f32 %v2210, %v4538
  %v5051 = vadd.f32 %v2211, %v4539
  %v5052 = vadd.f32 %v2212, %v4540
  %v5053 = vadd.f32 %v2213, %v4541
  %v5054 = vadd.f32 %v2214, %v4542
  %v5055 = vadd.f32 %v2215, %v4543
  %v5056 = vadd.f32 %v2216, %v4544
  %v5057 = vadd.f32 %v2217, %v4545
  %v5058 = vadd.f32 %v2218, %v4546
  %v5059 = vadd.f32 %v2219, %v4547
  %v5060 = vadd.f32 %v2220, %v4548
  %v5061 = vadd.f32 %v2221, %v4549
  %v5062 = vadd.f32 %v2222, %v4550
  %v5063 = vadd.f32 %v2223, %v4551
  %v5064 = vadd.f32 %v2224, %v4552
  %v5065 = vadd.f32 %v2225, %v4553
  %v5066 = vadd.f32 %v2226, %v4554
  %v5067 = vadd.f32 %v2227, %v4555
  %v5068 = vadd.f32 %v2228, %v4556
  %v5069 = vadd.f32 %v2229, %v4557
  %v5070 = vadd.f32 %v2230, %v4558
  %v5071 = vadd.f32 %v2231, %v4559
  %v5072 = vadd.f32 %v2232, %v4560
  %v5073 = vadd.f32 %v2233, %v4561
  %v5074 = vadd.f32 %v2234, %v4562
  %v5075 = vadd.f32 %v2235, %v4563
  %v5076 = vadd.f32 %v2236, %v4564
  %v5077 = vadd.f32 %v2237, %v4565
  %v5078 = vadd.f32 %v2238, %v4566
  %v5079 = vadd.f32 %v2239, %v4567
  %v5080 = vadd.f32 %v2240, %v4568
  %v5081 = vadd.f32 %v2241, %v4569
  %v5082 = vadd.f32 %v2242, %v4570
  %v5083 = vadd.f32 %v2243, %v4571
  %v5084 = vadd.f32 %v2244, %v4572
  %v5085 = vadd.f32 %v2245, %v4573
  %v5086 = vadd.f32 %v2246, %v4574
  %v5087 = vadd.f32 %v2247, %v4575
  %v5088 = vadd.f32 %v2248, %v4576
  %v5089 = vadd.f32 %v2249, %v4577
  %v5090 = vadd.f32 %v2250, %v4578
  %v5091 = vadd.f32 %v2251, %v4579
  %v5092 = vadd.f32 %v2252, %v4580
  %v5093 = vadd.f32 %v2253, %v4581
  %v5094 = vadd.f32 %v2254, %v4582
  %v5095 = vadd.f32 %v2255, %v4583
  %v5096 = vadd.f32 %v2256, %v4584
  %v5097 = vadd.f32 %v2257, %v4585
  %v5098 = vadd.f32 %v2258, %v4586
  %v5099 = vadd.f32 %v2259, %v4587
  %v5100 = vadd.f32 %v2260, %v4588
  %v5101 = vadd.f32 %v2261, %v4589
  %v5102 = vadd.f32 %v2262, %v4590
  %v5103 = vadd.f32 %v2263, %v4591
  %v5104 = vadd.f32 %v2264, %v4592
  %v5105 = vadd.f32 %v2265, %v4593
  %v5106 = vadd.f32 %v2266, %v4594
  %v5107 = vadd.f32 %v2267, %v4595
  %v5108 = vadd.f32 %v2268, %v4596
  %v5109 = vadd.f32 %v2269, %v4597
  %v5110 = vadd.f32 %v2270, %v4598
  %v5111 = vadd.f32 %v2271, %v4599
  %v5112 = vadd.f32 %v2272, %v4600
  %v5113 = vadd.f32 %v2273, %v4601
  %v5114 = vadd.f32 %v2274, %v4602
  %v5115 = vadd.f32 %v2275, %v4603
  %v5116 = vadd.f32 %v2276, %v4604
  %v5117 = vadd.f32 %v2277, %v4605
  %v5118 = vadd.f32 %v2278, %v4606
  %v5119 = vadd.f32 %v2279, %v4607
  %v5120 = vadd.f32 %v2280, %v4608
  %v5121 = vadd.f32 %v2281, %v4609
  %v5122 = vadd.f32 %v2282, %v4610
  %v5123 = vadd.f32 %v2283, %v4611
  %v5124 = vadd.f32 %v2284, %v4612
  %v5125 = vadd.f32 %v2285, %v4613
  %v5126 = vadd.f32 %v2286, %v4614
  %v5127 = vadd.f32 %v2287, %v4615
  %v5128 = vadd.f32 %v2288, %v4616
  %v5129 = vadd.f32 %v2289, %v4617
  %v5130 = vadd.f32 %v2290, %v4618
  %v5131 = vadd.f32 %v2291, %v4619
  %v5132 = vadd.f32 %v2292, %v4620
  %v5133 = vadd.f32 %v2293, %v4621
  %v5134 = vadd.f32 %v2294, %v4622
  %v5135 = vadd.f32 %v2295, %v4623
  %v5136 = vadd.f32 %v2296, %v4624
  %v5137 = vadd.f32 %v2297, %v4625
  %v5138 = vadd.f32 %v2298, %v4626
  %v5139 = vadd.f32 %v2299, %v4627
  %v5140 = vadd.f32 %v2300, %v4628
  %v5141 = vadd.f32 %v2301, %v4629
  %v5142 = vadd.f32 %v2302, %v4630
  %v5143 = vadd.f32 %v2303, %v4631
  %v5144 = vadd.f32 %v2304, %v4632
  %v5145 = vadd.f32 %v2305, %v4633
  %v5146 = vadd.f32 %v2306, %v4634
  %v5147 = vadd.f32 %v2307, %v4635
  %v5148 = vadd.f32 %v2308, %v4636
  %v5149 = vadd.f32 %v2309, %v4637
  %v5150 = vadd.f32 %v2310, %v4638
  %v5151 = vadd.f32 %v2311, %v4639
  %v5152 = vadd.f32 %v2312, %v4640
  %v5153 = vadd.f32 %v2313, %v4641
  %v5154 = vadd.f32 %v2314, %v4642
  %v5155 = vadd.f32 %v2315, %v4643
  %v5156 = vadd.f32 %v2316, %v4644
  %v5157 = vadd.f32 %v2317, %v4645
  %v5158 = vadd.f32 %v2318, %v4646
  %v5159 = vadd.f32 %v2319, %v4647
  %v5160 = vadd.f32 %v2320, %v4648
  %v5161 = vadd.f32 %v2321, %v4649
  %v5162 = vadd.f32 %v2322, %v4650
  %v5163 = vadd.f32 %v2323, %v4651
  %v5164 = vadd.f32 %v2324, %v4652
  %v5165 = vadd.f32 %v2325, %v4653
  %v5166 = vadd.f32 %v2326, %v4654
  %v5167 = vadd.f32 %v2327, %v4655
  %v5168 = vadd.f32 %v2328, %v4656
  %v5169 = vadd.f32 %v2329, %v4657
  %v5170 = vadd.f32 %v2330, %v4658
  %v5171 = vadd.f32 %v2331, %v4659
  %v5172 = vadd.f32 %v2332, %v4660
  %v5173 = vadd.f32 %v2333, %v4661
  %v5174 = vadd.f32 %v2334, %v4662
  %v5175 = vadd.f32 %v2335, %v4663
  %v5176 = vadd.f32 %v2336, %v4664
  %v5177 = vadd.f32 %v2337, %v4665
  %v5178 = vadd.f32 %v2338, %v4666
  %v5179 = vadd.f32 %v2339, %v4667
  %v5180 = vadd.f32 %v2340, %v4668
  %v5181 = vadd.f32 %v2341, %v4669
  %v5182 = vadd.f32 %v2342, %v4670
  %v5183 = vadd.f32 %v2343, %v4671
  %v5184 = vadd.f32 %v2344, %v4672
  %v5185 = vadd.f32 %v2345, %v4673
  %v5186 = vadd.f32 %v2346, %v4674
  %v5187 = vadd.f32 %v2347, %v4675
  %v5188 = vadd.f32 %v2348, %v4676
  %v5189 = vadd.f32 %v2349, %v4677
  %v5190 = vadd.f32 %v2350, %v4678
  %v5191 = vadd.f32 %v2351, %v4679
  %v5192 = vadd.f32 %v2352, %v4680
  %v5193 = vadd.f32 %v2353, %v4681
  %v5194 = vadd.f32 %v2354, %v4682
  %v5195 = vadd.f32 %v2355, %v4683
  %v5196 = vadd.f32 %v2356, %v4684
  %v5197 = vadd.f32 %v2357, %v4685
  %v5198 = vadd.f32 %v2358, %v4686
  %v5199 = vadd.f32 %v2359, %v4687
  %v5200 = vadd.f32 %v2360, %v4688
  %v5201 = vadd.f32 %v2361, %v4689
  %v5202 = vadd.f32 %v2362, %v4690
  %v5203 = vadd.f32 %v2363, %v4691
  %v5204 = vadd.f32 %v2364, %v4692
  %v5205 = vadd.f32 %v2365, %v4693
  %v5206 = vadd.f32 %v2366, %v4694
  %v5207 = vadd.f32 %v2367, %v4695
  %v5208 = vadd.f32 %v2368, %v4696
  %v5209 = vadd.f32 %v2369, %v4697
  %v5210 = vadd.f32 %v2370, %v4698
  %v5211 = vadd.f32 %v2371, %v4699
  %v5212 = vadd.f32 %v2372, %v4700
  %v5213 = vadd.f32 %v2373, %v4701
  %v5214 = vadd.f32 %v2374, %v4702
  %v5215 = vadd.f32 %v2375, %v4703
  %v5216 = vadd.f32 %v2376, %v4704
  %v5217 = vadd.f32 %v2377, %v4705
  %v5218 = vadd.f32 %v2378, %v4706
  %v5219 = vadd.f32 %v2379, %v4707
  %v5220 = vadd.f32 %v2380, %v4708
  %v5221 = vadd.f32 %v2381, %v4709
  %v5222 = vadd.f32 %v2382, %v4710
  %v5223 = vadd.f32 %v2383, %v4711
  %v5224 = vadd.f32 %v2384, %v4712
  %s5225 = scalar_lea.vmem %s1, 2
  %v5226 = vld [vmem:[%s5225] ss:$4 sm:$0xff]
  %s5227 = scalar_lea.vmem %s1, 34
  %v5228 = vld [vmem:[%s5227] ss:$4 sm:$0xff]
  %v5229 = vperm.slane %v56, 2
  %v5230 = vperm.slane %v57, 2
  %v5233 = vperm.slane %v5226, 0
  %v5234 = vperm.slane %v5226, 1
  %v5235 = vperm.slane %v5226, 2
  %v5236 = vperm.slane %v5226, 3
  %v5237 = vperm.slane %v5226, 4
  %v5238 = vperm.slane %v5226, 5
  %v5239 = vperm.slane %v5226, 6
  %v5240 = vperm.slane %v5226, 7
  %v5241 = vperm.slane %v5228, 0
  %v5242 = vperm.slane %v5228, 1
  %v5243 = vperm.slane %v5228, 2
  %v5244 = vperm.slane %v5228, 3
  %v5245 = vperm.slane %v5228, 4
  %v5246 = vperm.slane %v5228, 5
  %v5247 = vperm.slane %v5228, 6
  %v5248 = vperm.slane %v5228, 7
  %v5249 = vlaneseq
  %v5250 = vshrl.u32 %v5249, 7
  %5252 = vset.pattern.permute.xlu0 %v5250
  %5253 = vperm.xlu0 %5252, %v5233
  %v5254 = vpop.permute.xlu0 %5253
  %v5255 = vlaneseq
  %v5256 = vshrl.u32 %v5255, 7
  %v5257 = vadd.s32 %v5256, 8
  %5258 = vset.pattern.permute.xlu0 %v5257
  %5259 = vperm.xlu0 %5258, %v5233
  %v5260 = vpop.permute.xlu0 %5259
  %v5261 = vlaneseq
  %v5262 = vshrl.u32 %v5261, 7
  %v5263 = vadd.s32 %v5262, 16
  %5264 = vset.pattern.permute.xlu0 %v5263
  %5265 = vperm.xlu0 %5264, %v5233
  %v5266 = vpop.permute.xlu0 %5265
  %v5267 = vlaneseq
  %v5268 = vshrl.u32 %v5267, 7
  %v5269 = vadd.s32 %v5268, 24
  %5270 = vset.pattern.permute.xlu0 %v5269
  %5271 = vperm.xlu0 %5270, %v5233
  %v5272 = vpop.permute.xlu0 %5271
  %v5273 = vlaneseq
  %v5274 = vshrl.u32 %v5273, 7
  %v5275 = vadd.s32 %v5274, 32
  %5276 = vset.pattern.permute.xlu0 %v5275
  %5277 = vperm.xlu0 %5276, %v5233
  %v5278 = vpop.permute.xlu0 %5277
  %v5279 = vlaneseq
  %v5280 = vshrl.u32 %v5279, 7
  %v5281 = vadd.s32 %v5280, 40
  %5282 = vset.pattern.permute.xlu0 %v5281
  %5283 = vperm.xlu0 %5282, %v5233
  %v5284 = vpop.permute.xlu0 %5283
  %v5285 = vlaneseq
  %v5286 = vshrl.u32 %v5285, 7
  %v5287 = vadd.s32 %v5286, 48
  %5288 = vset.pattern.permute.xlu0 %v5287
  %5289 = vperm.xlu0 %5288, %v5233
  %v5290 = vpop.permute.xlu0 %5289
  %v5291 = vlaneseq
  %v5292 = vshrl.u32 %v5291, 7
  %v5293 = vadd.s32 %v5292, 56
  %5294 = vset.pattern.permute.xlu0 %v5293
  %5295 = vperm.xlu0 %5294, %v5233
  %v5296 = vpop.permute.xlu0 %5295
  %v5297 = vlaneseq
  %v5298 = vshrl.u32 %v5297, 7
  %v5299 = vadd.s32 %v5298, 64
  %5300 = vset.pattern.permute.xlu0 %v5299
  %5301 = vperm.xlu0 %5300, %v5233
  %v5302 = vpop.permute.xlu0 %5301
  %v5303 = vlaneseq
  %v5304 = vshrl.u32 %v5303, 7
  %v5305 = vadd.s32 %v5304, 72
  %5306 = vset.pattern.permute.xlu0 %v5305
  %5307 = vperm.xlu0 %5306, %v5233
  %v5308 = vpop.permute.xlu0 %5307
  %v5309 = vlaneseq
  %v5310 = vshrl.u32 %v5309, 7
  %v5311 = vadd.s32 %v5310, 80
  %5312 = vset.pattern.permute.xlu0 %v5311
  %5313 = vperm.xlu0 %5312, %v5233
  %v5314 = vpop.permute.xlu0 %5313
  %v5315 = vlaneseq
  %v5316 = vshrl.u32 %v5315, 7
  %v5317 = vadd.s32 %v5316, 88
  %5318 = vset.pattern.permute.xlu0 %v5317
  %5319 = vperm.xlu0 %5318, %v5233
  %v5320 = vpop.permute.xlu0 %5319
  %v5321 = vlaneseq
  %v5322 = vshrl.u32 %v5321, 7
  %v5323 = vadd.s32 %v5322, 96
  %5324 = vset.pattern.permute.xlu0 %v5323
  %5325 = vperm.xlu0 %5324, %v5233
  %v5326 = vpop.permute.xlu0 %5325
  %v5327 = vlaneseq
  %v5328 = vshrl.u32 %v5327, 7
  %v5329 = vadd.s32 %v5328, 104
  %5330 = vset.pattern.permute.xlu0 %v5329
  %5331 = vperm.xlu0 %5330, %v5233
  %v5332 = vpop.permute.xlu0 %5331
  %v5333 = vlaneseq
  %v5334 = vshrl.u32 %v5333, 7
  %v5335 = vadd.s32 %v5334, 112
  %5336 = vset.pattern.permute.xlu0 %v5335
  %5337 = vperm.xlu0 %5336, %v5233
  %v5338 = vpop.permute.xlu0 %5337
  %v5339 = vlaneseq
  %v5340 = vshrl.u32 %v5339, 7
  %v5341 = vadd.s32 %v5340, 120
  %5342 = vset.pattern.permute.xlu0 %v5341
  %5343 = vperm.xlu0 %5342, %v5233
  %v5344 = vpop.permute.xlu0 %5343
  %v5345 = vlaneseq
  %v5346 = vshrl.u32 %v5345, 7
  %5348 = vset.pattern.permute.xlu0 %v5346
  %5349 = vperm.xlu0 %5348, %v5234
  %v5350 = vpop.permute.xlu0 %5349
  %v5351 = vlaneseq
  %v5352 = vshrl.u32 %v5351, 7
  %v5353 = vadd.s32 %v5352, 8
  %5354 = vset.pattern.permute.xlu0 %v5353
  %5355 = vperm.xlu0 %5354, %v5234
  %v5356 = vpop.permute.xlu0 %5355
  %v5357 = vlaneseq
  %v5358 = vshrl.u32 %v5357, 7
  %v5359 = vadd.s32 %v5358, 16
  %5360 = vset.pattern.permute.xlu0 %v5359
  %5361 = vperm.xlu0 %5360, %v5234
  %v5362 = vpop.permute.xlu0 %5361
  %v5363 = vlaneseq
  %v5364 = vshrl.u32 %v5363, 7
  %v5365 = vadd.s32 %v5364, 24
  %5366 = vset.pattern.permute.xlu0 %v5365
  %5367 = vperm.xlu0 %5366, %v5234
  %v5368 = vpop.permute.xlu0 %5367
  %v5369 = vlaneseq
  %v5370 = vshrl.u32 %v5369, 7
  %v5371 = vadd.s32 %v5370, 32
  %5372 = vset.pattern.permute.xlu0 %v5371
  %5373 = vperm.xlu0 %5372, %v5234
  %v5374 = vpop.permute.xlu0 %5373
  %v5375 = vlaneseq
  %v5376 = vshrl.u32 %v5375, 7
  %v5377 = vadd.s32 %v5376, 40
  %5378 = vset.pattern.permute.xlu0 %v5377
  %5379 = vperm.xlu0 %5378, %v5234
  %v5380 = vpop.permute.xlu0 %5379
  %v5381 = vlaneseq
  %v5382 = vshrl.u32 %v5381, 7
  %v5383 = vadd.s32 %v5382, 48
  %5384 = vset.pattern.permute.xlu0 %v5383
  %5385 = vperm.xlu0 %5384, %v5234
  %v5386 = vpop.permute.xlu0 %5385
  %v5387 = vlaneseq
  %v5388 = vshrl.u32 %v5387, 7
  %v5389 = vadd.s32 %v5388, 56
  %5390 = vset.pattern.permute.xlu0 %v5389
  %5391 = vperm.xlu0 %5390, %v5234
  %v5392 = vpop.permute.xlu0 %5391
  %v5393 = vlaneseq
  %v5394 = vshrl.u32 %v5393, 7
  %v5395 = vadd.s32 %v5394, 64
  %5396 = vset.pattern.permute.xlu0 %v5395
  %5397 = vperm.xlu0 %5396, %v5234
  %v5398 = vpop.permute.xlu0 %5397
  %v5399 = vlaneseq
  %v5400 = vshrl.u32 %v5399, 7
  %v5401 = vadd.s32 %v5400, 72
  %5402 = vset.pattern.permute.xlu0 %v5401
  %5403 = vperm.xlu0 %5402, %v5234
  %v5404 = vpop.permute.xlu0 %5403
  %v5405 = vlaneseq
  %v5406 = vshrl.u32 %v5405, 7
  %v5407 = vadd.s32 %v5406, 80
  %5408 = vset.pattern.permute.xlu0 %v5407
  %5409 = vperm.xlu0 %5408, %v5234
  %v5410 = vpop.permute.xlu0 %5409
  %v5411 = vlaneseq
  %v5412 = vshrl.u32 %v5411, 7
  %v5413 = vadd.s32 %v5412, 88
  %5414 = vset.pattern.permute.xlu0 %v5413
  %5415 = vperm.xlu0 %5414, %v5234
  %v5416 = vpop.permute.xlu0 %5415
  %v5417 = vlaneseq
  %v5418 = vshrl.u32 %v5417, 7
  %v5419 = vadd.s32 %v5418, 96
  %5420 = vset.pattern.permute.xlu0 %v5419
  %5421 = vperm.xlu0 %5420, %v5234
  %v5422 = vpop.permute.xlu0 %5421
  %v5423 = vlaneseq
  %v5424 = vshrl.u32 %v5423, 7
  %v5425 = vadd.s32 %v5424, 104
  %5426 = vset.pattern.permute.xlu0 %v5425
  %5427 = vperm.xlu0 %5426, %v5234
  %v5428 = vpop.permute.xlu0 %5427
  %v5429 = vlaneseq
  %v5430 = vshrl.u32 %v5429, 7
  %v5431 = vadd.s32 %v5430, 112
  %5432 = vset.pattern.permute.xlu0 %v5431
  %5433 = vperm.xlu0 %5432, %v5234
  %v5434 = vpop.permute.xlu0 %5433
  %v5435 = vlaneseq
  %v5436 = vshrl.u32 %v5435, 7
  %v5437 = vadd.s32 %v5436, 120
  %5438 = vset.pattern.permute.xlu0 %v5437
  %5439 = vperm.xlu0 %5438, %v5234
  %v5440 = vpop.permute.xlu0 %5439
  %v5441 = vlaneseq
  %v5442 = vshrl.u32 %v5441, 7
  %5444 = vset.pattern.permute.xlu0 %v5442
  %5445 = vperm.xlu0 %5444, %v5235
  %v5446 = vpop.permute.xlu0 %5445
  %v5447 = vlaneseq
  %v5448 = vshrl.u32 %v5447, 7
  %v5449 = vadd.s32 %v5448, 8
  %5450 = vset.pattern.permute.xlu0 %v5449
  %5451 = vperm.xlu0 %5450, %v5235
  %v5452 = vpop.permute.xlu0 %5451
  %v5453 = vlaneseq
  %v5454 = vshrl.u32 %v5453, 7
  %v5455 = vadd.s32 %v5454, 16
  %5456 = vset.pattern.permute.xlu0 %v5455
  %5457 = vperm.xlu0 %5456, %v5235
  %v5458 = vpop.permute.xlu0 %5457
  %v5459 = vlaneseq
  %v5460 = vshrl.u32 %v5459, 7
  %v5461 = vadd.s32 %v5460, 24
  %5462 = vset.pattern.permute.xlu0 %v5461
  %5463 = vperm.xlu0 %5462, %v5235
  %v5464 = vpop.permute.xlu0 %5463
  %v5465 = vlaneseq
  %v5466 = vshrl.u32 %v5465, 7
  %v5467 = vadd.s32 %v5466, 32
  %5468 = vset.pattern.permute.xlu0 %v5467
  %5469 = vperm.xlu0 %5468, %v5235
  %v5470 = vpop.permute.xlu0 %5469
  %v5471 = vlaneseq
  %v5472 = vshrl.u32 %v5471, 7
  %v5473 = vadd.s32 %v5472, 40
  %5474 = vset.pattern.permute.xlu0 %v5473
  %5475 = vperm.xlu0 %5474, %v5235
  %v5476 = vpop.permute.xlu0 %5475
  %v5477 = vlaneseq
  %v5478 = vshrl.u32 %v5477, 7
  %v5479 = vadd.s32 %v5478, 48
  %5480 = vset.pattern.permute.xlu0 %v5479
  %5481 = vperm.xlu0 %5480, %v5235
  %v5482 = vpop.permute.xlu0 %5481
  %v5483 = vlaneseq
  %v5484 = vshrl.u32 %v5483, 7
  %v5485 = vadd.s32 %v5484, 56
  %5486 = vset.pattern.permute.xlu0 %v5485
  %5487 = vperm.xlu0 %5486, %v5235
  %v5488 = vpop.permute.xlu0 %5487
  %v5489 = vlaneseq
  %v5490 = vshrl.u32 %v5489, 7
  %v5491 = vadd.s32 %v5490, 64
  %5492 = vset.pattern.permute.xlu0 %v5491
  %5493 = vperm.xlu0 %5492, %v5235
  %v5494 = vpop.permute.xlu0 %5493
  %v5495 = vlaneseq
  %v5496 = vshrl.u32 %v5495, 7
  %v5497 = vadd.s32 %v5496, 72
  %5498 = vset.pattern.permute.xlu0 %v5497
  %5499 = vperm.xlu0 %5498, %v5235
  %v5500 = vpop.permute.xlu0 %5499
  %v5501 = vlaneseq
  %v5502 = vshrl.u32 %v5501, 7
  %v5503 = vadd.s32 %v5502, 80
  %5504 = vset.pattern.permute.xlu0 %v5503
  %5505 = vperm.xlu0 %5504, %v5235
  %v5506 = vpop.permute.xlu0 %5505
  %v5507 = vlaneseq
  %v5508 = vshrl.u32 %v5507, 7
  %v5509 = vadd.s32 %v5508, 88
  %5510 = vset.pattern.permute.xlu0 %v5509
  %5511 = vperm.xlu0 %5510, %v5235
  %v5512 = vpop.permute.xlu0 %5511
  %v5513 = vlaneseq
  %v5514 = vshrl.u32 %v5513, 7
  %v5515 = vadd.s32 %v5514, 96
  %5516 = vset.pattern.permute.xlu0 %v5515
  %5517 = vperm.xlu0 %5516, %v5235
  %v5518 = vpop.permute.xlu0 %5517
  %v5519 = vlaneseq
  %v5520 = vshrl.u32 %v5519, 7
  %v5521 = vadd.s32 %v5520, 104
  %5522 = vset.pattern.permute.xlu0 %v5521
  %5523 = vperm.xlu0 %5522, %v5235
  %v5524 = vpop.permute.xlu0 %5523
  %v5525 = vlaneseq
  %v5526 = vshrl.u32 %v5525, 7
  %v5527 = vadd.s32 %v5526, 112
  %5528 = vset.pattern.permute.xlu0 %v5527
  %5529 = vperm.xlu0 %5528, %v5235
  %v5530 = vpop.permute.xlu0 %5529
  %v5531 = vlaneseq
  %v5532 = vshrl.u32 %v5531, 7
  %v5533 = vadd.s32 %v5532, 120
  %5534 = vset.pattern.permute.xlu0 %v5533
  %5535 = vperm.xlu0 %5534, %v5235
  %v5536 = vpop.permute.xlu0 %5535
  %v5537 = vlaneseq
  %v5538 = vshrl.u32 %v5537, 7
  %5540 = vset.pattern.permute.xlu0 %v5538
  %5541 = vperm.xlu0 %5540, %v5236
  %v5542 = vpop.permute.xlu0 %5541
  %v5543 = vlaneseq
  %v5544 = vshrl.u32 %v5543, 7
  %v5545 = vadd.s32 %v5544, 8
  %5546 = vset.pattern.permute.xlu0 %v5545
  %5547 = vperm.xlu0 %5546, %v5236
  %v5548 = vpop.permute.xlu0 %5547
  %v5549 = vlaneseq
  %v5550 = vshrl.u32 %v5549, 7
  %v5551 = vadd.s32 %v5550, 16
  %5552 = vset.pattern.permute.xlu0 %v5551
  %5553 = vperm.xlu0 %5552, %v5236
  %v5554 = vpop.permute.xlu0 %5553
  %v5555 = vlaneseq
  %v5556 = vshrl.u32 %v5555, 7
  %v5557 = vadd.s32 %v5556, 24
  %5558 = vset.pattern.permute.xlu0 %v5557
  %5559 = vperm.xlu0 %5558, %v5236
  %v5560 = vpop.permute.xlu0 %5559
  %v5561 = vlaneseq
  %v5562 = vshrl.u32 %v5561, 7
  %v5563 = vadd.s32 %v5562, 32
  %5564 = vset.pattern.permute.xlu0 %v5563
  %5565 = vperm.xlu0 %5564, %v5236
  %v5566 = vpop.permute.xlu0 %5565
  %v5567 = vlaneseq
  %v5568 = vshrl.u32 %v5567, 7
  %v5569 = vadd.s32 %v5568, 40
  %5570 = vset.pattern.permute.xlu0 %v5569
  %5571 = vperm.xlu0 %5570, %v5236
  %v5572 = vpop.permute.xlu0 %5571
  %v5573 = vlaneseq
  %v5574 = vshrl.u32 %v5573, 7
  %v5575 = vadd.s32 %v5574, 48
  %5576 = vset.pattern.permute.xlu0 %v5575
  %5577 = vperm.xlu0 %5576, %v5236
  %v5578 = vpop.permute.xlu0 %5577
  %v5579 = vlaneseq
  %v5580 = vshrl.u32 %v5579, 7
  %v5581 = vadd.s32 %v5580, 56
  %5582 = vset.pattern.permute.xlu0 %v5581
  %5583 = vperm.xlu0 %5582, %v5236
  %v5584 = vpop.permute.xlu0 %5583
  %v5585 = vlaneseq
  %v5586 = vshrl.u32 %v5585, 7
  %v5587 = vadd.s32 %v5586, 64
  %5588 = vset.pattern.permute.xlu0 %v5587
  %5589 = vperm.xlu0 %5588, %v5236
  %v5590 = vpop.permute.xlu0 %5589
  %v5591 = vlaneseq
  %v5592 = vshrl.u32 %v5591, 7
  %v5593 = vadd.s32 %v5592, 72
  %5594 = vset.pattern.permute.xlu0 %v5593
  %5595 = vperm.xlu0 %5594, %v5236
  %v5596 = vpop.permute.xlu0 %5595
  %v5597 = vlaneseq
  %v5598 = vshrl.u32 %v5597, 7
  %v5599 = vadd.s32 %v5598, 80
  %5600 = vset.pattern.permute.xlu0 %v5599
  %5601 = vperm.xlu0 %5600, %v5236
  %v5602 = vpop.permute.xlu0 %5601
  %v5603 = vlaneseq
  %v5604 = vshrl.u32 %v5603, 7
  %v5605 = vadd.s32 %v5604, 88
  %5606 = vset.pattern.permute.xlu0 %v5605
  %5607 = vperm.xlu0 %5606, %v5236
  %v5608 = vpop.permute.xlu0 %5607
  %v5609 = vlaneseq
  %v5610 = vshrl.u32 %v5609, 7
  %v5611 = vadd.s32 %v5610, 96
  %5612 = vset.pattern.permute.xlu0 %v5611
  %5613 = vperm.xlu0 %5612, %v5236
  %v5614 = vpop.permute.xlu0 %5613
  %v5615 = vlaneseq
  %v5616 = vshrl.u32 %v5615, 7
  %v5617 = vadd.s32 %v5616, 104
  %5618 = vset.pattern.permute.xlu0 %v5617
  %5619 = vperm.xlu0 %5618, %v5236
  %v5620 = vpop.permute.xlu0 %5619
  %v5621 = vlaneseq
  %v5622 = vshrl.u32 %v5621, 7
  %v5623 = vadd.s32 %v5622, 112
  %5624 = vset.pattern.permute.xlu0 %v5623
  %5625 = vperm.xlu0 %5624, %v5236
  %v5626 = vpop.permute.xlu0 %5625
  %v5627 = vlaneseq
  %v5628 = vshrl.u32 %v5627, 7
  %v5629 = vadd.s32 %v5628, 120
  %5630 = vset.pattern.permute.xlu0 %v5629
  %5631 = vperm.xlu0 %5630, %v5236
  %v5632 = vpop.permute.xlu0 %5631
  %v5633 = vlaneseq
  %v5634 = vshrl.u32 %v5633, 7
  %5636 = vset.pattern.permute.xlu0 %v5634
  %5637 = vperm.xlu0 %5636, %v5237
  %v5638 = vpop.permute.xlu0 %5637
  %v5639 = vlaneseq
  %v5640 = vshrl.u32 %v5639, 7
  %v5641 = vadd.s32 %v5640, 8
  %5642 = vset.pattern.permute.xlu0 %v5641
  %5643 = vperm.xlu0 %5642, %v5237
  %v5644 = vpop.permute.xlu0 %5643
  %v5645 = vlaneseq
  %v5646 = vshrl.u32 %v5645, 7
  %v5647 = vadd.s32 %v5646, 16
  %5648 = vset.pattern.permute.xlu0 %v5647
  %5649 = vperm.xlu0 %5648, %v5237
  %v5650 = vpop.permute.xlu0 %5649
  %v5651 = vlaneseq
  %v5652 = vshrl.u32 %v5651, 7
  %v5653 = vadd.s32 %v5652, 24
  %5654 = vset.pattern.permute.xlu0 %v5653
  %5655 = vperm.xlu0 %5654, %v5237
  %v5656 = vpop.permute.xlu0 %5655
  %v5657 = vlaneseq
  %v5658 = vshrl.u32 %v5657, 7
  %v5659 = vadd.s32 %v5658, 32
  %5660 = vset.pattern.permute.xlu0 %v5659
  %5661 = vperm.xlu0 %5660, %v5237
  %v5662 = vpop.permute.xlu0 %5661
  %v5663 = vlaneseq
  %v5664 = vshrl.u32 %v5663, 7
  %v5665 = vadd.s32 %v5664, 40
  %5666 = vset.pattern.permute.xlu0 %v5665
  %5667 = vperm.xlu0 %5666, %v5237
  %v5668 = vpop.permute.xlu0 %5667
  %v5669 = vlaneseq
  %v5670 = vshrl.u32 %v5669, 7
  %v5671 = vadd.s32 %v5670, 48
  %5672 = vset.pattern.permute.xlu0 %v5671
  %5673 = vperm.xlu0 %5672, %v5237
  %v5674 = vpop.permute.xlu0 %5673
  %v5675 = vlaneseq
  %v5676 = vshrl.u32 %v5675, 7
  %v5677 = vadd.s32 %v5676, 56
  %5678 = vset.pattern.permute.xlu0 %v5677
  %5679 = vperm.xlu0 %5678, %v5237
  %v5680 = vpop.permute.xlu0 %5679
  %v5681 = vlaneseq
  %v5682 = vshrl.u32 %v5681, 7
  %v5683 = vadd.s32 %v5682, 64
  %5684 = vset.pattern.permute.xlu0 %v5683
  %5685 = vperm.xlu0 %5684, %v5237
  %v5686 = vpop.permute.xlu0 %5685
  %v5687 = vlaneseq
  %v5688 = vshrl.u32 %v5687, 7
  %v5689 = vadd.s32 %v5688, 72
  %5690 = vset.pattern.permute.xlu0 %v5689
  %5691 = vperm.xlu0 %5690, %v5237
  %v5692 = vpop.permute.xlu0 %5691
  %v5693 = vlaneseq
  %v5694 = vshrl.u32 %v5693, 7
  %v5695 = vadd.s32 %v5694, 80
  %5696 = vset.pattern.permute.xlu0 %v5695
  %5697 = vperm.xlu0 %5696, %v5237
  %v5698 = vpop.permute.xlu0 %5697
  %v5699 = vlaneseq
  %v5700 = vshrl.u32 %v5699, 7
  %v5701 = vadd.s32 %v5700, 88
  %5702 = vset.pattern.permute.xlu0 %v5701
  %5703 = vperm.xlu0 %5702, %v5237
  %v5704 = vpop.permute.xlu0 %5703
  %v5705 = vlaneseq
  %v5706 = vshrl.u32 %v5705, 7
  %v5707 = vadd.s32 %v5706, 96
  %5708 = vset.pattern.permute.xlu0 %v5707
  %5709 = vperm.xlu0 %5708, %v5237
  %v5710 = vpop.permute.xlu0 %5709
  %v5711 = vlaneseq
  %v5712 = vshrl.u32 %v5711, 7
  %v5713 = vadd.s32 %v5712, 104
  %5714 = vset.pattern.permute.xlu0 %v5713
  %5715 = vperm.xlu0 %5714, %v5237
  %v5716 = vpop.permute.xlu0 %5715
  %v5717 = vlaneseq
  %v5718 = vshrl.u32 %v5717, 7
  %v5719 = vadd.s32 %v5718, 112
  %5720 = vset.pattern.permute.xlu0 %v5719
  %5721 = vperm.xlu0 %5720, %v5237
  %v5722 = vpop.permute.xlu0 %5721
  %v5723 = vlaneseq
  %v5724 = vshrl.u32 %v5723, 7
  %v5725 = vadd.s32 %v5724, 120
  %5726 = vset.pattern.permute.xlu0 %v5725
  %5727 = vperm.xlu0 %5726, %v5237
  %v5728 = vpop.permute.xlu0 %5727
  %v5729 = vlaneseq
  %v5730 = vshrl.u32 %v5729, 7
  %5732 = vset.pattern.permute.xlu0 %v5730
  %5733 = vperm.xlu0 %5732, %v5238
  %v5734 = vpop.permute.xlu0 %5733
  %v5735 = vlaneseq
  %v5736 = vshrl.u32 %v5735, 7
  %v5737 = vadd.s32 %v5736, 8
  %5738 = vset.pattern.permute.xlu0 %v5737
  %5739 = vperm.xlu0 %5738, %v5238
  %v5740 = vpop.permute.xlu0 %5739
  %v5741 = vlaneseq
  %v5742 = vshrl.u32 %v5741, 7
  %v5743 = vadd.s32 %v5742, 16
  %5744 = vset.pattern.permute.xlu0 %v5743
  %5745 = vperm.xlu0 %5744, %v5238
  %v5746 = vpop.permute.xlu0 %5745
  %v5747 = vlaneseq
  %v5748 = vshrl.u32 %v5747, 7
  %v5749 = vadd.s32 %v5748, 24
  %5750 = vset.pattern.permute.xlu0 %v5749
  %5751 = vperm.xlu0 %5750, %v5238
  %v5752 = vpop.permute.xlu0 %5751
  %v5753 = vlaneseq
  %v5754 = vshrl.u32 %v5753, 7
  %v5755 = vadd.s32 %v5754, 32
  %5756 = vset.pattern.permute.xlu0 %v5755
  %5757 = vperm.xlu0 %5756, %v5238
  %v5758 = vpop.permute.xlu0 %5757
  %v5759 = vlaneseq
  %v5760 = vshrl.u32 %v5759, 7
  %v5761 = vadd.s32 %v5760, 40
  %5762 = vset.pattern.permute.xlu0 %v5761
  %5763 = vperm.xlu0 %5762, %v5238
  %v5764 = vpop.permute.xlu0 %5763
  %v5765 = vlaneseq
  %v5766 = vshrl.u32 %v5765, 7
  %v5767 = vadd.s32 %v5766, 48
  %5768 = vset.pattern.permute.xlu0 %v5767
  %5769 = vperm.xlu0 %5768, %v5238
  %v5770 = vpop.permute.xlu0 %5769
  %v5771 = vlaneseq
  %v5772 = vshrl.u32 %v5771, 7
  %v5773 = vadd.s32 %v5772, 56
  %5774 = vset.pattern.permute.xlu0 %v5773
  %5775 = vperm.xlu0 %5774, %v5238
  %v5776 = vpop.permute.xlu0 %5775
  %v5777 = vlaneseq
  %v5778 = vshrl.u32 %v5777, 7
  %v5779 = vadd.s32 %v5778, 64
  %5780 = vset.pattern.permute.xlu0 %v5779
  %5781 = vperm.xlu0 %5780, %v5238
  %v5782 = vpop.permute.xlu0 %5781
  %v5783 = vlaneseq
  %v5784 = vshrl.u32 %v5783, 7
  %v5785 = vadd.s32 %v5784, 72
  %5786 = vset.pattern.permute.xlu0 %v5785
  %5787 = vperm.xlu0 %5786, %v5238
  %v5788 = vpop.permute.xlu0 %5787
  %v5789 = vlaneseq
  %v5790 = vshrl.u32 %v5789, 7
  %v5791 = vadd.s32 %v5790, 80
  %5792 = vset.pattern.permute.xlu0 %v5791
  %5793 = vperm.xlu0 %5792, %v5238
  %v5794 = vpop.permute.xlu0 %5793
  %v5795 = vlaneseq
  %v5796 = vshrl.u32 %v5795, 7
  %v5797 = vadd.s32 %v5796, 88
  %5798 = vset.pattern.permute.xlu0 %v5797
  %5799 = vperm.xlu0 %5798, %v5238
  %v5800 = vpop.permute.xlu0 %5799
  %v5801 = vlaneseq
  %v5802 = vshrl.u32 %v5801, 7
  %v5803 = vadd.s32 %v5802, 96
  %5804 = vset.pattern.permute.xlu0 %v5803
  %5805 = vperm.xlu0 %5804, %v5238
  %v5806 = vpop.permute.xlu0 %5805
  %v5807 = vlaneseq
  %v5808 = vshrl.u32 %v5807, 7
  %v5809 = vadd.s32 %v5808, 104
  %5810 = vset.pattern.permute.xlu0 %v5809
  %5811 = vperm.xlu0 %5810, %v5238
  %v5812 = vpop.permute.xlu0 %5811
  %v5813 = vlaneseq
  %v5814 = vshrl.u32 %v5813, 7
  %v5815 = vadd.s32 %v5814, 112
  %5816 = vset.pattern.permute.xlu0 %v5815
  %5817 = vperm.xlu0 %5816, %v5238
  %v5818 = vpop.permute.xlu0 %5817
  %v5819 = vlaneseq
  %v5820 = vshrl.u32 %v5819, 7
  %v5821 = vadd.s32 %v5820, 120
  %5822 = vset.pattern.permute.xlu0 %v5821
  %5823 = vperm.xlu0 %5822, %v5238
  %v5824 = vpop.permute.xlu0 %5823
  %v5825 = vlaneseq
  %v5826 = vshrl.u32 %v5825, 7
  %5828 = vset.pattern.permute.xlu0 %v5826
  %5829 = vperm.xlu0 %5828, %v5239
  %v5830 = vpop.permute.xlu0 %5829
  %v5831 = vlaneseq
  %v5832 = vshrl.u32 %v5831, 7
  %v5833 = vadd.s32 %v5832, 8
  %5834 = vset.pattern.permute.xlu0 %v5833
  %5835 = vperm.xlu0 %5834, %v5239
  %v5836 = vpop.permute.xlu0 %5835
  %v5837 = vlaneseq
  %v5838 = vshrl.u32 %v5837, 7
  %v5839 = vadd.s32 %v5838, 16
  %5840 = vset.pattern.permute.xlu0 %v5839
  %5841 = vperm.xlu0 %5840, %v5239
  %v5842 = vpop.permute.xlu0 %5841
  %v5843 = vlaneseq
  %v5844 = vshrl.u32 %v5843, 7
  %v5845 = vadd.s32 %v5844, 24
  %5846 = vset.pattern.permute.xlu0 %v5845
  %5847 = vperm.xlu0 %5846, %v5239
  %v5848 = vpop.permute.xlu0 %5847
  %v5849 = vlaneseq
  %v5850 = vshrl.u32 %v5849, 7
  %v5851 = vadd.s32 %v5850, 32
  %5852 = vset.pattern.permute.xlu0 %v5851
  %5853 = vperm.xlu0 %5852, %v5239
  %v5854 = vpop.permute.xlu0 %5853
  %v5855 = vlaneseq
  %v5856 = vshrl.u32 %v5855, 7
  %v5857 = vadd.s32 %v5856, 40
  %5858 = vset.pattern.permute.xlu0 %v5857
  %5859 = vperm.xlu0 %5858, %v5239
  %v5860 = vpop.permute.xlu0 %5859
  %v5861 = vlaneseq
  %v5862 = vshrl.u32 %v5861, 7
  %v5863 = vadd.s32 %v5862, 48
  %5864 = vset.pattern.permute.xlu0 %v5863
  %5865 = vperm.xlu0 %5864, %v5239
  %v5866 = vpop.permute.xlu0 %5865
  %v5867 = vlaneseq
  %v5868 = vshrl.u32 %v5867, 7
  %v5869 = vadd.s32 %v5868, 56
  %5870 = vset.pattern.permute.xlu0 %v5869
  %5871 = vperm.xlu0 %5870, %v5239
  %v5872 = vpop.permute.xlu0 %5871
  %v5873 = vlaneseq
  %v5874 = vshrl.u32 %v5873, 7
  %v5875 = vadd.s32 %v5874, 64
  %5876 = vset.pattern.permute.xlu0 %v5875
  %5877 = vperm.xlu0 %5876, %v5239
  %v5878 = vpop.permute.xlu0 %5877
  %v5879 = vlaneseq
  %v5880 = vshrl.u32 %v5879, 7
  %v5881 = vadd.s32 %v5880, 72
  %5882 = vset.pattern.permute.xlu0 %v5881
  %5883 = vperm.xlu0 %5882, %v5239
  %v5884 = vpop.permute.xlu0 %5883
  %v5885 = vlaneseq
  %v5886 = vshrl.u32 %v5885, 7
  %v5887 = vadd.s32 %v5886, 80
  %5888 = vset.pattern.permute.xlu0 %v5887
  %5889 = vperm.xlu0 %5888, %v5239
  %v5890 = vpop.permute.xlu0 %5889
  %v5891 = vlaneseq
  %v5892 = vshrl.u32 %v5891, 7
  %v5893 = vadd.s32 %v5892, 88
  %5894 = vset.pattern.permute.xlu0 %v5893
  %5895 = vperm.xlu0 %5894, %v5239
  %v5896 = vpop.permute.xlu0 %5895
  %v5897 = vlaneseq
  %v5898 = vshrl.u32 %v5897, 7
  %v5899 = vadd.s32 %v5898, 96
  %5900 = vset.pattern.permute.xlu0 %v5899
  %5901 = vperm.xlu0 %5900, %v5239
  %v5902 = vpop.permute.xlu0 %5901
  %v5903 = vlaneseq
  %v5904 = vshrl.u32 %v5903, 7
  %v5905 = vadd.s32 %v5904, 104
  %5906 = vset.pattern.permute.xlu0 %v5905
  %5907 = vperm.xlu0 %5906, %v5239
  %v5908 = vpop.permute.xlu0 %5907
  %v5909 = vlaneseq
  %v5910 = vshrl.u32 %v5909, 7
  %v5911 = vadd.s32 %v5910, 112
  %5912 = vset.pattern.permute.xlu0 %v5911
  %5913 = vperm.xlu0 %5912, %v5239
  %v5914 = vpop.permute.xlu0 %5913
  %v5915 = vlaneseq
  %v5916 = vshrl.u32 %v5915, 7
  %v5917 = vadd.s32 %v5916, 120
  %5918 = vset.pattern.permute.xlu0 %v5917
  %5919 = vperm.xlu0 %5918, %v5239
  %v5920 = vpop.permute.xlu0 %5919
  %v5921 = vlaneseq
  %v5922 = vshrl.u32 %v5921, 7
  %5924 = vset.pattern.permute.xlu0 %v5922
  %5925 = vperm.xlu0 %5924, %v5240
  %v5926 = vpop.permute.xlu0 %5925
  %v5927 = vlaneseq
  %v5928 = vshrl.u32 %v5927, 7
  %v5929 = vadd.s32 %v5928, 8
  %5930 = vset.pattern.permute.xlu0 %v5929
  %5931 = vperm.xlu0 %5930, %v5240
  %v5932 = vpop.permute.xlu0 %5931
  %v5933 = vlaneseq
  %v5934 = vshrl.u32 %v5933, 7
  %v5935 = vadd.s32 %v5934, 16
  %5936 = vset.pattern.permute.xlu0 %v5935
  %5937 = vperm.xlu0 %5936, %v5240
  %v5938 = vpop.permute.xlu0 %5937
  %v5939 = vlaneseq
  %v5940 = vshrl.u32 %v5939, 7
  %v5941 = vadd.s32 %v5940, 24
  %5942 = vset.pattern.permute.xlu0 %v5941
  %5943 = vperm.xlu0 %5942, %v5240
  %v5944 = vpop.permute.xlu0 %5943
  %v5945 = vlaneseq
  %v5946 = vshrl.u32 %v5945, 7
  %v5947 = vadd.s32 %v5946, 32
  %5948 = vset.pattern.permute.xlu0 %v5947
  %5949 = vperm.xlu0 %5948, %v5240
  %v5950 = vpop.permute.xlu0 %5949
  %v5951 = vlaneseq
  %v5952 = vshrl.u32 %v5951, 7
  %v5953 = vadd.s32 %v5952, 40
  %5954 = vset.pattern.permute.xlu0 %v5953
  %5955 = vperm.xlu0 %5954, %v5240
  %v5956 = vpop.permute.xlu0 %5955
  %v5957 = vlaneseq
  %v5958 = vshrl.u32 %v5957, 7
  %v5959 = vadd.s32 %v5958, 48
  %5960 = vset.pattern.permute.xlu0 %v5959
  %5961 = vperm.xlu0 %5960, %v5240
  %v5962 = vpop.permute.xlu0 %5961
  %v5963 = vlaneseq
  %v5964 = vshrl.u32 %v5963, 7
  %v5965 = vadd.s32 %v5964, 56
  %5966 = vset.pattern.permute.xlu0 %v5965
  %5967 = vperm.xlu0 %5966, %v5240
  %v5968 = vpop.permute.xlu0 %5967
  %v5969 = vlaneseq
  %v5970 = vshrl.u32 %v5969, 7
  %v5971 = vadd.s32 %v5970, 64
  %5972 = vset.pattern.permute.xlu0 %v5971
  %5973 = vperm.xlu0 %5972, %v5240
  %v5974 = vpop.permute.xlu0 %5973
  %v5975 = vlaneseq
  %v5976 = vshrl.u32 %v5975, 7
  %v5977 = vadd.s32 %v5976, 72
  %5978 = vset.pattern.permute.xlu0 %v5977
  %5979 = vperm.xlu0 %5978, %v5240
  %v5980 = vpop.permute.xlu0 %5979
  %v5981 = vlaneseq
  %v5982 = vshrl.u32 %v5981, 7
  %v5983 = vadd.s32 %v5982, 80
  %5984 = vset.pattern.permute.xlu0 %v5983
  %5985 = vperm.xlu0 %5984, %v5240
  %v5986 = vpop.permute.xlu0 %5985
  %v5987 = vlaneseq
  %v5988 = vshrl.u32 %v5987, 7
  %v5989 = vadd.s32 %v5988, 88
  %5990 = vset.pattern.permute.xlu0 %v5989
  %5991 = vperm.xlu0 %5990, %v5240
  %v5992 = vpop.permute.xlu0 %5991
  %v5993 = vlaneseq
  %v5994 = vshrl.u32 %v5993, 7
  %v5995 = vadd.s32 %v5994, 96
  %5996 = vset.pattern.permute.xlu0 %v5995
  %5997 = vperm.xlu0 %5996, %v5240
  %v5998 = vpop.permute.xlu0 %5997
  %v5999 = vlaneseq
  %v6000 = vshrl.u32 %v5999, 7
  %v6001 = vadd.s32 %v6000, 104
  %6002 = vset.pattern.permute.xlu0 %v6001
  %6003 = vperm.xlu0 %6002, %v5240
  %v6004 = vpop.permute.xlu0 %6003
  %v6005 = vlaneseq
  %v6006 = vshrl.u32 %v6005, 7
  %v6007 = vadd.s32 %v6006, 112
  %6008 = vset.pattern.permute.xlu0 %v6007
  %6009 = vperm.xlu0 %6008, %v5240
  %v6010 = vpop.permute.xlu0 %6009
  %v6011 = vlaneseq
  %v6012 = vshrl.u32 %v6011, 7
  %v6013 = vadd.s32 %v6012, 120
  %6014 = vset.pattern.permute.xlu0 %v6013
  %6015 = vperm.xlu0 %6014, %v5240
  %v6016 = vpop.permute.xlu0 %6015
  %v6017 = vlaneseq
  %v6018 = vshrl.u32 %v6017, 7
  %6020 = vset.pattern.permute.xlu0 %v6018
  %6021 = vperm.xlu0 %6020, %v5241
  %v6022 = vpop.permute.xlu0 %6021
  %v6023 = vlaneseq
  %v6024 = vshrl.u32 %v6023, 7
  %v6025 = vadd.s32 %v6024, 8
  %6026 = vset.pattern.permute.xlu0 %v6025
  %6027 = vperm.xlu0 %6026, %v5241
  %v6028 = vpop.permute.xlu0 %6027
  %v6029 = vlaneseq
  %v6030 = vshrl.u32 %v6029, 7
  %v6031 = vadd.s32 %v6030, 16
  %6032 = vset.pattern.permute.xlu0 %v6031
  %6033 = vperm.xlu0 %6032, %v5241
  %v6034 = vpop.permute.xlu0 %6033
  %v6035 = vlaneseq
  %v6036 = vshrl.u32 %v6035, 7
  %v6037 = vadd.s32 %v6036, 24
  %6038 = vset.pattern.permute.xlu0 %v6037
  %6039 = vperm.xlu0 %6038, %v5241
  %v6040 = vpop.permute.xlu0 %6039
  %v6041 = vlaneseq
  %v6042 = vshrl.u32 %v6041, 7
  %v6043 = vadd.s32 %v6042, 32
  %6044 = vset.pattern.permute.xlu0 %v6043
  %6045 = vperm.xlu0 %6044, %v5241
  %v6046 = vpop.permute.xlu0 %6045
  %v6047 = vlaneseq
  %v6048 = vshrl.u32 %v6047, 7
  %v6049 = vadd.s32 %v6048, 40
  %6050 = vset.pattern.permute.xlu0 %v6049
  %6051 = vperm.xlu0 %6050, %v5241
  %v6052 = vpop.permute.xlu0 %6051
  %v6053 = vlaneseq
  %v6054 = vshrl.u32 %v6053, 7
  %v6055 = vadd.s32 %v6054, 48
  %6056 = vset.pattern.permute.xlu0 %v6055
  %6057 = vperm.xlu0 %6056, %v5241
  %v6058 = vpop.permute.xlu0 %6057
  %v6059 = vlaneseq
  %v6060 = vshrl.u32 %v6059, 7
  %v6061 = vadd.s32 %v6060, 56
  %6062 = vset.pattern.permute.xlu0 %v6061
  %6063 = vperm.xlu0 %6062, %v5241
  %v6064 = vpop.permute.xlu0 %6063
  %v6065 = vlaneseq
  %v6066 = vshrl.u32 %v6065, 7
  %v6067 = vadd.s32 %v6066, 64
  %6068 = vset.pattern.permute.xlu0 %v6067
  %6069 = vperm.xlu0 %6068, %v5241
  %v6070 = vpop.permute.xlu0 %6069
  %v6071 = vlaneseq
  %v6072 = vshrl.u32 %v6071, 7
  %v6073 = vadd.s32 %v6072, 72
  %6074 = vset.pattern.permute.xlu0 %v6073
  %6075 = vperm.xlu0 %6074, %v5241
  %v6076 = vpop.permute.xlu0 %6075
  %v6077 = vlaneseq
  %v6078 = vshrl.u32 %v6077, 7
  %v6079 = vadd.s32 %v6078, 80
  %6080 = vset.pattern.permute.xlu0 %v6079
  %6081 = vperm.xlu0 %6080, %v5241
  %v6082 = vpop.permute.xlu0 %6081
  %v6083 = vlaneseq
  %v6084 = vshrl.u32 %v6083, 7
  %v6085 = vadd.s32 %v6084, 88
  %6086 = vset.pattern.permute.xlu0 %v6085
  %6087 = vperm.xlu0 %6086, %v5241
  %v6088 = vpop.permute.xlu0 %6087
  %v6089 = vlaneseq
  %v6090 = vshrl.u32 %v6089, 7
  %v6091 = vadd.s32 %v6090, 96
  %6092 = vset.pattern.permute.xlu0 %v6091
  %6093 = vperm.xlu0 %6092, %v5241
  %v6094 = vpop.permute.xlu0 %6093
  %v6095 = vlaneseq
  %v6096 = vshrl.u32 %v6095, 7
  %v6097 = vadd.s32 %v6096, 104
  %6098 = vset.pattern.permute.xlu0 %v6097
  %6099 = vperm.xlu0 %6098, %v5241
  %v6100 = vpop.permute.xlu0 %6099
  %v6101 = vlaneseq
  %v6102 = vshrl.u32 %v6101, 7
  %v6103 = vadd.s32 %v6102, 112
  %6104 = vset.pattern.permute.xlu0 %v6103
  %6105 = vperm.xlu0 %6104, %v5241
  %v6106 = vpop.permute.xlu0 %6105
  %v6107 = vlaneseq
  %v6108 = vshrl.u32 %v6107, 7
  %v6109 = vadd.s32 %v6108, 120
  %6110 = vset.pattern.permute.xlu0 %v6109
  %6111 = vperm.xlu0 %6110, %v5241
  %v6112 = vpop.permute.xlu0 %6111
  %v6113 = vlaneseq
  %v6114 = vshrl.u32 %v6113, 7
  %6116 = vset.pattern.permute.xlu0 %v6114
  %6117 = vperm.xlu0 %6116, %v5242
  %v6118 = vpop.permute.xlu0 %6117
  %v6119 = vlaneseq
  %v6120 = vshrl.u32 %v6119, 7
  %v6121 = vadd.s32 %v6120, 8
  %6122 = vset.pattern.permute.xlu0 %v6121
  %6123 = vperm.xlu0 %6122, %v5242
  %v6124 = vpop.permute.xlu0 %6123
  %v6125 = vlaneseq
  %v6126 = vshrl.u32 %v6125, 7
  %v6127 = vadd.s32 %v6126, 16
  %6128 = vset.pattern.permute.xlu0 %v6127
  %6129 = vperm.xlu0 %6128, %v5242
  %v6130 = vpop.permute.xlu0 %6129
  %v6131 = vlaneseq
  %v6132 = vshrl.u32 %v6131, 7
  %v6133 = vadd.s32 %v6132, 24
  %6134 = vset.pattern.permute.xlu0 %v6133
  %6135 = vperm.xlu0 %6134, %v5242
  %v6136 = vpop.permute.xlu0 %6135
  %v6137 = vlaneseq
  %v6138 = vshrl.u32 %v6137, 7
  %v6139 = vadd.s32 %v6138, 32
  %6140 = vset.pattern.permute.xlu0 %v6139
  %6141 = vperm.xlu0 %6140, %v5242
  %v6142 = vpop.permute.xlu0 %6141
  %v6143 = vlaneseq
  %v6144 = vshrl.u32 %v6143, 7
  %v6145 = vadd.s32 %v6144, 40
  %6146 = vset.pattern.permute.xlu0 %v6145
  %6147 = vperm.xlu0 %6146, %v5242
  %v6148 = vpop.permute.xlu0 %6147
  %v6149 = vlaneseq
  %v6150 = vshrl.u32 %v6149, 7
  %v6151 = vadd.s32 %v6150, 48
  %6152 = vset.pattern.permute.xlu0 %v6151
  %6153 = vperm.xlu0 %6152, %v5242
  %v6154 = vpop.permute.xlu0 %6153
  %v6155 = vlaneseq
  %v6156 = vshrl.u32 %v6155, 7
  %v6157 = vadd.s32 %v6156, 56
  %6158 = vset.pattern.permute.xlu0 %v6157
  %6159 = vperm.xlu0 %6158, %v5242
  %v6160 = vpop.permute.xlu0 %6159
  %v6161 = vlaneseq
  %v6162 = vshrl.u32 %v6161, 7
  %v6163 = vadd.s32 %v6162, 64
  %6164 = vset.pattern.permute.xlu0 %v6163
  %6165 = vperm.xlu0 %6164, %v5242
  %v6166 = vpop.permute.xlu0 %6165
  %v6167 = vlaneseq
  %v6168 = vshrl.u32 %v6167, 7
  %v6169 = vadd.s32 %v6168, 72
  %6170 = vset.pattern.permute.xlu0 %v6169
  %6171 = vperm.xlu0 %6170, %v5242
  %v6172 = vpop.permute.xlu0 %6171
  %v6173 = vlaneseq
  %v6174 = vshrl.u32 %v6173, 7
  %v6175 = vadd.s32 %v6174, 80
  %6176 = vset.pattern.permute.xlu0 %v6175
  %6177 = vperm.xlu0 %6176, %v5242
  %v6178 = vpop.permute.xlu0 %6177
  %v6179 = vlaneseq
  %v6180 = vshrl.u32 %v6179, 7
  %v6181 = vadd.s32 %v6180, 88
  %6182 = vset.pattern.permute.xlu0 %v6181
  %6183 = vperm.xlu0 %6182, %v5242
  %v6184 = vpop.permute.xlu0 %6183
  %v6185 = vlaneseq
  %v6186 = vshrl.u32 %v6185, 7
  %v6187 = vadd.s32 %v6186, 96
  %6188 = vset.pattern.permute.xlu0 %v6187
  %6189 = vperm.xlu0 %6188, %v5242
  %v6190 = vpop.permute.xlu0 %6189
  %v6191 = vlaneseq
  %v6192 = vshrl.u32 %v6191, 7
  %v6193 = vadd.s32 %v6192, 104
  %6194 = vset.pattern.permute.xlu0 %v6193
  %6195 = vperm.xlu0 %6194, %v5242
  %v6196 = vpop.permute.xlu0 %6195
  %v6197 = vlaneseq
  %v6198 = vshrl.u32 %v6197, 7
  %v6199 = vadd.s32 %v6198, 112
  %6200 = vset.pattern.permute.xlu0 %v6199
  %6201 = vperm.xlu0 %6200, %v5242
  %v6202 = vpop.permute.xlu0 %6201
  %v6203 = vlaneseq
  %v6204 = vshrl.u32 %v6203, 7
  %v6205 = vadd.s32 %v6204, 120
  %6206 = vset.pattern.permute.xlu0 %v6205
  %6207 = vperm.xlu0 %6206, %v5242
  %v6208 = vpop.permute.xlu0 %6207
  %v6209 = vlaneseq
  %v6210 = vshrl.u32 %v6209, 7
  %6212 = vset.pattern.permute.xlu0 %v6210
  %6213 = vperm.xlu0 %6212, %v5243
  %v6214 = vpop.permute.xlu0 %6213
  %v6215 = vlaneseq
  %v6216 = vshrl.u32 %v6215, 7
  %v6217 = vadd.s32 %v6216, 8
  %6218 = vset.pattern.permute.xlu0 %v6217
  %6219 = vperm.xlu0 %6218, %v5243
  %v6220 = vpop.permute.xlu0 %6219
  %v6221 = vlaneseq
  %v6222 = vshrl.u32 %v6221, 7
  %v6223 = vadd.s32 %v6222, 16
  %6224 = vset.pattern.permute.xlu0 %v6223
  %6225 = vperm.xlu0 %6224, %v5243
  %v6226 = vpop.permute.xlu0 %6225
  %v6227 = vlaneseq
  %v6228 = vshrl.u32 %v6227, 7
  %v6229 = vadd.s32 %v6228, 24
  %6230 = vset.pattern.permute.xlu0 %v6229
  %6231 = vperm.xlu0 %6230, %v5243
  %v6232 = vpop.permute.xlu0 %6231
  %v6233 = vlaneseq
  %v6234 = vshrl.u32 %v6233, 7
  %v6235 = vadd.s32 %v6234, 32
  %6236 = vset.pattern.permute.xlu0 %v6235
  %6237 = vperm.xlu0 %6236, %v5243
  %v6238 = vpop.permute.xlu0 %6237
  %v6239 = vlaneseq
  %v6240 = vshrl.u32 %v6239, 7
  %v6241 = vadd.s32 %v6240, 40
  %6242 = vset.pattern.permute.xlu0 %v6241
  %6243 = vperm.xlu0 %6242, %v5243
  %v6244 = vpop.permute.xlu0 %6243
  %v6245 = vlaneseq
  %v6246 = vshrl.u32 %v6245, 7
  %v6247 = vadd.s32 %v6246, 48
  %6248 = vset.pattern.permute.xlu0 %v6247
  %6249 = vperm.xlu0 %6248, %v5243
  %v6250 = vpop.permute.xlu0 %6249
  %v6251 = vlaneseq
  %v6252 = vshrl.u32 %v6251, 7
  %v6253 = vadd.s32 %v6252, 56
  %6254 = vset.pattern.permute.xlu0 %v6253
  %6255 = vperm.xlu0 %6254, %v5243
  %v6256 = vpop.permute.xlu0 %6255
  %v6257 = vlaneseq
  %v6258 = vshrl.u32 %v6257, 7
  %v6259 = vadd.s32 %v6258, 64
  %6260 = vset.pattern.permute.xlu0 %v6259
  %6261 = vperm.xlu0 %6260, %v5243
  %v6262 = vpop.permute.xlu0 %6261
  %v6263 = vlaneseq
  %v6264 = vshrl.u32 %v6263, 7
  %v6265 = vadd.s32 %v6264, 72
  %6266 = vset.pattern.permute.xlu0 %v6265
  %6267 = vperm.xlu0 %6266, %v5243
  %v6268 = vpop.permute.xlu0 %6267
  %v6269 = vlaneseq
  %v6270 = vshrl.u32 %v6269, 7
  %v6271 = vadd.s32 %v6270, 80
  %6272 = vset.pattern.permute.xlu0 %v6271
  %6273 = vperm.xlu0 %6272, %v5243
  %v6274 = vpop.permute.xlu0 %6273
  %v6275 = vlaneseq
  %v6276 = vshrl.u32 %v6275, 7
  %v6277 = vadd.s32 %v6276, 88
  %6278 = vset.pattern.permute.xlu0 %v6277
  %6279 = vperm.xlu0 %6278, %v5243
  %v6280 = vpop.permute.xlu0 %6279
  %v6281 = vlaneseq
  %v6282 = vshrl.u32 %v6281, 7
  %v6283 = vadd.s32 %v6282, 96
  %6284 = vset.pattern.permute.xlu0 %v6283
  %6285 = vperm.xlu0 %6284, %v5243
  %v6286 = vpop.permute.xlu0 %6285
  %v6287 = vlaneseq
  %v6288 = vshrl.u32 %v6287, 7
  %v6289 = vadd.s32 %v6288, 104
  %6290 = vset.pattern.permute.xlu0 %v6289
  %6291 = vperm.xlu0 %6290, %v5243
  %v6292 = vpop.permute.xlu0 %6291
  %v6293 = vlaneseq
  %v6294 = vshrl.u32 %v6293, 7
  %v6295 = vadd.s32 %v6294, 112
  %6296 = vset.pattern.permute.xlu0 %v6295
  %6297 = vperm.xlu0 %6296, %v5243
  %v6298 = vpop.permute.xlu0 %6297
  %v6299 = vlaneseq
  %v6300 = vshrl.u32 %v6299, 7
  %v6301 = vadd.s32 %v6300, 120
  %6302 = vset.pattern.permute.xlu0 %v6301
  %6303 = vperm.xlu0 %6302, %v5243
  %v6304 = vpop.permute.xlu0 %6303
  %v6305 = vlaneseq
  %v6306 = vshrl.u32 %v6305, 7
  %6308 = vset.pattern.permute.xlu0 %v6306
  %6309 = vperm.xlu0 %6308, %v5244
  %v6310 = vpop.permute.xlu0 %6309
  %v6311 = vlaneseq
  %v6312 = vshrl.u32 %v6311, 7
  %v6313 = vadd.s32 %v6312, 8
  %6314 = vset.pattern.permute.xlu0 %v6313
  %6315 = vperm.xlu0 %6314, %v5244
  %v6316 = vpop.permute.xlu0 %6315
  %v6317 = vlaneseq
  %v6318 = vshrl.u32 %v6317, 7
  %v6319 = vadd.s32 %v6318, 16
  %6320 = vset.pattern.permute.xlu0 %v6319
  %6321 = vperm.xlu0 %6320, %v5244
  %v6322 = vpop.permute.xlu0 %6321
  %v6323 = vlaneseq
  %v6324 = vshrl.u32 %v6323, 7
  %v6325 = vadd.s32 %v6324, 24
  %6326 = vset.pattern.permute.xlu0 %v6325
  %6327 = vperm.xlu0 %6326, %v5244
  %v6328 = vpop.permute.xlu0 %6327
  %v6329 = vlaneseq
  %v6330 = vshrl.u32 %v6329, 7
  %v6331 = vadd.s32 %v6330, 32
  %6332 = vset.pattern.permute.xlu0 %v6331
  %6333 = vperm.xlu0 %6332, %v5244
  %v6334 = vpop.permute.xlu0 %6333
  %v6335 = vlaneseq
  %v6336 = vshrl.u32 %v6335, 7
  %v6337 = vadd.s32 %v6336, 40
  %6338 = vset.pattern.permute.xlu0 %v6337
  %6339 = vperm.xlu0 %6338, %v5244
  %v6340 = vpop.permute.xlu0 %6339
  %v6341 = vlaneseq
  %v6342 = vshrl.u32 %v6341, 7
  %v6343 = vadd.s32 %v6342, 48
  %6344 = vset.pattern.permute.xlu0 %v6343
  %6345 = vperm.xlu0 %6344, %v5244
  %v6346 = vpop.permute.xlu0 %6345
  %v6347 = vlaneseq
  %v6348 = vshrl.u32 %v6347, 7
  %v6349 = vadd.s32 %v6348, 56
  %6350 = vset.pattern.permute.xlu0 %v6349
  %6351 = vperm.xlu0 %6350, %v5244
  %v6352 = vpop.permute.xlu0 %6351
  %v6353 = vlaneseq
  %v6354 = vshrl.u32 %v6353, 7
  %v6355 = vadd.s32 %v6354, 64
  %6356 = vset.pattern.permute.xlu0 %v6355
  %6357 = vperm.xlu0 %6356, %v5244
  %v6358 = vpop.permute.xlu0 %6357
  %v6359 = vlaneseq
  %v6360 = vshrl.u32 %v6359, 7
  %v6361 = vadd.s32 %v6360, 72
  %6362 = vset.pattern.permute.xlu0 %v6361
  %6363 = vperm.xlu0 %6362, %v5244
  %v6364 = vpop.permute.xlu0 %6363
  %v6365 = vlaneseq
  %v6366 = vshrl.u32 %v6365, 7
  %v6367 = vadd.s32 %v6366, 80
  %6368 = vset.pattern.permute.xlu0 %v6367
  %6369 = vperm.xlu0 %6368, %v5244
  %v6370 = vpop.permute.xlu0 %6369
  %v6371 = vlaneseq
  %v6372 = vshrl.u32 %v6371, 7
  %v6373 = vadd.s32 %v6372, 88
  %6374 = vset.pattern.permute.xlu0 %v6373
  %6375 = vperm.xlu0 %6374, %v5244
  %v6376 = vpop.permute.xlu0 %6375
  %v6377 = vlaneseq
  %v6378 = vshrl.u32 %v6377, 7
  %v6379 = vadd.s32 %v6378, 96
  %6380 = vset.pattern.permute.xlu0 %v6379
  %6381 = vperm.xlu0 %6380, %v5244
  %v6382 = vpop.permute.xlu0 %6381
  %v6383 = vlaneseq
  %v6384 = vshrl.u32 %v6383, 7
  %v6385 = vadd.s32 %v6384, 104
  %6386 = vset.pattern.permute.xlu0 %v6385
  %6387 = vperm.xlu0 %6386, %v5244
  %v6388 = vpop.permute.xlu0 %6387
  %v6389 = vlaneseq
  %v6390 = vshrl.u32 %v6389, 7
  %v6391 = vadd.s32 %v6390, 112
  %6392 = vset.pattern.permute.xlu0 %v6391
  %6393 = vperm.xlu0 %6392, %v5244
  %v6394 = vpop.permute.xlu0 %6393
  %v6395 = vlaneseq
  %v6396 = vshrl.u32 %v6395, 7
  %v6397 = vadd.s32 %v6396, 120
  %6398 = vset.pattern.permute.xlu0 %v6397
  %6399 = vperm.xlu0 %6398, %v5244
  %v6400 = vpop.permute.xlu0 %6399
  %v6401 = vlaneseq
  %v6402 = vshrl.u32 %v6401, 7
  %6404 = vset.pattern.permute.xlu0 %v6402
  %6405 = vperm.xlu0 %6404, %v5245
  %v6406 = vpop.permute.xlu0 %6405
  %v6407 = vlaneseq
  %v6408 = vshrl.u32 %v6407, 7
  %v6409 = vadd.s32 %v6408, 8
  %6410 = vset.pattern.permute.xlu0 %v6409
  %6411 = vperm.xlu0 %6410, %v5245
  %v6412 = vpop.permute.xlu0 %6411
  %v6413 = vlaneseq
  %v6414 = vshrl.u32 %v6413, 7
  %v6415 = vadd.s32 %v6414, 16
  %6416 = vset.pattern.permute.xlu0 %v6415
  %6417 = vperm.xlu0 %6416, %v5245
  %v6418 = vpop.permute.xlu0 %6417
  %v6419 = vlaneseq
  %v6420 = vshrl.u32 %v6419, 7
  %v6421 = vadd.s32 %v6420, 24
  %6422 = vset.pattern.permute.xlu0 %v6421
  %6423 = vperm.xlu0 %6422, %v5245
  %v6424 = vpop.permute.xlu0 %6423
  %v6425 = vlaneseq
  %v6426 = vshrl.u32 %v6425, 7
  %v6427 = vadd.s32 %v6426, 32
  %6428 = vset.pattern.permute.xlu0 %v6427
  %6429 = vperm.xlu0 %6428, %v5245
  %v6430 = vpop.permute.xlu0 %6429
  %v6431 = vlaneseq
  %v6432 = vshrl.u32 %v6431, 7
  %v6433 = vadd.s32 %v6432, 40
  %6434 = vset.pattern.permute.xlu0 %v6433
  %6435 = vperm.xlu0 %6434, %v5245
  %v6436 = vpop.permute.xlu0 %6435
  %v6437 = vlaneseq
  %v6438 = vshrl.u32 %v6437, 7
  %v6439 = vadd.s32 %v6438, 48
  %6440 = vset.pattern.permute.xlu0 %v6439
  %6441 = vperm.xlu0 %6440, %v5245
  %v6442 = vpop.permute.xlu0 %6441
  %v6443 = vlaneseq
  %v6444 = vshrl.u32 %v6443, 7
  %v6445 = vadd.s32 %v6444, 56
  %6446 = vset.pattern.permute.xlu0 %v6445
  %6447 = vperm.xlu0 %6446, %v5245
  %v6448 = vpop.permute.xlu0 %6447
  %v6449 = vlaneseq
  %v6450 = vshrl.u32 %v6449, 7
  %v6451 = vadd.s32 %v6450, 64
  %6452 = vset.pattern.permute.xlu0 %v6451
  %6453 = vperm.xlu0 %6452, %v5245
  %v6454 = vpop.permute.xlu0 %6453
  %v6455 = vlaneseq
  %v6456 = vshrl.u32 %v6455, 7
  %v6457 = vadd.s32 %v6456, 72
  %6458 = vset.pattern.permute.xlu0 %v6457
  %6459 = vperm.xlu0 %6458, %v5245
  %v6460 = vpop.permute.xlu0 %6459
  %v6461 = vlaneseq
  %v6462 = vshrl.u32 %v6461, 7
  %v6463 = vadd.s32 %v6462, 80
  %6464 = vset.pattern.permute.xlu0 %v6463
  %6465 = vperm.xlu0 %6464, %v5245
  %v6466 = vpop.permute.xlu0 %6465
  %v6467 = vlaneseq
  %v6468 = vshrl.u32 %v6467, 7
  %v6469 = vadd.s32 %v6468, 88
  %6470 = vset.pattern.permute.xlu0 %v6469
  %6471 = vperm.xlu0 %6470, %v5245
  %v6472 = vpop.permute.xlu0 %6471
  %v6473 = vlaneseq
  %v6474 = vshrl.u32 %v6473, 7
  %v6475 = vadd.s32 %v6474, 96
  %6476 = vset.pattern.permute.xlu0 %v6475
  %6477 = vperm.xlu0 %6476, %v5245
  %v6478 = vpop.permute.xlu0 %6477
  %v6479 = vlaneseq
  %v6480 = vshrl.u32 %v6479, 7
  %v6481 = vadd.s32 %v6480, 104
  %6482 = vset.pattern.permute.xlu0 %v6481
  %6483 = vperm.xlu0 %6482, %v5245
  %v6484 = vpop.permute.xlu0 %6483
  %v6485 = vlaneseq
  %v6486 = vshrl.u32 %v6485, 7
  %v6487 = vadd.s32 %v6486, 112
  %6488 = vset.pattern.permute.xlu0 %v6487
  %6489 = vperm.xlu0 %6488, %v5245
  %v6490 = vpop.permute.xlu0 %6489
  %v6491 = vlaneseq
  %v6492 = vshrl.u32 %v6491, 7
  %v6493 = vadd.s32 %v6492, 120
  %6494 = vset.pattern.permute.xlu0 %v6493
  %6495 = vperm.xlu0 %6494, %v5245
  %v6496 = vpop.permute.xlu0 %6495
  %v6497 = vlaneseq
  %v6498 = vshrl.u32 %v6497, 7
  %6500 = vset.pattern.permute.xlu0 %v6498
  %6501 = vperm.xlu0 %6500, %v5246
  %v6502 = vpop.permute.xlu0 %6501
  %v6503 = vlaneseq
  %v6504 = vshrl.u32 %v6503, 7
  %v6505 = vadd.s32 %v6504, 8
  %6506 = vset.pattern.permute.xlu0 %v6505
  %6507 = vperm.xlu0 %6506, %v5246
  %v6508 = vpop.permute.xlu0 %6507
  %v6509 = vlaneseq
  %v6510 = vshrl.u32 %v6509, 7
  %v6511 = vadd.s32 %v6510, 16
  %6512 = vset.pattern.permute.xlu0 %v6511
  %6513 = vperm.xlu0 %6512, %v5246
  %v6514 = vpop.permute.xlu0 %6513
  %v6515 = vlaneseq
  %v6516 = vshrl.u32 %v6515, 7
  %v6517 = vadd.s32 %v6516, 24
  %6518 = vset.pattern.permute.xlu0 %v6517
  %6519 = vperm.xlu0 %6518, %v5246
  %v6520 = vpop.permute.xlu0 %6519
  %v6521 = vlaneseq
  %v6522 = vshrl.u32 %v6521, 7
  %v6523 = vadd.s32 %v6522, 32
  %6524 = vset.pattern.permute.xlu0 %v6523
  %6525 = vperm.xlu0 %6524, %v5246
  %v6526 = vpop.permute.xlu0 %6525
  %v6527 = vlaneseq
  %v6528 = vshrl.u32 %v6527, 7
  %v6529 = vadd.s32 %v6528, 40
  %6530 = vset.pattern.permute.xlu0 %v6529
  %6531 = vperm.xlu0 %6530, %v5246
  %v6532 = vpop.permute.xlu0 %6531
  %v6533 = vlaneseq
  %v6534 = vshrl.u32 %v6533, 7
  %v6535 = vadd.s32 %v6534, 48
  %6536 = vset.pattern.permute.xlu0 %v6535
  %6537 = vperm.xlu0 %6536, %v5246
  %v6538 = vpop.permute.xlu0 %6537
  %v6539 = vlaneseq
  %v6540 = vshrl.u32 %v6539, 7
  %v6541 = vadd.s32 %v6540, 56
  %6542 = vset.pattern.permute.xlu0 %v6541
  %6543 = vperm.xlu0 %6542, %v5246
  %v6544 = vpop.permute.xlu0 %6543
  %v6545 = vlaneseq
  %v6546 = vshrl.u32 %v6545, 7
  %v6547 = vadd.s32 %v6546, 64
  %6548 = vset.pattern.permute.xlu0 %v6547
  %6549 = vperm.xlu0 %6548, %v5246
  %v6550 = vpop.permute.xlu0 %6549
  %v6551 = vlaneseq
  %v6552 = vshrl.u32 %v6551, 7
  %v6553 = vadd.s32 %v6552, 72
  %6554 = vset.pattern.permute.xlu0 %v6553
  %6555 = vperm.xlu0 %6554, %v5246
  %v6556 = vpop.permute.xlu0 %6555
  %v6557 = vlaneseq
  %v6558 = vshrl.u32 %v6557, 7
  %v6559 = vadd.s32 %v6558, 80
  %6560 = vset.pattern.permute.xlu0 %v6559
  %6561 = vperm.xlu0 %6560, %v5246
  %v6562 = vpop.permute.xlu0 %6561
  %v6563 = vlaneseq
  %v6564 = vshrl.u32 %v6563, 7
  %v6565 = vadd.s32 %v6564, 88
  %6566 = vset.pattern.permute.xlu0 %v6565
  %6567 = vperm.xlu0 %6566, %v5246
  %v6568 = vpop.permute.xlu0 %6567
  %v6569 = vlaneseq
  %v6570 = vshrl.u32 %v6569, 7
  %v6571 = vadd.s32 %v6570, 96
  %6572 = vset.pattern.permute.xlu0 %v6571
  %6573 = vperm.xlu0 %6572, %v5246
  %v6574 = vpop.permute.xlu0 %6573
  %v6575 = vlaneseq
  %v6576 = vshrl.u32 %v6575, 7
  %v6577 = vadd.s32 %v6576, 104
  %6578 = vset.pattern.permute.xlu0 %v6577
  %6579 = vperm.xlu0 %6578, %v5246
  %v6580 = vpop.permute.xlu0 %6579
  %v6581 = vlaneseq
  %v6582 = vshrl.u32 %v6581, 7
  %v6583 = vadd.s32 %v6582, 112
  %6584 = vset.pattern.permute.xlu0 %v6583
  %6585 = vperm.xlu0 %6584, %v5246
  %v6586 = vpop.permute.xlu0 %6585
  %v6587 = vlaneseq
  %v6588 = vshrl.u32 %v6587, 7
  %v6589 = vadd.s32 %v6588, 120
  %6590 = vset.pattern.permute.xlu0 %v6589
  %6591 = vperm.xlu0 %6590, %v5246
  %v6592 = vpop.permute.xlu0 %6591
  %v6593 = vlaneseq
  %v6594 = vshrl.u32 %v6593, 7
  %6596 = vset.pattern.permute.xlu0 %v6594
  %6597 = vperm.xlu0 %6596, %v5247
  %v6598 = vpop.permute.xlu0 %6597
  %v6599 = vlaneseq
  %v6600 = vshrl.u32 %v6599, 7
  %v6601 = vadd.s32 %v6600, 8
  %6602 = vset.pattern.permute.xlu0 %v6601
  %6603 = vperm.xlu0 %6602, %v5247
  %v6604 = vpop.permute.xlu0 %6603
  %v6605 = vlaneseq
  %v6606 = vshrl.u32 %v6605, 7
  %v6607 = vadd.s32 %v6606, 16
  %6608 = vset.pattern.permute.xlu0 %v6607
  %6609 = vperm.xlu0 %6608, %v5247
  %v6610 = vpop.permute.xlu0 %6609
  %v6611 = vlaneseq
  %v6612 = vshrl.u32 %v6611, 7
  %v6613 = vadd.s32 %v6612, 24
  %6614 = vset.pattern.permute.xlu0 %v6613
  %6615 = vperm.xlu0 %6614, %v5247
  %v6616 = vpop.permute.xlu0 %6615
  %v6617 = vlaneseq
  %v6618 = vshrl.u32 %v6617, 7
  %v6619 = vadd.s32 %v6618, 32
  %6620 = vset.pattern.permute.xlu0 %v6619
  %6621 = vperm.xlu0 %6620, %v5247
  %v6622 = vpop.permute.xlu0 %6621
  %v6623 = vlaneseq
  %v6624 = vshrl.u32 %v6623, 7
  %v6625 = vadd.s32 %v6624, 40
  %6626 = vset.pattern.permute.xlu0 %v6625
  %6627 = vperm.xlu0 %6626, %v5247
  %v6628 = vpop.permute.xlu0 %6627
  %v6629 = vlaneseq
  %v6630 = vshrl.u32 %v6629, 7
  %v6631 = vadd.s32 %v6630, 48
  %6632 = vset.pattern.permute.xlu0 %v6631
  %6633 = vperm.xlu0 %6632, %v5247
  %v6634 = vpop.permute.xlu0 %6633
  %v6635 = vlaneseq
  %v6636 = vshrl.u32 %v6635, 7
  %v6637 = vadd.s32 %v6636, 56
  %6638 = vset.pattern.permute.xlu0 %v6637
  %6639 = vperm.xlu0 %6638, %v5247
  %v6640 = vpop.permute.xlu0 %6639
  %v6641 = vlaneseq
  %v6642 = vshrl.u32 %v6641, 7
  %v6643 = vadd.s32 %v6642, 64
  %6644 = vset.pattern.permute.xlu0 %v6643
  %6645 = vperm.xlu0 %6644, %v5247
  %v6646 = vpop.permute.xlu0 %6645
  %v6647 = vlaneseq
  %v6648 = vshrl.u32 %v6647, 7
  %v6649 = vadd.s32 %v6648, 72
  %6650 = vset.pattern.permute.xlu0 %v6649
  %6651 = vperm.xlu0 %6650, %v5247
  %v6652 = vpop.permute.xlu0 %6651
  %v6653 = vlaneseq
  %v6654 = vshrl.u32 %v6653, 7
  %v6655 = vadd.s32 %v6654, 80
  %6656 = vset.pattern.permute.xlu0 %v6655
  %6657 = vperm.xlu0 %6656, %v5247
  %v6658 = vpop.permute.xlu0 %6657
  %v6659 = vlaneseq
  %v6660 = vshrl.u32 %v6659, 7
  %v6661 = vadd.s32 %v6660, 88
  %6662 = vset.pattern.permute.xlu0 %v6661
  %6663 = vperm.xlu0 %6662, %v5247
  %v6664 = vpop.permute.xlu0 %6663
  %v6665 = vlaneseq
  %v6666 = vshrl.u32 %v6665, 7
  %v6667 = vadd.s32 %v6666, 96
  %6668 = vset.pattern.permute.xlu0 %v6667
  %6669 = vperm.xlu0 %6668, %v5247
  %v6670 = vpop.permute.xlu0 %6669
  %v6671 = vlaneseq
  %v6672 = vshrl.u32 %v6671, 7
  %v6673 = vadd.s32 %v6672, 104
  %6674 = vset.pattern.permute.xlu0 %v6673
  %6675 = vperm.xlu0 %6674, %v5247
  %v6676 = vpop.permute.xlu0 %6675
  %v6677 = vlaneseq
  %v6678 = vshrl.u32 %v6677, 7
  %v6679 = vadd.s32 %v6678, 112
  %6680 = vset.pattern.permute.xlu0 %v6679
  %6681 = vperm.xlu0 %6680, %v5247
  %v6682 = vpop.permute.xlu0 %6681
  %v6683 = vlaneseq
  %v6684 = vshrl.u32 %v6683, 7
  %v6685 = vadd.s32 %v6684, 120
  %6686 = vset.pattern.permute.xlu0 %v6685
  %6687 = vperm.xlu0 %6686, %v5247
  %v6688 = vpop.permute.xlu0 %6687
  %v6689 = vlaneseq
  %v6690 = vshrl.u32 %v6689, 7
  %6692 = vset.pattern.permute.xlu0 %v6690
  %6693 = vperm.xlu0 %6692, %v5248
  %v6694 = vpop.permute.xlu0 %6693
  %v6695 = vlaneseq
  %v6696 = vshrl.u32 %v6695, 7
  %v6697 = vadd.s32 %v6696, 8
  %6698 = vset.pattern.permute.xlu0 %v6697
  %6699 = vperm.xlu0 %6698, %v5248
  %v6700 = vpop.permute.xlu0 %6699
  %v6701 = vlaneseq
  %v6702 = vshrl.u32 %v6701, 7
  %v6703 = vadd.s32 %v6702, 16
  %6704 = vset.pattern.permute.xlu0 %v6703
  %6705 = vperm.xlu0 %6704, %v5248
  %v6706 = vpop.permute.xlu0 %6705
  %v6707 = vlaneseq
  %v6708 = vshrl.u32 %v6707, 7
  %v6709 = vadd.s32 %v6708, 24
  %6710 = vset.pattern.permute.xlu0 %v6709
  %6711 = vperm.xlu0 %6710, %v5248
  %v6712 = vpop.permute.xlu0 %6711
  %v6713 = vlaneseq
  %v6714 = vshrl.u32 %v6713, 7
  %v6715 = vadd.s32 %v6714, 32
  %6716 = vset.pattern.permute.xlu0 %v6715
  %6717 = vperm.xlu0 %6716, %v5248
  %v6718 = vpop.permute.xlu0 %6717
  %v6719 = vlaneseq
  %v6720 = vshrl.u32 %v6719, 7
  %v6721 = vadd.s32 %v6720, 40
  %6722 = vset.pattern.permute.xlu0 %v6721
  %6723 = vperm.xlu0 %6722, %v5248
  %v6724 = vpop.permute.xlu0 %6723
  %v6725 = vlaneseq
  %v6726 = vshrl.u32 %v6725, 7
  %v6727 = vadd.s32 %v6726, 48
  %6728 = vset.pattern.permute.xlu0 %v6727
  %6729 = vperm.xlu0 %6728, %v5248
  %v6730 = vpop.permute.xlu0 %6729
  %v6731 = vlaneseq
  %v6732 = vshrl.u32 %v6731, 7
  %v6733 = vadd.s32 %v6732, 56
  %6734 = vset.pattern.permute.xlu0 %v6733
  %6735 = vperm.xlu0 %6734, %v5248
  %v6736 = vpop.permute.xlu0 %6735
  %v6737 = vlaneseq
  %v6738 = vshrl.u32 %v6737, 7
  %v6739 = vadd.s32 %v6738, 64
  %6740 = vset.pattern.permute.xlu0 %v6739
  %6741 = vperm.xlu0 %6740, %v5248
  %v6742 = vpop.permute.xlu0 %6741
  %v6743 = vlaneseq
  %v6744 = vshrl.u32 %v6743, 7
  %v6745 = vadd.s32 %v6744, 72
  %6746 = vset.pattern.permute.xlu0 %v6745
  %6747 = vperm.xlu0 %6746, %v5248
  %v6748 = vpop.permute.xlu0 %6747
  %v6749 = vlaneseq
  %v6750 = vshrl.u32 %v6749, 7
  %v6751 = vadd.s32 %v6750, 80
  %6752 = vset.pattern.permute.xlu0 %v6751
  %6753 = vperm.xlu0 %6752, %v5248
  %v6754 = vpop.permute.xlu0 %6753
  %v6755 = vlaneseq
  %v6756 = vshrl.u32 %v6755, 7
  %v6757 = vadd.s32 %v6756, 88
  %6758 = vset.pattern.permute.xlu0 %v6757
  %6759 = vperm.xlu0 %6758, %v5248
  %v6760 = vpop.permute.xlu0 %6759
  %v6761 = vlaneseq
  %v6762 = vshrl.u32 %v6761, 7
  %v6763 = vadd.s32 %v6762, 96
  %6764 = vset.pattern.permute.xlu0 %v6763
  %6765 = vperm.xlu0 %6764, %v5248
  %v6766 = vpop.permute.xlu0 %6765
  %v6767 = vlaneseq
  %v6768 = vshrl.u32 %v6767, 7
  %v6769 = vadd.s32 %v6768, 104
  %6770 = vset.pattern.permute.xlu0 %v6769
  %6771 = vperm.xlu0 %6770, %v5248
  %v6772 = vpop.permute.xlu0 %6771
  %v6773 = vlaneseq
  %v6774 = vshrl.u32 %v6773, 7
  %v6775 = vadd.s32 %v6774, 112
  %6776 = vset.pattern.permute.xlu0 %v6775
  %6777 = vperm.xlu0 %6776, %v5248
  %v6778 = vpop.permute.xlu0 %6777
  %v6779 = vlaneseq
  %v6780 = vshrl.u32 %v6779, 7
  %v6781 = vadd.s32 %v6780, 120
  %6782 = vset.pattern.permute.xlu0 %v6781
  %6783 = vperm.xlu0 %6782, %v5248
  %v6784 = vpop.permute.xlu0 %6783
  %v7041 = vmul.f32 %v5229, %v5254
  %v7042 = vmul.f32 %v5229, %v5260
  %v7043 = vmul.f32 %v5229, %v5266
  %v7044 = vmul.f32 %v5229, %v5272
  %v7045 = vmul.f32 %v5229, %v5278
  %v7046 = vmul.f32 %v5229, %v5284
  %v7047 = vmul.f32 %v5229, %v5290
  %v7048 = vmul.f32 %v5229, %v5296
  %v7049 = vmul.f32 %v5229, %v5302
  %v7050 = vmul.f32 %v5229, %v5308
  %v7051 = vmul.f32 %v5229, %v5314
  %v7052 = vmul.f32 %v5229, %v5320
  %v7053 = vmul.f32 %v5229, %v5326
  %v7054 = vmul.f32 %v5229, %v5332
  %v7055 = vmul.f32 %v5229, %v5338
  %v7056 = vmul.f32 %v5229, %v5344
  %v7057 = vmul.f32 %v5229, %v5350
  %v7058 = vmul.f32 %v5229, %v5356
  %v7059 = vmul.f32 %v5229, %v5362
  %v7060 = vmul.f32 %v5229, %v5368
  %v7061 = vmul.f32 %v5229, %v5374
  %v7062 = vmul.f32 %v5229, %v5380
  %v7063 = vmul.f32 %v5229, %v5386
  %v7064 = vmul.f32 %v5229, %v5392
  %v7065 = vmul.f32 %v5229, %v5398
  %v7066 = vmul.f32 %v5229, %v5404
  %v7067 = vmul.f32 %v5229, %v5410
  %v7068 = vmul.f32 %v5229, %v5416
  %v7069 = vmul.f32 %v5229, %v5422
  %v7070 = vmul.f32 %v5229, %v5428
  %v7071 = vmul.f32 %v5229, %v5434
  %v7072 = vmul.f32 %v5229, %v5440
  %v7073 = vmul.f32 %v5229, %v5446
  %v7074 = vmul.f32 %v5229, %v5452
  %v7075 = vmul.f32 %v5229, %v5458
  %v7076 = vmul.f32 %v5229, %v5464
  %v7077 = vmul.f32 %v5229, %v5470
  %v7078 = vmul.f32 %v5229, %v5476
  %v7079 = vmul.f32 %v5229, %v5482
  %v7080 = vmul.f32 %v5229, %v5488
  %v7081 = vmul.f32 %v5229, %v5494
  %v7082 = vmul.f32 %v5229, %v5500
  %v7083 = vmul.f32 %v5229, %v5506
  %v7084 = vmul.f32 %v5229, %v5512
  %v7085 = vmul.f32 %v5229, %v5518
  %v7086 = vmul.f32 %v5229, %v5524
  %v7087 = vmul.f32 %v5229, %v5530
  %v7088 = vmul.f32 %v5229, %v5536
  %v7089 = vmul.f32 %v5229, %v5542
  %v7090 = vmul.f32 %v5229, %v5548
  %v7091 = vmul.f32 %v5229, %v5554
  %v7092 = vmul.f32 %v5229, %v5560
  %v7093 = vmul.f32 %v5229, %v5566
  %v7094 = vmul.f32 %v5229, %v5572
  %v7095 = vmul.f32 %v5229, %v5578
  %v7096 = vmul.f32 %v5229, %v5584
  %v7097 = vmul.f32 %v5229, %v5590
  %v7098 = vmul.f32 %v5229, %v5596
  %v7099 = vmul.f32 %v5229, %v5602
  %v7100 = vmul.f32 %v5229, %v5608
  %v7101 = vmul.f32 %v5229, %v5614
  %v7102 = vmul.f32 %v5229, %v5620
  %v7103 = vmul.f32 %v5229, %v5626
  %v7104 = vmul.f32 %v5229, %v5632
  %v7105 = vmul.f32 %v5229, %v5638
  %v7106 = vmul.f32 %v5229, %v5644
  %v7107 = vmul.f32 %v5229, %v5650
  %v7108 = vmul.f32 %v5229, %v5656
  %v7109 = vmul.f32 %v5229, %v5662
  %v7110 = vmul.f32 %v5229, %v5668
  %v7111 = vmul.f32 %v5229, %v5674
  %v7112 = vmul.f32 %v5229, %v5680
  %v7113 = vmul.f32 %v5229, %v5686
  %v7114 = vmul.f32 %v5229, %v5692
  %v7115 = vmul.f32 %v5229, %v5698
  %v7116 = vmul.f32 %v5229, %v5704
  %v7117 = vmul.f32 %v5229, %v5710
  %v7118 = vmul.f32 %v5229, %v5716
  %v7119 = vmul.f32 %v5229, %v5722
  %v7120 = vmul.f32 %v5229, %v5728
  %v7121 = vmul.f32 %v5229, %v5734
  %v7122 = vmul.f32 %v5229, %v5740
  %v7123 = vmul.f32 %v5229, %v5746
  %v7124 = vmul.f32 %v5229, %v5752
  %v7125 = vmul.f32 %v5229, %v5758
  %v7126 = vmul.f32 %v5229, %v5764
  %v7127 = vmul.f32 %v5229, %v5770
  %v7128 = vmul.f32 %v5229, %v5776
  %v7129 = vmul.f32 %v5229, %v5782
  %v7130 = vmul.f32 %v5229, %v5788
  %v7131 = vmul.f32 %v5229, %v5794
  %v7132 = vmul.f32 %v5229, %v5800
  %v7133 = vmul.f32 %v5229, %v5806
  %v7134 = vmul.f32 %v5229, %v5812
  %v7135 = vmul.f32 %v5229, %v5818
  %v7136 = vmul.f32 %v5229, %v5824
  %v7137 = vmul.f32 %v5229, %v5830
  %v7138 = vmul.f32 %v5229, %v5836
  %v7139 = vmul.f32 %v5229, %v5842
  %v7140 = vmul.f32 %v5229, %v5848
  %v7141 = vmul.f32 %v5229, %v5854
  %v7142 = vmul.f32 %v5229, %v5860
  %v7143 = vmul.f32 %v5229, %v5866
  %v7144 = vmul.f32 %v5229, %v5872
  %v7145 = vmul.f32 %v5229, %v5878
  %v7146 = vmul.f32 %v5229, %v5884
  %v7147 = vmul.f32 %v5229, %v5890
  %v7148 = vmul.f32 %v5229, %v5896
  %v7149 = vmul.f32 %v5229, %v5902
  %v7150 = vmul.f32 %v5229, %v5908
  %v7151 = vmul.f32 %v5229, %v5914
  %v7152 = vmul.f32 %v5229, %v5920
  %v7153 = vmul.f32 %v5229, %v5926
  %v7154 = vmul.f32 %v5229, %v5932
  %v7155 = vmul.f32 %v5229, %v5938
  %v7156 = vmul.f32 %v5229, %v5944
  %v7157 = vmul.f32 %v5229, %v5950
  %v7158 = vmul.f32 %v5229, %v5956
  %v7159 = vmul.f32 %v5229, %v5962
  %v7160 = vmul.f32 %v5229, %v5968
  %v7161 = vmul.f32 %v5229, %v5974
  %v7162 = vmul.f32 %v5229, %v5980
  %v7163 = vmul.f32 %v5229, %v5986
  %v7164 = vmul.f32 %v5229, %v5992
  %v7165 = vmul.f32 %v5229, %v5998
  %v7166 = vmul.f32 %v5229, %v6004
  %v7167 = vmul.f32 %v5229, %v6010
  %v7168 = vmul.f32 %v5229, %v6016
  %v7169 = vmul.f32 %v5229, %v6022
  %v7170 = vmul.f32 %v5229, %v6028
  %v7171 = vmul.f32 %v5229, %v6034
  %v7172 = vmul.f32 %v5229, %v6040
  %v7173 = vmul.f32 %v5229, %v6046
  %v7174 = vmul.f32 %v5229, %v6052
  %v7175 = vmul.f32 %v5229, %v6058
  %v7176 = vmul.f32 %v5229, %v6064
  %v7177 = vmul.f32 %v5229, %v6070
  %v7178 = vmul.f32 %v5229, %v6076
  %v7179 = vmul.f32 %v5229, %v6082
  %v7180 = vmul.f32 %v5229, %v6088
  %v7181 = vmul.f32 %v5229, %v6094
  %v7182 = vmul.f32 %v5229, %v6100
  %v7183 = vmul.f32 %v5229, %v6106
  %v7184 = vmul.f32 %v5229, %v6112
  %v7185 = vmul.f32 %v5229, %v6118
  %v7186 = vmul.f32 %v5229, %v6124
  %v7187 = vmul.f32 %v5229, %v6130
  %v7188 = vmul.f32 %v5229, %v6136
  %v7189 = vmul.f32 %v5229, %v6142
  %v7190 = vmul.f32 %v5229, %v6148
  %v7191 = vmul.f32 %v5229, %v6154
  %v7192 = vmul.f32 %v5229, %v6160
  %v7193 = vmul.f32 %v5229, %v6166
  %v7194 = vmul.f32 %v5229, %v6172
  %v7195 = vmul.f32 %v5229, %v6178
  %v7196 = vmul.f32 %v5229, %v6184
  %v7197 = vmul.f32 %v5229, %v6190
  %v7198 = vmul.f32 %v5229, %v6196
  %v7199 = vmul.f32 %v5229, %v6202
  %v7200 = vmul.f32 %v5229, %v6208
  %v7201 = vmul.f32 %v5229, %v6214
  %v7202 = vmul.f32 %v5229, %v6220
  %v7203 = vmul.f32 %v5229, %v6226
  %v7204 = vmul.f32 %v5229, %v6232
  %v7205 = vmul.f32 %v5229, %v6238
  %v7206 = vmul.f32 %v5229, %v6244
  %v7207 = vmul.f32 %v5229, %v6250
  %v7208 = vmul.f32 %v5229, %v6256
  %v7209 = vmul.f32 %v5229, %v6262
  %v7210 = vmul.f32 %v5229, %v6268
  %v7211 = vmul.f32 %v5229, %v6274
  %v7212 = vmul.f32 %v5229, %v6280
  %v7213 = vmul.f32 %v5229, %v6286
  %v7214 = vmul.f32 %v5229, %v6292
  %v7215 = vmul.f32 %v5229, %v6298
  %v7216 = vmul.f32 %v5229, %v6304
  %v7217 = vmul.f32 %v5229, %v6310
  %v7218 = vmul.f32 %v5229, %v6316
  %v7219 = vmul.f32 %v5229, %v6322
  %v7220 = vmul.f32 %v5229, %v6328
  %v7221 = vmul.f32 %v5229, %v6334
  %v7222 = vmul.f32 %v5229, %v6340
  %v7223 = vmul.f32 %v5229, %v6346
  %v7224 = vmul.f32 %v5229, %v6352
  %v7225 = vmul.f32 %v5229, %v6358
  %v7226 = vmul.f32 %v5229, %v6364
  %v7227 = vmul.f32 %v5229, %v6370
  %v7228 = vmul.f32 %v5229, %v6376
  %v7229 = vmul.f32 %v5229, %v6382
  %v7230 = vmul.f32 %v5229, %v6388
  %v7231 = vmul.f32 %v5229, %v6394
  %v7232 = vmul.f32 %v5229, %v6400
  %v7233 = vmul.f32 %v5229, %v6406
  %v7234 = vmul.f32 %v5229, %v6412
  %v7235 = vmul.f32 %v5229, %v6418
  %v7236 = vmul.f32 %v5229, %v6424
  %v7237 = vmul.f32 %v5229, %v6430
  %v7238 = vmul.f32 %v5229, %v6436
  %v7239 = vmul.f32 %v5229, %v6442
  %v7240 = vmul.f32 %v5229, %v6448
  %v7241 = vmul.f32 %v5229, %v6454
  %v7242 = vmul.f32 %v5229, %v6460
  %v7243 = vmul.f32 %v5229, %v6466
  %v7244 = vmul.f32 %v5229, %v6472
  %v7245 = vmul.f32 %v5229, %v6478
  %v7246 = vmul.f32 %v5229, %v6484
  %v7247 = vmul.f32 %v5229, %v6490
  %v7248 = vmul.f32 %v5229, %v6496
  %v7249 = vmul.f32 %v5229, %v6502
  %v7250 = vmul.f32 %v5229, %v6508
  %v7251 = vmul.f32 %v5229, %v6514
  %v7252 = vmul.f32 %v5229, %v6520
  %v7253 = vmul.f32 %v5229, %v6526
  %v7254 = vmul.f32 %v5229, %v6532
  %v7255 = vmul.f32 %v5229, %v6538
  %v7256 = vmul.f32 %v5229, %v6544
  %v7257 = vmul.f32 %v5229, %v6550
  %v7258 = vmul.f32 %v5229, %v6556
  %v7259 = vmul.f32 %v5229, %v6562
  %v7260 = vmul.f32 %v5229, %v6568
  %v7261 = vmul.f32 %v5229, %v6574
  %v7262 = vmul.f32 %v5229, %v6580
  %v7263 = vmul.f32 %v5229, %v6586
  %v7264 = vmul.f32 %v5229, %v6592
  %v7265 = vmul.f32 %v5229, %v6598
  %v7266 = vmul.f32 %v5229, %v6604
  %v7267 = vmul.f32 %v5229, %v6610
  %v7268 = vmul.f32 %v5229, %v6616
  %v7269 = vmul.f32 %v5229, %v6622
  %v7270 = vmul.f32 %v5229, %v6628
  %v7271 = vmul.f32 %v5229, %v6634
  %v7272 = vmul.f32 %v5229, %v6640
  %v7273 = vmul.f32 %v5229, %v6646
  %v7274 = vmul.f32 %v5229, %v6652
  %v7275 = vmul.f32 %v5229, %v6658
  %v7276 = vmul.f32 %v5229, %v6664
  %v7277 = vmul.f32 %v5229, %v6670
  %v7278 = vmul.f32 %v5229, %v6676
  %v7279 = vmul.f32 %v5229, %v6682
  %v7280 = vmul.f32 %v5229, %v6688
  %v7281 = vmul.f32 %v5229, %v6694
  %v7282 = vmul.f32 %v5229, %v6700
  %v7283 = vmul.f32 %v5229, %v6706
  %v7284 = vmul.f32 %v5229, %v6712
  %v7285 = vmul.f32 %v5229, %v6718
  %v7286 = vmul.f32 %v5229, %v6724
  %v7287 = vmul.f32 %v5229, %v6730
  %v7288 = vmul.f32 %v5229, %v6736
  %v7289 = vmul.f32 %v5229, %v6742
  %v7290 = vmul.f32 %v5229, %v6748
  %v7291 = vmul.f32 %v5229, %v6754
  %v7292 = vmul.f32 %v5229, %v6760
  %v7293 = vmul.f32 %v5229, %v6766
  %v7294 = vmul.f32 %v5229, %v6772
  %v7295 = vmul.f32 %v5229, %v6778
  %v7296 = vmul.f32 %v5229, %v6784
  %v7297 = vmul.f32 %v5230, %v5254
  %v7298 = vmul.f32 %v5230, %v5260
  %v7299 = vmul.f32 %v5230, %v5266
  %v7300 = vmul.f32 %v5230, %v5272
  %v7301 = vmul.f32 %v5230, %v5278
  %v7302 = vmul.f32 %v5230, %v5284
  %v7303 = vmul.f32 %v5230, %v5290
  %v7304 = vmul.f32 %v5230, %v5296
  %v7305 = vmul.f32 %v5230, %v5302
  %v7306 = vmul.f32 %v5230, %v5308
  %v7307 = vmul.f32 %v5230, %v5314
  %v7308 = vmul.f32 %v5230, %v5320
  %v7309 = vmul.f32 %v5230, %v5326
  %v7310 = vmul.f32 %v5230, %v5332
  %v7311 = vmul.f32 %v5230, %v5338
  %v7312 = vmul.f32 %v5230, %v5344
  %v7313 = vmul.f32 %v5230, %v5350
  %v7314 = vmul.f32 %v5230, %v5356
  %v7315 = vmul.f32 %v5230, %v5362
  %v7316 = vmul.f32 %v5230, %v5368
  %v7317 = vmul.f32 %v5230, %v5374
  %v7318 = vmul.f32 %v5230, %v5380
  %v7319 = vmul.f32 %v5230, %v5386
  %v7320 = vmul.f32 %v5230, %v5392
  %v7321 = vmul.f32 %v5230, %v5398
  %v7322 = vmul.f32 %v5230, %v5404
  %v7323 = vmul.f32 %v5230, %v5410
  %v7324 = vmul.f32 %v5230, %v5416
  %v7325 = vmul.f32 %v5230, %v5422
  %v7326 = vmul.f32 %v5230, %v5428
  %v7327 = vmul.f32 %v5230, %v5434
  %v7328 = vmul.f32 %v5230, %v5440
  %v7329 = vmul.f32 %v5230, %v5446
  %v7330 = vmul.f32 %v5230, %v5452
  %v7331 = vmul.f32 %v5230, %v5458
  %v7332 = vmul.f32 %v5230, %v5464
  %v7333 = vmul.f32 %v5230, %v5470
  %v7334 = vmul.f32 %v5230, %v5476
  %v7335 = vmul.f32 %v5230, %v5482
  %v7336 = vmul.f32 %v5230, %v5488
  %v7337 = vmul.f32 %v5230, %v5494
  %v7338 = vmul.f32 %v5230, %v5500
  %v7339 = vmul.f32 %v5230, %v5506
  %v7340 = vmul.f32 %v5230, %v5512
  %v7341 = vmul.f32 %v5230, %v5518
  %v7342 = vmul.f32 %v5230, %v5524
  %v7343 = vmul.f32 %v5230, %v5530
  %v7344 = vmul.f32 %v5230, %v5536
  %v7345 = vmul.f32 %v5230, %v5542
  %v7346 = vmul.f32 %v5230, %v5548
  %v7347 = vmul.f32 %v5230, %v5554
  %v7348 = vmul.f32 %v5230, %v5560
  %v7349 = vmul.f32 %v5230, %v5566
  %v7350 = vmul.f32 %v5230, %v5572
  %v7351 = vmul.f32 %v5230, %v5578
  %v7352 = vmul.f32 %v5230, %v5584
  %v7353 = vmul.f32 %v5230, %v5590
  %v7354 = vmul.f32 %v5230, %v5596
  %v7355 = vmul.f32 %v5230, %v5602
  %v7356 = vmul.f32 %v5230, %v5608
  %v7357 = vmul.f32 %v5230, %v5614
  %v7358 = vmul.f32 %v5230, %v5620
  %v7359 = vmul.f32 %v5230, %v5626
  %v7360 = vmul.f32 %v5230, %v5632
  %v7361 = vmul.f32 %v5230, %v5638
  %v7362 = vmul.f32 %v5230, %v5644
  %v7363 = vmul.f32 %v5230, %v5650
  %v7364 = vmul.f32 %v5230, %v5656
  %v7365 = vmul.f32 %v5230, %v5662
  %v7366 = vmul.f32 %v5230, %v5668
  %v7367 = vmul.f32 %v5230, %v5674
  %v7368 = vmul.f32 %v5230, %v5680
  %v7369 = vmul.f32 %v5230, %v5686
  %v7370 = vmul.f32 %v5230, %v5692
  %v7371 = vmul.f32 %v5230, %v5698
  %v7372 = vmul.f32 %v5230, %v5704
  %v7373 = vmul.f32 %v5230, %v5710
  %v7374 = vmul.f32 %v5230, %v5716
  %v7375 = vmul.f32 %v5230, %v5722
  %v7376 = vmul.f32 %v5230, %v5728
  %v7377 = vmul.f32 %v5230, %v5734
  %v7378 = vmul.f32 %v5230, %v5740
  %v7379 = vmul.f32 %v5230, %v5746
  %v7380 = vmul.f32 %v5230, %v5752
  %v7381 = vmul.f32 %v5230, %v5758
  %v7382 = vmul.f32 %v5230, %v5764
  %v7383 = vmul.f32 %v5230, %v5770
  %v7384 = vmul.f32 %v5230, %v5776
  %v7385 = vmul.f32 %v5230, %v5782
  %v7386 = vmul.f32 %v5230, %v5788
  %v7387 = vmul.f32 %v5230, %v5794
  %v7388 = vmul.f32 %v5230, %v5800
  %v7389 = vmul.f32 %v5230, %v5806
  %v7390 = vmul.f32 %v5230, %v5812
  %v7391 = vmul.f32 %v5230, %v5818
  %v7392 = vmul.f32 %v5230, %v5824
  %v7393 = vmul.f32 %v5230, %v5830
  %v7394 = vmul.f32 %v5230, %v5836
  %v7395 = vmul.f32 %v5230, %v5842
  %v7396 = vmul.f32 %v5230, %v5848
  %v7397 = vmul.f32 %v5230, %v5854
  %v7398 = vmul.f32 %v5230, %v5860
  %v7399 = vmul.f32 %v5230, %v5866
  %v7400 = vmul.f32 %v5230, %v5872
  %v7401 = vmul.f32 %v5230, %v5878
  %v7402 = vmul.f32 %v5230, %v5884
  %v7403 = vmul.f32 %v5230, %v5890
  %v7404 = vmul.f32 %v5230, %v5896
  %v7405 = vmul.f32 %v5230, %v5902
  %v7406 = vmul.f32 %v5230, %v5908
  %v7407 = vmul.f32 %v5230, %v5914
  %v7408 = vmul.f32 %v5230, %v5920
  %v7409 = vmul.f32 %v5230, %v5926
  %v7410 = vmul.f32 %v5230, %v5932
  %v7411 = vmul.f32 %v5230, %v5938
  %v7412 = vmul.f32 %v5230, %v5944
  %v7413 = vmul.f32 %v5230, %v5950
  %v7414 = vmul.f32 %v5230, %v5956
  %v7415 = vmul.f32 %v5230, %v5962
  %v7416 = vmul.f32 %v5230, %v5968
  %v7417 = vmul.f32 %v5230, %v5974
  %v7418 = vmul.f32 %v5230, %v5980
  %v7419 = vmul.f32 %v5230, %v5986
  %v7420 = vmul.f32 %v5230, %v5992
  %v7421 = vmul.f32 %v5230, %v5998
  %v7422 = vmul.f32 %v5230, %v6004
  %v7423 = vmul.f32 %v5230, %v6010
  %v7424 = vmul.f32 %v5230, %v6016
  %v7425 = vmul.f32 %v5230, %v6022
  %v7426 = vmul.f32 %v5230, %v6028
  %v7427 = vmul.f32 %v5230, %v6034
  %v7428 = vmul.f32 %v5230, %v6040
  %v7429 = vmul.f32 %v5230, %v6046
  %v7430 = vmul.f32 %v5230, %v6052
  %v7431 = vmul.f32 %v5230, %v6058
  %v7432 = vmul.f32 %v5230, %v6064
  %v7433 = vmul.f32 %v5230, %v6070
  %v7434 = vmul.f32 %v5230, %v6076
  %v7435 = vmul.f32 %v5230, %v6082
  %v7436 = vmul.f32 %v5230, %v6088
  %v7437 = vmul.f32 %v5230, %v6094
  %v7438 = vmul.f32 %v5230, %v6100
  %v7439 = vmul.f32 %v5230, %v6106
  %v7440 = vmul.f32 %v5230, %v6112
  %v7441 = vmul.f32 %v5230, %v6118
  %v7442 = vmul.f32 %v5230, %v6124
  %v7443 = vmul.f32 %v5230, %v6130
  %v7444 = vmul.f32 %v5230, %v6136
  %v7445 = vmul.f32 %v5230, %v6142
  %v7446 = vmul.f32 %v5230, %v6148
  %v7447 = vmul.f32 %v5230, %v6154
  %v7448 = vmul.f32 %v5230, %v6160
  %v7449 = vmul.f32 %v5230, %v6166
  %v7450 = vmul.f32 %v5230, %v6172
  %v7451 = vmul.f32 %v5230, %v6178
  %v7452 = vmul.f32 %v5230, %v6184
  %v7453 = vmul.f32 %v5230, %v6190
  %v7454 = vmul.f32 %v5230, %v6196
  %v7455 = vmul.f32 %v5230, %v6202
  %v7456 = vmul.f32 %v5230, %v6208
  %v7457 = vmul.f32 %v5230, %v6214
  %v7458 = vmul.f32 %v5230, %v6220
  %v7459 = vmul.f32 %v5230, %v6226
  %v7460 = vmul.f32 %v5230, %v6232
  %v7461 = vmul.f32 %v5230, %v6238
  %v7462 = vmul.f32 %v5230, %v6244
  %v7463 = vmul.f32 %v5230, %v6250
  %v7464 = vmul.f32 %v5230, %v6256
  %v7465 = vmul.f32 %v5230, %v6262
  %v7466 = vmul.f32 %v5230, %v6268
  %v7467 = vmul.f32 %v5230, %v6274
  %v7468 = vmul.f32 %v5230, %v6280
  %v7469 = vmul.f32 %v5230, %v6286
  %v7470 = vmul.f32 %v5230, %v6292
  %v7471 = vmul.f32 %v5230, %v6298
  %v7472 = vmul.f32 %v5230, %v6304
  %v7473 = vmul.f32 %v5230, %v6310
  %v7474 = vmul.f32 %v5230, %v6316
  %v7475 = vmul.f32 %v5230, %v6322
  %v7476 = vmul.f32 %v5230, %v6328
  %v7477 = vmul.f32 %v5230, %v6334
  %v7478 = vmul.f32 %v5230, %v6340
  %v7479 = vmul.f32 %v5230, %v6346
  %v7480 = vmul.f32 %v5230, %v6352
  %v7481 = vmul.f32 %v5230, %v6358
  %v7482 = vmul.f32 %v5230, %v6364
  %v7483 = vmul.f32 %v5230, %v6370
  %v7484 = vmul.f32 %v5230, %v6376
  %v7485 = vmul.f32 %v5230, %v6382
  %v7486 = vmul.f32 %v5230, %v6388
  %v7487 = vmul.f32 %v5230, %v6394
  %v7488 = vmul.f32 %v5230, %v6400
  %v7489 = vmul.f32 %v5230, %v6406
  %v7490 = vmul.f32 %v5230, %v6412
  %v7491 = vmul.f32 %v5230, %v6418
  %v7492 = vmul.f32 %v5230, %v6424
  %v7493 = vmul.f32 %v5230, %v6430
  %v7494 = vmul.f32 %v5230, %v6436
  %v7495 = vmul.f32 %v5230, %v6442
  %v7496 = vmul.f32 %v5230, %v6448
  %v7497 = vmul.f32 %v5230, %v6454
  %v7498 = vmul.f32 %v5230, %v6460
  %v7499 = vmul.f32 %v5230, %v6466
  %v7500 = vmul.f32 %v5230, %v6472
  %v7501 = vmul.f32 %v5230, %v6478
  %v7502 = vmul.f32 %v5230, %v6484
  %v7503 = vmul.f32 %v5230, %v6490
  %v7504 = vmul.f32 %v5230, %v6496
  %v7505 = vmul.f32 %v5230, %v6502
  %v7506 = vmul.f32 %v5230, %v6508
  %v7507 = vmul.f32 %v5230, %v6514
  %v7508 = vmul.f32 %v5230, %v6520
  %v7509 = vmul.f32 %v5230, %v6526
  %v7510 = vmul.f32 %v5230, %v6532
  %v7511 = vmul.f32 %v5230, %v6538
  %v7512 = vmul.f32 %v5230, %v6544
  %v7513 = vmul.f32 %v5230, %v6550
  %v7514 = vmul.f32 %v5230, %v6556
  %v7515 = vmul.f32 %v5230, %v6562
  %v7516 = vmul.f32 %v5230, %v6568
  %v7517 = vmul.f32 %v5230, %v6574
  %v7518 = vmul.f32 %v5230, %v6580
  %v7519 = vmul.f32 %v5230, %v6586
  %v7520 = vmul.f32 %v5230, %v6592
  %v7521 = vmul.f32 %v5230, %v6598
  %v7522 = vmul.f32 %v5230, %v6604
  %v7523 = vmul.f32 %v5230, %v6610
  %v7524 = vmul.f32 %v5230, %v6616
  %v7525 = vmul.f32 %v5230, %v6622
  %v7526 = vmul.f32 %v5230, %v6628
  %v7527 = vmul.f32 %v5230, %v6634
  %v7528 = vmul.f32 %v5230, %v6640
  %v7529 = vmul.f32 %v5230, %v6646
  %v7530 = vmul.f32 %v5230, %v6652
  %v7531 = vmul.f32 %v5230, %v6658
  %v7532 = vmul.f32 %v5230, %v6664
  %v7533 = vmul.f32 %v5230, %v6670
  %v7534 = vmul.f32 %v5230, %v6676
  %v7535 = vmul.f32 %v5230, %v6682
  %v7536 = vmul.f32 %v5230, %v6688
  %v7537 = vmul.f32 %v5230, %v6694
  %v7538 = vmul.f32 %v5230, %v6700
  %v7539 = vmul.f32 %v5230, %v6706
  %v7540 = vmul.f32 %v5230, %v6712
  %v7541 = vmul.f32 %v5230, %v6718
  %v7542 = vmul.f32 %v5230, %v6724
  %v7543 = vmul.f32 %v5230, %v6730
  %v7544 = vmul.f32 %v5230, %v6736
  %v7545 = vmul.f32 %v5230, %v6742
  %v7546 = vmul.f32 %v5230, %v6748
  %v7547 = vmul.f32 %v5230, %v6754
  %v7548 = vmul.f32 %v5230, %v6760
  %v7549 = vmul.f32 %v5230, %v6766
  %v7550 = vmul.f32 %v5230, %v6772
  %v7551 = vmul.f32 %v5230, %v6778
  %v7552 = vmul.f32 %v5230, %v6784
  %v7553 = vadd.f32 %v4713, %v7041
  %v7554 = vadd.f32 %v4714, %v7042
  %v7555 = vadd.f32 %v4715, %v7043
  %v7556 = vadd.f32 %v4716, %v7044
  %v7557 = vadd.f32 %v4717, %v7045
  %v7558 = vadd.f32 %v4718, %v7046
  %v7559 = vadd.f32 %v4719, %v7047
  %v7560 = vadd.f32 %v4720, %v7048
  %v7561 = vadd.f32 %v4721, %v7049
  %v7562 = vadd.f32 %v4722, %v7050
  %v7563 = vadd.f32 %v4723, %v7051
  %v7564 = vadd.f32 %v4724, %v7052
  %v7565 = vadd.f32 %v4725, %v7053
  %v7566 = vadd.f32 %v4726, %v7054
  %v7567 = vadd.f32 %v4727, %v7055
  %v7568 = vadd.f32 %v4728, %v7056
  %v7569 = vadd.f32 %v4729, %v7057
  %v7570 = vadd.f32 %v4730, %v7058
  %v7571 = vadd.f32 %v4731, %v7059
  %v7572 = vadd.f32 %v4732, %v7060
  %v7573 = vadd.f32 %v4733, %v7061
  %v7574 = vadd.f32 %v4734, %v7062
  %v7575 = vadd.f32 %v4735, %v7063
  %v7576 = vadd.f32 %v4736, %v7064
  %v7577 = vadd.f32 %v4737, %v7065
  %v7578 = vadd.f32 %v4738, %v7066
  %v7579 = vadd.f32 %v4739, %v7067
  %v7580 = vadd.f32 %v4740, %v7068
  %v7581 = vadd.f32 %v4741, %v7069
  %v7582 = vadd.f32 %v4742, %v7070
  %v7583 = vadd.f32 %v4743, %v7071
  %v7584 = vadd.f32 %v4744, %v7072
  %v7585 = vadd.f32 %v4745, %v7073
  %v7586 = vadd.f32 %v4746, %v7074
  %v7587 = vadd.f32 %v4747, %v7075
  %v7588 = vadd.f32 %v4748, %v7076
  %v7589 = vadd.f32 %v4749, %v7077
  %v7590 = vadd.f32 %v4750, %v7078
  %v7591 = vadd.f32 %v4751, %v7079
  %v7592 = vadd.f32 %v4752, %v7080
  %v7593 = vadd.f32 %v4753, %v7081
  %v7594 = vadd.f32 %v4754, %v7082
  %v7595 = vadd.f32 %v4755, %v7083
  %v7596 = vadd.f32 %v4756, %v7084
  %v7597 = vadd.f32 %v4757, %v7085
  %v7598 = vadd.f32 %v4758, %v7086
  %v7599 = vadd.f32 %v4759, %v7087
  %v7600 = vadd.f32 %v4760, %v7088
  %v7601 = vadd.f32 %v4761, %v7089
  %v7602 = vadd.f32 %v4762, %v7090
  %v7603 = vadd.f32 %v4763, %v7091
  %v7604 = vadd.f32 %v4764, %v7092
  %v7605 = vadd.f32 %v4765, %v7093
  %v7606 = vadd.f32 %v4766, %v7094
  %v7607 = vadd.f32 %v4767, %v7095
  %v7608 = vadd.f32 %v4768, %v7096
  %v7609 = vadd.f32 %v4769, %v7097
  %v7610 = vadd.f32 %v4770, %v7098
  %v7611 = vadd.f32 %v4771, %v7099
  %v7612 = vadd.f32 %v4772, %v7100
  %v7613 = vadd.f32 %v4773, %v7101
  %v7614 = vadd.f32 %v4774, %v7102
  %v7615 = vadd.f32 %v4775, %v7103
  %v7616 = vadd.f32 %v4776, %v7104
  %v7617 = vadd.f32 %v4777, %v7105
  %v7618 = vadd.f32 %v4778, %v7106
  %v7619 = vadd.f32 %v4779, %v7107
  %v7620 = vadd.f32 %v4780, %v7108
  %v7621 = vadd.f32 %v4781, %v7109
  %v7622 = vadd.f32 %v4782, %v7110
  %v7623 = vadd.f32 %v4783, %v7111
  %v7624 = vadd.f32 %v4784, %v7112
  %v7625 = vadd.f32 %v4785, %v7113
  %v7626 = vadd.f32 %v4786, %v7114
  %v7627 = vadd.f32 %v4787, %v7115
  %v7628 = vadd.f32 %v4788, %v7116
  %v7629 = vadd.f32 %v4789, %v7117
  %v7630 = vadd.f32 %v4790, %v7118
  %v7631 = vadd.f32 %v4791, %v7119
  %v7632 = vadd.f32 %v4792, %v7120
  %v7633 = vadd.f32 %v4793, %v7121
  %v7634 = vadd.f32 %v4794, %v7122
  %v7635 = vadd.f32 %v4795, %v7123
  %v7636 = vadd.f32 %v4796, %v7124
  %v7637 = vadd.f32 %v4797, %v7125
  %v7638 = vadd.f32 %v4798, %v7126
  %v7639 = vadd.f32 %v4799, %v7127
  %v7640 = vadd.f32 %v4800, %v7128
  %v7641 = vadd.f32 %v4801, %v7129
  %v7642 = vadd.f32 %v4802, %v7130
  %v7643 = vadd.f32 %v4803, %v7131
  %v7644 = vadd.f32 %v4804, %v7132
  %v7645 = vadd.f32 %v4805, %v7133
  %v7646 = vadd.f32 %v4806, %v7134
  %v7647 = vadd.f32 %v4807, %v7135
  %v7648 = vadd.f32 %v4808, %v7136
  %v7649 = vadd.f32 %v4809, %v7137
  %v7650 = vadd.f32 %v4810, %v7138
  %v7651 = vadd.f32 %v4811, %v7139
  %v7652 = vadd.f32 %v4812, %v7140
  %v7653 = vadd.f32 %v4813, %v7141
  %v7654 = vadd.f32 %v4814, %v7142
  %v7655 = vadd.f32 %v4815, %v7143
  %v7656 = vadd.f32 %v4816, %v7144
  %v7657 = vadd.f32 %v4817, %v7145
  %v7658 = vadd.f32 %v4818, %v7146
  %v7659 = vadd.f32 %v4819, %v7147
  %v7660 = vadd.f32 %v4820, %v7148
  %v7661 = vadd.f32 %v4821, %v7149
  %v7662 = vadd.f32 %v4822, %v7150
  %v7663 = vadd.f32 %v4823, %v7151
  %v7664 = vadd.f32 %v4824, %v7152
  %v7665 = vadd.f32 %v4825, %v7153
  %v7666 = vadd.f32 %v4826, %v7154
  %v7667 = vadd.f32 %v4827, %v7155
  %v7668 = vadd.f32 %v4828, %v7156
  %v7669 = vadd.f32 %v4829, %v7157
  %v7670 = vadd.f32 %v4830, %v7158
  %v7671 = vadd.f32 %v4831, %v7159
  %v7672 = vadd.f32 %v4832, %v7160
  %v7673 = vadd.f32 %v4833, %v7161
  %v7674 = vadd.f32 %v4834, %v7162
  %v7675 = vadd.f32 %v4835, %v7163
  %v7676 = vadd.f32 %v4836, %v7164
  %v7677 = vadd.f32 %v4837, %v7165
  %v7678 = vadd.f32 %v4838, %v7166
  %v7679 = vadd.f32 %v4839, %v7167
  %v7680 = vadd.f32 %v4840, %v7168
  %v7681 = vadd.f32 %v4841, %v7169
  %v7682 = vadd.f32 %v4842, %v7170
  %v7683 = vadd.f32 %v4843, %v7171
  %v7684 = vadd.f32 %v4844, %v7172
  %v7685 = vadd.f32 %v4845, %v7173
  %v7686 = vadd.f32 %v4846, %v7174
  %v7687 = vadd.f32 %v4847, %v7175
  %v7688 = vadd.f32 %v4848, %v7176
  %v7689 = vadd.f32 %v4849, %v7177
  %v7690 = vadd.f32 %v4850, %v7178
  %v7691 = vadd.f32 %v4851, %v7179
  %v7692 = vadd.f32 %v4852, %v7180
  %v7693 = vadd.f32 %v4853, %v7181
  %v7694 = vadd.f32 %v4854, %v7182
  %v7695 = vadd.f32 %v4855, %v7183
  %v7696 = vadd.f32 %v4856, %v7184
  %v7697 = vadd.f32 %v4857, %v7185
  %v7698 = vadd.f32 %v4858, %v7186
  %v7699 = vadd.f32 %v4859, %v7187
  %v7700 = vadd.f32 %v4860, %v7188
  %v7701 = vadd.f32 %v4861, %v7189
  %v7702 = vadd.f32 %v4862, %v7190
  %v7703 = vadd.f32 %v4863, %v7191
  %v7704 = vadd.f32 %v4864, %v7192
  %v7705 = vadd.f32 %v4865, %v7193
  %v7706 = vadd.f32 %v4866, %v7194
  %v7707 = vadd.f32 %v4867, %v7195
  %v7708 = vadd.f32 %v4868, %v7196
  %v7709 = vadd.f32 %v4869, %v7197
  %v7710 = vadd.f32 %v4870, %v7198
  %v7711 = vadd.f32 %v4871, %v7199
  %v7712 = vadd.f32 %v4872, %v7200
  %v7713 = vadd.f32 %v4873, %v7201
  %v7714 = vadd.f32 %v4874, %v7202
  %v7715 = vadd.f32 %v4875, %v7203
  %v7716 = vadd.f32 %v4876, %v7204
  %v7717 = vadd.f32 %v4877, %v7205
  %v7718 = vadd.f32 %v4878, %v7206
  %v7719 = vadd.f32 %v4879, %v7207
  %v7720 = vadd.f32 %v4880, %v7208
  %v7721 = vadd.f32 %v4881, %v7209
  %v7722 = vadd.f32 %v4882, %v7210
  %v7723 = vadd.f32 %v4883, %v7211
  %v7724 = vadd.f32 %v4884, %v7212
  %v7725 = vadd.f32 %v4885, %v7213
  %v7726 = vadd.f32 %v4886, %v7214
  %v7727 = vadd.f32 %v4887, %v7215
  %v7728 = vadd.f32 %v4888, %v7216
  %v7729 = vadd.f32 %v4889, %v7217
  %v7730 = vadd.f32 %v4890, %v7218
  %v7731 = vadd.f32 %v4891, %v7219
  %v7732 = vadd.f32 %v4892, %v7220
  %v7733 = vadd.f32 %v4893, %v7221
  %v7734 = vadd.f32 %v4894, %v7222
  %v7735 = vadd.f32 %v4895, %v7223
  %v7736 = vadd.f32 %v4896, %v7224
  %v7737 = vadd.f32 %v4897, %v7225
  %v7738 = vadd.f32 %v4898, %v7226
  %v7739 = vadd.f32 %v4899, %v7227
  %v7740 = vadd.f32 %v4900, %v7228
  %v7741 = vadd.f32 %v4901, %v7229
  %v7742 = vadd.f32 %v4902, %v7230
  %v7743 = vadd.f32 %v4903, %v7231
  %v7744 = vadd.f32 %v4904, %v7232
  %v7745 = vadd.f32 %v4905, %v7233
  %v7746 = vadd.f32 %v4906, %v7234
  %v7747 = vadd.f32 %v4907, %v7235
  %v7748 = vadd.f32 %v4908, %v7236
  %v7749 = vadd.f32 %v4909, %v7237
  %v7750 = vadd.f32 %v4910, %v7238
  %v7751 = vadd.f32 %v4911, %v7239
  %v7752 = vadd.f32 %v4912, %v7240
  %v7753 = vadd.f32 %v4913, %v7241
  %v7754 = vadd.f32 %v4914, %v7242
  %v7755 = vadd.f32 %v4915, %v7243
  %v7756 = vadd.f32 %v4916, %v7244
  %v7757 = vadd.f32 %v4917, %v7245
  %v7758 = vadd.f32 %v4918, %v7246
  %v7759 = vadd.f32 %v4919, %v7247
  %v7760 = vadd.f32 %v4920, %v7248
  %v7761 = vadd.f32 %v4921, %v7249
  %v7762 = vadd.f32 %v4922, %v7250
  %v7763 = vadd.f32 %v4923, %v7251
  %v7764 = vadd.f32 %v4924, %v7252
  %v7765 = vadd.f32 %v4925, %v7253
  %v7766 = vadd.f32 %v4926, %v7254
  %v7767 = vadd.f32 %v4927, %v7255
  %v7768 = vadd.f32 %v4928, %v7256
  %v7769 = vadd.f32 %v4929, %v7257
  %v7770 = vadd.f32 %v4930, %v7258
  %v7771 = vadd.f32 %v4931, %v7259
  %v7772 = vadd.f32 %v4932, %v7260
  %v7773 = vadd.f32 %v4933, %v7261
  %v7774 = vadd.f32 %v4934, %v7262
  %v7775 = vadd.f32 %v4935, %v7263
  %v7776 = vadd.f32 %v4936, %v7264
  %v7777 = vadd.f32 %v4937, %v7265
  %v7778 = vadd.f32 %v4938, %v7266
  %v7779 = vadd.f32 %v4939, %v7267
  %v7780 = vadd.f32 %v4940, %v7268
  %v7781 = vadd.f32 %v4941, %v7269
  %v7782 = vadd.f32 %v4942, %v7270
  %v7783 = vadd.f32 %v4943, %v7271
  %v7784 = vadd.f32 %v4944, %v7272
  %v7785 = vadd.f32 %v4945, %v7273
  %v7786 = vadd.f32 %v4946, %v7274
  %v7787 = vadd.f32 %v4947, %v7275
  %v7788 = vadd.f32 %v4948, %v7276
  %v7789 = vadd.f32 %v4949, %v7277
  %v7790 = vadd.f32 %v4950, %v7278
  %v7791 = vadd.f32 %v4951, %v7279
  %v7792 = vadd.f32 %v4952, %v7280
  %v7793 = vadd.f32 %v4953, %v7281
  %v7794 = vadd.f32 %v4954, %v7282
  %v7795 = vadd.f32 %v4955, %v7283
  %v7796 = vadd.f32 %v4956, %v7284
  %v7797 = vadd.f32 %v4957, %v7285
  %v7798 = vadd.f32 %v4958, %v7286
  %v7799 = vadd.f32 %v4959, %v7287
  %v7800 = vadd.f32 %v4960, %v7288
  %v7801 = vadd.f32 %v4961, %v7289
  %v7802 = vadd.f32 %v4962, %v7290
  %v7803 = vadd.f32 %v4963, %v7291
  %v7804 = vadd.f32 %v4964, %v7292
  %v7805 = vadd.f32 %v4965, %v7293
  %v7806 = vadd.f32 %v4966, %v7294
  %v7807 = vadd.f32 %v4967, %v7295
  %v7808 = vadd.f32 %v4968, %v7296
  %v7809 = vadd.f32 %v4969, %v7297
  %v7810 = vadd.f32 %v4970, %v7298
  %v7811 = vadd.f32 %v4971, %v7299
  %v7812 = vadd.f32 %v4972, %v7300
  %v7813 = vadd.f32 %v4973, %v7301
  %v7814 = vadd.f32 %v4974, %v7302
  %v7815 = vadd.f32 %v4975, %v7303
  %v7816 = vadd.f32 %v4976, %v7304
  %v7817 = vadd.f32 %v4977, %v7305
  %v7818 = vadd.f32 %v4978, %v7306
  %v7819 = vadd.f32 %v4979, %v7307
  %v7820 = vadd.f32 %v4980, %v7308
  %v7821 = vadd.f32 %v4981, %v7309
  %v7822 = vadd.f32 %v4982, %v7310
  %v7823 = vadd.f32 %v4983, %v7311
  %v7824 = vadd.f32 %v4984, %v7312
  %v7825 = vadd.f32 %v4985, %v7313
  %v7826 = vadd.f32 %v4986, %v7314
  %v7827 = vadd.f32 %v4987, %v7315
  %v7828 = vadd.f32 %v4988, %v7316
  %v7829 = vadd.f32 %v4989, %v7317
  %v7830 = vadd.f32 %v4990, %v7318
  %v7831 = vadd.f32 %v4991, %v7319
  %v7832 = vadd.f32 %v4992, %v7320
  %v7833 = vadd.f32 %v4993, %v7321
  %v7834 = vadd.f32 %v4994, %v7322
  %v7835 = vadd.f32 %v4995, %v7323
  %v7836 = vadd.f32 %v4996, %v7324
  %v7837 = vadd.f32 %v4997, %v7325
  %v7838 = vadd.f32 %v4998, %v7326
  %v7839 = vadd.f32 %v4999, %v7327
  %v7840 = vadd.f32 %v5000, %v7328
  %v7841 = vadd.f32 %v5001, %v7329
  %v7842 = vadd.f32 %v5002, %v7330
  %v7843 = vadd.f32 %v5003, %v7331
  %v7844 = vadd.f32 %v5004, %v7332
  %v7845 = vadd.f32 %v5005, %v7333
  %v7846 = vadd.f32 %v5006, %v7334
  %v7847 = vadd.f32 %v5007, %v7335
  %v7848 = vadd.f32 %v5008, %v7336
  %v7849 = vadd.f32 %v5009, %v7337
  %v7850 = vadd.f32 %v5010, %v7338
  %v7851 = vadd.f32 %v5011, %v7339
  %v7852 = vadd.f32 %v5012, %v7340
  %v7853 = vadd.f32 %v5013, %v7341
  %v7854 = vadd.f32 %v5014, %v7342
  %v7855 = vadd.f32 %v5015, %v7343
  %v7856 = vadd.f32 %v5016, %v7344
  %v7857 = vadd.f32 %v5017, %v7345
  %v7858 = vadd.f32 %v5018, %v7346
  %v7859 = vadd.f32 %v5019, %v7347
  %v7860 = vadd.f32 %v5020, %v7348
  %v7861 = vadd.f32 %v5021, %v7349
  %v7862 = vadd.f32 %v5022, %v7350
  %v7863 = vadd.f32 %v5023, %v7351
  %v7864 = vadd.f32 %v5024, %v7352
  %v7865 = vadd.f32 %v5025, %v7353
  %v7866 = vadd.f32 %v5026, %v7354
  %v7867 = vadd.f32 %v5027, %v7355
  %v7868 = vadd.f32 %v5028, %v7356
  %v7869 = vadd.f32 %v5029, %v7357
  %v7870 = vadd.f32 %v5030, %v7358
  %v7871 = vadd.f32 %v5031, %v7359
  %v7872 = vadd.f32 %v5032, %v7360
  %v7873 = vadd.f32 %v5033, %v7361
  %v7874 = vadd.f32 %v5034, %v7362
  %v7875 = vadd.f32 %v5035, %v7363
  %v7876 = vadd.f32 %v5036, %v7364
  %v7877 = vadd.f32 %v5037, %v7365
  %v7878 = vadd.f32 %v5038, %v7366
  %v7879 = vadd.f32 %v5039, %v7367
  %v7880 = vadd.f32 %v5040, %v7368
  %v7881 = vadd.f32 %v5041, %v7369
  %v7882 = vadd.f32 %v5042, %v7370
  %v7883 = vadd.f32 %v5043, %v7371
  %v7884 = vadd.f32 %v5044, %v7372
  %v7885 = vadd.f32 %v5045, %v7373
  %v7886 = vadd.f32 %v5046, %v7374
  %v7887 = vadd.f32 %v5047, %v7375
  %v7888 = vadd.f32 %v5048, %v7376
  %v7889 = vadd.f32 %v5049, %v7377
  %v7890 = vadd.f32 %v5050, %v7378
  %v7891 = vadd.f32 %v5051, %v7379
  %v7892 = vadd.f32 %v5052, %v7380
  %v7893 = vadd.f32 %v5053, %v7381
  %v7894 = vadd.f32 %v5054, %v7382
  %v7895 = vadd.f32 %v5055, %v7383
  %v7896 = vadd.f32 %v5056, %v7384
  %v7897 = vadd.f32 %v5057, %v7385
  %v7898 = vadd.f32 %v5058, %v7386
  %v7899 = vadd.f32 %v5059, %v7387
  %v7900 = vadd.f32 %v5060, %v7388
  %v7901 = vadd.f32 %v5061, %v7389
  %v7902 = vadd.f32 %v5062, %v7390
  %v7903 = vadd.f32 %v5063, %v7391
  %v7904 = vadd.f32 %v5064, %v7392
  %v7905 = vadd.f32 %v5065, %v7393
  %v7906 = vadd.f32 %v5066, %v7394
  %v7907 = vadd.f32 %v5067, %v7395
  %v7908 = vadd.f32 %v5068, %v7396
  %v7909 = vadd.f32 %v5069, %v7397
  %v7910 = vadd.f32 %v5070, %v7398
  %v7911 = vadd.f32 %v5071, %v7399
  %v7912 = vadd.f32 %v5072, %v7400
  %v7913 = vadd.f32 %v5073, %v7401
  %v7914 = vadd.f32 %v5074, %v7402
  %v7915 = vadd.f32 %v5075, %v7403
  %v7916 = vadd.f32 %v5076, %v7404
  %v7917 = vadd.f32 %v5077, %v7405
  %v7918 = vadd.f32 %v5078, %v7406
  %v7919 = vadd.f32 %v5079, %v7407
  %v7920 = vadd.f32 %v5080, %v7408
  %v7921 = vadd.f32 %v5081, %v7409
  %v7922 = vadd.f32 %v5082, %v7410
  %v7923 = vadd.f32 %v5083, %v7411
  %v7924 = vadd.f32 %v5084, %v7412
  %v7925 = vadd.f32 %v5085, %v7413
  %v7926 = vadd.f32 %v5086, %v7414
  %v7927 = vadd.f32 %v5087, %v7415
  %v7928 = vadd.f32 %v5088, %v7416
  %v7929 = vadd.f32 %v5089, %v7417
  %v7930 = vadd.f32 %v5090, %v7418
  %v7931 = vadd.f32 %v5091, %v7419
  %v7932 = vadd.f32 %v5092, %v7420
  %v7933 = vadd.f32 %v5093, %v7421
  %v7934 = vadd.f32 %v5094, %v7422
  %v7935 = vadd.f32 %v5095, %v7423
  %v7936 = vadd.f32 %v5096, %v7424
  %v7937 = vadd.f32 %v5097, %v7425
  %v7938 = vadd.f32 %v5098, %v7426
  %v7939 = vadd.f32 %v5099, %v7427
  %v7940 = vadd.f32 %v5100, %v7428
  %v7941 = vadd.f32 %v5101, %v7429
  %v7942 = vadd.f32 %v5102, %v7430
  %v7943 = vadd.f32 %v5103, %v7431
  %v7944 = vadd.f32 %v5104, %v7432
  %v7945 = vadd.f32 %v5105, %v7433
  %v7946 = vadd.f32 %v5106, %v7434
  %v7947 = vadd.f32 %v5107, %v7435
  %v7948 = vadd.f32 %v5108, %v7436
  %v7949 = vadd.f32 %v5109, %v7437
  %v7950 = vadd.f32 %v5110, %v7438
  %v7951 = vadd.f32 %v5111, %v7439
  %v7952 = vadd.f32 %v5112, %v7440
  %v7953 = vadd.f32 %v5113, %v7441
  %v7954 = vadd.f32 %v5114, %v7442
  %v7955 = vadd.f32 %v5115, %v7443
  %v7956 = vadd.f32 %v5116, %v7444
  %v7957 = vadd.f32 %v5117, %v7445
  %v7958 = vadd.f32 %v5118, %v7446
  %v7959 = vadd.f32 %v5119, %v7447
  %v7960 = vadd.f32 %v5120, %v7448
  %v7961 = vadd.f32 %v5121, %v7449
  %v7962 = vadd.f32 %v5122, %v7450
  %v7963 = vadd.f32 %v5123, %v7451
  %v7964 = vadd.f32 %v5124, %v7452
  %v7965 = vadd.f32 %v5125, %v7453
  %v7966 = vadd.f32 %v5126, %v7454
  %v7967 = vadd.f32 %v5127, %v7455
  %v7968 = vadd.f32 %v5128, %v7456
  %v7969 = vadd.f32 %v5129, %v7457
  %v7970 = vadd.f32 %v5130, %v7458
  %v7971 = vadd.f32 %v5131, %v7459
  %v7972 = vadd.f32 %v5132, %v7460
  %v7973 = vadd.f32 %v5133, %v7461
  %v7974 = vadd.f32 %v5134, %v7462
  %v7975 = vadd.f32 %v5135, %v7463
  %v7976 = vadd.f32 %v5136, %v7464
  %v7977 = vadd.f32 %v5137, %v7465
  %v7978 = vadd.f32 %v5138, %v7466
  %v7979 = vadd.f32 %v5139, %v7467
  %v7980 = vadd.f32 %v5140, %v7468
  %v7981 = vadd.f32 %v5141, %v7469
  %v7982 = vadd.f32 %v5142, %v7470
  %v7983 = vadd.f32 %v5143, %v7471
  %v7984 = vadd.f32 %v5144, %v7472
  %v7985 = vadd.f32 %v5145, %v7473
  %v7986 = vadd.f32 %v5146, %v7474
  %v7987 = vadd.f32 %v5147, %v7475
  %v7988 = vadd.f32 %v5148, %v7476
  %v7989 = vadd.f32 %v5149, %v7477
  %v7990 = vadd.f32 %v5150, %v7478
  %v7991 = vadd.f32 %v5151, %v7479
  %v7992 = vadd.f32 %v5152, %v7480
  %v7993 = vadd.f32 %v5153, %v7481
  %v7994 = vadd.f32 %v5154, %v7482
  %v7995 = vadd.f32 %v5155, %v7483
  %v7996 = vadd.f32 %v5156, %v7484
  %v7997 = vadd.f32 %v5157, %v7485
  %v7998 = vadd.f32 %v5158, %v7486
  %v7999 = vadd.f32 %v5159, %v7487
  %v8000 = vadd.f32 %v5160, %v7488
  %v8001 = vadd.f32 %v5161, %v7489
  %v8002 = vadd.f32 %v5162, %v7490
  %v8003 = vadd.f32 %v5163, %v7491
  %v8004 = vadd.f32 %v5164, %v7492
  %v8005 = vadd.f32 %v5165, %v7493
  %v8006 = vadd.f32 %v5166, %v7494
  %v8007 = vadd.f32 %v5167, %v7495
  %v8008 = vadd.f32 %v5168, %v7496
  %v8009 = vadd.f32 %v5169, %v7497
  %v8010 = vadd.f32 %v5170, %v7498
  %v8011 = vadd.f32 %v5171, %v7499
  %v8012 = vadd.f32 %v5172, %v7500
  %v8013 = vadd.f32 %v5173, %v7501
  %v8014 = vadd.f32 %v5174, %v7502
  %v8015 = vadd.f32 %v5175, %v7503
  %v8016 = vadd.f32 %v5176, %v7504
  %v8017 = vadd.f32 %v5177, %v7505
  %v8018 = vadd.f32 %v5178, %v7506
  %v8019 = vadd.f32 %v5179, %v7507
  %v8020 = vadd.f32 %v5180, %v7508
  %v8021 = vadd.f32 %v5181, %v7509
  %v8022 = vadd.f32 %v5182, %v7510
  %v8023 = vadd.f32 %v5183, %v7511
  %v8024 = vadd.f32 %v5184, %v7512
  %v8025 = vadd.f32 %v5185, %v7513
  %v8026 = vadd.f32 %v5186, %v7514
  %v8027 = vadd.f32 %v5187, %v7515
  %v8028 = vadd.f32 %v5188, %v7516
  %v8029 = vadd.f32 %v5189, %v7517
  %v8030 = vadd.f32 %v5190, %v7518
  %v8031 = vadd.f32 %v5191, %v7519
  %v8032 = vadd.f32 %v5192, %v7520
  %v8033 = vadd.f32 %v5193, %v7521
  %v8034 = vadd.f32 %v5194, %v7522
  %v8035 = vadd.f32 %v5195, %v7523
  %v8036 = vadd.f32 %v5196, %v7524
  %v8037 = vadd.f32 %v5197, %v7525
  %v8038 = vadd.f32 %v5198, %v7526
  %v8039 = vadd.f32 %v5199, %v7527
  %v8040 = vadd.f32 %v5200, %v7528
  %v8041 = vadd.f32 %v5201, %v7529
  %v8042 = vadd.f32 %v5202, %v7530
  %v8043 = vadd.f32 %v5203, %v7531
  %v8044 = vadd.f32 %v5204, %v7532
  %v8045 = vadd.f32 %v5205, %v7533
  %v8046 = vadd.f32 %v5206, %v7534
  %v8047 = vadd.f32 %v5207, %v7535
  %v8048 = vadd.f32 %v5208, %v7536
  %v8049 = vadd.f32 %v5209, %v7537
  %v8050 = vadd.f32 %v5210, %v7538
  %v8051 = vadd.f32 %v5211, %v7539
  %v8052 = vadd.f32 %v5212, %v7540
  %v8053 = vadd.f32 %v5213, %v7541
  %v8054 = vadd.f32 %v5214, %v7542
  %v8055 = vadd.f32 %v5215, %v7543
  %v8056 = vadd.f32 %v5216, %v7544
  %v8057 = vadd.f32 %v5217, %v7545
  %v8058 = vadd.f32 %v5218, %v7546
  %v8059 = vadd.f32 %v5219, %v7547
  %v8060 = vadd.f32 %v5220, %v7548
  %v8061 = vadd.f32 %v5221, %v7549
  %v8062 = vadd.f32 %v5222, %v7550
  %v8063 = vadd.f32 %v5223, %v7551
  %v8064 = vadd.f32 %v5224, %v7552
  %s8065 = scalar_lea.vmem %s1, 3
  %v8066 = vld [vmem:[%s8065] ss:$4 sm:$0xff]
  %s8067 = scalar_lea.vmem %s1, 35
  %v8068 = vld [vmem:[%s8067] ss:$4 sm:$0xff]
  %v8069 = vperm.slane %v56, 3
  %v8070 = vperm.slane %v57, 3
  %v8073 = vperm.slane %v8066, 0
  %v8074 = vperm.slane %v8066, 1
  %v8075 = vperm.slane %v8066, 2
  %v8076 = vperm.slane %v8066, 3
  %v8077 = vperm.slane %v8066, 4
  %v8078 = vperm.slane %v8066, 5
  %v8079 = vperm.slane %v8066, 6
  %v8080 = vperm.slane %v8066, 7
  %v8081 = vperm.slane %v8068, 0
  %v8082 = vperm.slane %v8068, 1
  %v8083 = vperm.slane %v8068, 2
  %v8084 = vperm.slane %v8068, 3
  %v8085 = vperm.slane %v8068, 4
  %v8086 = vperm.slane %v8068, 5
  %v8087 = vperm.slane %v8068, 6
  %v8088 = vperm.slane %v8068, 7
  %v8089 = vlaneseq
  %v8090 = vshrl.u32 %v8089, 7
  %8092 = vset.pattern.permute.xlu0 %v8090
  %8093 = vperm.xlu0 %8092, %v8073
  %v8094 = vpop.permute.xlu0 %8093
  %v8095 = vlaneseq
  %v8096 = vshrl.u32 %v8095, 7
  %v8097 = vadd.s32 %v8096, 8
  %8098 = vset.pattern.permute.xlu0 %v8097
  %8099 = vperm.xlu0 %8098, %v8073
  %v8100 = vpop.permute.xlu0 %8099
  %v8101 = vlaneseq
  %v8102 = vshrl.u32 %v8101, 7
  %v8103 = vadd.s32 %v8102, 16
  %8104 = vset.pattern.permute.xlu0 %v8103
  %8105 = vperm.xlu0 %8104, %v8073
  %v8106 = vpop.permute.xlu0 %8105
  %v8107 = vlaneseq
  %v8108 = vshrl.u32 %v8107, 7
  %v8109 = vadd.s32 %v8108, 24
  %8110 = vset.pattern.permute.xlu0 %v8109
  %8111 = vperm.xlu0 %8110, %v8073
  %v8112 = vpop.permute.xlu0 %8111
  %v8113 = vlaneseq
  %v8114 = vshrl.u32 %v8113, 7
  %v8115 = vadd.s32 %v8114, 32
  %8116 = vset.pattern.permute.xlu0 %v8115
  %8117 = vperm.xlu0 %8116, %v8073
  %v8118 = vpop.permute.xlu0 %8117
  %v8119 = vlaneseq
  %v8120 = vshrl.u32 %v8119, 7
  %v8121 = vadd.s32 %v8120, 40
  %8122 = vset.pattern.permute.xlu0 %v8121
  %8123 = vperm.xlu0 %8122, %v8073
  %v8124 = vpop.permute.xlu0 %8123
  %v8125 = vlaneseq
  %v8126 = vshrl.u32 %v8125, 7
  %v8127 = vadd.s32 %v8126, 48
  %8128 = vset.pattern.permute.xlu0 %v8127
  %8129 = vperm.xlu0 %8128, %v8073
  %v8130 = vpop.permute.xlu0 %8129
  %v8131 = vlaneseq
  %v8132 = vshrl.u32 %v8131, 7
  %v8133 = vadd.s32 %v8132, 56
  %8134 = vset.pattern.permute.xlu0 %v8133
  %8135 = vperm.xlu0 %8134, %v8073
  %v8136 = vpop.permute.xlu0 %8135
  %v8137 = vlaneseq
  %v8138 = vshrl.u32 %v8137, 7
  %v8139 = vadd.s32 %v8138, 64
  %8140 = vset.pattern.permute.xlu0 %v8139
  %8141 = vperm.xlu0 %8140, %v8073
  %v8142 = vpop.permute.xlu0 %8141
  %v8143 = vlaneseq
  %v8144 = vshrl.u32 %v8143, 7
  %v8145 = vadd.s32 %v8144, 72
  %8146 = vset.pattern.permute.xlu0 %v8145
  %8147 = vperm.xlu0 %8146, %v8073
  %v8148 = vpop.permute.xlu0 %8147
  %v8149 = vlaneseq
  %v8150 = vshrl.u32 %v8149, 7
  %v8151 = vadd.s32 %v8150, 80
  %8152 = vset.pattern.permute.xlu0 %v8151
  %8153 = vperm.xlu0 %8152, %v8073
  %v8154 = vpop.permute.xlu0 %8153
  %v8155 = vlaneseq
  %v8156 = vshrl.u32 %v8155, 7
  %v8157 = vadd.s32 %v8156, 88
  %8158 = vset.pattern.permute.xlu0 %v8157
  %8159 = vperm.xlu0 %8158, %v8073
  %v8160 = vpop.permute.xlu0 %8159
  %v8161 = vlaneseq
  %v8162 = vshrl.u32 %v8161, 7
  %v8163 = vadd.s32 %v8162, 96
  %8164 = vset.pattern.permute.xlu0 %v8163
  %8165 = vperm.xlu0 %8164, %v8073
  %v8166 = vpop.permute.xlu0 %8165
  %v8167 = vlaneseq
  %v8168 = vshrl.u32 %v8167, 7
  %v8169 = vadd.s32 %v8168, 104
  %8170 = vset.pattern.permute.xlu0 %v8169
  %8171 = vperm.xlu0 %8170, %v8073
  %v8172 = vpop.permute.xlu0 %8171
  %v8173 = vlaneseq
  %v8174 = vshrl.u32 %v8173, 7
  %v8175 = vadd.s32 %v8174, 112
  %8176 = vset.pattern.permute.xlu0 %v8175
  %8177 = vperm.xlu0 %8176, %v8073
  %v8178 = vpop.permute.xlu0 %8177
  %v8179 = vlaneseq
  %v8180 = vshrl.u32 %v8179, 7
  %v8181 = vadd.s32 %v8180, 120
  %8182 = vset.pattern.permute.xlu0 %v8181
  %8183 = vperm.xlu0 %8182, %v8073
  %v8184 = vpop.permute.xlu0 %8183
  %v8185 = vlaneseq
  %v8186 = vshrl.u32 %v8185, 7
  %8188 = vset.pattern.permute.xlu0 %v8186
  %8189 = vperm.xlu0 %8188, %v8074
  %v8190 = vpop.permute.xlu0 %8189
  %v8191 = vlaneseq
  %v8192 = vshrl.u32 %v8191, 7
  %v8193 = vadd.s32 %v8192, 8
  %8194 = vset.pattern.permute.xlu0 %v8193
  %8195 = vperm.xlu0 %8194, %v8074
  %v8196 = vpop.permute.xlu0 %8195
  %v8197 = vlaneseq
  %v8198 = vshrl.u32 %v8197, 7
  %v8199 = vadd.s32 %v8198, 16
  %8200 = vset.pattern.permute.xlu0 %v8199
  %8201 = vperm.xlu0 %8200, %v8074
  %v8202 = vpop.permute.xlu0 %8201
  %v8203 = vlaneseq
  %v8204 = vshrl.u32 %v8203, 7
  %v8205 = vadd.s32 %v8204, 24
  %8206 = vset.pattern.permute.xlu0 %v8205
  %8207 = vperm.xlu0 %8206, %v8074
  %v8208 = vpop.permute.xlu0 %8207
  %v8209 = vlaneseq
  %v8210 = vshrl.u32 %v8209, 7
  %v8211 = vadd.s32 %v8210, 32
  %8212 = vset.pattern.permute.xlu0 %v8211
  %8213 = vperm.xlu0 %8212, %v8074
  %v8214 = vpop.permute.xlu0 %8213
  %v8215 = vlaneseq
  %v8216 = vshrl.u32 %v8215, 7
  %v8217 = vadd.s32 %v8216, 40
  %8218 = vset.pattern.permute.xlu0 %v8217
  %8219 = vperm.xlu0 %8218, %v8074
  %v8220 = vpop.permute.xlu0 %8219
  %v8221 = vlaneseq
  %v8222 = vshrl.u32 %v8221, 7
  %v8223 = vadd.s32 %v8222, 48
  %8224 = vset.pattern.permute.xlu0 %v8223
  %8225 = vperm.xlu0 %8224, %v8074
  %v8226 = vpop.permute.xlu0 %8225
  %v8227 = vlaneseq
  %v8228 = vshrl.u32 %v8227, 7
  %v8229 = vadd.s32 %v8228, 56
  %8230 = vset.pattern.permute.xlu0 %v8229
  %8231 = vperm.xlu0 %8230, %v8074
  %v8232 = vpop.permute.xlu0 %8231
  %v8233 = vlaneseq
  %v8234 = vshrl.u32 %v8233, 7
  %v8235 = vadd.s32 %v8234, 64
  %8236 = vset.pattern.permute.xlu0 %v8235
  %8237 = vperm.xlu0 %8236, %v8074
  %v8238 = vpop.permute.xlu0 %8237
  %v8239 = vlaneseq
  %v8240 = vshrl.u32 %v8239, 7
  %v8241 = vadd.s32 %v8240, 72
  %8242 = vset.pattern.permute.xlu0 %v8241
  %8243 = vperm.xlu0 %8242, %v8074
  %v8244 = vpop.permute.xlu0 %8243
  %v8245 = vlaneseq
  %v8246 = vshrl.u32 %v8245, 7
  %v8247 = vadd.s32 %v8246, 80
  %8248 = vset.pattern.permute.xlu0 %v8247
  %8249 = vperm.xlu0 %8248, %v8074
  %v8250 = vpop.permute.xlu0 %8249
  %v8251 = vlaneseq
  %v8252 = vshrl.u32 %v8251, 7
  %v8253 = vadd.s32 %v8252, 88
  %8254 = vset.pattern.permute.xlu0 %v8253
  %8255 = vperm.xlu0 %8254, %v8074
  %v8256 = vpop.permute.xlu0 %8255
  %v8257 = vlaneseq
  %v8258 = vshrl.u32 %v8257, 7
  %v8259 = vadd.s32 %v8258, 96
  %8260 = vset.pattern.permute.xlu0 %v8259
  %8261 = vperm.xlu0 %8260, %v8074
  %v8262 = vpop.permute.xlu0 %8261
  %v8263 = vlaneseq
  %v8264 = vshrl.u32 %v8263, 7
  %v8265 = vadd.s32 %v8264, 104
  %8266 = vset.pattern.permute.xlu0 %v8265
  %8267 = vperm.xlu0 %8266, %v8074
  %v8268 = vpop.permute.xlu0 %8267
  %v8269 = vlaneseq
  %v8270 = vshrl.u32 %v8269, 7
  %v8271 = vadd.s32 %v8270, 112
  %8272 = vset.pattern.permute.xlu0 %v8271
  %8273 = vperm.xlu0 %8272, %v8074
  %v8274 = vpop.permute.xlu0 %8273
  %v8275 = vlaneseq
  %v8276 = vshrl.u32 %v8275, 7
  %v8277 = vadd.s32 %v8276, 120
  %8278 = vset.pattern.permute.xlu0 %v8277
  %8279 = vperm.xlu0 %8278, %v8074
  %v8280 = vpop.permute.xlu0 %8279
  %v8281 = vlaneseq
  %v8282 = vshrl.u32 %v8281, 7
  %8284 = vset.pattern.permute.xlu0 %v8282
  %8285 = vperm.xlu0 %8284, %v8075
  %v8286 = vpop.permute.xlu0 %8285
  %v8287 = vlaneseq
  %v8288 = vshrl.u32 %v8287, 7
  %v8289 = vadd.s32 %v8288, 8
  %8290 = vset.pattern.permute.xlu0 %v8289
  %8291 = vperm.xlu0 %8290, %v8075
  %v8292 = vpop.permute.xlu0 %8291
  %v8293 = vlaneseq
  %v8294 = vshrl.u32 %v8293, 7
  %v8295 = vadd.s32 %v8294, 16
  %8296 = vset.pattern.permute.xlu0 %v8295
  %8297 = vperm.xlu0 %8296, %v8075
  %v8298 = vpop.permute.xlu0 %8297
  %v8299 = vlaneseq
  %v8300 = vshrl.u32 %v8299, 7
  %v8301 = vadd.s32 %v8300, 24
  %8302 = vset.pattern.permute.xlu0 %v8301
  %8303 = vperm.xlu0 %8302, %v8075
  %v8304 = vpop.permute.xlu0 %8303
  %v8305 = vlaneseq
  %v8306 = vshrl.u32 %v8305, 7
  %v8307 = vadd.s32 %v8306, 32
  %8308 = vset.pattern.permute.xlu0 %v8307
  %8309 = vperm.xlu0 %8308, %v8075
  %v8310 = vpop.permute.xlu0 %8309
  %v8311 = vlaneseq
  %v8312 = vshrl.u32 %v8311, 7
  %v8313 = vadd.s32 %v8312, 40
  %8314 = vset.pattern.permute.xlu0 %v8313
  %8315 = vperm.xlu0 %8314, %v8075
  %v8316 = vpop.permute.xlu0 %8315
  %v8317 = vlaneseq
  %v8318 = vshrl.u32 %v8317, 7
  %v8319 = vadd.s32 %v8318, 48
  %8320 = vset.pattern.permute.xlu0 %v8319
  %8321 = vperm.xlu0 %8320, %v8075
  %v8322 = vpop.permute.xlu0 %8321
  %v8323 = vlaneseq
  %v8324 = vshrl.u32 %v8323, 7
  %v8325 = vadd.s32 %v8324, 56
  %8326 = vset.pattern.permute.xlu0 %v8325
  %8327 = vperm.xlu0 %8326, %v8075
  %v8328 = vpop.permute.xlu0 %8327
  %v8329 = vlaneseq
  %v8330 = vshrl.u32 %v8329, 7
  %v8331 = vadd.s32 %v8330, 64
  %8332 = vset.pattern.permute.xlu0 %v8331
  %8333 = vperm.xlu0 %8332, %v8075
  %v8334 = vpop.permute.xlu0 %8333
  %v8335 = vlaneseq
  %v8336 = vshrl.u32 %v8335, 7
  %v8337 = vadd.s32 %v8336, 72
  %8338 = vset.pattern.permute.xlu0 %v8337
  %8339 = vperm.xlu0 %8338, %v8075
  %v8340 = vpop.permute.xlu0 %8339
  %v8341 = vlaneseq
  %v8342 = vshrl.u32 %v8341, 7
  %v8343 = vadd.s32 %v8342, 80
  %8344 = vset.pattern.permute.xlu0 %v8343
  %8345 = vperm.xlu0 %8344, %v8075
  %v8346 = vpop.permute.xlu0 %8345
  %v8347 = vlaneseq
  %v8348 = vshrl.u32 %v8347, 7
  %v8349 = vadd.s32 %v8348, 88
  %8350 = vset.pattern.permute.xlu0 %v8349
  %8351 = vperm.xlu0 %8350, %v8075
  %v8352 = vpop.permute.xlu0 %8351
  %v8353 = vlaneseq
  %v8354 = vshrl.u32 %v8353, 7
  %v8355 = vadd.s32 %v8354, 96
  %8356 = vset.pattern.permute.xlu0 %v8355
  %8357 = vperm.xlu0 %8356, %v8075
  %v8358 = vpop.permute.xlu0 %8357
  %v8359 = vlaneseq
  %v8360 = vshrl.u32 %v8359, 7
  %v8361 = vadd.s32 %v8360, 104
  %8362 = vset.pattern.permute.xlu0 %v8361
  %8363 = vperm.xlu0 %8362, %v8075
  %v8364 = vpop.permute.xlu0 %8363
  %v8365 = vlaneseq
  %v8366 = vshrl.u32 %v8365, 7
  %v8367 = vadd.s32 %v8366, 112
  %8368 = vset.pattern.permute.xlu0 %v8367
  %8369 = vperm.xlu0 %8368, %v8075
  %v8370 = vpop.permute.xlu0 %8369
  %v8371 = vlaneseq
  %v8372 = vshrl.u32 %v8371, 7
  %v8373 = vadd.s32 %v8372, 120
  %8374 = vset.pattern.permute.xlu0 %v8373
  %8375 = vperm.xlu0 %8374, %v8075
  %v8376 = vpop.permute.xlu0 %8375
  %v8377 = vlaneseq
  %v8378 = vshrl.u32 %v8377, 7
  %8380 = vset.pattern.permute.xlu0 %v8378
  %8381 = vperm.xlu0 %8380, %v8076
  %v8382 = vpop.permute.xlu0 %8381
  %v8383 = vlaneseq
  %v8384 = vshrl.u32 %v8383, 7
  %v8385 = vadd.s32 %v8384, 8
  %8386 = vset.pattern.permute.xlu0 %v8385
  %8387 = vperm.xlu0 %8386, %v8076
  %v8388 = vpop.permute.xlu0 %8387
  %v8389 = vlaneseq
  %v8390 = vshrl.u32 %v8389, 7
  %v8391 = vadd.s32 %v8390, 16
  %8392 = vset.pattern.permute.xlu0 %v8391
  %8393 = vperm.xlu0 %8392, %v8076
  %v8394 = vpop.permute.xlu0 %8393
  %v8395 = vlaneseq
  %v8396 = vshrl.u32 %v8395, 7
  %v8397 = vadd.s32 %v8396, 24
  %8398 = vset.pattern.permute.xlu0 %v8397
  %8399 = vperm.xlu0 %8398, %v8076
  %v8400 = vpop.permute.xlu0 %8399
  %v8401 = vlaneseq
  %v8402 = vshrl.u32 %v8401, 7
  %v8403 = vadd.s32 %v8402, 32
  %8404 = vset.pattern.permute.xlu0 %v8403
  %8405 = vperm.xlu0 %8404, %v8076
  %v8406 = vpop.permute.xlu0 %8405
  %v8407 = vlaneseq
  %v8408 = vshrl.u32 %v8407, 7
  %v8409 = vadd.s32 %v8408, 40
  %8410 = vset.pattern.permute.xlu0 %v8409
  %8411 = vperm.xlu0 %8410, %v8076
  %v8412 = vpop.permute.xlu0 %8411
  %v8413 = vlaneseq
  %v8414 = vshrl.u32 %v8413, 7
  %v8415 = vadd.s32 %v8414, 48
  %8416 = vset.pattern.permute.xlu0 %v8415
  %8417 = vperm.xlu0 %8416, %v8076
  %v8418 = vpop.permute.xlu0 %8417
  %v8419 = vlaneseq
  %v8420 = vshrl.u32 %v8419, 7
  %v8421 = vadd.s32 %v8420, 56
  %8422 = vset.pattern.permute.xlu0 %v8421
  %8423 = vperm.xlu0 %8422, %v8076
  %v8424 = vpop.permute.xlu0 %8423
  %v8425 = vlaneseq
  %v8426 = vshrl.u32 %v8425, 7
  %v8427 = vadd.s32 %v8426, 64
  %8428 = vset.pattern.permute.xlu0 %v8427
  %8429 = vperm.xlu0 %8428, %v8076
  %v8430 = vpop.permute.xlu0 %8429
  %v8431 = vlaneseq
  %v8432 = vshrl.u32 %v8431, 7
  %v8433 = vadd.s32 %v8432, 72
  %8434 = vset.pattern.permute.xlu0 %v8433
  %8435 = vperm.xlu0 %8434, %v8076
  %v8436 = vpop.permute.xlu0 %8435
  %v8437 = vlaneseq
  %v8438 = vshrl.u32 %v8437, 7
  %v8439 = vadd.s32 %v8438, 80
  %8440 = vset.pattern.permute.xlu0 %v8439
  %8441 = vperm.xlu0 %8440, %v8076
  %v8442 = vpop.permute.xlu0 %8441
  %v8443 = vlaneseq
  %v8444 = vshrl.u32 %v8443, 7
  %v8445 = vadd.s32 %v8444, 88
  %8446 = vset.pattern.permute.xlu0 %v8445
  %8447 = vperm.xlu0 %8446, %v8076
  %v8448 = vpop.permute.xlu0 %8447
  %v8449 = vlaneseq
  %v8450 = vshrl.u32 %v8449, 7
  %v8451 = vadd.s32 %v8450, 96
  %8452 = vset.pattern.permute.xlu0 %v8451
  %8453 = vperm.xlu0 %8452, %v8076
  %v8454 = vpop.permute.xlu0 %8453
  %v8455 = vlaneseq
  %v8456 = vshrl.u32 %v8455, 7
  %v8457 = vadd.s32 %v8456, 104
  %8458 = vset.pattern.permute.xlu0 %v8457
  %8459 = vperm.xlu0 %8458, %v8076
  %v8460 = vpop.permute.xlu0 %8459
  %v8461 = vlaneseq
  %v8462 = vshrl.u32 %v8461, 7
  %v8463 = vadd.s32 %v8462, 112
  %8464 = vset.pattern.permute.xlu0 %v8463
  %8465 = vperm.xlu0 %8464, %v8076
  %v8466 = vpop.permute.xlu0 %8465
  %v8467 = vlaneseq
  %v8468 = vshrl.u32 %v8467, 7
  %v8469 = vadd.s32 %v8468, 120
  %8470 = vset.pattern.permute.xlu0 %v8469
  %8471 = vperm.xlu0 %8470, %v8076
  %v8472 = vpop.permute.xlu0 %8471
  %v8473 = vlaneseq
  %v8474 = vshrl.u32 %v8473, 7
  %8476 = vset.pattern.permute.xlu0 %v8474
  %8477 = vperm.xlu0 %8476, %v8077
  %v8478 = vpop.permute.xlu0 %8477
  %v8479 = vlaneseq
  %v8480 = vshrl.u32 %v8479, 7
  %v8481 = vadd.s32 %v8480, 8
  %8482 = vset.pattern.permute.xlu0 %v8481
  %8483 = vperm.xlu0 %8482, %v8077
  %v8484 = vpop.permute.xlu0 %8483
  %v8485 = vlaneseq
  %v8486 = vshrl.u32 %v8485, 7
  %v8487 = vadd.s32 %v8486, 16
  %8488 = vset.pattern.permute.xlu0 %v8487
  %8489 = vperm.xlu0 %8488, %v8077
  %v8490 = vpop.permute.xlu0 %8489
  %v8491 = vlaneseq
  %v8492 = vshrl.u32 %v8491, 7
  %v8493 = vadd.s32 %v8492, 24
  %8494 = vset.pattern.permute.xlu0 %v8493
  %8495 = vperm.xlu0 %8494, %v8077
  %v8496 = vpop.permute.xlu0 %8495
  %v8497 = vlaneseq
  %v8498 = vshrl.u32 %v8497, 7
  %v8499 = vadd.s32 %v8498, 32
  %8500 = vset.pattern.permute.xlu0 %v8499
  %8501 = vperm.xlu0 %8500, %v8077
  %v8502 = vpop.permute.xlu0 %8501
  %v8503 = vlaneseq
  %v8504 = vshrl.u32 %v8503, 7
  %v8505 = vadd.s32 %v8504, 40
  %8506 = vset.pattern.permute.xlu0 %v8505
  %8507 = vperm.xlu0 %8506, %v8077
  %v8508 = vpop.permute.xlu0 %8507
  %v8509 = vlaneseq
  %v8510 = vshrl.u32 %v8509, 7
  %v8511 = vadd.s32 %v8510, 48
  %8512 = vset.pattern.permute.xlu0 %v8511
  %8513 = vperm.xlu0 %8512, %v8077
  %v8514 = vpop.permute.xlu0 %8513
  %v8515 = vlaneseq
  %v8516 = vshrl.u32 %v8515, 7
  %v8517 = vadd.s32 %v8516, 56
  %8518 = vset.pattern.permute.xlu0 %v8517
  %8519 = vperm.xlu0 %8518, %v8077
  %v8520 = vpop.permute.xlu0 %8519
  %v8521 = vlaneseq
  %v8522 = vshrl.u32 %v8521, 7
  %v8523 = vadd.s32 %v8522, 64
  %8524 = vset.pattern.permute.xlu0 %v8523
  %8525 = vperm.xlu0 %8524, %v8077
  %v8526 = vpop.permute.xlu0 %8525
  %v8527 = vlaneseq
  %v8528 = vshrl.u32 %v8527, 7
  %v8529 = vadd.s32 %v8528, 72
  %8530 = vset.pattern.permute.xlu0 %v8529
  %8531 = vperm.xlu0 %8530, %v8077
  %v8532 = vpop.permute.xlu0 %8531
  %v8533 = vlaneseq
  %v8534 = vshrl.u32 %v8533, 7
  %v8535 = vadd.s32 %v8534, 80
  %8536 = vset.pattern.permute.xlu0 %v8535
  %8537 = vperm.xlu0 %8536, %v8077
  %v8538 = vpop.permute.xlu0 %8537
  %v8539 = vlaneseq
  %v8540 = vshrl.u32 %v8539, 7
  %v8541 = vadd.s32 %v8540, 88
  %8542 = vset.pattern.permute.xlu0 %v8541
  %8543 = vperm.xlu0 %8542, %v8077
  %v8544 = vpop.permute.xlu0 %8543
  %v8545 = vlaneseq
  %v8546 = vshrl.u32 %v8545, 7
  %v8547 = vadd.s32 %v8546, 96
  %8548 = vset.pattern.permute.xlu0 %v8547
  %8549 = vperm.xlu0 %8548, %v8077
  %v8550 = vpop.permute.xlu0 %8549
  %v8551 = vlaneseq
  %v8552 = vshrl.u32 %v8551, 7
  %v8553 = vadd.s32 %v8552, 104
  %8554 = vset.pattern.permute.xlu0 %v8553
  %8555 = vperm.xlu0 %8554, %v8077
  %v8556 = vpop.permute.xlu0 %8555
  %v8557 = vlaneseq
  %v8558 = vshrl.u32 %v8557, 7
  %v8559 = vadd.s32 %v8558, 112
  %8560 = vset.pattern.permute.xlu0 %v8559
  %8561 = vperm.xlu0 %8560, %v8077
  %v8562 = vpop.permute.xlu0 %8561
  %v8563 = vlaneseq
  %v8564 = vshrl.u32 %v8563, 7
  %v8565 = vadd.s32 %v8564, 120
  %8566 = vset.pattern.permute.xlu0 %v8565
  %8567 = vperm.xlu0 %8566, %v8077
  %v8568 = vpop.permute.xlu0 %8567
  %v8569 = vlaneseq
  %v8570 = vshrl.u32 %v8569, 7
  %8572 = vset.pattern.permute.xlu0 %v8570
  %8573 = vperm.xlu0 %8572, %v8078
  %v8574 = vpop.permute.xlu0 %8573
  %v8575 = vlaneseq
  %v8576 = vshrl.u32 %v8575, 7
  %v8577 = vadd.s32 %v8576, 8
  %8578 = vset.pattern.permute.xlu0 %v8577
  %8579 = vperm.xlu0 %8578, %v8078
  %v8580 = vpop.permute.xlu0 %8579
  %v8581 = vlaneseq
  %v8582 = vshrl.u32 %v8581, 7
  %v8583 = vadd.s32 %v8582, 16
  %8584 = vset.pattern.permute.xlu0 %v8583
  %8585 = vperm.xlu0 %8584, %v8078
  %v8586 = vpop.permute.xlu0 %8585
  %v8587 = vlaneseq
  %v8588 = vshrl.u32 %v8587, 7
  %v8589 = vadd.s32 %v8588, 24
  %8590 = vset.pattern.permute.xlu0 %v8589
  %8591 = vperm.xlu0 %8590, %v8078
  %v8592 = vpop.permute.xlu0 %8591
  %v8593 = vlaneseq
  %v8594 = vshrl.u32 %v8593, 7
  %v8595 = vadd.s32 %v8594, 32
  %8596 = vset.pattern.permute.xlu0 %v8595
  %8597 = vperm.xlu0 %8596, %v8078
  %v8598 = vpop.permute.xlu0 %8597
  %v8599 = vlaneseq
  %v8600 = vshrl.u32 %v8599, 7
  %v8601 = vadd.s32 %v8600, 40
  %8602 = vset.pattern.permute.xlu0 %v8601
  %8603 = vperm.xlu0 %8602, %v8078
  %v8604 = vpop.permute.xlu0 %8603
  %v8605 = vlaneseq
  %v8606 = vshrl.u32 %v8605, 7
  %v8607 = vadd.s32 %v8606, 48
  %8608 = vset.pattern.permute.xlu0 %v8607
  %8609 = vperm.xlu0 %8608, %v8078
  %v8610 = vpop.permute.xlu0 %8609
  %v8611 = vlaneseq
  %v8612 = vshrl.u32 %v8611, 7
  %v8613 = vadd.s32 %v8612, 56
  %8614 = vset.pattern.permute.xlu0 %v8613
  %8615 = vperm.xlu0 %8614, %v8078
  %v8616 = vpop.permute.xlu0 %8615
  %v8617 = vlaneseq
  %v8618 = vshrl.u32 %v8617, 7
  %v8619 = vadd.s32 %v8618, 64
  %8620 = vset.pattern.permute.xlu0 %v8619
  %8621 = vperm.xlu0 %8620, %v8078
  %v8622 = vpop.permute.xlu0 %8621
  %v8623 = vlaneseq
  %v8624 = vshrl.u32 %v8623, 7
  %v8625 = vadd.s32 %v8624, 72
  %8626 = vset.pattern.permute.xlu0 %v8625
  %8627 = vperm.xlu0 %8626, %v8078
  %v8628 = vpop.permute.xlu0 %8627
  %v8629 = vlaneseq
  %v8630 = vshrl.u32 %v8629, 7
  %v8631 = vadd.s32 %v8630, 80
  %8632 = vset.pattern.permute.xlu0 %v8631
  %8633 = vperm.xlu0 %8632, %v8078
  %v8634 = vpop.permute.xlu0 %8633
  %v8635 = vlaneseq
  %v8636 = vshrl.u32 %v8635, 7
  %v8637 = vadd.s32 %v8636, 88
  %8638 = vset.pattern.permute.xlu0 %v8637
  %8639 = vperm.xlu0 %8638, %v8078
  %v8640 = vpop.permute.xlu0 %8639
  %v8641 = vlaneseq
  %v8642 = vshrl.u32 %v8641, 7
  %v8643 = vadd.s32 %v8642, 96
  %8644 = vset.pattern.permute.xlu0 %v8643
  %8645 = vperm.xlu0 %8644, %v8078
  %v8646 = vpop.permute.xlu0 %8645
  %v8647 = vlaneseq
  %v8648 = vshrl.u32 %v8647, 7
  %v8649 = vadd.s32 %v8648, 104
  %8650 = vset.pattern.permute.xlu0 %v8649
  %8651 = vperm.xlu0 %8650, %v8078
  %v8652 = vpop.permute.xlu0 %8651
  %v8653 = vlaneseq
  %v8654 = vshrl.u32 %v8653, 7
  %v8655 = vadd.s32 %v8654, 112
  %8656 = vset.pattern.permute.xlu0 %v8655
  %8657 = vperm.xlu0 %8656, %v8078
  %v8658 = vpop.permute.xlu0 %8657
  %v8659 = vlaneseq
  %v8660 = vshrl.u32 %v8659, 7
  %v8661 = vadd.s32 %v8660, 120
  %8662 = vset.pattern.permute.xlu0 %v8661
  %8663 = vperm.xlu0 %8662, %v8078
  %v8664 = vpop.permute.xlu0 %8663
  %v8665 = vlaneseq
  %v8666 = vshrl.u32 %v8665, 7
  %8668 = vset.pattern.permute.xlu0 %v8666
  %8669 = vperm.xlu0 %8668, %v8079
  %v8670 = vpop.permute.xlu0 %8669
  %v8671 = vlaneseq
  %v8672 = vshrl.u32 %v8671, 7
  %v8673 = vadd.s32 %v8672, 8
  %8674 = vset.pattern.permute.xlu0 %v8673
  %8675 = vperm.xlu0 %8674, %v8079
  %v8676 = vpop.permute.xlu0 %8675
  %v8677 = vlaneseq
  %v8678 = vshrl.u32 %v8677, 7
  %v8679 = vadd.s32 %v8678, 16
  %8680 = vset.pattern.permute.xlu0 %v8679
  %8681 = vperm.xlu0 %8680, %v8079
  %v8682 = vpop.permute.xlu0 %8681
  %v8683 = vlaneseq
  %v8684 = vshrl.u32 %v8683, 7
  %v8685 = vadd.s32 %v8684, 24
  %8686 = vset.pattern.permute.xlu0 %v8685
  %8687 = vperm.xlu0 %8686, %v8079
  %v8688 = vpop.permute.xlu0 %8687
  %v8689 = vlaneseq
  %v8690 = vshrl.u32 %v8689, 7
  %v8691 = vadd.s32 %v8690, 32
  %8692 = vset.pattern.permute.xlu0 %v8691
  %8693 = vperm.xlu0 %8692, %v8079
  %v8694 = vpop.permute.xlu0 %8693
  %v8695 = vlaneseq
  %v8696 = vshrl.u32 %v8695, 7
  %v8697 = vadd.s32 %v8696, 40
  %8698 = vset.pattern.permute.xlu0 %v8697
  %8699 = vperm.xlu0 %8698, %v8079
  %v8700 = vpop.permute.xlu0 %8699
  %v8701 = vlaneseq
  %v8702 = vshrl.u32 %v8701, 7
  %v8703 = vadd.s32 %v8702, 48
  %8704 = vset.pattern.permute.xlu0 %v8703
  %8705 = vperm.xlu0 %8704, %v8079
  %v8706 = vpop.permute.xlu0 %8705
  %v8707 = vlaneseq
  %v8708 = vshrl.u32 %v8707, 7
  %v8709 = vadd.s32 %v8708, 56
  %8710 = vset.pattern.permute.xlu0 %v8709
  %8711 = vperm.xlu0 %8710, %v8079
  %v8712 = vpop.permute.xlu0 %8711
  %v8713 = vlaneseq
  %v8714 = vshrl.u32 %v8713, 7
  %v8715 = vadd.s32 %v8714, 64
  %8716 = vset.pattern.permute.xlu0 %v8715
  %8717 = vperm.xlu0 %8716, %v8079
  %v8718 = vpop.permute.xlu0 %8717
  %v8719 = vlaneseq
  %v8720 = vshrl.u32 %v8719, 7
  %v8721 = vadd.s32 %v8720, 72
  %8722 = vset.pattern.permute.xlu0 %v8721
  %8723 = vperm.xlu0 %8722, %v8079
  %v8724 = vpop.permute.xlu0 %8723
  %v8725 = vlaneseq
  %v8726 = vshrl.u32 %v8725, 7
  %v8727 = vadd.s32 %v8726, 80
  %8728 = vset.pattern.permute.xlu0 %v8727
  %8729 = vperm.xlu0 %8728, %v8079
  %v8730 = vpop.permute.xlu0 %8729
  %v8731 = vlaneseq
  %v8732 = vshrl.u32 %v8731, 7
  %v8733 = vadd.s32 %v8732, 88
  %8734 = vset.pattern.permute.xlu0 %v8733
  %8735 = vperm.xlu0 %8734, %v8079
  %v8736 = vpop.permute.xlu0 %8735
  %v8737 = vlaneseq
  %v8738 = vshrl.u32 %v8737, 7
  %v8739 = vadd.s32 %v8738, 96
  %8740 = vset.pattern.permute.xlu0 %v8739
  %8741 = vperm.xlu0 %8740, %v8079
  %v8742 = vpop.permute.xlu0 %8741
  %v8743 = vlaneseq
  %v8744 = vshrl.u32 %v8743, 7
  %v8745 = vadd.s32 %v8744, 104
  %8746 = vset.pattern.permute.xlu0 %v8745
  %8747 = vperm.xlu0 %8746, %v8079
  %v8748 = vpop.permute.xlu0 %8747
  %v8749 = vlaneseq
  %v8750 = vshrl.u32 %v8749, 7
  %v8751 = vadd.s32 %v8750, 112
  %8752 = vset.pattern.permute.xlu0 %v8751
  %8753 = vperm.xlu0 %8752, %v8079
  %v8754 = vpop.permute.xlu0 %8753
  %v8755 = vlaneseq
  %v8756 = vshrl.u32 %v8755, 7
  %v8757 = vadd.s32 %v8756, 120
  %8758 = vset.pattern.permute.xlu0 %v8757
  %8759 = vperm.xlu0 %8758, %v8079
  %v8760 = vpop.permute.xlu0 %8759
  %v8761 = vlaneseq
  %v8762 = vshrl.u32 %v8761, 7
  %8764 = vset.pattern.permute.xlu0 %v8762
  %8765 = vperm.xlu0 %8764, %v8080
  %v8766 = vpop.permute.xlu0 %8765
  %v8767 = vlaneseq
  %v8768 = vshrl.u32 %v8767, 7
  %v8769 = vadd.s32 %v8768, 8
  %8770 = vset.pattern.permute.xlu0 %v8769
  %8771 = vperm.xlu0 %8770, %v8080
  %v8772 = vpop.permute.xlu0 %8771
  %v8773 = vlaneseq
  %v8774 = vshrl.u32 %v8773, 7
  %v8775 = vadd.s32 %v8774, 16
  %8776 = vset.pattern.permute.xlu0 %v8775
  %8777 = vperm.xlu0 %8776, %v8080
  %v8778 = vpop.permute.xlu0 %8777
  %v8779 = vlaneseq
  %v8780 = vshrl.u32 %v8779, 7
  %v8781 = vadd.s32 %v8780, 24
  %8782 = vset.pattern.permute.xlu0 %v8781
  %8783 = vperm.xlu0 %8782, %v8080
  %v8784 = vpop.permute.xlu0 %8783
  %v8785 = vlaneseq
  %v8786 = vshrl.u32 %v8785, 7
  %v8787 = vadd.s32 %v8786, 32
  %8788 = vset.pattern.permute.xlu0 %v8787
  %8789 = vperm.xlu0 %8788, %v8080
  %v8790 = vpop.permute.xlu0 %8789
  %v8791 = vlaneseq
  %v8792 = vshrl.u32 %v8791, 7
  %v8793 = vadd.s32 %v8792, 40
  %8794 = vset.pattern.permute.xlu0 %v8793
  %8795 = vperm.xlu0 %8794, %v8080
  %v8796 = vpop.permute.xlu0 %8795
  %v8797 = vlaneseq
  %v8798 = vshrl.u32 %v8797, 7
  %v8799 = vadd.s32 %v8798, 48
  %8800 = vset.pattern.permute.xlu0 %v8799
  %8801 = vperm.xlu0 %8800, %v8080
  %v8802 = vpop.permute.xlu0 %8801
  %v8803 = vlaneseq
  %v8804 = vshrl.u32 %v8803, 7
  %v8805 = vadd.s32 %v8804, 56
  %8806 = vset.pattern.permute.xlu0 %v8805
  %8807 = vperm.xlu0 %8806, %v8080
  %v8808 = vpop.permute.xlu0 %8807
  %v8809 = vlaneseq
  %v8810 = vshrl.u32 %v8809, 7
  %v8811 = vadd.s32 %v8810, 64
  %8812 = vset.pattern.permute.xlu0 %v8811
  %8813 = vperm.xlu0 %8812, %v8080
  %v8814 = vpop.permute.xlu0 %8813
  %v8815 = vlaneseq
  %v8816 = vshrl.u32 %v8815, 7
  %v8817 = vadd.s32 %v8816, 72
  %8818 = vset.pattern.permute.xlu0 %v8817
  %8819 = vperm.xlu0 %8818, %v8080
  %v8820 = vpop.permute.xlu0 %8819
  %v8821 = vlaneseq
  %v8822 = vshrl.u32 %v8821, 7
  %v8823 = vadd.s32 %v8822, 80
  %8824 = vset.pattern.permute.xlu0 %v8823
  %8825 = vperm.xlu0 %8824, %v8080
  %v8826 = vpop.permute.xlu0 %8825
  %v8827 = vlaneseq
  %v8828 = vshrl.u32 %v8827, 7
  %v8829 = vadd.s32 %v8828, 88
  %8830 = vset.pattern.permute.xlu0 %v8829
  %8831 = vperm.xlu0 %8830, %v8080
  %v8832 = vpop.permute.xlu0 %8831
  %v8833 = vlaneseq
  %v8834 = vshrl.u32 %v8833, 7
  %v8835 = vadd.s32 %v8834, 96
  %8836 = vset.pattern.permute.xlu0 %v8835
  %8837 = vperm.xlu0 %8836, %v8080
  %v8838 = vpop.permute.xlu0 %8837
  %v8839 = vlaneseq
  %v8840 = vshrl.u32 %v8839, 7
  %v8841 = vadd.s32 %v8840, 104
  %8842 = vset.pattern.permute.xlu0 %v8841
  %8843 = vperm.xlu0 %8842, %v8080
  %v8844 = vpop.permute.xlu0 %8843
  %v8845 = vlaneseq
  %v8846 = vshrl.u32 %v8845, 7
  %v8847 = vadd.s32 %v8846, 112
  %8848 = vset.pattern.permute.xlu0 %v8847
  %8849 = vperm.xlu0 %8848, %v8080
  %v8850 = vpop.permute.xlu0 %8849
  %v8851 = vlaneseq
  %v8852 = vshrl.u32 %v8851, 7
  %v8853 = vadd.s32 %v8852, 120
  %8854 = vset.pattern.permute.xlu0 %v8853
  %8855 = vperm.xlu0 %8854, %v8080
  %v8856 = vpop.permute.xlu0 %8855
  %v8857 = vlaneseq
  %v8858 = vshrl.u32 %v8857, 7
  %8860 = vset.pattern.permute.xlu0 %v8858
  %8861 = vperm.xlu0 %8860, %v8081
  %v8862 = vpop.permute.xlu0 %8861
  %v8863 = vlaneseq
  %v8864 = vshrl.u32 %v8863, 7
  %v8865 = vadd.s32 %v8864, 8
  %8866 = vset.pattern.permute.xlu0 %v8865
  %8867 = vperm.xlu0 %8866, %v8081
  %v8868 = vpop.permute.xlu0 %8867
  %v8869 = vlaneseq
  %v8870 = vshrl.u32 %v8869, 7
  %v8871 = vadd.s32 %v8870, 16
  %8872 = vset.pattern.permute.xlu0 %v8871
  %8873 = vperm.xlu0 %8872, %v8081
  %v8874 = vpop.permute.xlu0 %8873
  %v8875 = vlaneseq
  %v8876 = vshrl.u32 %v8875, 7
  %v8877 = vadd.s32 %v8876, 24
  %8878 = vset.pattern.permute.xlu0 %v8877
  %8879 = vperm.xlu0 %8878, %v8081
  %v8880 = vpop.permute.xlu0 %8879
  %v8881 = vlaneseq
  %v8882 = vshrl.u32 %v8881, 7
  %v8883 = vadd.s32 %v8882, 32
  %8884 = vset.pattern.permute.xlu0 %v8883
  %8885 = vperm.xlu0 %8884, %v8081
  %v8886 = vpop.permute.xlu0 %8885
  %v8887 = vlaneseq
  %v8888 = vshrl.u32 %v8887, 7
  %v8889 = vadd.s32 %v8888, 40
  %8890 = vset.pattern.permute.xlu0 %v8889
  %8891 = vperm.xlu0 %8890, %v8081
  %v8892 = vpop.permute.xlu0 %8891
  %v8893 = vlaneseq
  %v8894 = vshrl.u32 %v8893, 7
  %v8895 = vadd.s32 %v8894, 48
  %8896 = vset.pattern.permute.xlu0 %v8895
  %8897 = vperm.xlu0 %8896, %v8081
  %v8898 = vpop.permute.xlu0 %8897
  %v8899 = vlaneseq
  %v8900 = vshrl.u32 %v8899, 7
  %v8901 = vadd.s32 %v8900, 56
  %8902 = vset.pattern.permute.xlu0 %v8901
  %8903 = vperm.xlu0 %8902, %v8081
  %v8904 = vpop.permute.xlu0 %8903
  %v8905 = vlaneseq
  %v8906 = vshrl.u32 %v8905, 7
  %v8907 = vadd.s32 %v8906, 64
  %8908 = vset.pattern.permute.xlu0 %v8907
  %8909 = vperm.xlu0 %8908, %v8081
  %v8910 = vpop.permute.xlu0 %8909
  %v8911 = vlaneseq
  %v8912 = vshrl.u32 %v8911, 7
  %v8913 = vadd.s32 %v8912, 72
  %8914 = vset.pattern.permute.xlu0 %v8913
  %8915 = vperm.xlu0 %8914, %v8081
  %v8916 = vpop.permute.xlu0 %8915
  %v8917 = vlaneseq
  %v8918 = vshrl.u32 %v8917, 7
  %v8919 = vadd.s32 %v8918, 80
  %8920 = vset.pattern.permute.xlu0 %v8919
  %8921 = vperm.xlu0 %8920, %v8081
  %v8922 = vpop.permute.xlu0 %8921
  %v8923 = vlaneseq
  %v8924 = vshrl.u32 %v8923, 7
  %v8925 = vadd.s32 %v8924, 88
  %8926 = vset.pattern.permute.xlu0 %v8925
  %8927 = vperm.xlu0 %8926, %v8081
  %v8928 = vpop.permute.xlu0 %8927
  %v8929 = vlaneseq
  %v8930 = vshrl.u32 %v8929, 7
  %v8931 = vadd.s32 %v8930, 96
  %8932 = vset.pattern.permute.xlu0 %v8931
  %8933 = vperm.xlu0 %8932, %v8081
  %v8934 = vpop.permute.xlu0 %8933
  %v8935 = vlaneseq
  %v8936 = vshrl.u32 %v8935, 7
  %v8937 = vadd.s32 %v8936, 104
  %8938 = vset.pattern.permute.xlu0 %v8937
  %8939 = vperm.xlu0 %8938, %v8081
  %v8940 = vpop.permute.xlu0 %8939
  %v8941 = vlaneseq
  %v8942 = vshrl.u32 %v8941, 7
  %v8943 = vadd.s32 %v8942, 112
  %8944 = vset.pattern.permute.xlu0 %v8943
  %8945 = vperm.xlu0 %8944, %v8081
  %v8946 = vpop.permute.xlu0 %8945
  %v8947 = vlaneseq
  %v8948 = vshrl.u32 %v8947, 7
  %v8949 = vadd.s32 %v8948, 120
  %8950 = vset.pattern.permute.xlu0 %v8949
  %8951 = vperm.xlu0 %8950, %v8081
  %v8952 = vpop.permute.xlu0 %8951
  %v8953 = vlaneseq
  %v8954 = vshrl.u32 %v8953, 7
  %8956 = vset.pattern.permute.xlu0 %v8954
  %8957 = vperm.xlu0 %8956, %v8082
  %v8958 = vpop.permute.xlu0 %8957
  %v8959 = vlaneseq
  %v8960 = vshrl.u32 %v8959, 7
  %v8961 = vadd.s32 %v8960, 8
  %8962 = vset.pattern.permute.xlu0 %v8961
  %8963 = vperm.xlu0 %8962, %v8082
  %v8964 = vpop.permute.xlu0 %8963
  %v8965 = vlaneseq
  %v8966 = vshrl.u32 %v8965, 7
  %v8967 = vadd.s32 %v8966, 16
  %8968 = vset.pattern.permute.xlu0 %v8967
  %8969 = vperm.xlu0 %8968, %v8082
  %v8970 = vpop.permute.xlu0 %8969
  %v8971 = vlaneseq
  %v8972 = vshrl.u32 %v8971, 7
  %v8973 = vadd.s32 %v8972, 24
  %8974 = vset.pattern.permute.xlu0 %v8973
  %8975 = vperm.xlu0 %8974, %v8082
  %v8976 = vpop.permute.xlu0 %8975
  %v8977 = vlaneseq
  %v8978 = vshrl.u32 %v8977, 7
  %v8979 = vadd.s32 %v8978, 32
  %8980 = vset.pattern.permute.xlu0 %v8979
  %8981 = vperm.xlu0 %8980, %v8082
  %v8982 = vpop.permute.xlu0 %8981
  %v8983 = vlaneseq
  %v8984 = vshrl.u32 %v8983, 7
  %v8985 = vadd.s32 %v8984, 40
  %8986 = vset.pattern.permute.xlu0 %v8985
  %8987 = vperm.xlu0 %8986, %v8082
  %v8988 = vpop.permute.xlu0 %8987
  %v8989 = vlaneseq
  %v8990 = vshrl.u32 %v8989, 7
  %v8991 = vadd.s32 %v8990, 48
  %8992 = vset.pattern.permute.xlu0 %v8991
  %8993 = vperm.xlu0 %8992, %v8082
  %v8994 = vpop.permute.xlu0 %8993
  %v8995 = vlaneseq
  %v8996 = vshrl.u32 %v8995, 7
  %v8997 = vadd.s32 %v8996, 56
  %8998 = vset.pattern.permute.xlu0 %v8997
  %8999 = vperm.xlu0 %8998, %v8082
  %v9000 = vpop.permute.xlu0 %8999
  %v9001 = vlaneseq
  %v9002 = vshrl.u32 %v9001, 7
  %v9003 = vadd.s32 %v9002, 64
  %9004 = vset.pattern.permute.xlu0 %v9003
  %9005 = vperm.xlu0 %9004, %v8082
  %v9006 = vpop.permute.xlu0 %9005
  %v9007 = vlaneseq
  %v9008 = vshrl.u32 %v9007, 7
  %v9009 = vadd.s32 %v9008, 72
  %9010 = vset.pattern.permute.xlu0 %v9009
  %9011 = vperm.xlu0 %9010, %v8082
  %v9012 = vpop.permute.xlu0 %9011
  %v9013 = vlaneseq
  %v9014 = vshrl.u32 %v9013, 7
  %v9015 = vadd.s32 %v9014, 80
  %9016 = vset.pattern.permute.xlu0 %v9015
  %9017 = vperm.xlu0 %9016, %v8082
  %v9018 = vpop.permute.xlu0 %9017
  %v9019 = vlaneseq
  %v9020 = vshrl.u32 %v9019, 7
  %v9021 = vadd.s32 %v9020, 88
  %9022 = vset.pattern.permute.xlu0 %v9021
  %9023 = vperm.xlu0 %9022, %v8082
  %v9024 = vpop.permute.xlu0 %9023
  %v9025 = vlaneseq
  %v9026 = vshrl.u32 %v9025, 7
  %v9027 = vadd.s32 %v9026, 96
  %9028 = vset.pattern.permute.xlu0 %v9027
  %9029 = vperm.xlu0 %9028, %v8082
  %v9030 = vpop.permute.xlu0 %9029
  %v9031 = vlaneseq
  %v9032 = vshrl.u32 %v9031, 7
  %v9033 = vadd.s32 %v9032, 104
  %9034 = vset.pattern.permute.xlu0 %v9033
  %9035 = vperm.xlu0 %9034, %v8082
  %v9036 = vpop.permute.xlu0 %9035
  %v9037 = vlaneseq
  %v9038 = vshrl.u32 %v9037, 7
  %v9039 = vadd.s32 %v9038, 112
  %9040 = vset.pattern.permute.xlu0 %v9039
  %9041 = vperm.xlu0 %9040, %v8082
  %v9042 = vpop.permute.xlu0 %9041
  %v9043 = vlaneseq
  %v9044 = vshrl.u32 %v9043, 7
  %v9045 = vadd.s32 %v9044, 120
  %9046 = vset.pattern.permute.xlu0 %v9045
  %9047 = vperm.xlu0 %9046, %v8082
  %v9048 = vpop.permute.xlu0 %9047
  %v9049 = vlaneseq
  %v9050 = vshrl.u32 %v9049, 7
  %9052 = vset.pattern.permute.xlu0 %v9050
  %9053 = vperm.xlu0 %9052, %v8083
  %v9054 = vpop.permute.xlu0 %9053
  %v9055 = vlaneseq
  %v9056 = vshrl.u32 %v9055, 7
  %v9057 = vadd.s32 %v9056, 8
  %9058 = vset.pattern.permute.xlu0 %v9057
  %9059 = vperm.xlu0 %9058, %v8083
  %v9060 = vpop.permute.xlu0 %9059
  %v9061 = vlaneseq
  %v9062 = vshrl.u32 %v9061, 7
  %v9063 = vadd.s32 %v9062, 16
  %9064 = vset.pattern.permute.xlu0 %v9063
  %9065 = vperm.xlu0 %9064, %v8083
  %v9066 = vpop.permute.xlu0 %9065
  %v9067 = vlaneseq
  %v9068 = vshrl.u32 %v9067, 7
  %v9069 = vadd.s32 %v9068, 24
  %9070 = vset.pattern.permute.xlu0 %v9069
  %9071 = vperm.xlu0 %9070, %v8083
  %v9072 = vpop.permute.xlu0 %9071
  %v9073 = vlaneseq
  %v9074 = vshrl.u32 %v9073, 7
  %v9075 = vadd.s32 %v9074, 32
  %9076 = vset.pattern.permute.xlu0 %v9075
  %9077 = vperm.xlu0 %9076, %v8083
  %v9078 = vpop.permute.xlu0 %9077
  %v9079 = vlaneseq
  %v9080 = vshrl.u32 %v9079, 7
  %v9081 = vadd.s32 %v9080, 40
  %9082 = vset.pattern.permute.xlu0 %v9081
  %9083 = vperm.xlu0 %9082, %v8083
  %v9084 = vpop.permute.xlu0 %9083
  %v9085 = vlaneseq
  %v9086 = vshrl.u32 %v9085, 7
  %v9087 = vadd.s32 %v9086, 48
  %9088 = vset.pattern.permute.xlu0 %v9087
  %9089 = vperm.xlu0 %9088, %v8083
  %v9090 = vpop.permute.xlu0 %9089
  %v9091 = vlaneseq
  %v9092 = vshrl.u32 %v9091, 7
  %v9093 = vadd.s32 %v9092, 56
  %9094 = vset.pattern.permute.xlu0 %v9093
  %9095 = vperm.xlu0 %9094, %v8083
  %v9096 = vpop.permute.xlu0 %9095
  %v9097 = vlaneseq
  %v9098 = vshrl.u32 %v9097, 7
  %v9099 = vadd.s32 %v9098, 64
  %9100 = vset.pattern.permute.xlu0 %v9099
  %9101 = vperm.xlu0 %9100, %v8083
  %v9102 = vpop.permute.xlu0 %9101
  %v9103 = vlaneseq
  %v9104 = vshrl.u32 %v9103, 7
  %v9105 = vadd.s32 %v9104, 72
  %9106 = vset.pattern.permute.xlu0 %v9105
  %9107 = vperm.xlu0 %9106, %v8083
  %v9108 = vpop.permute.xlu0 %9107
  %v9109 = vlaneseq
  %v9110 = vshrl.u32 %v9109, 7
  %v9111 = vadd.s32 %v9110, 80
  %9112 = vset.pattern.permute.xlu0 %v9111
  %9113 = vperm.xlu0 %9112, %v8083
  %v9114 = vpop.permute.xlu0 %9113
  %v9115 = vlaneseq
  %v9116 = vshrl.u32 %v9115, 7
  %v9117 = vadd.s32 %v9116, 88
  %9118 = vset.pattern.permute.xlu0 %v9117
  %9119 = vperm.xlu0 %9118, %v8083
  %v9120 = vpop.permute.xlu0 %9119
  %v9121 = vlaneseq
  %v9122 = vshrl.u32 %v9121, 7
  %v9123 = vadd.s32 %v9122, 96
  %9124 = vset.pattern.permute.xlu0 %v9123
  %9125 = vperm.xlu0 %9124, %v8083
  %v9126 = vpop.permute.xlu0 %9125
  %v9127 = vlaneseq
  %v9128 = vshrl.u32 %v9127, 7
  %v9129 = vadd.s32 %v9128, 104
  %9130 = vset.pattern.permute.xlu0 %v9129
  %9131 = vperm.xlu0 %9130, %v8083
  %v9132 = vpop.permute.xlu0 %9131
  %v9133 = vlaneseq
  %v9134 = vshrl.u32 %v9133, 7
  %v9135 = vadd.s32 %v9134, 112
  %9136 = vset.pattern.permute.xlu0 %v9135
  %9137 = vperm.xlu0 %9136, %v8083
  %v9138 = vpop.permute.xlu0 %9137
  %v9139 = vlaneseq
  %v9140 = vshrl.u32 %v9139, 7
  %v9141 = vadd.s32 %v9140, 120
  %9142 = vset.pattern.permute.xlu0 %v9141
  %9143 = vperm.xlu0 %9142, %v8083
  %v9144 = vpop.permute.xlu0 %9143
  %v9145 = vlaneseq
  %v9146 = vshrl.u32 %v9145, 7
  %9148 = vset.pattern.permute.xlu0 %v9146
  %9149 = vperm.xlu0 %9148, %v8084
  %v9150 = vpop.permute.xlu0 %9149
  %v9151 = vlaneseq
  %v9152 = vshrl.u32 %v9151, 7
  %v9153 = vadd.s32 %v9152, 8
  %9154 = vset.pattern.permute.xlu0 %v9153
  %9155 = vperm.xlu0 %9154, %v8084
  %v9156 = vpop.permute.xlu0 %9155
  %v9157 = vlaneseq
  %v9158 = vshrl.u32 %v9157, 7
  %v9159 = vadd.s32 %v9158, 16
  %9160 = vset.pattern.permute.xlu0 %v9159
  %9161 = vperm.xlu0 %9160, %v8084
  %v9162 = vpop.permute.xlu0 %9161
  %v9163 = vlaneseq
  %v9164 = vshrl.u32 %v9163, 7
  %v9165 = vadd.s32 %v9164, 24
  %9166 = vset.pattern.permute.xlu0 %v9165
  %9167 = vperm.xlu0 %9166, %v8084
  %v9168 = vpop.permute.xlu0 %9167
  %v9169 = vlaneseq
  %v9170 = vshrl.u32 %v9169, 7
  %v9171 = vadd.s32 %v9170, 32
  %9172 = vset.pattern.permute.xlu0 %v9171
  %9173 = vperm.xlu0 %9172, %v8084
  %v9174 = vpop.permute.xlu0 %9173
  %v9175 = vlaneseq
  %v9176 = vshrl.u32 %v9175, 7
  %v9177 = vadd.s32 %v9176, 40
  %9178 = vset.pattern.permute.xlu0 %v9177
  %9179 = vperm.xlu0 %9178, %v8084
  %v9180 = vpop.permute.xlu0 %9179
  %v9181 = vlaneseq
  %v9182 = vshrl.u32 %v9181, 7
  %v9183 = vadd.s32 %v9182, 48
  %9184 = vset.pattern.permute.xlu0 %v9183
  %9185 = vperm.xlu0 %9184, %v8084
  %v9186 = vpop.permute.xlu0 %9185
  %v9187 = vlaneseq
  %v9188 = vshrl.u32 %v9187, 7
  %v9189 = vadd.s32 %v9188, 56
  %9190 = vset.pattern.permute.xlu0 %v9189
  %9191 = vperm.xlu0 %9190, %v8084
  %v9192 = vpop.permute.xlu0 %9191
  %v9193 = vlaneseq
  %v9194 = vshrl.u32 %v9193, 7
  %v9195 = vadd.s32 %v9194, 64
  %9196 = vset.pattern.permute.xlu0 %v9195
  %9197 = vperm.xlu0 %9196, %v8084
  %v9198 = vpop.permute.xlu0 %9197
  %v9199 = vlaneseq
  %v9200 = vshrl.u32 %v9199, 7
  %v9201 = vadd.s32 %v9200, 72
  %9202 = vset.pattern.permute.xlu0 %v9201
  %9203 = vperm.xlu0 %9202, %v8084
  %v9204 = vpop.permute.xlu0 %9203
  %v9205 = vlaneseq
  %v9206 = vshrl.u32 %v9205, 7
  %v9207 = vadd.s32 %v9206, 80
  %9208 = vset.pattern.permute.xlu0 %v9207
  %9209 = vperm.xlu0 %9208, %v8084
  %v9210 = vpop.permute.xlu0 %9209
  %v9211 = vlaneseq
  %v9212 = vshrl.u32 %v9211, 7
  %v9213 = vadd.s32 %v9212, 88
  %9214 = vset.pattern.permute.xlu0 %v9213
  %9215 = vperm.xlu0 %9214, %v8084
  %v9216 = vpop.permute.xlu0 %9215
  %v9217 = vlaneseq
  %v9218 = vshrl.u32 %v9217, 7
  %v9219 = vadd.s32 %v9218, 96
  %9220 = vset.pattern.permute.xlu0 %v9219
  %9221 = vperm.xlu0 %9220, %v8084
  %v9222 = vpop.permute.xlu0 %9221
  %v9223 = vlaneseq
  %v9224 = vshrl.u32 %v9223, 7
  %v9225 = vadd.s32 %v9224, 104
  %9226 = vset.pattern.permute.xlu0 %v9225
  %9227 = vperm.xlu0 %9226, %v8084
  %v9228 = vpop.permute.xlu0 %9227
  %v9229 = vlaneseq
  %v9230 = vshrl.u32 %v9229, 7
  %v9231 = vadd.s32 %v9230, 112
  %9232 = vset.pattern.permute.xlu0 %v9231
  %9233 = vperm.xlu0 %9232, %v8084
  %v9234 = vpop.permute.xlu0 %9233
  %v9235 = vlaneseq
  %v9236 = vshrl.u32 %v9235, 7
  %v9237 = vadd.s32 %v9236, 120
  %9238 = vset.pattern.permute.xlu0 %v9237
  %9239 = vperm.xlu0 %9238, %v8084
  %v9240 = vpop.permute.xlu0 %9239
  %v9241 = vlaneseq
  %v9242 = vshrl.u32 %v9241, 7
  %9244 = vset.pattern.permute.xlu0 %v9242
  %9245 = vperm.xlu0 %9244, %v8085
  %v9246 = vpop.permute.xlu0 %9245
  %v9247 = vlaneseq
  %v9248 = vshrl.u32 %v9247, 7
  %v9249 = vadd.s32 %v9248, 8
  %9250 = vset.pattern.permute.xlu0 %v9249
  %9251 = vperm.xlu0 %9250, %v8085
  %v9252 = vpop.permute.xlu0 %9251
  %v9253 = vlaneseq
  %v9254 = vshrl.u32 %v9253, 7
  %v9255 = vadd.s32 %v9254, 16
  %9256 = vset.pattern.permute.xlu0 %v9255
  %9257 = vperm.xlu0 %9256, %v8085
  %v9258 = vpop.permute.xlu0 %9257
  %v9259 = vlaneseq
  %v9260 = vshrl.u32 %v9259, 7
  %v9261 = vadd.s32 %v9260, 24
  %9262 = vset.pattern.permute.xlu0 %v9261
  %9263 = vperm.xlu0 %9262, %v8085
  %v9264 = vpop.permute.xlu0 %9263
  %v9265 = vlaneseq
  %v9266 = vshrl.u32 %v9265, 7
  %v9267 = vadd.s32 %v9266, 32
  %9268 = vset.pattern.permute.xlu0 %v9267
  %9269 = vperm.xlu0 %9268, %v8085
  %v9270 = vpop.permute.xlu0 %9269
  %v9271 = vlaneseq
  %v9272 = vshrl.u32 %v9271, 7
  %v9273 = vadd.s32 %v9272, 40
  %9274 = vset.pattern.permute.xlu0 %v9273
  %9275 = vperm.xlu0 %9274, %v8085
  %v9276 = vpop.permute.xlu0 %9275
  %v9277 = vlaneseq
  %v9278 = vshrl.u32 %v9277, 7
  %v9279 = vadd.s32 %v9278, 48
  %9280 = vset.pattern.permute.xlu0 %v9279
  %9281 = vperm.xlu0 %9280, %v8085
  %v9282 = vpop.permute.xlu0 %9281
  %v9283 = vlaneseq
  %v9284 = vshrl.u32 %v9283, 7
  %v9285 = vadd.s32 %v9284, 56
  %9286 = vset.pattern.permute.xlu0 %v9285
  %9287 = vperm.xlu0 %9286, %v8085
  %v9288 = vpop.permute.xlu0 %9287
  %v9289 = vlaneseq
  %v9290 = vshrl.u32 %v9289, 7
  %v9291 = vadd.s32 %v9290, 64
  %9292 = vset.pattern.permute.xlu0 %v9291
  %9293 = vperm.xlu0 %9292, %v8085
  %v9294 = vpop.permute.xlu0 %9293
  %v9295 = vlaneseq
  %v9296 = vshrl.u32 %v9295, 7
  %v9297 = vadd.s32 %v9296, 72
  %9298 = vset.pattern.permute.xlu0 %v9297
  %9299 = vperm.xlu0 %9298, %v8085
  %v9300 = vpop.permute.xlu0 %9299
  %v9301 = vlaneseq
  %v9302 = vshrl.u32 %v9301, 7
  %v9303 = vadd.s32 %v9302, 80
  %9304 = vset.pattern.permute.xlu0 %v9303
  %9305 = vperm.xlu0 %9304, %v8085
  %v9306 = vpop.permute.xlu0 %9305
  %v9307 = vlaneseq
  %v9308 = vshrl.u32 %v9307, 7
  %v9309 = vadd.s32 %v9308, 88
  %9310 = vset.pattern.permute.xlu0 %v9309
  %9311 = vperm.xlu0 %9310, %v8085
  %v9312 = vpop.permute.xlu0 %9311
  %v9313 = vlaneseq
  %v9314 = vshrl.u32 %v9313, 7
  %v9315 = vadd.s32 %v9314, 96
  %9316 = vset.pattern.permute.xlu0 %v9315
  %9317 = vperm.xlu0 %9316, %v8085
  %v9318 = vpop.permute.xlu0 %9317
  %v9319 = vlaneseq
  %v9320 = vshrl.u32 %v9319, 7
  %v9321 = vadd.s32 %v9320, 104
  %9322 = vset.pattern.permute.xlu0 %v9321
  %9323 = vperm.xlu0 %9322, %v8085
  %v9324 = vpop.permute.xlu0 %9323
  %v9325 = vlaneseq
  %v9326 = vshrl.u32 %v9325, 7
  %v9327 = vadd.s32 %v9326, 112
  %9328 = vset.pattern.permute.xlu0 %v9327
  %9329 = vperm.xlu0 %9328, %v8085
  %v9330 = vpop.permute.xlu0 %9329
  %v9331 = vlaneseq
  %v9332 = vshrl.u32 %v9331, 7
  %v9333 = vadd.s32 %v9332, 120
  %9334 = vset.pattern.permute.xlu0 %v9333
  %9335 = vperm.xlu0 %9334, %v8085
  %v9336 = vpop.permute.xlu0 %9335
  %v9337 = vlaneseq
  %v9338 = vshrl.u32 %v9337, 7
  %9340 = vset.pattern.permute.xlu0 %v9338
  %9341 = vperm.xlu0 %9340, %v8086
  %v9342 = vpop.permute.xlu0 %9341
  %v9343 = vlaneseq
  %v9344 = vshrl.u32 %v9343, 7
  %v9345 = vadd.s32 %v9344, 8
  %9346 = vset.pattern.permute.xlu0 %v9345
  %9347 = vperm.xlu0 %9346, %v8086
  %v9348 = vpop.permute.xlu0 %9347
  %v9349 = vlaneseq
  %v9350 = vshrl.u32 %v9349, 7
  %v9351 = vadd.s32 %v9350, 16
  %9352 = vset.pattern.permute.xlu0 %v9351
  %9353 = vperm.xlu0 %9352, %v8086
  %v9354 = vpop.permute.xlu0 %9353
  %v9355 = vlaneseq
  %v9356 = vshrl.u32 %v9355, 7
  %v9357 = vadd.s32 %v9356, 24
  %9358 = vset.pattern.permute.xlu0 %v9357
  %9359 = vperm.xlu0 %9358, %v8086
  %v9360 = vpop.permute.xlu0 %9359
  %v9361 = vlaneseq
  %v9362 = vshrl.u32 %v9361, 7
  %v9363 = vadd.s32 %v9362, 32
  %9364 = vset.pattern.permute.xlu0 %v9363
  %9365 = vperm.xlu0 %9364, %v8086
  %v9366 = vpop.permute.xlu0 %9365
  %v9367 = vlaneseq
  %v9368 = vshrl.u32 %v9367, 7
  %v9369 = vadd.s32 %v9368, 40
  %9370 = vset.pattern.permute.xlu0 %v9369
  %9371 = vperm.xlu0 %9370, %v8086
  %v9372 = vpop.permute.xlu0 %9371
  %v9373 = vlaneseq
  %v9374 = vshrl.u32 %v9373, 7
  %v9375 = vadd.s32 %v9374, 48
  %9376 = vset.pattern.permute.xlu0 %v9375
  %9377 = vperm.xlu0 %9376, %v8086
  %v9378 = vpop.permute.xlu0 %9377
  %v9379 = vlaneseq
  %v9380 = vshrl.u32 %v9379, 7
  %v9381 = vadd.s32 %v9380, 56
  %9382 = vset.pattern.permute.xlu0 %v9381
  %9383 = vperm.xlu0 %9382, %v8086
  %v9384 = vpop.permute.xlu0 %9383
  %v9385 = vlaneseq
  %v9386 = vshrl.u32 %v9385, 7
  %v9387 = vadd.s32 %v9386, 64
  %9388 = vset.pattern.permute.xlu0 %v9387
  %9389 = vperm.xlu0 %9388, %v8086
  %v9390 = vpop.permute.xlu0 %9389
  %v9391 = vlaneseq
  %v9392 = vshrl.u32 %v9391, 7
  %v9393 = vadd.s32 %v9392, 72
  %9394 = vset.pattern.permute.xlu0 %v9393
  %9395 = vperm.xlu0 %9394, %v8086
  %v9396 = vpop.permute.xlu0 %9395
  %v9397 = vlaneseq
  %v9398 = vshrl.u32 %v9397, 7
  %v9399 = vadd.s32 %v9398, 80
  %9400 = vset.pattern.permute.xlu0 %v9399
  %9401 = vperm.xlu0 %9400, %v8086
  %v9402 = vpop.permute.xlu0 %9401
  %v9403 = vlaneseq
  %v9404 = vshrl.u32 %v9403, 7
  %v9405 = vadd.s32 %v9404, 88
  %9406 = vset.pattern.permute.xlu0 %v9405
  %9407 = vperm.xlu0 %9406, %v8086
  %v9408 = vpop.permute.xlu0 %9407
  %v9409 = vlaneseq
  %v9410 = vshrl.u32 %v9409, 7
  %v9411 = vadd.s32 %v9410, 96
  %9412 = vset.pattern.permute.xlu0 %v9411
  %9413 = vperm.xlu0 %9412, %v8086
  %v9414 = vpop.permute.xlu0 %9413
  %v9415 = vlaneseq
  %v9416 = vshrl.u32 %v9415, 7
  %v9417 = vadd.s32 %v9416, 104
  %9418 = vset.pattern.permute.xlu0 %v9417
  %9419 = vperm.xlu0 %9418, %v8086
  %v9420 = vpop.permute.xlu0 %9419
  %v9421 = vlaneseq
  %v9422 = vshrl.u32 %v9421, 7
  %v9423 = vadd.s32 %v9422, 112
  %9424 = vset.pattern.permute.xlu0 %v9423
  %9425 = vperm.xlu0 %9424, %v8086
  %v9426 = vpop.permute.xlu0 %9425
  %v9427 = vlaneseq
  %v9428 = vshrl.u32 %v9427, 7
  %v9429 = vadd.s32 %v9428, 120
  %9430 = vset.pattern.permute.xlu0 %v9429
  %9431 = vperm.xlu0 %9430, %v8086
  %v9432 = vpop.permute.xlu0 %9431
  %v9433 = vlaneseq
  %v9434 = vshrl.u32 %v9433, 7
  %9436 = vset.pattern.permute.xlu0 %v9434
  %9437 = vperm.xlu0 %9436, %v8087
  %v9438 = vpop.permute.xlu0 %9437
  %v9439 = vlaneseq
  %v9440 = vshrl.u32 %v9439, 7
  %v9441 = vadd.s32 %v9440, 8
  %9442 = vset.pattern.permute.xlu0 %v9441
  %9443 = vperm.xlu0 %9442, %v8087
  %v9444 = vpop.permute.xlu0 %9443
  %v9445 = vlaneseq
  %v9446 = vshrl.u32 %v9445, 7
  %v9447 = vadd.s32 %v9446, 16
  %9448 = vset.pattern.permute.xlu0 %v9447
  %9449 = vperm.xlu0 %9448, %v8087
  %v9450 = vpop.permute.xlu0 %9449
  %v9451 = vlaneseq
  %v9452 = vshrl.u32 %v9451, 7
  %v9453 = vadd.s32 %v9452, 24
  %9454 = vset.pattern.permute.xlu0 %v9453
  %9455 = vperm.xlu0 %9454, %v8087
  %v9456 = vpop.permute.xlu0 %9455
  %v9457 = vlaneseq
  %v9458 = vshrl.u32 %v9457, 7
  %v9459 = vadd.s32 %v9458, 32
  %9460 = vset.pattern.permute.xlu0 %v9459
  %9461 = vperm.xlu0 %9460, %v8087
  %v9462 = vpop.permute.xlu0 %9461
  %v9463 = vlaneseq
  %v9464 = vshrl.u32 %v9463, 7
  %v9465 = vadd.s32 %v9464, 40
  %9466 = vset.pattern.permute.xlu0 %v9465
  %9467 = vperm.xlu0 %9466, %v8087
  %v9468 = vpop.permute.xlu0 %9467
  %v9469 = vlaneseq
  %v9470 = vshrl.u32 %v9469, 7
  %v9471 = vadd.s32 %v9470, 48
  %9472 = vset.pattern.permute.xlu0 %v9471
  %9473 = vperm.xlu0 %9472, %v8087
  %v9474 = vpop.permute.xlu0 %9473
  %v9475 = vlaneseq
  %v9476 = vshrl.u32 %v9475, 7
  %v9477 = vadd.s32 %v9476, 56
  %9478 = vset.pattern.permute.xlu0 %v9477
  %9479 = vperm.xlu0 %9478, %v8087
  %v9480 = vpop.permute.xlu0 %9479
  %v9481 = vlaneseq
  %v9482 = vshrl.u32 %v9481, 7
  %v9483 = vadd.s32 %v9482, 64
  %9484 = vset.pattern.permute.xlu0 %v9483
  %9485 = vperm.xlu0 %9484, %v8087
  %v9486 = vpop.permute.xlu0 %9485
  %v9487 = vlaneseq
  %v9488 = vshrl.u32 %v9487, 7
  %v9489 = vadd.s32 %v9488, 72
  %9490 = vset.pattern.permute.xlu0 %v9489
  %9491 = vperm.xlu0 %9490, %v8087
  %v9492 = vpop.permute.xlu0 %9491
  %v9493 = vlaneseq
  %v9494 = vshrl.u32 %v9493, 7
  %v9495 = vadd.s32 %v9494, 80
  %9496 = vset.pattern.permute.xlu0 %v9495
  %9497 = vperm.xlu0 %9496, %v8087
  %v9498 = vpop.permute.xlu0 %9497
  %v9499 = vlaneseq
  %v9500 = vshrl.u32 %v9499, 7
  %v9501 = vadd.s32 %v9500, 88
  %9502 = vset.pattern.permute.xlu0 %v9501
  %9503 = vperm.xlu0 %9502, %v8087
  %v9504 = vpop.permute.xlu0 %9503
  %v9505 = vlaneseq
  %v9506 = vshrl.u32 %v9505, 7
  %v9507 = vadd.s32 %v9506, 96
  %9508 = vset.pattern.permute.xlu0 %v9507
  %9509 = vperm.xlu0 %9508, %v8087
  %v9510 = vpop.permute.xlu0 %9509
  %v9511 = vlaneseq
  %v9512 = vshrl.u32 %v9511, 7
  %v9513 = vadd.s32 %v9512, 104
  %9514 = vset.pattern.permute.xlu0 %v9513
  %9515 = vperm.xlu0 %9514, %v8087
  %v9516 = vpop.permute.xlu0 %9515
  %v9517 = vlaneseq
  %v9518 = vshrl.u32 %v9517, 7
  %v9519 = vadd.s32 %v9518, 112
  %9520 = vset.pattern.permute.xlu0 %v9519
  %9521 = vperm.xlu0 %9520, %v8087
  %v9522 = vpop.permute.xlu0 %9521
  %v9523 = vlaneseq
  %v9524 = vshrl.u32 %v9523, 7
  %v9525 = vadd.s32 %v9524, 120
  %9526 = vset.pattern.permute.xlu0 %v9525
  %9527 = vperm.xlu0 %9526, %v8087
  %v9528 = vpop.permute.xlu0 %9527
  %v9529 = vlaneseq
  %v9530 = vshrl.u32 %v9529, 7
  %9532 = vset.pattern.permute.xlu0 %v9530
  %9533 = vperm.xlu0 %9532, %v8088
  %v9534 = vpop.permute.xlu0 %9533
  %v9535 = vlaneseq
  %v9536 = vshrl.u32 %v9535, 7
  %v9537 = vadd.s32 %v9536, 8
  %9538 = vset.pattern.permute.xlu0 %v9537
  %9539 = vperm.xlu0 %9538, %v8088
  %v9540 = vpop.permute.xlu0 %9539
  %v9541 = vlaneseq
  %v9542 = vshrl.u32 %v9541, 7
  %v9543 = vadd.s32 %v9542, 16
  %9544 = vset.pattern.permute.xlu0 %v9543
  %9545 = vperm.xlu0 %9544, %v8088
  %v9546 = vpop.permute.xlu0 %9545
  %v9547 = vlaneseq
  %v9548 = vshrl.u32 %v9547, 7
  %v9549 = vadd.s32 %v9548, 24
  %9550 = vset.pattern.permute.xlu0 %v9549
  %9551 = vperm.xlu0 %9550, %v8088
  %v9552 = vpop.permute.xlu0 %9551
  %v9553 = vlaneseq
  %v9554 = vshrl.u32 %v9553, 7
  %v9555 = vadd.s32 %v9554, 32
  %9556 = vset.pattern.permute.xlu0 %v9555
  %9557 = vperm.xlu0 %9556, %v8088
  %v9558 = vpop.permute.xlu0 %9557
  %v9559 = vlaneseq
  %v9560 = vshrl.u32 %v9559, 7
  %v9561 = vadd.s32 %v9560, 40
  %9562 = vset.pattern.permute.xlu0 %v9561
  %9563 = vperm.xlu0 %9562, %v8088
  %v9564 = vpop.permute.xlu0 %9563
  %v9565 = vlaneseq
  %v9566 = vshrl.u32 %v9565, 7
  %v9567 = vadd.s32 %v9566, 48
  %9568 = vset.pattern.permute.xlu0 %v9567
  %9569 = vperm.xlu0 %9568, %v8088
  %v9570 = vpop.permute.xlu0 %9569
  %v9571 = vlaneseq
  %v9572 = vshrl.u32 %v9571, 7
  %v9573 = vadd.s32 %v9572, 56
  %9574 = vset.pattern.permute.xlu0 %v9573
  %9575 = vperm.xlu0 %9574, %v8088
  %v9576 = vpop.permute.xlu0 %9575
  %v9577 = vlaneseq
  %v9578 = vshrl.u32 %v9577, 7
  %v9579 = vadd.s32 %v9578, 64
  %9580 = vset.pattern.permute.xlu0 %v9579
  %9581 = vperm.xlu0 %9580, %v8088
  %v9582 = vpop.permute.xlu0 %9581
  %v9583 = vlaneseq
  %v9584 = vshrl.u32 %v9583, 7
  %v9585 = vadd.s32 %v9584, 72
  %9586 = vset.pattern.permute.xlu0 %v9585
  %9587 = vperm.xlu0 %9586, %v8088
  %v9588 = vpop.permute.xlu0 %9587
  %v9589 = vlaneseq
  %v9590 = vshrl.u32 %v9589, 7
  %v9591 = vadd.s32 %v9590, 80
  %9592 = vset.pattern.permute.xlu0 %v9591
  %9593 = vperm.xlu0 %9592, %v8088
  %v9594 = vpop.permute.xlu0 %9593
  %v9595 = vlaneseq
  %v9596 = vshrl.u32 %v9595, 7
  %v9597 = vadd.s32 %v9596, 88
  %9598 = vset.pattern.permute.xlu0 %v9597
  %9599 = vperm.xlu0 %9598, %v8088
  %v9600 = vpop.permute.xlu0 %9599
  %v9601 = vlaneseq
  %v9602 = vshrl.u32 %v9601, 7
  %v9603 = vadd.s32 %v9602, 96
  %9604 = vset.pattern.permute.xlu0 %v9603
  %9605 = vperm.xlu0 %9604, %v8088
  %v9606 = vpop.permute.xlu0 %9605
  %v9607 = vlaneseq
  %v9608 = vshrl.u32 %v9607, 7
  %v9609 = vadd.s32 %v9608, 104
  %9610 = vset.pattern.permute.xlu0 %v9609
  %9611 = vperm.xlu0 %9610, %v8088
  %v9612 = vpop.permute.xlu0 %9611
  %v9613 = vlaneseq
  %v9614 = vshrl.u32 %v9613, 7
  %v9615 = vadd.s32 %v9614, 112
  %9616 = vset.pattern.permute.xlu0 %v9615
  %9617 = vperm.xlu0 %9616, %v8088
  %v9618 = vpop.permute.xlu0 %9617
  %v9619 = vlaneseq
  %v9620 = vshrl.u32 %v9619, 7
  %v9621 = vadd.s32 %v9620, 120
  %9622 = vset.pattern.permute.xlu0 %v9621
  %9623 = vperm.xlu0 %9622, %v8088
  %v9624 = vpop.permute.xlu0 %9623
  %v9881 = vmul.f32 %v8069, %v8094
  %v9882 = vmul.f32 %v8069, %v8100
  %v9883 = vmul.f32 %v8069, %v8106
  %v9884 = vmul.f32 %v8069, %v8112
  %v9885 = vmul.f32 %v8069, %v8118
  %v9886 = vmul.f32 %v8069, %v8124
  %v9887 = vmul.f32 %v8069, %v8130
  %v9888 = vmul.f32 %v8069, %v8136
  %v9889 = vmul.f32 %v8069, %v8142
  %v9890 = vmul.f32 %v8069, %v8148
  %v9891 = vmul.f32 %v8069, %v8154
  %v9892 = vmul.f32 %v8069, %v8160
  %v9893 = vmul.f32 %v8069, %v8166
  %v9894 = vmul.f32 %v8069, %v8172
  %v9895 = vmul.f32 %v8069, %v8178
  %v9896 = vmul.f32 %v8069, %v8184
  %v9897 = vmul.f32 %v8069, %v8190
  %v9898 = vmul.f32 %v8069, %v8196
  %v9899 = vmul.f32 %v8069, %v8202
  %v9900 = vmul.f32 %v8069, %v8208
  %v9901 = vmul.f32 %v8069, %v8214
  %v9902 = vmul.f32 %v8069, %v8220
  %v9903 = vmul.f32 %v8069, %v8226
  %v9904 = vmul.f32 %v8069, %v8232
  %v9905 = vmul.f32 %v8069, %v8238
  %v9906 = vmul.f32 %v8069, %v8244
  %v9907 = vmul.f32 %v8069, %v8250
  %v9908 = vmul.f32 %v8069, %v8256
  %v9909 = vmul.f32 %v8069, %v8262
  %v9910 = vmul.f32 %v8069, %v8268
  %v9911 = vmul.f32 %v8069, %v8274
  %v9912 = vmul.f32 %v8069, %v8280
  %v9913 = vmul.f32 %v8069, %v8286
  %v9914 = vmul.f32 %v8069, %v8292
  %v9915 = vmul.f32 %v8069, %v8298
  %v9916 = vmul.f32 %v8069, %v8304
  %v9917 = vmul.f32 %v8069, %v8310
  %v9918 = vmul.f32 %v8069, %v8316
  %v9919 = vmul.f32 %v8069, %v8322
  %v9920 = vmul.f32 %v8069, %v8328
  %v9921 = vmul.f32 %v8069, %v8334
  %v9922 = vmul.f32 %v8069, %v8340
  %v9923 = vmul.f32 %v8069, %v8346
  %v9924 = vmul.f32 %v8069, %v8352
  %v9925 = vmul.f32 %v8069, %v8358
  %v9926 = vmul.f32 %v8069, %v8364
  %v9927 = vmul.f32 %v8069, %v8370
  %v9928 = vmul.f32 %v8069, %v8376
  %v9929 = vmul.f32 %v8069, %v8382
  %v9930 = vmul.f32 %v8069, %v8388
  %v9931 = vmul.f32 %v8069, %v8394
  %v9932 = vmul.f32 %v8069, %v8400
  %v9933 = vmul.f32 %v8069, %v8406
  %v9934 = vmul.f32 %v8069, %v8412
  %v9935 = vmul.f32 %v8069, %v8418
  %v9936 = vmul.f32 %v8069, %v8424
  %v9937 = vmul.f32 %v8069, %v8430
  %v9938 = vmul.f32 %v8069, %v8436
  %v9939 = vmul.f32 %v8069, %v8442
  %v9940 = vmul.f32 %v8069, %v8448
  %v9941 = vmul.f32 %v8069, %v8454
  %v9942 = vmul.f32 %v8069, %v8460
  %v9943 = vmul.f32 %v8069, %v8466
  %v9944 = vmul.f32 %v8069, %v8472
  %v9945 = vmul.f32 %v8069, %v8478
  %v9946 = vmul.f32 %v8069, %v8484
  %v9947 = vmul.f32 %v8069, %v8490
  %v9948 = vmul.f32 %v8069, %v8496
  %v9949 = vmul.f32 %v8069, %v8502
  %v9950 = vmul.f32 %v8069, %v8508
  %v9951 = vmul.f32 %v8069, %v8514
  %v9952 = vmul.f32 %v8069, %v8520
  %v9953 = vmul.f32 %v8069, %v8526
  %v9954 = vmul.f32 %v8069, %v8532
  %v9955 = vmul.f32 %v8069, %v8538
  %v9956 = vmul.f32 %v8069, %v8544
  %v9957 = vmul.f32 %v8069, %v8550
  %v9958 = vmul.f32 %v8069, %v8556
  %v9959 = vmul.f32 %v8069, %v8562
  %v9960 = vmul.f32 %v8069, %v8568
  %v9961 = vmul.f32 %v8069, %v8574
  %v9962 = vmul.f32 %v8069, %v8580
  %v9963 = vmul.f32 %v8069, %v8586
  %v9964 = vmul.f32 %v8069, %v8592
  %v9965 = vmul.f32 %v8069, %v8598
  %v9966 = vmul.f32 %v8069, %v8604
  %v9967 = vmul.f32 %v8069, %v8610
  %v9968 = vmul.f32 %v8069, %v8616
  %v9969 = vmul.f32 %v8069, %v8622
  %v9970 = vmul.f32 %v8069, %v8628
  %v9971 = vmul.f32 %v8069, %v8634
  %v9972 = vmul.f32 %v8069, %v8640
  %v9973 = vmul.f32 %v8069, %v8646
  %v9974 = vmul.f32 %v8069, %v8652
  %v9975 = vmul.f32 %v8069, %v8658
  %v9976 = vmul.f32 %v8069, %v8664
  %v9977 = vmul.f32 %v8069, %v8670
  %v9978 = vmul.f32 %v8069, %v8676
  %v9979 = vmul.f32 %v8069, %v8682
  %v9980 = vmul.f32 %v8069, %v8688
  %v9981 = vmul.f32 %v8069, %v8694
  %v9982 = vmul.f32 %v8069, %v8700
  %v9983 = vmul.f32 %v8069, %v8706
  %v9984 = vmul.f32 %v8069, %v8712
  %v9985 = vmul.f32 %v8069, %v8718
  %v9986 = vmul.f32 %v8069, %v8724
  %v9987 = vmul.f32 %v8069, %v8730
  %v9988 = vmul.f32 %v8069, %v8736
  %v9989 = vmul.f32 %v8069, %v8742
  %v9990 = vmul.f32 %v8069, %v8748
  %v9991 = vmul.f32 %v8069, %v8754
  %v9992 = vmul.f32 %v8069, %v8760
  %v9993 = vmul.f32 %v8069, %v8766
  %v9994 = vmul.f32 %v8069, %v8772
  %v9995 = vmul.f32 %v8069, %v8778
  %v9996 = vmul.f32 %v8069, %v8784
  %v9997 = vmul.f32 %v8069, %v8790
  %v9998 = vmul.f32 %v8069, %v8796
  %v9999 = vmul.f32 %v8069, %v8802
  %v10000 = vmul.f32 %v8069, %v8808
  %v10001 = vmul.f32 %v8069, %v8814
  %v10002 = vmul.f32 %v8069, %v8820
  %v10003 = vmul.f32 %v8069, %v8826
  %v10004 = vmul.f32 %v8069, %v8832
  %v10005 = vmul.f32 %v8069, %v8838
  %v10006 = vmul.f32 %v8069, %v8844
  %v10007 = vmul.f32 %v8069, %v8850
  %v10008 = vmul.f32 %v8069, %v8856
  %v10009 = vmul.f32 %v8069, %v8862
  %v10010 = vmul.f32 %v8069, %v8868
  %v10011 = vmul.f32 %v8069, %v8874
  %v10012 = vmul.f32 %v8069, %v8880
  %v10013 = vmul.f32 %v8069, %v8886
  %v10014 = vmul.f32 %v8069, %v8892
  %v10015 = vmul.f32 %v8069, %v8898
  %v10016 = vmul.f32 %v8069, %v8904
  %v10017 = vmul.f32 %v8069, %v8910
  %v10018 = vmul.f32 %v8069, %v8916
  %v10019 = vmul.f32 %v8069, %v8922
  %v10020 = vmul.f32 %v8069, %v8928
  %v10021 = vmul.f32 %v8069, %v8934
  %v10022 = vmul.f32 %v8069, %v8940
  %v10023 = vmul.f32 %v8069, %v8946
  %v10024 = vmul.f32 %v8069, %v8952
  %v10025 = vmul.f32 %v8069, %v8958
  %v10026 = vmul.f32 %v8069, %v8964
  %v10027 = vmul.f32 %v8069, %v8970
  %v10028 = vmul.f32 %v8069, %v8976
  %v10029 = vmul.f32 %v8069, %v8982
  %v10030 = vmul.f32 %v8069, %v8988
  %v10031 = vmul.f32 %v8069, %v8994
  %v10032 = vmul.f32 %v8069, %v9000
  %v10033 = vmul.f32 %v8069, %v9006
  %v10034 = vmul.f32 %v8069, %v9012
  %v10035 = vmul.f32 %v8069, %v9018
  %v10036 = vmul.f32 %v8069, %v9024
  %v10037 = vmul.f32 %v8069, %v9030
  %v10038 = vmul.f32 %v8069, %v9036
  %v10039 = vmul.f32 %v8069, %v9042
  %v10040 = vmul.f32 %v8069, %v9048
  %v10041 = vmul.f32 %v8069, %v9054
  %v10042 = vmul.f32 %v8069, %v9060
  %v10043 = vmul.f32 %v8069, %v9066
  %v10044 = vmul.f32 %v8069, %v9072
  %v10045 = vmul.f32 %v8069, %v9078
  %v10046 = vmul.f32 %v8069, %v9084
  %v10047 = vmul.f32 %v8069, %v9090
  %v10048 = vmul.f32 %v8069, %v9096
  %v10049 = vmul.f32 %v8069, %v9102
  %v10050 = vmul.f32 %v8069, %v9108
  %v10051 = vmul.f32 %v8069, %v9114
  %v10052 = vmul.f32 %v8069, %v9120
  %v10053 = vmul.f32 %v8069, %v9126
  %v10054 = vmul.f32 %v8069, %v9132
  %v10055 = vmul.f32 %v8069, %v9138
  %v10056 = vmul.f32 %v8069, %v9144
  %v10057 = vmul.f32 %v8069, %v9150
  %v10058 = vmul.f32 %v8069, %v9156
  %v10059 = vmul.f32 %v8069, %v9162
  %v10060 = vmul.f32 %v8069, %v9168
  %v10061 = vmul.f32 %v8069, %v9174
  %v10062 = vmul.f32 %v8069, %v9180
  %v10063 = vmul.f32 %v8069, %v9186
  %v10064 = vmul.f32 %v8069, %v9192
  %v10065 = vmul.f32 %v8069, %v9198
  %v10066 = vmul.f32 %v8069, %v9204
  %v10067 = vmul.f32 %v8069, %v9210
  %v10068 = vmul.f32 %v8069, %v9216
  %v10069 = vmul.f32 %v8069, %v9222
  %v10070 = vmul.f32 %v8069, %v9228
  %v10071 = vmul.f32 %v8069, %v9234
  %v10072 = vmul.f32 %v8069, %v9240
  %v10073 = vmul.f32 %v8069, %v9246
  %v10074 = vmul.f32 %v8069, %v9252
  %v10075 = vmul.f32 %v8069, %v9258
  %v10076 = vmul.f32 %v8069, %v9264
  %v10077 = vmul.f32 %v8069, %v9270
  %v10078 = vmul.f32 %v8069, %v9276
  %v10079 = vmul.f32 %v8069, %v9282
  %v10080 = vmul.f32 %v8069, %v9288
  %v10081 = vmul.f32 %v8069, %v9294
  %v10082 = vmul.f32 %v8069, %v9300
  %v10083 = vmul.f32 %v8069, %v9306
  %v10084 = vmul.f32 %v8069, %v9312
  %v10085 = vmul.f32 %v8069, %v9318
  %v10086 = vmul.f32 %v8069, %v9324
  %v10087 = vmul.f32 %v8069, %v9330
  %v10088 = vmul.f32 %v8069, %v9336
  %v10089 = vmul.f32 %v8069, %v9342
  %v10090 = vmul.f32 %v8069, %v9348
  %v10091 = vmul.f32 %v8069, %v9354
  %v10092 = vmul.f32 %v8069, %v9360
  %v10093 = vmul.f32 %v8069, %v9366
  %v10094 = vmul.f32 %v8069, %v9372
  %v10095 = vmul.f32 %v8069, %v9378
  %v10096 = vmul.f32 %v8069, %v9384
  %v10097 = vmul.f32 %v8069, %v9390
  %v10098 = vmul.f32 %v8069, %v9396
  %v10099 = vmul.f32 %v8069, %v9402
  %v10100 = vmul.f32 %v8069, %v9408
  %v10101 = vmul.f32 %v8069, %v9414
  %v10102 = vmul.f32 %v8069, %v9420
  %v10103 = vmul.f32 %v8069, %v9426
  %v10104 = vmul.f32 %v8069, %v9432
  %v10105 = vmul.f32 %v8069, %v9438
  %v10106 = vmul.f32 %v8069, %v9444
  %v10107 = vmul.f32 %v8069, %v9450
  %v10108 = vmul.f32 %v8069, %v9456
  %v10109 = vmul.f32 %v8069, %v9462
  %v10110 = vmul.f32 %v8069, %v9468
  %v10111 = vmul.f32 %v8069, %v9474
  %v10112 = vmul.f32 %v8069, %v9480
  %v10113 = vmul.f32 %v8069, %v9486
  %v10114 = vmul.f32 %v8069, %v9492
  %v10115 = vmul.f32 %v8069, %v9498
  %v10116 = vmul.f32 %v8069, %v9504
  %v10117 = vmul.f32 %v8069, %v9510
  %v10118 = vmul.f32 %v8069, %v9516
  %v10119 = vmul.f32 %v8069, %v9522
  %v10120 = vmul.f32 %v8069, %v9528
  %v10121 = vmul.f32 %v8069, %v9534
  %v10122 = vmul.f32 %v8069, %v9540
  %v10123 = vmul.f32 %v8069, %v9546
  %v10124 = vmul.f32 %v8069, %v9552
  %v10125 = vmul.f32 %v8069, %v9558
  %v10126 = vmul.f32 %v8069, %v9564
  %v10127 = vmul.f32 %v8069, %v9570
  %v10128 = vmul.f32 %v8069, %v9576
  %v10129 = vmul.f32 %v8069, %v9582
  %v10130 = vmul.f32 %v8069, %v9588
  %v10131 = vmul.f32 %v8069, %v9594
  %v10132 = vmul.f32 %v8069, %v9600
  %v10133 = vmul.f32 %v8069, %v9606
  %v10134 = vmul.f32 %v8069, %v9612
  %v10135 = vmul.f32 %v8069, %v9618
  %v10136 = vmul.f32 %v8069, %v9624
  %v10137 = vmul.f32 %v8070, %v8094
  %v10138 = vmul.f32 %v8070, %v8100
  %v10139 = vmul.f32 %v8070, %v8106
  %v10140 = vmul.f32 %v8070, %v8112
  %v10141 = vmul.f32 %v8070, %v8118
  %v10142 = vmul.f32 %v8070, %v8124
  %v10143 = vmul.f32 %v8070, %v8130
  %v10144 = vmul.f32 %v8070, %v8136
  %v10145 = vmul.f32 %v8070, %v8142
  %v10146 = vmul.f32 %v8070, %v8148
  %v10147 = vmul.f32 %v8070, %v8154
  %v10148 = vmul.f32 %v8070, %v8160
  %v10149 = vmul.f32 %v8070, %v8166
  %v10150 = vmul.f32 %v8070, %v8172
  %v10151 = vmul.f32 %v8070, %v8178
  %v10152 = vmul.f32 %v8070, %v8184
  %v10153 = vmul.f32 %v8070, %v8190
  %v10154 = vmul.f32 %v8070, %v8196
  %v10155 = vmul.f32 %v8070, %v8202
  %v10156 = vmul.f32 %v8070, %v8208
  %v10157 = vmul.f32 %v8070, %v8214
  %v10158 = vmul.f32 %v8070, %v8220
  %v10159 = vmul.f32 %v8070, %v8226
  %v10160 = vmul.f32 %v8070, %v8232
  %v10161 = vmul.f32 %v8070, %v8238
  %v10162 = vmul.f32 %v8070, %v8244
  %v10163 = vmul.f32 %v8070, %v8250
  %v10164 = vmul.f32 %v8070, %v8256
  %v10165 = vmul.f32 %v8070, %v8262
  %v10166 = vmul.f32 %v8070, %v8268
  %v10167 = vmul.f32 %v8070, %v8274
  %v10168 = vmul.f32 %v8070, %v8280
  %v10169 = vmul.f32 %v8070, %v8286
  %v10170 = vmul.f32 %v8070, %v8292
  %v10171 = vmul.f32 %v8070, %v8298
  %v10172 = vmul.f32 %v8070, %v8304
  %v10173 = vmul.f32 %v8070, %v8310
  %v10174 = vmul.f32 %v8070, %v8316
  %v10175 = vmul.f32 %v8070, %v8322
  %v10176 = vmul.f32 %v8070, %v8328
  %v10177 = vmul.f32 %v8070, %v8334
  %v10178 = vmul.f32 %v8070, %v8340
  %v10179 = vmul.f32 %v8070, %v8346
  %v10180 = vmul.f32 %v8070, %v8352
  %v10181 = vmul.f32 %v8070, %v8358
  %v10182 = vmul.f32 %v8070, %v8364
  %v10183 = vmul.f32 %v8070, %v8370
  %v10184 = vmul.f32 %v8070, %v8376
  %v10185 = vmul.f32 %v8070, %v8382
  %v10186 = vmul.f32 %v8070, %v8388
  %v10187 = vmul.f32 %v8070, %v8394
  %v10188 = vmul.f32 %v8070, %v8400
  %v10189 = vmul.f32 %v8070, %v8406
  %v10190 = vmul.f32 %v8070, %v8412
  %v10191 = vmul.f32 %v8070, %v8418
  %v10192 = vmul.f32 %v8070, %v8424
  %v10193 = vmul.f32 %v8070, %v8430
  %v10194 = vmul.f32 %v8070, %v8436
  %v10195 = vmul.f32 %v8070, %v8442
  %v10196 = vmul.f32 %v8070, %v8448
  %v10197 = vmul.f32 %v8070, %v8454
  %v10198 = vmul.f32 %v8070, %v8460
  %v10199 = vmul.f32 %v8070, %v8466
  %v10200 = vmul.f32 %v8070, %v8472
  %v10201 = vmul.f32 %v8070, %v8478
  %v10202 = vmul.f32 %v8070, %v8484
  %v10203 = vmul.f32 %v8070, %v8490
  %v10204 = vmul.f32 %v8070, %v8496
  %v10205 = vmul.f32 %v8070, %v8502
  %v10206 = vmul.f32 %v8070, %v8508
  %v10207 = vmul.f32 %v8070, %v8514
  %v10208 = vmul.f32 %v8070, %v8520
  %v10209 = vmul.f32 %v8070, %v8526
  %v10210 = vmul.f32 %v8070, %v8532
  %v10211 = vmul.f32 %v8070, %v8538
  %v10212 = vmul.f32 %v8070, %v8544
  %v10213 = vmul.f32 %v8070, %v8550
  %v10214 = vmul.f32 %v8070, %v8556
  %v10215 = vmul.f32 %v8070, %v8562
  %v10216 = vmul.f32 %v8070, %v8568
  %v10217 = vmul.f32 %v8070, %v8574
  %v10218 = vmul.f32 %v8070, %v8580
  %v10219 = vmul.f32 %v8070, %v8586
  %v10220 = vmul.f32 %v8070, %v8592
  %v10221 = vmul.f32 %v8070, %v8598
  %v10222 = vmul.f32 %v8070, %v8604
  %v10223 = vmul.f32 %v8070, %v8610
  %v10224 = vmul.f32 %v8070, %v8616
  %v10225 = vmul.f32 %v8070, %v8622
  %v10226 = vmul.f32 %v8070, %v8628
  %v10227 = vmul.f32 %v8070, %v8634
  %v10228 = vmul.f32 %v8070, %v8640
  %v10229 = vmul.f32 %v8070, %v8646
  %v10230 = vmul.f32 %v8070, %v8652
  %v10231 = vmul.f32 %v8070, %v8658
  %v10232 = vmul.f32 %v8070, %v8664
  %v10233 = vmul.f32 %v8070, %v8670
  %v10234 = vmul.f32 %v8070, %v8676
  %v10235 = vmul.f32 %v8070, %v8682
  %v10236 = vmul.f32 %v8070, %v8688
  %v10237 = vmul.f32 %v8070, %v8694
  %v10238 = vmul.f32 %v8070, %v8700
  %v10239 = vmul.f32 %v8070, %v8706
  %v10240 = vmul.f32 %v8070, %v8712
  %v10241 = vmul.f32 %v8070, %v8718
  %v10242 = vmul.f32 %v8070, %v8724
  %v10243 = vmul.f32 %v8070, %v8730
  %v10244 = vmul.f32 %v8070, %v8736
  %v10245 = vmul.f32 %v8070, %v8742
  %v10246 = vmul.f32 %v8070, %v8748
  %v10247 = vmul.f32 %v8070, %v8754
  %v10248 = vmul.f32 %v8070, %v8760
  %v10249 = vmul.f32 %v8070, %v8766
  %v10250 = vmul.f32 %v8070, %v8772
  %v10251 = vmul.f32 %v8070, %v8778
  %v10252 = vmul.f32 %v8070, %v8784
  %v10253 = vmul.f32 %v8070, %v8790
  %v10254 = vmul.f32 %v8070, %v8796
  %v10255 = vmul.f32 %v8070, %v8802
  %v10256 = vmul.f32 %v8070, %v8808
  %v10257 = vmul.f32 %v8070, %v8814
  %v10258 = vmul.f32 %v8070, %v8820
  %v10259 = vmul.f32 %v8070, %v8826
  %v10260 = vmul.f32 %v8070, %v8832
  %v10261 = vmul.f32 %v8070, %v8838
  %v10262 = vmul.f32 %v8070, %v8844
  %v10263 = vmul.f32 %v8070, %v8850
  %v10264 = vmul.f32 %v8070, %v8856
  %v10265 = vmul.f32 %v8070, %v8862
  %v10266 = vmul.f32 %v8070, %v8868
  %v10267 = vmul.f32 %v8070, %v8874
  %v10268 = vmul.f32 %v8070, %v8880
  %v10269 = vmul.f32 %v8070, %v8886
  %v10270 = vmul.f32 %v8070, %v8892
  %v10271 = vmul.f32 %v8070, %v8898
  %v10272 = vmul.f32 %v8070, %v8904
  %v10273 = vmul.f32 %v8070, %v8910
  %v10274 = vmul.f32 %v8070, %v8916
  %v10275 = vmul.f32 %v8070, %v8922
  %v10276 = vmul.f32 %v8070, %v8928
  %v10277 = vmul.f32 %v8070, %v8934
  %v10278 = vmul.f32 %v8070, %v8940
  %v10279 = vmul.f32 %v8070, %v8946
  %v10280 = vmul.f32 %v8070, %v8952
  %v10281 = vmul.f32 %v8070, %v8958
  %v10282 = vmul.f32 %v8070, %v8964
  %v10283 = vmul.f32 %v8070, %v8970
  %v10284 = vmul.f32 %v8070, %v8976
  %v10285 = vmul.f32 %v8070, %v8982
  %v10286 = vmul.f32 %v8070, %v8988
  %v10287 = vmul.f32 %v8070, %v8994
  %v10288 = vmul.f32 %v8070, %v9000
  %v10289 = vmul.f32 %v8070, %v9006
  %v10290 = vmul.f32 %v8070, %v9012
  %v10291 = vmul.f32 %v8070, %v9018
  %v10292 = vmul.f32 %v8070, %v9024
  %v10293 = vmul.f32 %v8070, %v9030
  %v10294 = vmul.f32 %v8070, %v9036
  %v10295 = vmul.f32 %v8070, %v9042
  %v10296 = vmul.f32 %v8070, %v9048
  %v10297 = vmul.f32 %v8070, %v9054
  %v10298 = vmul.f32 %v8070, %v9060
  %v10299 = vmul.f32 %v8070, %v9066
  %v10300 = vmul.f32 %v8070, %v9072
  %v10301 = vmul.f32 %v8070, %v9078
  %v10302 = vmul.f32 %v8070, %v9084
  %v10303 = vmul.f32 %v8070, %v9090
  %v10304 = vmul.f32 %v8070, %v9096
  %v10305 = vmul.f32 %v8070, %v9102
  %v10306 = vmul.f32 %v8070, %v9108
  %v10307 = vmul.f32 %v8070, %v9114
  %v10308 = vmul.f32 %v8070, %v9120
  %v10309 = vmul.f32 %v8070, %v9126
  %v10310 = vmul.f32 %v8070, %v9132
  %v10311 = vmul.f32 %v8070, %v9138
  %v10312 = vmul.f32 %v8070, %v9144
  %v10313 = vmul.f32 %v8070, %v9150
  %v10314 = vmul.f32 %v8070, %v9156
  %v10315 = vmul.f32 %v8070, %v9162
  %v10316 = vmul.f32 %v8070, %v9168
  %v10317 = vmul.f32 %v8070, %v9174
  %v10318 = vmul.f32 %v8070, %v9180
  %v10319 = vmul.f32 %v8070, %v9186
  %v10320 = vmul.f32 %v8070, %v9192
  %v10321 = vmul.f32 %v8070, %v9198
  %v10322 = vmul.f32 %v8070, %v9204
  %v10323 = vmul.f32 %v8070, %v9210
  %v10324 = vmul.f32 %v8070, %v9216
  %v10325 = vmul.f32 %v8070, %v9222
  %v10326 = vmul.f32 %v8070, %v9228
  %v10327 = vmul.f32 %v8070, %v9234
  %v10328 = vmul.f32 %v8070, %v9240
  %v10329 = vmul.f32 %v8070, %v9246
  %v10330 = vmul.f32 %v8070, %v9252
  %v10331 = vmul.f32 %v8070, %v9258
  %v10332 = vmul.f32 %v8070, %v9264
  %v10333 = vmul.f32 %v8070, %v9270
  %v10334 = vmul.f32 %v8070, %v9276
  %v10335 = vmul.f32 %v8070, %v9282
  %v10336 = vmul.f32 %v8070, %v9288
  %v10337 = vmul.f32 %v8070, %v9294
  %v10338 = vmul.f32 %v8070, %v9300
  %v10339 = vmul.f32 %v8070, %v9306
  %v10340 = vmul.f32 %v8070, %v9312
  %v10341 = vmul.f32 %v8070, %v9318
  %v10342 = vmul.f32 %v8070, %v9324
  %v10343 = vmul.f32 %v8070, %v9330
  %v10344 = vmul.f32 %v8070, %v9336
  %v10345 = vmul.f32 %v8070, %v9342
  %v10346 = vmul.f32 %v8070, %v9348
  %v10347 = vmul.f32 %v8070, %v9354
  %v10348 = vmul.f32 %v8070, %v9360
  %v10349 = vmul.f32 %v8070, %v9366
  %v10350 = vmul.f32 %v8070, %v9372
  %v10351 = vmul.f32 %v8070, %v9378
  %v10352 = vmul.f32 %v8070, %v9384
  %v10353 = vmul.f32 %v8070, %v9390
  %v10354 = vmul.f32 %v8070, %v9396
  %v10355 = vmul.f32 %v8070, %v9402
  %v10356 = vmul.f32 %v8070, %v9408
  %v10357 = vmul.f32 %v8070, %v9414
  %v10358 = vmul.f32 %v8070, %v9420
  %v10359 = vmul.f32 %v8070, %v9426
  %v10360 = vmul.f32 %v8070, %v9432
  %v10361 = vmul.f32 %v8070, %v9438
  %v10362 = vmul.f32 %v8070, %v9444
  %v10363 = vmul.f32 %v8070, %v9450
  %v10364 = vmul.f32 %v8070, %v9456
  %v10365 = vmul.f32 %v8070, %v9462
  %v10366 = vmul.f32 %v8070, %v9468
  %v10367 = vmul.f32 %v8070, %v9474
  %v10368 = vmul.f32 %v8070, %v9480
  %v10369 = vmul.f32 %v8070, %v9486
  %v10370 = vmul.f32 %v8070, %v9492
  %v10371 = vmul.f32 %v8070, %v9498
  %v10372 = vmul.f32 %v8070, %v9504
  %v10373 = vmul.f32 %v8070, %v9510
  %v10374 = vmul.f32 %v8070, %v9516
  %v10375 = vmul.f32 %v8070, %v9522
  %v10376 = vmul.f32 %v8070, %v9528
  %v10377 = vmul.f32 %v8070, %v9534
  %v10378 = vmul.f32 %v8070, %v9540
  %v10379 = vmul.f32 %v8070, %v9546
  %v10380 = vmul.f32 %v8070, %v9552
  %v10381 = vmul.f32 %v8070, %v9558
  %v10382 = vmul.f32 %v8070, %v9564
  %v10383 = vmul.f32 %v8070, %v9570
  %v10384 = vmul.f32 %v8070, %v9576
  %v10385 = vmul.f32 %v8070, %v9582
  %v10386 = vmul.f32 %v8070, %v9588
  %v10387 = vmul.f32 %v8070, %v9594
  %v10388 = vmul.f32 %v8070, %v9600
  %v10389 = vmul.f32 %v8070, %v9606
  %v10390 = vmul.f32 %v8070, %v9612
  %v10391 = vmul.f32 %v8070, %v9618
  %v10392 = vmul.f32 %v8070, %v9624
  %v10393 = vadd.f32 %v7553, %v9881
  %v10394 = vadd.f32 %v7554, %v9882
  %v10395 = vadd.f32 %v7555, %v9883
  %v10396 = vadd.f32 %v7556, %v9884
  %v10397 = vadd.f32 %v7557, %v9885
  %v10398 = vadd.f32 %v7558, %v9886
  %v10399 = vadd.f32 %v7559, %v9887
  %v10400 = vadd.f32 %v7560, %v9888
  %v10401 = vadd.f32 %v7561, %v9889
  %v10402 = vadd.f32 %v7562, %v9890
  %v10403 = vadd.f32 %v7563, %v9891
  %v10404 = vadd.f32 %v7564, %v9892
  %v10405 = vadd.f32 %v7565, %v9893
  %v10406 = vadd.f32 %v7566, %v9894
  %v10407 = vadd.f32 %v7567, %v9895
  %v10408 = vadd.f32 %v7568, %v9896
  %v10409 = vadd.f32 %v7569, %v9897
  %v10410 = vadd.f32 %v7570, %v9898
  %v10411 = vadd.f32 %v7571, %v9899
  %v10412 = vadd.f32 %v7572, %v9900
  %v10413 = vadd.f32 %v7573, %v9901
  %v10414 = vadd.f32 %v7574, %v9902
  %v10415 = vadd.f32 %v7575, %v9903
  %v10416 = vadd.f32 %v7576, %v9904
  %v10417 = vadd.f32 %v7577, %v9905
  %v10418 = vadd.f32 %v7578, %v9906
  %v10419 = vadd.f32 %v7579, %v9907
  %v10420 = vadd.f32 %v7580, %v9908
  %v10421 = vadd.f32 %v7581, %v9909
  %v10422 = vadd.f32 %v7582, %v9910
  %v10423 = vadd.f32 %v7583, %v9911
  %v10424 = vadd.f32 %v7584, %v9912
  %v10425 = vadd.f32 %v7585, %v9913
  %v10426 = vadd.f32 %v7586, %v9914
  %v10427 = vadd.f32 %v7587, %v9915
  %v10428 = vadd.f32 %v7588, %v9916
  %v10429 = vadd.f32 %v7589, %v9917
  %v10430 = vadd.f32 %v7590, %v9918
  %v10431 = vadd.f32 %v7591, %v9919
  %v10432 = vadd.f32 %v7592, %v9920
  %v10433 = vadd.f32 %v7593, %v9921
  %v10434 = vadd.f32 %v7594, %v9922
  %v10435 = vadd.f32 %v7595, %v9923
  %v10436 = vadd.f32 %v7596, %v9924
  %v10437 = vadd.f32 %v7597, %v9925
  %v10438 = vadd.f32 %v7598, %v9926
  %v10439 = vadd.f32 %v7599, %v9927
  %v10440 = vadd.f32 %v7600, %v9928
  %v10441 = vadd.f32 %v7601, %v9929
  %v10442 = vadd.f32 %v7602, %v9930
  %v10443 = vadd.f32 %v7603, %v9931
  %v10444 = vadd.f32 %v7604, %v9932
  %v10445 = vadd.f32 %v7605, %v9933
  %v10446 = vadd.f32 %v7606, %v9934
  %v10447 = vadd.f32 %v7607, %v9935
  %v10448 = vadd.f32 %v7608, %v9936
  %v10449 = vadd.f32 %v7609, %v9937
  %v10450 = vadd.f32 %v7610, %v9938
  %v10451 = vadd.f32 %v7611, %v9939
  %v10452 = vadd.f32 %v7612, %v9940
  %v10453 = vadd.f32 %v7613, %v9941
  %v10454 = vadd.f32 %v7614, %v9942
  %v10455 = vadd.f32 %v7615, %v9943
  %v10456 = vadd.f32 %v7616, %v9944
  %v10457 = vadd.f32 %v7617, %v9945
  %v10458 = vadd.f32 %v7618, %v9946
  %v10459 = vadd.f32 %v7619, %v9947
  %v10460 = vadd.f32 %v7620, %v9948
  %v10461 = vadd.f32 %v7621, %v9949
  %v10462 = vadd.f32 %v7622, %v9950
  %v10463 = vadd.f32 %v7623, %v9951
  %v10464 = vadd.f32 %v7624, %v9952
  %v10465 = vadd.f32 %v7625, %v9953
  %v10466 = vadd.f32 %v7626, %v9954
  %v10467 = vadd.f32 %v7627, %v9955
  %v10468 = vadd.f32 %v7628, %v9956
  %v10469 = vadd.f32 %v7629, %v9957
  %v10470 = vadd.f32 %v7630, %v9958
  %v10471 = vadd.f32 %v7631, %v9959
  %v10472 = vadd.f32 %v7632, %v9960
  %v10473 = vadd.f32 %v7633, %v9961
  %v10474 = vadd.f32 %v7634, %v9962
  %v10475 = vadd.f32 %v7635, %v9963
  %v10476 = vadd.f32 %v7636, %v9964
  %v10477 = vadd.f32 %v7637, %v9965
  %v10478 = vadd.f32 %v7638, %v9966
  %v10479 = vadd.f32 %v7639, %v9967
  %v10480 = vadd.f32 %v7640, %v9968
  %v10481 = vadd.f32 %v7641, %v9969
  %v10482 = vadd.f32 %v7642, %v9970
  %v10483 = vadd.f32 %v7643, %v9971
  %v10484 = vadd.f32 %v7644, %v9972
  %v10485 = vadd.f32 %v7645, %v9973
  %v10486 = vadd.f32 %v7646, %v9974
  %v10487 = vadd.f32 %v7647, %v9975
  %v10488 = vadd.f32 %v7648, %v9976
  %v10489 = vadd.f32 %v7649, %v9977
  %v10490 = vadd.f32 %v7650, %v9978
  %v10491 = vadd.f32 %v7651, %v9979
  %v10492 = vadd.f32 %v7652, %v9980
  %v10493 = vadd.f32 %v7653, %v9981
  %v10494 = vadd.f32 %v7654, %v9982
  %v10495 = vadd.f32 %v7655, %v9983
  %v10496 = vadd.f32 %v7656, %v9984
  %v10497 = vadd.f32 %v7657, %v9985
  %v10498 = vadd.f32 %v7658, %v9986
  %v10499 = vadd.f32 %v7659, %v9987
  %v10500 = vadd.f32 %v7660, %v9988
  %v10501 = vadd.f32 %v7661, %v9989
  %v10502 = vadd.f32 %v7662, %v9990
  %v10503 = vadd.f32 %v7663, %v9991
  %v10504 = vadd.f32 %v7664, %v9992
  %v10505 = vadd.f32 %v7665, %v9993
  %v10506 = vadd.f32 %v7666, %v9994
  %v10507 = vadd.f32 %v7667, %v9995
  %v10508 = vadd.f32 %v7668, %v9996
  %v10509 = vadd.f32 %v7669, %v9997
  %v10510 = vadd.f32 %v7670, %v9998
  %v10511 = vadd.f32 %v7671, %v9999
  %v10512 = vadd.f32 %v7672, %v10000
  %v10513 = vadd.f32 %v7673, %v10001
  %v10514 = vadd.f32 %v7674, %v10002
  %v10515 = vadd.f32 %v7675, %v10003
  %v10516 = vadd.f32 %v7676, %v10004
  %v10517 = vadd.f32 %v7677, %v10005
  %v10518 = vadd.f32 %v7678, %v10006
  %v10519 = vadd.f32 %v7679, %v10007
  %v10520 = vadd.f32 %v7680, %v10008
  %v10521 = vadd.f32 %v7681, %v10009
  %v10522 = vadd.f32 %v7682, %v10010
  %v10523 = vadd.f32 %v7683, %v10011
  %v10524 = vadd.f32 %v7684, %v10012
  %v10525 = vadd.f32 %v7685, %v10013
  %v10526 = vadd.f32 %v7686, %v10014
  %v10527 = vadd.f32 %v7687, %v10015
  %v10528 = vadd.f32 %v7688, %v10016
  %v10529 = vadd.f32 %v7689, %v10017
  %v10530 = vadd.f32 %v7690, %v10018
  %v10531 = vadd.f32 %v7691, %v10019
  %v10532 = vadd.f32 %v7692, %v10020
  %v10533 = vadd.f32 %v7693, %v10021
  %v10534 = vadd.f32 %v7694, %v10022
  %v10535 = vadd.f32 %v7695, %v10023
  %v10536 = vadd.f32 %v7696, %v10024
  %v10537 = vadd.f32 %v7697, %v10025
  %v10538 = vadd.f32 %v7698, %v10026
  %v10539 = vadd.f32 %v7699, %v10027
  %v10540 = vadd.f32 %v7700, %v10028
  %v10541 = vadd.f32 %v7701, %v10029
  %v10542 = vadd.f32 %v7702, %v10030
  %v10543 = vadd.f32 %v7703, %v10031
  %v10544 = vadd.f32 %v7704, %v10032
  %v10545 = vadd.f32 %v7705, %v10033
  %v10546 = vadd.f32 %v7706, %v10034
  %v10547 = vadd.f32 %v7707, %v10035
  %v10548 = vadd.f32 %v7708, %v10036
  %v10549 = vadd.f32 %v7709, %v10037
  %v10550 = vadd.f32 %v7710, %v10038
  %v10551 = vadd.f32 %v7711, %v10039
  %v10552 = vadd.f32 %v7712, %v10040
  %v10553 = vadd.f32 %v7713, %v10041
  %v10554 = vadd.f32 %v7714, %v10042
  %v10555 = vadd.f32 %v7715, %v10043
  %v10556 = vadd.f32 %v7716, %v10044
  %v10557 = vadd.f32 %v7717, %v10045
  %v10558 = vadd.f32 %v7718, %v10046
  %v10559 = vadd.f32 %v7719, %v10047
  %v10560 = vadd.f32 %v7720, %v10048
  %v10561 = vadd.f32 %v7721, %v10049
  %v10562 = vadd.f32 %v7722, %v10050
  %v10563 = vadd.f32 %v7723, %v10051
  %v10564 = vadd.f32 %v7724, %v10052
  %v10565 = vadd.f32 %v7725, %v10053
  %v10566 = vadd.f32 %v7726, %v10054
  %v10567 = vadd.f32 %v7727, %v10055
  %v10568 = vadd.f32 %v7728, %v10056
  %v10569 = vadd.f32 %v7729, %v10057
  %v10570 = vadd.f32 %v7730, %v10058
  %v10571 = vadd.f32 %v7731, %v10059
  %v10572 = vadd.f32 %v7732, %v10060
  %v10573 = vadd.f32 %v7733, %v10061
  %v10574 = vadd.f32 %v7734, %v10062
  %v10575 = vadd.f32 %v7735, %v10063
  %v10576 = vadd.f32 %v7736, %v10064
  %v10577 = vadd.f32 %v7737, %v10065
  %v10578 = vadd.f32 %v7738, %v10066
  %v10579 = vadd.f32 %v7739, %v10067
  %v10580 = vadd.f32 %v7740, %v10068
  %v10581 = vadd.f32 %v7741, %v10069
  %v10582 = vadd.f32 %v7742, %v10070
  %v10583 = vadd.f32 %v7743, %v10071
  %v10584 = vadd.f32 %v7744, %v10072
  %v10585 = vadd.f32 %v7745, %v10073
  %v10586 = vadd.f32 %v7746, %v10074
  %v10587 = vadd.f32 %v7747, %v10075
  %v10588 = vadd.f32 %v7748, %v10076
  %v10589 = vadd.f32 %v7749, %v10077
  %v10590 = vadd.f32 %v7750, %v10078
  %v10591 = vadd.f32 %v7751, %v10079
  %v10592 = vadd.f32 %v7752, %v10080
  %v10593 = vadd.f32 %v7753, %v10081
  %v10594 = vadd.f32 %v7754, %v10082
  %v10595 = vadd.f32 %v7755, %v10083
  %v10596 = vadd.f32 %v7756, %v10084
  %v10597 = vadd.f32 %v7757, %v10085
  %v10598 = vadd.f32 %v7758, %v10086
  %v10599 = vadd.f32 %v7759, %v10087
  %v10600 = vadd.f32 %v7760, %v10088
  %v10601 = vadd.f32 %v7761, %v10089
  %v10602 = vadd.f32 %v7762, %v10090
  %v10603 = vadd.f32 %v7763, %v10091
  %v10604 = vadd.f32 %v7764, %v10092
  %v10605 = vadd.f32 %v7765, %v10093
  %v10606 = vadd.f32 %v7766, %v10094
  %v10607 = vadd.f32 %v7767, %v10095
  %v10608 = vadd.f32 %v7768, %v10096
  %v10609 = vadd.f32 %v7769, %v10097
  %v10610 = vadd.f32 %v7770, %v10098
  %v10611 = vadd.f32 %v7771, %v10099
  %v10612 = vadd.f32 %v7772, %v10100
  %v10613 = vadd.f32 %v7773, %v10101
  %v10614 = vadd.f32 %v7774, %v10102
  %v10615 = vadd.f32 %v7775, %v10103
  %v10616 = vadd.f32 %v7776, %v10104
  %v10617 = vadd.f32 %v7777, %v10105
  %v10618 = vadd.f32 %v7778, %v10106
  %v10619 = vadd.f32 %v7779, %v10107
  %v10620 = vadd.f32 %v7780, %v10108
  %v10621 = vadd.f32 %v7781, %v10109
  %v10622 = vadd.f32 %v7782, %v10110
  %v10623 = vadd.f32 %v7783, %v10111
  %v10624 = vadd.f32 %v7784, %v10112
  %v10625 = vadd.f32 %v7785, %v10113
  %v10626 = vadd.f32 %v7786, %v10114
  %v10627 = vadd.f32 %v7787, %v10115
  %v10628 = vadd.f32 %v7788, %v10116
  %v10629 = vadd.f32 %v7789, %v10117
  %v10630 = vadd.f32 %v7790, %v10118
  %v10631 = vadd.f32 %v7791, %v10119
  %v10632 = vadd.f32 %v7792, %v10120
  %v10633 = vadd.f32 %v7793, %v10121
  %v10634 = vadd.f32 %v7794, %v10122
  %v10635 = vadd.f32 %v7795, %v10123
  %v10636 = vadd.f32 %v7796, %v10124
  %v10637 = vadd.f32 %v7797, %v10125
  %v10638 = vadd.f32 %v7798, %v10126
  %v10639 = vadd.f32 %v7799, %v10127
  %v10640 = vadd.f32 %v7800, %v10128
  %v10641 = vadd.f32 %v7801, %v10129
  %v10642 = vadd.f32 %v7802, %v10130
  %v10643 = vadd.f32 %v7803, %v10131
  %v10644 = vadd.f32 %v7804, %v10132
  %v10645 = vadd.f32 %v7805, %v10133
  %v10646 = vadd.f32 %v7806, %v10134
  %v10647 = vadd.f32 %v7807, %v10135
  %v10648 = vadd.f32 %v7808, %v10136
  %v10649 = vadd.f32 %v7809, %v10137
  %v10650 = vadd.f32 %v7810, %v10138
  %v10651 = vadd.f32 %v7811, %v10139
  %v10652 = vadd.f32 %v7812, %v10140
  %v10653 = vadd.f32 %v7813, %v10141
  %v10654 = vadd.f32 %v7814, %v10142
  %v10655 = vadd.f32 %v7815, %v10143
  %v10656 = vadd.f32 %v7816, %v10144
  %v10657 = vadd.f32 %v7817, %v10145
  %v10658 = vadd.f32 %v7818, %v10146
  %v10659 = vadd.f32 %v7819, %v10147
  %v10660 = vadd.f32 %v7820, %v10148
  %v10661 = vadd.f32 %v7821, %v10149
  %v10662 = vadd.f32 %v7822, %v10150
  %v10663 = vadd.f32 %v7823, %v10151
  %v10664 = vadd.f32 %v7824, %v10152
  %v10665 = vadd.f32 %v7825, %v10153
  %v10666 = vadd.f32 %v7826, %v10154
  %v10667 = vadd.f32 %v7827, %v10155
  %v10668 = vadd.f32 %v7828, %v10156
  %v10669 = vadd.f32 %v7829, %v10157
  %v10670 = vadd.f32 %v7830, %v10158
  %v10671 = vadd.f32 %v7831, %v10159
  %v10672 = vadd.f32 %v7832, %v10160
  %v10673 = vadd.f32 %v7833, %v10161
  %v10674 = vadd.f32 %v7834, %v10162
  %v10675 = vadd.f32 %v7835, %v10163
  %v10676 = vadd.f32 %v7836, %v10164
  %v10677 = vadd.f32 %v7837, %v10165
  %v10678 = vadd.f32 %v7838, %v10166
  %v10679 = vadd.f32 %v7839, %v10167
  %v10680 = vadd.f32 %v7840, %v10168
  %v10681 = vadd.f32 %v7841, %v10169
  %v10682 = vadd.f32 %v7842, %v10170
  %v10683 = vadd.f32 %v7843, %v10171
  %v10684 = vadd.f32 %v7844, %v10172
  %v10685 = vadd.f32 %v7845, %v10173
  %v10686 = vadd.f32 %v7846, %v10174
  %v10687 = vadd.f32 %v7847, %v10175
  %v10688 = vadd.f32 %v7848, %v10176
  %v10689 = vadd.f32 %v7849, %v10177
  %v10690 = vadd.f32 %v7850, %v10178
  %v10691 = vadd.f32 %v7851, %v10179
  %v10692 = vadd.f32 %v7852, %v10180
  %v10693 = vadd.f32 %v7853, %v10181
  %v10694 = vadd.f32 %v7854, %v10182
  %v10695 = vadd.f32 %v7855, %v10183
  %v10696 = vadd.f32 %v7856, %v10184
  %v10697 = vadd.f32 %v7857, %v10185
  %v10698 = vadd.f32 %v7858, %v10186
  %v10699 = vadd.f32 %v7859, %v10187
  %v10700 = vadd.f32 %v7860, %v10188
  %v10701 = vadd.f32 %v7861, %v10189
  %v10702 = vadd.f32 %v7862, %v10190
  %v10703 = vadd.f32 %v7863, %v10191
  %v10704 = vadd.f32 %v7864, %v10192
  %v10705 = vadd.f32 %v7865, %v10193
  %v10706 = vadd.f32 %v7866, %v10194
  %v10707 = vadd.f32 %v7867, %v10195
  %v10708 = vadd.f32 %v7868, %v10196
  %v10709 = vadd.f32 %v7869, %v10197
  %v10710 = vadd.f32 %v7870, %v10198
  %v10711 = vadd.f32 %v7871, %v10199
  %v10712 = vadd.f32 %v7872, %v10200
  %v10713 = vadd.f32 %v7873, %v10201
  %v10714 = vadd.f32 %v7874, %v10202
  %v10715 = vadd.f32 %v7875, %v10203
  %v10716 = vadd.f32 %v7876, %v10204
  %v10717 = vadd.f32 %v7877, %v10205
  %v10718 = vadd.f32 %v7878, %v10206
  %v10719 = vadd.f32 %v7879, %v10207
  %v10720 = vadd.f32 %v7880, %v10208
  %v10721 = vadd.f32 %v7881, %v10209
  %v10722 = vadd.f32 %v7882, %v10210
  %v10723 = vadd.f32 %v7883, %v10211
  %v10724 = vadd.f32 %v7884, %v10212
  %v10725 = vadd.f32 %v7885, %v10213
  %v10726 = vadd.f32 %v7886, %v10214
  %v10727 = vadd.f32 %v7887, %v10215
  %v10728 = vadd.f32 %v7888, %v10216
  %v10729 = vadd.f32 %v7889, %v10217
  %v10730 = vadd.f32 %v7890, %v10218
  %v10731 = vadd.f32 %v7891, %v10219
  %v10732 = vadd.f32 %v7892, %v10220
  %v10733 = vadd.f32 %v7893, %v10221
  %v10734 = vadd.f32 %v7894, %v10222
  %v10735 = vadd.f32 %v7895, %v10223
  %v10736 = vadd.f32 %v7896, %v10224
  %v10737 = vadd.f32 %v7897, %v10225
  %v10738 = vadd.f32 %v7898, %v10226
  %v10739 = vadd.f32 %v7899, %v10227
  %v10740 = vadd.f32 %v7900, %v10228
  %v10741 = vadd.f32 %v7901, %v10229
  %v10742 = vadd.f32 %v7902, %v10230
  %v10743 = vadd.f32 %v7903, %v10231
  %v10744 = vadd.f32 %v7904, %v10232
  %v10745 = vadd.f32 %v7905, %v10233
  %v10746 = vadd.f32 %v7906, %v10234
  %v10747 = vadd.f32 %v7907, %v10235
  %v10748 = vadd.f32 %v7908, %v10236
  %v10749 = vadd.f32 %v7909, %v10237
  %v10750 = vadd.f32 %v7910, %v10238
  %v10751 = vadd.f32 %v7911, %v10239
  %v10752 = vadd.f32 %v7912, %v10240
  %v10753 = vadd.f32 %v7913, %v10241
  %v10754 = vadd.f32 %v7914, %v10242
  %v10755 = vadd.f32 %v7915, %v10243
  %v10756 = vadd.f32 %v7916, %v10244
  %v10757 = vadd.f32 %v7917, %v10245
  %v10758 = vadd.f32 %v7918, %v10246
  %v10759 = vadd.f32 %v7919, %v10247
  %v10760 = vadd.f32 %v7920, %v10248
  %v10761 = vadd.f32 %v7921, %v10249
  %v10762 = vadd.f32 %v7922, %v10250
  %v10763 = vadd.f32 %v7923, %v10251
  %v10764 = vadd.f32 %v7924, %v10252
  %v10765 = vadd.f32 %v7925, %v10253
  %v10766 = vadd.f32 %v7926, %v10254
  %v10767 = vadd.f32 %v7927, %v10255
  %v10768 = vadd.f32 %v7928, %v10256
  %v10769 = vadd.f32 %v7929, %v10257
  %v10770 = vadd.f32 %v7930, %v10258
  %v10771 = vadd.f32 %v7931, %v10259
  %v10772 = vadd.f32 %v7932, %v10260
  %v10773 = vadd.f32 %v7933, %v10261
  %v10774 = vadd.f32 %v7934, %v10262
  %v10775 = vadd.f32 %v7935, %v10263
  %v10776 = vadd.f32 %v7936, %v10264
  %v10777 = vadd.f32 %v7937, %v10265
  %v10778 = vadd.f32 %v7938, %v10266
  %v10779 = vadd.f32 %v7939, %v10267
  %v10780 = vadd.f32 %v7940, %v10268
  %v10781 = vadd.f32 %v7941, %v10269
  %v10782 = vadd.f32 %v7942, %v10270
  %v10783 = vadd.f32 %v7943, %v10271
  %v10784 = vadd.f32 %v7944, %v10272
  %v10785 = vadd.f32 %v7945, %v10273
  %v10786 = vadd.f32 %v7946, %v10274
  %v10787 = vadd.f32 %v7947, %v10275
  %v10788 = vadd.f32 %v7948, %v10276
  %v10789 = vadd.f32 %v7949, %v10277
  %v10790 = vadd.f32 %v7950, %v10278
  %v10791 = vadd.f32 %v7951, %v10279
  %v10792 = vadd.f32 %v7952, %v10280
  %v10793 = vadd.f32 %v7953, %v10281
  %v10794 = vadd.f32 %v7954, %v10282
  %v10795 = vadd.f32 %v7955, %v10283
  %v10796 = vadd.f32 %v7956, %v10284
  %v10797 = vadd.f32 %v7957, %v10285
  %v10798 = vadd.f32 %v7958, %v10286
  %v10799 = vadd.f32 %v7959, %v10287
  %v10800 = vadd.f32 %v7960, %v10288
  %v10801 = vadd.f32 %v7961, %v10289
  %v10802 = vadd.f32 %v7962, %v10290
  %v10803 = vadd.f32 %v7963, %v10291
  %v10804 = vadd.f32 %v7964, %v10292
  %v10805 = vadd.f32 %v7965, %v10293
  %v10806 = vadd.f32 %v7966, %v10294
  %v10807 = vadd.f32 %v7967, %v10295
  %v10808 = vadd.f32 %v7968, %v10296
  %v10809 = vadd.f32 %v7969, %v10297
  %v10810 = vadd.f32 %v7970, %v10298
  %v10811 = vadd.f32 %v7971, %v10299
  %v10812 = vadd.f32 %v7972, %v10300
  %v10813 = vadd.f32 %v7973, %v10301
  %v10814 = vadd.f32 %v7974, %v10302
  %v10815 = vadd.f32 %v7975, %v10303
  %v10816 = vadd.f32 %v7976, %v10304
  %v10817 = vadd.f32 %v7977, %v10305
  %v10818 = vadd.f32 %v7978, %v10306
  %v10819 = vadd.f32 %v7979, %v10307
  %v10820 = vadd.f32 %v7980, %v10308
  %v10821 = vadd.f32 %v7981, %v10309
  %v10822 = vadd.f32 %v7982, %v10310
  %v10823 = vadd.f32 %v7983, %v10311
  %v10824 = vadd.f32 %v7984, %v10312
  %v10825 = vadd.f32 %v7985, %v10313
  %v10826 = vadd.f32 %v7986, %v10314
  %v10827 = vadd.f32 %v7987, %v10315
  %v10828 = vadd.f32 %v7988, %v10316
  %v10829 = vadd.f32 %v7989, %v10317
  %v10830 = vadd.f32 %v7990, %v10318
  %v10831 = vadd.f32 %v7991, %v10319
  %v10832 = vadd.f32 %v7992, %v10320
  %v10833 = vadd.f32 %v7993, %v10321
  %v10834 = vadd.f32 %v7994, %v10322
  %v10835 = vadd.f32 %v7995, %v10323
  %v10836 = vadd.f32 %v7996, %v10324
  %v10837 = vadd.f32 %v7997, %v10325
  %v10838 = vadd.f32 %v7998, %v10326
  %v10839 = vadd.f32 %v7999, %v10327
  %v10840 = vadd.f32 %v8000, %v10328
  %v10841 = vadd.f32 %v8001, %v10329
  %v10842 = vadd.f32 %v8002, %v10330
  %v10843 = vadd.f32 %v8003, %v10331
  %v10844 = vadd.f32 %v8004, %v10332
  %v10845 = vadd.f32 %v8005, %v10333
  %v10846 = vadd.f32 %v8006, %v10334
  %v10847 = vadd.f32 %v8007, %v10335
  %v10848 = vadd.f32 %v8008, %v10336
  %v10849 = vadd.f32 %v8009, %v10337
  %v10850 = vadd.f32 %v8010, %v10338
  %v10851 = vadd.f32 %v8011, %v10339
  %v10852 = vadd.f32 %v8012, %v10340
  %v10853 = vadd.f32 %v8013, %v10341
  %v10854 = vadd.f32 %v8014, %v10342
  %v10855 = vadd.f32 %v8015, %v10343
  %v10856 = vadd.f32 %v8016, %v10344
  %v10857 = vadd.f32 %v8017, %v10345
  %v10858 = vadd.f32 %v8018, %v10346
  %v10859 = vadd.f32 %v8019, %v10347
  %v10860 = vadd.f32 %v8020, %v10348
  %v10861 = vadd.f32 %v8021, %v10349
  %v10862 = vadd.f32 %v8022, %v10350
  %v10863 = vadd.f32 %v8023, %v10351
  %v10864 = vadd.f32 %v8024, %v10352
  %v10865 = vadd.f32 %v8025, %v10353
  %v10866 = vadd.f32 %v8026, %v10354
  %v10867 = vadd.f32 %v8027, %v10355
  %v10868 = vadd.f32 %v8028, %v10356
  %v10869 = vadd.f32 %v8029, %v10357
  %v10870 = vadd.f32 %v8030, %v10358
  %v10871 = vadd.f32 %v8031, %v10359
  %v10872 = vadd.f32 %v8032, %v10360
  %v10873 = vadd.f32 %v8033, %v10361
  %v10874 = vadd.f32 %v8034, %v10362
  %v10875 = vadd.f32 %v8035, %v10363
  %v10876 = vadd.f32 %v8036, %v10364
  %v10877 = vadd.f32 %v8037, %v10365
  %v10878 = vadd.f32 %v8038, %v10366
  %v10879 = vadd.f32 %v8039, %v10367
  %v10880 = vadd.f32 %v8040, %v10368
  %v10881 = vadd.f32 %v8041, %v10369
  %v10882 = vadd.f32 %v8042, %v10370
  %v10883 = vadd.f32 %v8043, %v10371
  %v10884 = vadd.f32 %v8044, %v10372
  %v10885 = vadd.f32 %v8045, %v10373
  %v10886 = vadd.f32 %v8046, %v10374
  %v10887 = vadd.f32 %v8047, %v10375
  %v10888 = vadd.f32 %v8048, %v10376
  %v10889 = vadd.f32 %v8049, %v10377
  %v10890 = vadd.f32 %v8050, %v10378
  %v10891 = vadd.f32 %v8051, %v10379
  %v10892 = vadd.f32 %v8052, %v10380
  %v10893 = vadd.f32 %v8053, %v10381
  %v10894 = vadd.f32 %v8054, %v10382
  %v10895 = vadd.f32 %v8055, %v10383
  %v10896 = vadd.f32 %v8056, %v10384
  %v10897 = vadd.f32 %v8057, %v10385
  %v10898 = vadd.f32 %v8058, %v10386
  %v10899 = vadd.f32 %v8059, %v10387
  %v10900 = vadd.f32 %v8060, %v10388
  %v10901 = vadd.f32 %v8061, %v10389
  %v10902 = vadd.f32 %v8062, %v10390
  %v10903 = vadd.f32 %v8063, %v10391
  %v10904 = vadd.f32 %v8064, %v10392
  %v10905 = vld [vmem:[%s2] sm:$0xff]
  %v10906 = vld [vmem:[%s2 + $0x8] sm:$0xff]
  %v10907 = vld [vmem:[%s2 + $0x10] sm:$0xff]
  %v10908 = vld [vmem:[%s2 + $0x18] sm:$0xff]
  %v10909 = vld [vmem:[%s2 + $0x20] sm:$0xff]
  %v10910 = vld [vmem:[%s2 + $0x28] sm:$0xff]
  %v10911 = vld [vmem:[%s2 + $0x30] sm:$0xff]
  %v10912 = vld [vmem:[%s2 + $0x38] sm:$0xff]
  %v10913 = vld [vmem:[%s2 + $0x40] sm:$0xff]
  %v10914 = vld [vmem:[%s2 + $0x48] sm:$0xff]
  %v10915 = vld [vmem:[%s2 + $0x50] sm:$0xff]
  %v10916 = vld [vmem:[%s2 + $0x58] sm:$0xff]
  %v10917 = vld [vmem:[%s2 + $0x60] sm:$0xff]
  %v10918 = vld [vmem:[%s2 + $0x68] sm:$0xff]
  %v10919 = vld [vmem:[%s2 + $0x70] sm:$0xff]
  %v10920 = vld [vmem:[%s2 + $0x78] sm:$0xff]
  %v10921 = vld [vmem:[%s2 + $0x80] sm:$0xff]
  %v10922 = vld [vmem:[%s2 + $0x88] sm:$0xff]
  %v10923 = vld [vmem:[%s2 + $0x90] sm:$0xff]
  %v10924 = vld [vmem:[%s2 + $0x98] sm:$0xff]
  %v10925 = vld [vmem:[%s2 + $0xa0] sm:$0xff]
  %v10926 = vld [vmem:[%s2 + $0xa8] sm:$0xff]
  %v10927 = vld [vmem:[%s2 + $0xb0] sm:$0xff]
  %v10928 = vld [vmem:[%s2 + $0xb8] sm:$0xff]
  %v10929 = vld [vmem:[%s2 + $0xc0] sm:$0xff]
  %v10930 = vld [vmem:[%s2 + $0xc8] sm:$0xff]
  %v10931 = vld [vmem:[%s2 + $0xd0] sm:$0xff]
  %v10932 = vld [vmem:[%s2 + $0xd8] sm:$0xff]
  %v10933 = vld [vmem:[%s2 + $0xe0] sm:$0xff]
  %v10934 = vld [vmem:[%s2 + $0xe8] sm:$0xff]
  %v10935 = vld [vmem:[%s2 + $0xf0] sm:$0xff]
  %v10936 = vld [vmem:[%s2 + $0xf8] sm:$0xff]
  %v10937 = vld [vmem:[%s2 + $0x100] sm:$0xff]
  %v10938 = vld [vmem:[%s2 + $0x108] sm:$0xff]
  %v10939 = vld [vmem:[%s2 + $0x110] sm:$0xff]
  %v10940 = vld [vmem:[%s2 + $0x118] sm:$0xff]
  %v10941 = vld [vmem:[%s2 + $0x120] sm:$0xff]
  %v10942 = vld [vmem:[%s2 + $0x128] sm:$0xff]
  %v10943 = vld [vmem:[%s2 + $0x130] sm:$0xff]
  %v10944 = vld [vmem:[%s2 + $0x138] sm:$0xff]
  %v10945 = vld [vmem:[%s2 + $0x140] sm:$0xff]
  %v10946 = vld [vmem:[%s2 + $0x148] sm:$0xff]
  %v10947 = vld [vmem:[%s2 + $0x150] sm:$0xff]
  %v10948 = vld [vmem:[%s2 + $0x158] sm:$0xff]
  %v10949 = vld [vmem:[%s2 + $0x160] sm:$0xff]
  %v10950 = vld [vmem:[%s2 + $0x168] sm:$0xff]
  %v10951 = vld [vmem:[%s2 + $0x170] sm:$0xff]
  %v10952 = vld [vmem:[%s2 + $0x178] sm:$0xff]
  %v10953 = vld [vmem:[%s2 + $0x180] sm:$0xff]
  %v10954 = vld [vmem:[%s2 + $0x188] sm:$0xff]
  %v10955 = vld [vmem:[%s2 + $0x190] sm:$0xff]
  %v10956 = vld [vmem:[%s2 + $0x198] sm:$0xff]
  %v10957 = vld [vmem:[%s2 + $0x1a0] sm:$0xff]
  %v10958 = vld [vmem:[%s2 + $0x1a8] sm:$0xff]
  %v10959 = vld [vmem:[%s2 + $0x1b0] sm:$0xff]
  %v10960 = vld [vmem:[%s2 + $0x1b8] sm:$0xff]
  %v10961 = vld [vmem:[%s2 + $0x1c0] sm:$0xff]
  %v10962 = vld [vmem:[%s2 + $0x1c8] sm:$0xff]
  %v10963 = vld [vmem:[%s2 + $0x1d0] sm:$0xff]
  %v10964 = vld [vmem:[%s2 + $0x1d8] sm:$0xff]
  %v10965 = vld [vmem:[%s2 + $0x1e0] sm:$0xff]
  %v10966 = vld [vmem:[%s2 + $0x1e8] sm:$0xff]
  %v10967 = vld [vmem:[%s2 + $0x1f0] sm:$0xff]
  %v10968 = vld [vmem:[%s2 + $0x1f8] sm:$0xff]
  %v10969 = vld [vmem:[%s2 + $0x200] sm:$0xff]
  %v10970 = vld [vmem:[%s2 + $0x208] sm:$0xff]
  %v10971 = vld [vmem:[%s2 + $0x210] sm:$0xff]
  %v10972 = vld [vmem:[%s2 + $0x218] sm:$0xff]
  %v10973 = vld [vmem:[%s2 + $0x220] sm:$0xff]
  %v10974 = vld [vmem:[%s2 + $0x228] sm:$0xff]
  %v10975 = vld [vmem:[%s2 + $0x230] sm:$0xff]
  %v10976 = vld [vmem:[%s2 + $0x238] sm:$0xff]
  %v10977 = vld [vmem:[%s2 + $0x240] sm:$0xff]
  %v10978 = vld [vmem:[%s2 + $0x248] sm:$0xff]
  %v10979 = vld [vmem:[%s2 + $0x250] sm:$0xff]
  %v10980 = vld [vmem:[%s2 + $0x258] sm:$0xff]
  %v10981 = vld [vmem:[%s2 + $0x260] sm:$0xff]
  %v10982 = vld [vmem:[%s2 + $0x268] sm:$0xff]
  %v10983 = vld [vmem:[%s2 + $0x270] sm:$0xff]
  %v10984 = vld [vmem:[%s2 + $0x278] sm:$0xff]
  %v10985 = vld [vmem:[%s2 + $0x280] sm:$0xff]
  %v10986 = vld [vmem:[%s2 + $0x288] sm:$0xff]
  %v10987 = vld [vmem:[%s2 + $0x290] sm:$0xff]
  %v10988 = vld [vmem:[%s2 + $0x298] sm:$0xff]
  %v10989 = vld [vmem:[%s2 + $0x2a0] sm:$0xff]
  %v10990 = vld [vmem:[%s2 + $0x2a8] sm:$0xff]
  %v10991 = vld [vmem:[%s2 + $0x2b0] sm:$0xff]
  %v10992 = vld [vmem:[%s2 + $0x2b8] sm:$0xff]
  %v10993 = vld [vmem:[%s2 + $0x2c0] sm:$0xff]
  %v10994 = vld [vmem:[%s2 + $0x2c8] sm:$0xff]
  %v10995 = vld [vmem:[%s2 + $0x2d0] sm:$0xff]
  %v10996 = vld [vmem:[%s2 + $0x2d8] sm:$0xff]
  %v10997 = vld [vmem:[%s2 + $0x2e0] sm:$0xff]
  %v10998 = vld [vmem:[%s2 + $0x2e8] sm:$0xff]
  %v10999 = vld [vmem:[%s2 + $0x2f0] sm:$0xff]
  %v11000 = vld [vmem:[%s2 + $0x2f8] sm:$0xff]
  %v11001 = vld [vmem:[%s2 + $0x300] sm:$0xff]
  %v11002 = vld [vmem:[%s2 + $0x308] sm:$0xff]
  %v11003 = vld [vmem:[%s2 + $0x310] sm:$0xff]
  %v11004 = vld [vmem:[%s2 + $0x318] sm:$0xff]
  %v11005 = vld [vmem:[%s2 + $0x320] sm:$0xff]
  %v11006 = vld [vmem:[%s2 + $0x328] sm:$0xff]
  %v11007 = vld [vmem:[%s2 + $0x330] sm:$0xff]
  %v11008 = vld [vmem:[%s2 + $0x338] sm:$0xff]
  %v11009 = vld [vmem:[%s2 + $0x340] sm:$0xff]
  %v11010 = vld [vmem:[%s2 + $0x348] sm:$0xff]
  %v11011 = vld [vmem:[%s2 + $0x350] sm:$0xff]
  %v11012 = vld [vmem:[%s2 + $0x358] sm:$0xff]
  %v11013 = vld [vmem:[%s2 + $0x360] sm:$0xff]
  %v11014 = vld [vmem:[%s2 + $0x368] sm:$0xff]
  %v11015 = vld [vmem:[%s2 + $0x370] sm:$0xff]
  %v11016 = vld [vmem:[%s2 + $0x378] sm:$0xff]
  %v11017 = vld [vmem:[%s2 + $0x380] sm:$0xff]
  %v11018 = vld [vmem:[%s2 + $0x388] sm:$0xff]
  %v11019 = vld [vmem:[%s2 + $0x390] sm:$0xff]
  %v11020 = vld [vmem:[%s2 + $0x398] sm:$0xff]
  %v11021 = vld [vmem:[%s2 + $0x3a0] sm:$0xff]
  %v11022 = vld [vmem:[%s2 + $0x3a8] sm:$0xff]
  %v11023 = vld [vmem:[%s2 + $0x3b0] sm:$0xff]
  %v11024 = vld [vmem:[%s2 + $0x3b8] sm:$0xff]
  %v11025 = vld [vmem:[%s2 + $0x3c0] sm:$0xff]
  %v11026 = vld [vmem:[%s2 + $0x3c8] sm:$0xff]
  %v11027 = vld [vmem:[%s2 + $0x3d0] sm:$0xff]
  %v11028 = vld [vmem:[%s2 + $0x3d8] sm:$0xff]
  %v11029 = vld [vmem:[%s2 + $0x3e0] sm:$0xff]
  %v11030 = vld [vmem:[%s2 + $0x3e8] sm:$0xff]
  %v11031 = vld [vmem:[%s2 + $0x3f0] sm:$0xff]
  %v11032 = vld [vmem:[%s2 + $0x3f8] sm:$0xff]
  %v11033 = vld [vmem:[%s2 + $0x400] sm:$0xff]
  %v11034 = vld [vmem:[%s2 + $0x408] sm:$0xff]
  %v11035 = vld [vmem:[%s2 + $0x410] sm:$0xff]
  %v11036 = vld [vmem:[%s2 + $0x418] sm:$0xff]
  %v11037 = vld [vmem:[%s2 + $0x420] sm:$0xff]
  %v11038 = vld [vmem:[%s2 + $0x428] sm:$0xff]
  %v11039 = vld [vmem:[%s2 + $0x430] sm:$0xff]
  %v11040 = vld [vmem:[%s2 + $0x438] sm:$0xff]
  %v11041 = vld [vmem:[%s2 + $0x440] sm:$0xff]
  %v11042 = vld [vmem:[%s2 + $0x448] sm:$0xff]
  %v11043 = vld [vmem:[%s2 + $0x450] sm:$0xff]
  %v11044 = vld [vmem:[%s2 + $0x458] sm:$0xff]
  %v11045 = vld [vmem:[%s2 + $0x460] sm:$0xff]
  %v11046 = vld [vmem:[%s2 + $0x468] sm:$0xff]
  %v11047 = vld [vmem:[%s2 + $0x470] sm:$0xff]
  %v11048 = vld [vmem:[%s2 + $0x478] sm:$0xff]
  %v11049 = vld [vmem:[%s2 + $0x480] sm:$0xff]
  %v11050 = vld [vmem:[%s2 + $0x488] sm:$0xff]
  %v11051 = vld [vmem:[%s2 + $0x490] sm:$0xff]
  %v11052 = vld [vmem:[%s2 + $0x498] sm:$0xff]
  %v11053 = vld [vmem:[%s2 + $0x4a0] sm:$0xff]
  %v11054 = vld [vmem:[%s2 + $0x4a8] sm:$0xff]
  %v11055 = vld [vmem:[%s2 + $0x4b0] sm:$0xff]
  %v11056 = vld [vmem:[%s2 + $0x4b8] sm:$0xff]
  %v11057 = vld [vmem:[%s2 + $0x4c0] sm:$0xff]
  %v11058 = vld [vmem:[%s2 + $0x4c8] sm:$0xff]
  %v11059 = vld [vmem:[%s2 + $0x4d0] sm:$0xff]
  %v11060 = vld [vmem:[%s2 + $0x4d8] sm:$0xff]
  %v11061 = vld [vmem:[%s2 + $0x4e0] sm:$0xff]
  %v11062 = vld [vmem:[%s2 + $0x4e8] sm:$0xff]
  %v11063 = vld [vmem:[%s2 + $0x4f0] sm:$0xff]
  %v11064 = vld [vmem:[%s2 + $0x4f8] sm:$0xff]
  %v11065 = vld [vmem:[%s2 + $0x500] sm:$0xff]
  %v11066 = vld [vmem:[%s2 + $0x508] sm:$0xff]
  %v11067 = vld [vmem:[%s2 + $0x510] sm:$0xff]
  %v11068 = vld [vmem:[%s2 + $0x518] sm:$0xff]
  %v11069 = vld [vmem:[%s2 + $0x520] sm:$0xff]
  %v11070 = vld [vmem:[%s2 + $0x528] sm:$0xff]
  %v11071 = vld [vmem:[%s2 + $0x530] sm:$0xff]
  %v11072 = vld [vmem:[%s2 + $0x538] sm:$0xff]
  %v11073 = vld [vmem:[%s2 + $0x540] sm:$0xff]
  %v11074 = vld [vmem:[%s2 + $0x548] sm:$0xff]
  %v11075 = vld [vmem:[%s2 + $0x550] sm:$0xff]
  %v11076 = vld [vmem:[%s2 + $0x558] sm:$0xff]
  %v11077 = vld [vmem:[%s2 + $0x560] sm:$0xff]
  %v11078 = vld [vmem:[%s2 + $0x568] sm:$0xff]
  %v11079 = vld [vmem:[%s2 + $0x570] sm:$0xff]
  %v11080 = vld [vmem:[%s2 + $0x578] sm:$0xff]
  %v11081 = vld [vmem:[%s2 + $0x580] sm:$0xff]
  %v11082 = vld [vmem:[%s2 + $0x588] sm:$0xff]
  %v11083 = vld [vmem:[%s2 + $0x590] sm:$0xff]
  %v11084 = vld [vmem:[%s2 + $0x598] sm:$0xff]
  %v11085 = vld [vmem:[%s2 + $0x5a0] sm:$0xff]
  %v11086 = vld [vmem:[%s2 + $0x5a8] sm:$0xff]
  %v11087 = vld [vmem:[%s2 + $0x5b0] sm:$0xff]
  %v11088 = vld [vmem:[%s2 + $0x5b8] sm:$0xff]
  %v11089 = vld [vmem:[%s2 + $0x5c0] sm:$0xff]
  %v11090 = vld [vmem:[%s2 + $0x5c8] sm:$0xff]
  %v11091 = vld [vmem:[%s2 + $0x5d0] sm:$0xff]
  %v11092 = vld [vmem:[%s2 + $0x5d8] sm:$0xff]
  %v11093 = vld [vmem:[%s2 + $0x5e0] sm:$0xff]
  %v11094 = vld [vmem:[%s2 + $0x5e8] sm:$0xff]
  %v11095 = vld [vmem:[%s2 + $0x5f0] sm:$0xff]
  %v11096 = vld [vmem:[%s2 + $0x5f8] sm:$0xff]
  %v11097 = vld [vmem:[%s2 + $0x600] sm:$0xff]
  %v11098 = vld [vmem:[%s2 + $0x608] sm:$0xff]
  %v11099 = vld [vmem:[%s2 + $0x610] sm:$0xff]
  %v11100 = vld [vmem:[%s2 + $0x618] sm:$0xff]
  %v11101 = vld [vmem:[%s2 + $0x620] sm:$0xff]
  %v11102 = vld [vmem:[%s2 + $0x628] sm:$0xff]
  %v11103 = vld [vmem:[%s2 + $0x630] sm:$0xff]
  %v11104 = vld [vmem:[%s2 + $0x638] sm:$0xff]
  %v11105 = vld [vmem:[%s2 + $0x640] sm:$0xff]
  %v11106 = vld [vmem:[%s2 + $0x648] sm:$0xff]
  %v11107 = vld [vmem:[%s2 + $0x650] sm:$0xff]
  %v11108 = vld [vmem:[%s2 + $0x658] sm:$0xff]
  %v11109 = vld [vmem:[%s2 + $0x660] sm:$0xff]
  %v11110 = vld [vmem:[%s2 + $0x668] sm:$0xff]
  %v11111 = vld [vmem:[%s2 + $0x670] sm:$0xff]
  %v11112 = vld [vmem:[%s2 + $0x678] sm:$0xff]
  %v11113 = vld [vmem:[%s2 + $0x680] sm:$0xff]
  %v11114 = vld [vmem:[%s2 + $0x688] sm:$0xff]
  %v11115 = vld [vmem:[%s2 + $0x690] sm:$0xff]
  %v11116 = vld [vmem:[%s2 + $0x698] sm:$0xff]
  %v11117 = vld [vmem:[%s2 + $0x6a0] sm:$0xff]
  %v11118 = vld [vmem:[%s2 + $0x6a8] sm:$0xff]
  %v11119 = vld [vmem:[%s2 + $0x6b0] sm:$0xff]
  %v11120 = vld [vmem:[%s2 + $0x6b8] sm:$0xff]
  %v11121 = vld [vmem:[%s2 + $0x6c0] sm:$0xff]
  %v11122 = vld [vmem:[%s2 + $0x6c8] sm:$0xff]
  %v11123 = vld [vmem:[%s2 + $0x6d0] sm:$0xff]
  %v11124 = vld [vmem:[%s2 + $0x6d8] sm:$0xff]
  %v11125 = vld [vmem:[%s2 + $0x6e0] sm:$0xff]
  %v11126 = vld [vmem:[%s2 + $0x6e8] sm:$0xff]
  %v11127 = vld [vmem:[%s2 + $0x6f0] sm:$0xff]
  %v11128 = vld [vmem:[%s2 + $0x6f8] sm:$0xff]
  %v11129 = vld [vmem:[%s2 + $0x700] sm:$0xff]
  %v11130 = vld [vmem:[%s2 + $0x708] sm:$0xff]
  %v11131 = vld [vmem:[%s2 + $0x710] sm:$0xff]
  %v11132 = vld [vmem:[%s2 + $0x718] sm:$0xff]
  %v11133 = vld [vmem:[%s2 + $0x720] sm:$0xff]
  %v11134 = vld [vmem:[%s2 + $0x728] sm:$0xff]
  %v11135 = vld [vmem:[%s2 + $0x730] sm:$0xff]
  %v11136 = vld [vmem:[%s2 + $0x738] sm:$0xff]
  %v11137 = vld [vmem:[%s2 + $0x740] sm:$0xff]
  %v11138 = vld [vmem:[%s2 + $0x748] sm:$0xff]
  %v11139 = vld [vmem:[%s2 + $0x750] sm:$0xff]
  %v11140 = vld [vmem:[%s2 + $0x758] sm:$0xff]
  %v11141 = vld [vmem:[%s2 + $0x760] sm:$0xff]
  %v11142 = vld [vmem:[%s2 + $0x768] sm:$0xff]
  %v11143 = vld [vmem:[%s2 + $0x770] sm:$0xff]
  %v11144 = vld [vmem:[%s2 + $0x778] sm:$0xff]
  %v11145 = vld [vmem:[%s2 + $0x780] sm:$0xff]
  %v11146 = vld [vmem:[%s2 + $0x788] sm:$0xff]
  %v11147 = vld [vmem:[%s2 + $0x790] sm:$0xff]
  %v11148 = vld [vmem:[%s2 + $0x798] sm:$0xff]
  %v11149 = vld [vmem:[%s2 + $0x7a0] sm:$0xff]
  %v11150 = vld [vmem:[%s2 + $0x7a8] sm:$0xff]
  %v11151 = vld [vmem:[%s2 + $0x7b0] sm:$0xff]
  %v11152 = vld [vmem:[%s2 + $0x7b8] sm:$0xff]
  %v11153 = vld [vmem:[%s2 + $0x7c0] sm:$0xff]
  %v11154 = vld [vmem:[%s2 + $0x7c8] sm:$0xff]
  %v11155 = vld [vmem:[%s2 + $0x7d0] sm:$0xff]
  %v11156 = vld [vmem:[%s2 + $0x7d8] sm:$0xff]
  %v11157 = vld [vmem:[%s2 + $0x7e0] sm:$0xff]
  %v11158 = vld [vmem:[%s2 + $0x7e8] sm:$0xff]
  %v11159 = vld [vmem:[%s2 + $0x7f0] sm:$0xff]
  %v11160 = vld [vmem:[%s2 + $0x7f8] sm:$0xff]
  %v11161 = vld [vmem:[%s3] sm:$0x1]
  %v11163 = vperm.slane %v11161, 0
  %11677 = vset.pattern.permute.xlu0 0
  %11678 = vperm.xlu0 %11677, %v10393
  %v11679 = vpop.permute.xlu0 %11678
  %11680 = vset.pattern.permute.xlu0 0
  %11681 = vperm.xlu0 %11680, %v10394
  %v11682 = vpop.permute.xlu0 %11681
  %11683 = vset.pattern.permute.xlu0 0
  %11684 = vperm.xlu0 %11683, %v10395
  %v11685 = vpop.permute.xlu0 %11684
  %11686 = vset.pattern.permute.xlu0 0
  %11687 = vperm.xlu0 %11686, %v10396
  %v11688 = vpop.permute.xlu0 %11687
  %11689 = vset.pattern.permute.xlu0 0
  %11690 = vperm.xlu0 %11689, %v10397
  %v11691 = vpop.permute.xlu0 %11690
  %11692 = vset.pattern.permute.xlu0 0
  %11693 = vperm.xlu0 %11692, %v10398
  %v11694 = vpop.permute.xlu0 %11693
  %11695 = vset.pattern.permute.xlu0 0
  %11696 = vperm.xlu0 %11695, %v10399
  %v11697 = vpop.permute.xlu0 %11696
  %11698 = vset.pattern.permute.xlu0 0
  %11699 = vperm.xlu0 %11698, %v10400
  %v11700 = vpop.permute.xlu0 %11699
  %11701 = vset.pattern.permute.xlu0 0
  %11702 = vperm.xlu0 %11701, %v10401
  %v11703 = vpop.permute.xlu0 %11702
  %11704 = vset.pattern.permute.xlu0 0
  %11705 = vperm.xlu0 %11704, %v10402
  %v11706 = vpop.permute.xlu0 %11705
  %11707 = vset.pattern.permute.xlu0 0
  %11708 = vperm.xlu0 %11707, %v10403
  %v11709 = vpop.permute.xlu0 %11708
  %11710 = vset.pattern.permute.xlu0 0
  %11711 = vperm.xlu0 %11710, %v10404
  %v11712 = vpop.permute.xlu0 %11711
  %11713 = vset.pattern.permute.xlu0 0
  %11714 = vperm.xlu0 %11713, %v10405
  %v11715 = vpop.permute.xlu0 %11714
  %11716 = vset.pattern.permute.xlu0 0
  %11717 = vperm.xlu0 %11716, %v10406
  %v11718 = vpop.permute.xlu0 %11717
  %11719 = vset.pattern.permute.xlu0 0
  %11720 = vperm.xlu0 %11719, %v10407
  %v11721 = vpop.permute.xlu0 %11720
  %11722 = vset.pattern.permute.xlu0 0
  %11723 = vperm.xlu0 %11722, %v10408
  %v11724 = vpop.permute.xlu0 %11723
  %11725 = vset.pattern.permute.xlu0 0
  %11726 = vperm.xlu0 %11725, %v10409
  %v11727 = vpop.permute.xlu0 %11726
  %11728 = vset.pattern.permute.xlu0 0
  %11729 = vperm.xlu0 %11728, %v10410
  %v11730 = vpop.permute.xlu0 %11729
  %11731 = vset.pattern.permute.xlu0 0
  %11732 = vperm.xlu0 %11731, %v10411
  %v11733 = vpop.permute.xlu0 %11732
  %11734 = vset.pattern.permute.xlu0 0
  %11735 = vperm.xlu0 %11734, %v10412
  %v11736 = vpop.permute.xlu0 %11735
  %11737 = vset.pattern.permute.xlu0 0
  %11738 = vperm.xlu0 %11737, %v10413
  %v11739 = vpop.permute.xlu0 %11738
  %11740 = vset.pattern.permute.xlu0 0
  %11741 = vperm.xlu0 %11740, %v10414
  %v11742 = vpop.permute.xlu0 %11741
  %11743 = vset.pattern.permute.xlu0 0
  %11744 = vperm.xlu0 %11743, %v10415
  %v11745 = vpop.permute.xlu0 %11744
  %11746 = vset.pattern.permute.xlu0 0
  %11747 = vperm.xlu0 %11746, %v10416
  %v11748 = vpop.permute.xlu0 %11747
  %11749 = vset.pattern.permute.xlu0 0
  %11750 = vperm.xlu0 %11749, %v10417
  %v11751 = vpop.permute.xlu0 %11750
  %11752 = vset.pattern.permute.xlu0 0
  %11753 = vperm.xlu0 %11752, %v10418
  %v11754 = vpop.permute.xlu0 %11753
  %11755 = vset.pattern.permute.xlu0 0
  %11756 = vperm.xlu0 %11755, %v10419
  %v11757 = vpop.permute.xlu0 %11756
  %11758 = vset.pattern.permute.xlu0 0
  %11759 = vperm.xlu0 %11758, %v10420
  %v11760 = vpop.permute.xlu0 %11759
  %11761 = vset.pattern.permute.xlu0 0
  %11762 = vperm.xlu0 %11761, %v10421
  %v11763 = vpop.permute.xlu0 %11762
  %11764 = vset.pattern.permute.xlu0 0
  %11765 = vperm.xlu0 %11764, %v10422
  %v11766 = vpop.permute.xlu0 %11765
  %11767 = vset.pattern.permute.xlu0 0
  %11768 = vperm.xlu0 %11767, %v10423
  %v11769 = vpop.permute.xlu0 %11768
  %11770 = vset.pattern.permute.xlu0 0
  %11771 = vperm.xlu0 %11770, %v10424
  %v11772 = vpop.permute.xlu0 %11771
  %11773 = vset.pattern.permute.xlu0 0
  %11774 = vperm.xlu0 %11773, %v10425
  %v11775 = vpop.permute.xlu0 %11774
  %11776 = vset.pattern.permute.xlu0 0
  %11777 = vperm.xlu0 %11776, %v10426
  %v11778 = vpop.permute.xlu0 %11777
  %11779 = vset.pattern.permute.xlu0 0
  %11780 = vperm.xlu0 %11779, %v10427
  %v11781 = vpop.permute.xlu0 %11780
  %11782 = vset.pattern.permute.xlu0 0
  %11783 = vperm.xlu0 %11782, %v10428
  %v11784 = vpop.permute.xlu0 %11783
  %11785 = vset.pattern.permute.xlu0 0
  %11786 = vperm.xlu0 %11785, %v10429
  %v11787 = vpop.permute.xlu0 %11786
  %11788 = vset.pattern.permute.xlu0 0
  %11789 = vperm.xlu0 %11788, %v10430
  %v11790 = vpop.permute.xlu0 %11789
  %11791 = vset.pattern.permute.xlu0 0
  %11792 = vperm.xlu0 %11791, %v10431
  %v11793 = vpop.permute.xlu0 %11792
  %11794 = vset.pattern.permute.xlu0 0
  %11795 = vperm.xlu0 %11794, %v10432
  %v11796 = vpop.permute.xlu0 %11795
  %11797 = vset.pattern.permute.xlu0 0
  %11798 = vperm.xlu0 %11797, %v10433
  %v11799 = vpop.permute.xlu0 %11798
  %11800 = vset.pattern.permute.xlu0 0
  %11801 = vperm.xlu0 %11800, %v10434
  %v11802 = vpop.permute.xlu0 %11801
  %11803 = vset.pattern.permute.xlu0 0
  %11804 = vperm.xlu0 %11803, %v10435
  %v11805 = vpop.permute.xlu0 %11804
  %11806 = vset.pattern.permute.xlu0 0
  %11807 = vperm.xlu0 %11806, %v10436
  %v11808 = vpop.permute.xlu0 %11807
  %11809 = vset.pattern.permute.xlu0 0
  %11810 = vperm.xlu0 %11809, %v10437
  %v11811 = vpop.permute.xlu0 %11810
  %11812 = vset.pattern.permute.xlu0 0
  %11813 = vperm.xlu0 %11812, %v10438
  %v11814 = vpop.permute.xlu0 %11813
  %11815 = vset.pattern.permute.xlu0 0
  %11816 = vperm.xlu0 %11815, %v10439
  %v11817 = vpop.permute.xlu0 %11816
  %11818 = vset.pattern.permute.xlu0 0
  %11819 = vperm.xlu0 %11818, %v10440
  %v11820 = vpop.permute.xlu0 %11819
  %11821 = vset.pattern.permute.xlu0 0
  %11822 = vperm.xlu0 %11821, %v10441
  %v11823 = vpop.permute.xlu0 %11822
  %11824 = vset.pattern.permute.xlu0 0
  %11825 = vperm.xlu0 %11824, %v10442
  %v11826 = vpop.permute.xlu0 %11825
  %11827 = vset.pattern.permute.xlu0 0
  %11828 = vperm.xlu0 %11827, %v10443
  %v11829 = vpop.permute.xlu0 %11828
  %11830 = vset.pattern.permute.xlu0 0
  %11831 = vperm.xlu0 %11830, %v10444
  %v11832 = vpop.permute.xlu0 %11831
  %11833 = vset.pattern.permute.xlu0 0
  %11834 = vperm.xlu0 %11833, %v10445
  %v11835 = vpop.permute.xlu0 %11834
  %11836 = vset.pattern.permute.xlu0 0
  %11837 = vperm.xlu0 %11836, %v10446
  %v11838 = vpop.permute.xlu0 %11837
  %11839 = vset.pattern.permute.xlu0 0
  %11840 = vperm.xlu0 %11839, %v10447
  %v11841 = vpop.permute.xlu0 %11840
  %11842 = vset.pattern.permute.xlu0 0
  %11843 = vperm.xlu0 %11842, %v10448
  %v11844 = vpop.permute.xlu0 %11843
  %11845 = vset.pattern.permute.xlu0 0
  %11846 = vperm.xlu0 %11845, %v10449
  %v11847 = vpop.permute.xlu0 %11846
  %11848 = vset.pattern.permute.xlu0 0
  %11849 = vperm.xlu0 %11848, %v10450
  %v11850 = vpop.permute.xlu0 %11849
  %11851 = vset.pattern.permute.xlu0 0
  %11852 = vperm.xlu0 %11851, %v10451
  %v11853 = vpop.permute.xlu0 %11852
  %11854 = vset.pattern.permute.xlu0 0
  %11855 = vperm.xlu0 %11854, %v10452
  %v11856 = vpop.permute.xlu0 %11855
  %11857 = vset.pattern.permute.xlu0 0
  %11858 = vperm.xlu0 %11857, %v10453
  %v11859 = vpop.permute.xlu0 %11858
  %11860 = vset.pattern.permute.xlu0 0
  %11861 = vperm.xlu0 %11860, %v10454
  %v11862 = vpop.permute.xlu0 %11861
  %11863 = vset.pattern.permute.xlu0 0
  %11864 = vperm.xlu0 %11863, %v10455
  %v11865 = vpop.permute.xlu0 %11864
  %11866 = vset.pattern.permute.xlu0 0
  %11867 = vperm.xlu0 %11866, %v10456
  %v11868 = vpop.permute.xlu0 %11867
  %11869 = vset.pattern.permute.xlu0 0
  %11870 = vperm.xlu0 %11869, %v10457
  %v11871 = vpop.permute.xlu0 %11870
  %11872 = vset.pattern.permute.xlu0 0
  %11873 = vperm.xlu0 %11872, %v10458
  %v11874 = vpop.permute.xlu0 %11873
  %11875 = vset.pattern.permute.xlu0 0
  %11876 = vperm.xlu0 %11875, %v10459
  %v11877 = vpop.permute.xlu0 %11876
  %11878 = vset.pattern.permute.xlu0 0
  %11879 = vperm.xlu0 %11878, %v10460
  %v11880 = vpop.permute.xlu0 %11879
  %11881 = vset.pattern.permute.xlu0 0
  %11882 = vperm.xlu0 %11881, %v10461
  %v11883 = vpop.permute.xlu0 %11882
  %11884 = vset.pattern.permute.xlu0 0
  %11885 = vperm.xlu0 %11884, %v10462
  %v11886 = vpop.permute.xlu0 %11885
  %11887 = vset.pattern.permute.xlu0 0
  %11888 = vperm.xlu0 %11887, %v10463
  %v11889 = vpop.permute.xlu0 %11888
  %11890 = vset.pattern.permute.xlu0 0
  %11891 = vperm.xlu0 %11890, %v10464
  %v11892 = vpop.permute.xlu0 %11891
  %11893 = vset.pattern.permute.xlu0 0
  %11894 = vperm.xlu0 %11893, %v10465
  %v11895 = vpop.permute.xlu0 %11894
  %11896 = vset.pattern.permute.xlu0 0
  %11897 = vperm.xlu0 %11896, %v10466
  %v11898 = vpop.permute.xlu0 %11897
  %11899 = vset.pattern.permute.xlu0 0
  %11900 = vperm.xlu0 %11899, %v10467
  %v11901 = vpop.permute.xlu0 %11900
  %11902 = vset.pattern.permute.xlu0 0
  %11903 = vperm.xlu0 %11902, %v10468
  %v11904 = vpop.permute.xlu0 %11903
  %11905 = vset.pattern.permute.xlu0 0
  %11906 = vperm.xlu0 %11905, %v10469
  %v11907 = vpop.permute.xlu0 %11906
  %11908 = vset.pattern.permute.xlu0 0
  %11909 = vperm.xlu0 %11908, %v10470
  %v11910 = vpop.permute.xlu0 %11909
  %11911 = vset.pattern.permute.xlu0 0
  %11912 = vperm.xlu0 %11911, %v10471
  %v11913 = vpop.permute.xlu0 %11912
  %11914 = vset.pattern.permute.xlu0 0
  %11915 = vperm.xlu0 %11914, %v10472
  %v11916 = vpop.permute.xlu0 %11915
  %11917 = vset.pattern.permute.xlu0 0
  %11918 = vperm.xlu0 %11917, %v10473
  %v11919 = vpop.permute.xlu0 %11918
  %11920 = vset.pattern.permute.xlu0 0
  %11921 = vperm.xlu0 %11920, %v10474
  %v11922 = vpop.permute.xlu0 %11921
  %11923 = vset.pattern.permute.xlu0 0
  %11924 = vperm.xlu0 %11923, %v10475
  %v11925 = vpop.permute.xlu0 %11924
  %11926 = vset.pattern.permute.xlu0 0
  %11927 = vperm.xlu0 %11926, %v10476
  %v11928 = vpop.permute.xlu0 %11927
  %11929 = vset.pattern.permute.xlu0 0
  %11930 = vperm.xlu0 %11929, %v10477
  %v11931 = vpop.permute.xlu0 %11930
  %11932 = vset.pattern.permute.xlu0 0
  %11933 = vperm.xlu0 %11932, %v10478
  %v11934 = vpop.permute.xlu0 %11933
  %11935 = vset.pattern.permute.xlu0 0
  %11936 = vperm.xlu0 %11935, %v10479
  %v11937 = vpop.permute.xlu0 %11936
  %11938 = vset.pattern.permute.xlu0 0
  %11939 = vperm.xlu0 %11938, %v10480
  %v11940 = vpop.permute.xlu0 %11939
  %11941 = vset.pattern.permute.xlu0 0
  %11942 = vperm.xlu0 %11941, %v10481
  %v11943 = vpop.permute.xlu0 %11942
  %11944 = vset.pattern.permute.xlu0 0
  %11945 = vperm.xlu0 %11944, %v10482
  %v11946 = vpop.permute.xlu0 %11945
  %11947 = vset.pattern.permute.xlu0 0
  %11948 = vperm.xlu0 %11947, %v10483
  %v11949 = vpop.permute.xlu0 %11948
  %11950 = vset.pattern.permute.xlu0 0
  %11951 = vperm.xlu0 %11950, %v10484
  %v11952 = vpop.permute.xlu0 %11951
  %11953 = vset.pattern.permute.xlu0 0
  %11954 = vperm.xlu0 %11953, %v10485
  %v11955 = vpop.permute.xlu0 %11954
  %11956 = vset.pattern.permute.xlu0 0
  %11957 = vperm.xlu0 %11956, %v10486
  %v11958 = vpop.permute.xlu0 %11957
  %11959 = vset.pattern.permute.xlu0 0
  %11960 = vperm.xlu0 %11959, %v10487
  %v11961 = vpop.permute.xlu0 %11960
  %11962 = vset.pattern.permute.xlu0 0
  %11963 = vperm.xlu0 %11962, %v10488
  %v11964 = vpop.permute.xlu0 %11963
  %11965 = vset.pattern.permute.xlu0 0
  %11966 = vperm.xlu0 %11965, %v10489
  %v11967 = vpop.permute.xlu0 %11966
  %11968 = vset.pattern.permute.xlu0 0
  %11969 = vperm.xlu0 %11968, %v10490
  %v11970 = vpop.permute.xlu0 %11969
  %11971 = vset.pattern.permute.xlu0 0
  %11972 = vperm.xlu0 %11971, %v10491
  %v11973 = vpop.permute.xlu0 %11972
  %11974 = vset.pattern.permute.xlu0 0
  %11975 = vperm.xlu0 %11974, %v10492
  %v11976 = vpop.permute.xlu0 %11975
  %11977 = vset.pattern.permute.xlu0 0
  %11978 = vperm.xlu0 %11977, %v10493
  %v11979 = vpop.permute.xlu0 %11978
  %11980 = vset.pattern.permute.xlu0 0
  %11981 = vperm.xlu0 %11980, %v10494
  %v11982 = vpop.permute.xlu0 %11981
  %11983 = vset.pattern.permute.xlu0 0
  %11984 = vperm.xlu0 %11983, %v10495
  %v11985 = vpop.permute.xlu0 %11984
  %11986 = vset.pattern.permute.xlu0 0
  %11987 = vperm.xlu0 %11986, %v10496
  %v11988 = vpop.permute.xlu0 %11987
  %11989 = vset.pattern.permute.xlu0 0
  %11990 = vperm.xlu0 %11989, %v10497
  %v11991 = vpop.permute.xlu0 %11990
  %11992 = vset.pattern.permute.xlu0 0
  %11993 = vperm.xlu0 %11992, %v10498
  %v11994 = vpop.permute.xlu0 %11993
  %11995 = vset.pattern.permute.xlu0 0
  %11996 = vperm.xlu0 %11995, %v10499
  %v11997 = vpop.permute.xlu0 %11996
  %11998 = vset.pattern.permute.xlu0 0
  %11999 = vperm.xlu0 %11998, %v10500
  %v12000 = vpop.permute.xlu0 %11999
  %12001 = vset.pattern.permute.xlu0 0
  %12002 = vperm.xlu0 %12001, %v10501
  %v12003 = vpop.permute.xlu0 %12002
  %12004 = vset.pattern.permute.xlu0 0
  %12005 = vperm.xlu0 %12004, %v10502
  %v12006 = vpop.permute.xlu0 %12005
  %12007 = vset.pattern.permute.xlu0 0
  %12008 = vperm.xlu0 %12007, %v10503
  %v12009 = vpop.permute.xlu0 %12008
  %12010 = vset.pattern.permute.xlu0 0
  %12011 = vperm.xlu0 %12010, %v10504
  %v12012 = vpop.permute.xlu0 %12011
  %12013 = vset.pattern.permute.xlu0 0
  %12014 = vperm.xlu0 %12013, %v10505
  %v12015 = vpop.permute.xlu0 %12014
  %12016 = vset.pattern.permute.xlu0 0
  %12017 = vperm.xlu0 %12016, %v10506
  %v12018 = vpop.permute.xlu0 %12017
  %12019 = vset.pattern.permute.xlu0 0
  %12020 = vperm.xlu0 %12019, %v10507
  %v12021 = vpop.permute.xlu0 %12020
  %12022 = vset.pattern.permute.xlu0 0
  %12023 = vperm.xlu0 %12022, %v10508
  %v12024 = vpop.permute.xlu0 %12023
  %12025 = vset.pattern.permute.xlu0 0
  %12026 = vperm.xlu0 %12025, %v10509
  %v12027 = vpop.permute.xlu0 %12026
  %12028 = vset.pattern.permute.xlu0 0
  %12029 = vperm.xlu0 %12028, %v10510
  %v12030 = vpop.permute.xlu0 %12029
  %12031 = vset.pattern.permute.xlu0 0
  %12032 = vperm.xlu0 %12031, %v10511
  %v12033 = vpop.permute.xlu0 %12032
  %12034 = vset.pattern.permute.xlu0 0
  %12035 = vperm.xlu0 %12034, %v10512
  %v12036 = vpop.permute.xlu0 %12035
  %12037 = vset.pattern.permute.xlu0 0
  %12038 = vperm.xlu0 %12037, %v10513
  %v12039 = vpop.permute.xlu0 %12038
  %12040 = vset.pattern.permute.xlu0 0
  %12041 = vperm.xlu0 %12040, %v10514
  %v12042 = vpop.permute.xlu0 %12041
  %12043 = vset.pattern.permute.xlu0 0
  %12044 = vperm.xlu0 %12043, %v10515
  %v12045 = vpop.permute.xlu0 %12044
  %12046 = vset.pattern.permute.xlu0 0
  %12047 = vperm.xlu0 %12046, %v10516
  %v12048 = vpop.permute.xlu0 %12047
  %12049 = vset.pattern.permute.xlu0 0
  %12050 = vperm.xlu0 %12049, %v10517
  %v12051 = vpop.permute.xlu0 %12050
  %12052 = vset.pattern.permute.xlu0 0
  %12053 = vperm.xlu0 %12052, %v10518
  %v12054 = vpop.permute.xlu0 %12053
  %12055 = vset.pattern.permute.xlu0 0
  %12056 = vperm.xlu0 %12055, %v10519
  %v12057 = vpop.permute.xlu0 %12056
  %12058 = vset.pattern.permute.xlu0 0
  %12059 = vperm.xlu0 %12058, %v10520
  %v12060 = vpop.permute.xlu0 %12059
  %12061 = vset.pattern.permute.xlu0 0
  %12062 = vperm.xlu0 %12061, %v10521
  %v12063 = vpop.permute.xlu0 %12062
  %12064 = vset.pattern.permute.xlu0 0
  %12065 = vperm.xlu0 %12064, %v10522
  %v12066 = vpop.permute.xlu0 %12065
  %12067 = vset.pattern.permute.xlu0 0
  %12068 = vperm.xlu0 %12067, %v10523
  %v12069 = vpop.permute.xlu0 %12068
  %12070 = vset.pattern.permute.xlu0 0
  %12071 = vperm.xlu0 %12070, %v10524
  %v12072 = vpop.permute.xlu0 %12071
  %12073 = vset.pattern.permute.xlu0 0
  %12074 = vperm.xlu0 %12073, %v10525
  %v12075 = vpop.permute.xlu0 %12074
  %12076 = vset.pattern.permute.xlu0 0
  %12077 = vperm.xlu0 %12076, %v10526
  %v12078 = vpop.permute.xlu0 %12077
  %12079 = vset.pattern.permute.xlu0 0
  %12080 = vperm.xlu0 %12079, %v10527
  %v12081 = vpop.permute.xlu0 %12080
  %12082 = vset.pattern.permute.xlu0 0
  %12083 = vperm.xlu0 %12082, %v10528
  %v12084 = vpop.permute.xlu0 %12083
  %12085 = vset.pattern.permute.xlu0 0
  %12086 = vperm.xlu0 %12085, %v10529
  %v12087 = vpop.permute.xlu0 %12086
  %12088 = vset.pattern.permute.xlu0 0
  %12089 = vperm.xlu0 %12088, %v10530
  %v12090 = vpop.permute.xlu0 %12089
  %12091 = vset.pattern.permute.xlu0 0
  %12092 = vperm.xlu0 %12091, %v10531
  %v12093 = vpop.permute.xlu0 %12092
  %12094 = vset.pattern.permute.xlu0 0
  %12095 = vperm.xlu0 %12094, %v10532
  %v12096 = vpop.permute.xlu0 %12095
  %12097 = vset.pattern.permute.xlu0 0
  %12098 = vperm.xlu0 %12097, %v10533
  %v12099 = vpop.permute.xlu0 %12098
  %12100 = vset.pattern.permute.xlu0 0
  %12101 = vperm.xlu0 %12100, %v10534
  %v12102 = vpop.permute.xlu0 %12101
  %12103 = vset.pattern.permute.xlu0 0
  %12104 = vperm.xlu0 %12103, %v10535
  %v12105 = vpop.permute.xlu0 %12104
  %12106 = vset.pattern.permute.xlu0 0
  %12107 = vperm.xlu0 %12106, %v10536
  %v12108 = vpop.permute.xlu0 %12107
  %12109 = vset.pattern.permute.xlu0 0
  %12110 = vperm.xlu0 %12109, %v10537
  %v12111 = vpop.permute.xlu0 %12110
  %12112 = vset.pattern.permute.xlu0 0
  %12113 = vperm.xlu0 %12112, %v10538
  %v12114 = vpop.permute.xlu0 %12113
  %12115 = vset.pattern.permute.xlu0 0
  %12116 = vperm.xlu0 %12115, %v10539
  %v12117 = vpop.permute.xlu0 %12116
  %12118 = vset.pattern.permute.xlu0 0
  %12119 = vperm.xlu0 %12118, %v10540
  %v12120 = vpop.permute.xlu0 %12119
  %12121 = vset.pattern.permute.xlu0 0
  %12122 = vperm.xlu0 %12121, %v10541
  %v12123 = vpop.permute.xlu0 %12122
  %12124 = vset.pattern.permute.xlu0 0
  %12125 = vperm.xlu0 %12124, %v10542
  %v12126 = vpop.permute.xlu0 %12125
  %12127 = vset.pattern.permute.xlu0 0
  %12128 = vperm.xlu0 %12127, %v10543
  %v12129 = vpop.permute.xlu0 %12128
  %12130 = vset.pattern.permute.xlu0 0
  %12131 = vperm.xlu0 %12130, %v10544
  %v12132 = vpop.permute.xlu0 %12131
  %12133 = vset.pattern.permute.xlu0 0
  %12134 = vperm.xlu0 %12133, %v10545
  %v12135 = vpop.permute.xlu0 %12134
  %12136 = vset.pattern.permute.xlu0 0
  %12137 = vperm.xlu0 %12136, %v10546
  %v12138 = vpop.permute.xlu0 %12137
  %12139 = vset.pattern.permute.xlu0 0
  %12140 = vperm.xlu0 %12139, %v10547
  %v12141 = vpop.permute.xlu0 %12140
  %12142 = vset.pattern.permute.xlu0 0
  %12143 = vperm.xlu0 %12142, %v10548
  %v12144 = vpop.permute.xlu0 %12143
  %12145 = vset.pattern.permute.xlu0 0
  %12146 = vperm.xlu0 %12145, %v10549
  %v12147 = vpop.permute.xlu0 %12146
  %12148 = vset.pattern.permute.xlu0 0
  %12149 = vperm.xlu0 %12148, %v10550
  %v12150 = vpop.permute.xlu0 %12149
  %12151 = vset.pattern.permute.xlu0 0
  %12152 = vperm.xlu0 %12151, %v10551
  %v12153 = vpop.permute.xlu0 %12152
  %12154 = vset.pattern.permute.xlu0 0
  %12155 = vperm.xlu0 %12154, %v10552
  %v12156 = vpop.permute.xlu0 %12155
  %12157 = vset.pattern.permute.xlu0 0
  %12158 = vperm.xlu0 %12157, %v10553
  %v12159 = vpop.permute.xlu0 %12158
  %12160 = vset.pattern.permute.xlu0 0
  %12161 = vperm.xlu0 %12160, %v10554
  %v12162 = vpop.permute.xlu0 %12161
  %12163 = vset.pattern.permute.xlu0 0
  %12164 = vperm.xlu0 %12163, %v10555
  %v12165 = vpop.permute.xlu0 %12164
  %12166 = vset.pattern.permute.xlu0 0
  %12167 = vperm.xlu0 %12166, %v10556
  %v12168 = vpop.permute.xlu0 %12167
  %12169 = vset.pattern.permute.xlu0 0
  %12170 = vperm.xlu0 %12169, %v10557
  %v12171 = vpop.permute.xlu0 %12170
  %12172 = vset.pattern.permute.xlu0 0
  %12173 = vperm.xlu0 %12172, %v10558
  %v12174 = vpop.permute.xlu0 %12173
  %12175 = vset.pattern.permute.xlu0 0
  %12176 = vperm.xlu0 %12175, %v10559
  %v12177 = vpop.permute.xlu0 %12176
  %12178 = vset.pattern.permute.xlu0 0
  %12179 = vperm.xlu0 %12178, %v10560
  %v12180 = vpop.permute.xlu0 %12179
  %12181 = vset.pattern.permute.xlu0 0
  %12182 = vperm.xlu0 %12181, %v10561
  %v12183 = vpop.permute.xlu0 %12182
  %12184 = vset.pattern.permute.xlu0 0
  %12185 = vperm.xlu0 %12184, %v10562
  %v12186 = vpop.permute.xlu0 %12185
  %12187 = vset.pattern.permute.xlu0 0
  %12188 = vperm.xlu0 %12187, %v10563
  %v12189 = vpop.permute.xlu0 %12188
  %12190 = vset.pattern.permute.xlu0 0
  %12191 = vperm.xlu0 %12190, %v10564
  %v12192 = vpop.permute.xlu0 %12191
  %12193 = vset.pattern.permute.xlu0 0
  %12194 = vperm.xlu0 %12193, %v10565
  %v12195 = vpop.permute.xlu0 %12194
  %12196 = vset.pattern.permute.xlu0 0
  %12197 = vperm.xlu0 %12196, %v10566
  %v12198 = vpop.permute.xlu0 %12197
  %12199 = vset.pattern.permute.xlu0 0
  %12200 = vperm.xlu0 %12199, %v10567
  %v12201 = vpop.permute.xlu0 %12200
  %12202 = vset.pattern.permute.xlu0 0
  %12203 = vperm.xlu0 %12202, %v10568
  %v12204 = vpop.permute.xlu0 %12203
  %12205 = vset.pattern.permute.xlu0 0
  %12206 = vperm.xlu0 %12205, %v10569
  %v12207 = vpop.permute.xlu0 %12206
  %12208 = vset.pattern.permute.xlu0 0
  %12209 = vperm.xlu0 %12208, %v10570
  %v12210 = vpop.permute.xlu0 %12209
  %12211 = vset.pattern.permute.xlu0 0
  %12212 = vperm.xlu0 %12211, %v10571
  %v12213 = vpop.permute.xlu0 %12212
  %12214 = vset.pattern.permute.xlu0 0
  %12215 = vperm.xlu0 %12214, %v10572
  %v12216 = vpop.permute.xlu0 %12215
  %12217 = vset.pattern.permute.xlu0 0
  %12218 = vperm.xlu0 %12217, %v10573
  %v12219 = vpop.permute.xlu0 %12218
  %12220 = vset.pattern.permute.xlu0 0
  %12221 = vperm.xlu0 %12220, %v10574
  %v12222 = vpop.permute.xlu0 %12221
  %12223 = vset.pattern.permute.xlu0 0
  %12224 = vperm.xlu0 %12223, %v10575
  %v12225 = vpop.permute.xlu0 %12224
  %12226 = vset.pattern.permute.xlu0 0
  %12227 = vperm.xlu0 %12226, %v10576
  %v12228 = vpop.permute.xlu0 %12227
  %12229 = vset.pattern.permute.xlu0 0
  %12230 = vperm.xlu0 %12229, %v10577
  %v12231 = vpop.permute.xlu0 %12230
  %12232 = vset.pattern.permute.xlu0 0
  %12233 = vperm.xlu0 %12232, %v10578
  %v12234 = vpop.permute.xlu0 %12233
  %12235 = vset.pattern.permute.xlu0 0
  %12236 = vperm.xlu0 %12235, %v10579
  %v12237 = vpop.permute.xlu0 %12236
  %12238 = vset.pattern.permute.xlu0 0
  %12239 = vperm.xlu0 %12238, %v10580
  %v12240 = vpop.permute.xlu0 %12239
  %12241 = vset.pattern.permute.xlu0 0
  %12242 = vperm.xlu0 %12241, %v10581
  %v12243 = vpop.permute.xlu0 %12242
  %12244 = vset.pattern.permute.xlu0 0
  %12245 = vperm.xlu0 %12244, %v10582
  %v12246 = vpop.permute.xlu0 %12245
  %12247 = vset.pattern.permute.xlu0 0
  %12248 = vperm.xlu0 %12247, %v10583
  %v12249 = vpop.permute.xlu0 %12248
  %12250 = vset.pattern.permute.xlu0 0
  %12251 = vperm.xlu0 %12250, %v10584
  %v12252 = vpop.permute.xlu0 %12251
  %12253 = vset.pattern.permute.xlu0 0
  %12254 = vperm.xlu0 %12253, %v10585
  %v12255 = vpop.permute.xlu0 %12254
  %12256 = vset.pattern.permute.xlu0 0
  %12257 = vperm.xlu0 %12256, %v10586
  %v12258 = vpop.permute.xlu0 %12257
  %12259 = vset.pattern.permute.xlu0 0
  %12260 = vperm.xlu0 %12259, %v10587
  %v12261 = vpop.permute.xlu0 %12260
  %12262 = vset.pattern.permute.xlu0 0
  %12263 = vperm.xlu0 %12262, %v10588
  %v12264 = vpop.permute.xlu0 %12263
  %12265 = vset.pattern.permute.xlu0 0
  %12266 = vperm.xlu0 %12265, %v10589
  %v12267 = vpop.permute.xlu0 %12266
  %12268 = vset.pattern.permute.xlu0 0
  %12269 = vperm.xlu0 %12268, %v10590
  %v12270 = vpop.permute.xlu0 %12269
  %12271 = vset.pattern.permute.xlu0 0
  %12272 = vperm.xlu0 %12271, %v10591
  %v12273 = vpop.permute.xlu0 %12272
  %12274 = vset.pattern.permute.xlu0 0
  %12275 = vperm.xlu0 %12274, %v10592
  %v12276 = vpop.permute.xlu0 %12275
  %12277 = vset.pattern.permute.xlu0 0
  %12278 = vperm.xlu0 %12277, %v10593
  %v12279 = vpop.permute.xlu0 %12278
  %12280 = vset.pattern.permute.xlu0 0
  %12281 = vperm.xlu0 %12280, %v10594
  %v12282 = vpop.permute.xlu0 %12281
  %12283 = vset.pattern.permute.xlu0 0
  %12284 = vperm.xlu0 %12283, %v10595
  %v12285 = vpop.permute.xlu0 %12284
  %12286 = vset.pattern.permute.xlu0 0
  %12287 = vperm.xlu0 %12286, %v10596
  %v12288 = vpop.permute.xlu0 %12287
  %12289 = vset.pattern.permute.xlu0 0
  %12290 = vperm.xlu0 %12289, %v10597
  %v12291 = vpop.permute.xlu0 %12290
  %12292 = vset.pattern.permute.xlu0 0
  %12293 = vperm.xlu0 %12292, %v10598
  %v12294 = vpop.permute.xlu0 %12293
  %12295 = vset.pattern.permute.xlu0 0
  %12296 = vperm.xlu0 %12295, %v10599
  %v12297 = vpop.permute.xlu0 %12296
  %12298 = vset.pattern.permute.xlu0 0
  %12299 = vperm.xlu0 %12298, %v10600
  %v12300 = vpop.permute.xlu0 %12299
  %12301 = vset.pattern.permute.xlu0 0
  %12302 = vperm.xlu0 %12301, %v10601
  %v12303 = vpop.permute.xlu0 %12302
  %12304 = vset.pattern.permute.xlu0 0
  %12305 = vperm.xlu0 %12304, %v10602
  %v12306 = vpop.permute.xlu0 %12305
  %12307 = vset.pattern.permute.xlu0 0
  %12308 = vperm.xlu0 %12307, %v10603
  %v12309 = vpop.permute.xlu0 %12308
  %12310 = vset.pattern.permute.xlu0 0
  %12311 = vperm.xlu0 %12310, %v10604
  %v12312 = vpop.permute.xlu0 %12311
  %12313 = vset.pattern.permute.xlu0 0
  %12314 = vperm.xlu0 %12313, %v10605
  %v12315 = vpop.permute.xlu0 %12314
  %12316 = vset.pattern.permute.xlu0 0
  %12317 = vperm.xlu0 %12316, %v10606
  %v12318 = vpop.permute.xlu0 %12317
  %12319 = vset.pattern.permute.xlu0 0
  %12320 = vperm.xlu0 %12319, %v10607
  %v12321 = vpop.permute.xlu0 %12320
  %12322 = vset.pattern.permute.xlu0 0
  %12323 = vperm.xlu0 %12322, %v10608
  %v12324 = vpop.permute.xlu0 %12323
  %12325 = vset.pattern.permute.xlu0 0
  %12326 = vperm.xlu0 %12325, %v10609
  %v12327 = vpop.permute.xlu0 %12326
  %12328 = vset.pattern.permute.xlu0 0
  %12329 = vperm.xlu0 %12328, %v10610
  %v12330 = vpop.permute.xlu0 %12329
  %12331 = vset.pattern.permute.xlu0 0
  %12332 = vperm.xlu0 %12331, %v10611
  %v12333 = vpop.permute.xlu0 %12332
  %12334 = vset.pattern.permute.xlu0 0
  %12335 = vperm.xlu0 %12334, %v10612
  %v12336 = vpop.permute.xlu0 %12335
  %12337 = vset.pattern.permute.xlu0 0
  %12338 = vperm.xlu0 %12337, %v10613
  %v12339 = vpop.permute.xlu0 %12338
  %12340 = vset.pattern.permute.xlu0 0
  %12341 = vperm.xlu0 %12340, %v10614
  %v12342 = vpop.permute.xlu0 %12341
  %12343 = vset.pattern.permute.xlu0 0
  %12344 = vperm.xlu0 %12343, %v10615
  %v12345 = vpop.permute.xlu0 %12344
  %12346 = vset.pattern.permute.xlu0 0
  %12347 = vperm.xlu0 %12346, %v10616
  %v12348 = vpop.permute.xlu0 %12347
  %12349 = vset.pattern.permute.xlu0 0
  %12350 = vperm.xlu0 %12349, %v10617
  %v12351 = vpop.permute.xlu0 %12350
  %12352 = vset.pattern.permute.xlu0 0
  %12353 = vperm.xlu0 %12352, %v10618
  %v12354 = vpop.permute.xlu0 %12353
  %12355 = vset.pattern.permute.xlu0 0
  %12356 = vperm.xlu0 %12355, %v10619
  %v12357 = vpop.permute.xlu0 %12356
  %12358 = vset.pattern.permute.xlu0 0
  %12359 = vperm.xlu0 %12358, %v10620
  %v12360 = vpop.permute.xlu0 %12359
  %12361 = vset.pattern.permute.xlu0 0
  %12362 = vperm.xlu0 %12361, %v10621
  %v12363 = vpop.permute.xlu0 %12362
  %12364 = vset.pattern.permute.xlu0 0
  %12365 = vperm.xlu0 %12364, %v10622
  %v12366 = vpop.permute.xlu0 %12365
  %12367 = vset.pattern.permute.xlu0 0
  %12368 = vperm.xlu0 %12367, %v10623
  %v12369 = vpop.permute.xlu0 %12368
  %12370 = vset.pattern.permute.xlu0 0
  %12371 = vperm.xlu0 %12370, %v10624
  %v12372 = vpop.permute.xlu0 %12371
  %12373 = vset.pattern.permute.xlu0 0
  %12374 = vperm.xlu0 %12373, %v10625
  %v12375 = vpop.permute.xlu0 %12374
  %12376 = vset.pattern.permute.xlu0 0
  %12377 = vperm.xlu0 %12376, %v10626
  %v12378 = vpop.permute.xlu0 %12377
  %12379 = vset.pattern.permute.xlu0 0
  %12380 = vperm.xlu0 %12379, %v10627
  %v12381 = vpop.permute.xlu0 %12380
  %12382 = vset.pattern.permute.xlu0 0
  %12383 = vperm.xlu0 %12382, %v10628
  %v12384 = vpop.permute.xlu0 %12383
  %12385 = vset.pattern.permute.xlu0 0
  %12386 = vperm.xlu0 %12385, %v10629
  %v12387 = vpop.permute.xlu0 %12386
  %12388 = vset.pattern.permute.xlu0 0
  %12389 = vperm.xlu0 %12388, %v10630
  %v12390 = vpop.permute.xlu0 %12389
  %12391 = vset.pattern.permute.xlu0 0
  %12392 = vperm.xlu0 %12391, %v10631
  %v12393 = vpop.permute.xlu0 %12392
  %12394 = vset.pattern.permute.xlu0 0
  %12395 = vperm.xlu0 %12394, %v10632
  %v12396 = vpop.permute.xlu0 %12395
  %12397 = vset.pattern.permute.xlu0 0
  %12398 = vperm.xlu0 %12397, %v10633
  %v12399 = vpop.permute.xlu0 %12398
  %12400 = vset.pattern.permute.xlu0 0
  %12401 = vperm.xlu0 %12400, %v10634
  %v12402 = vpop.permute.xlu0 %12401
  %12403 = vset.pattern.permute.xlu0 0
  %12404 = vperm.xlu0 %12403, %v10635
  %v12405 = vpop.permute.xlu0 %12404
  %12406 = vset.pattern.permute.xlu0 0
  %12407 = vperm.xlu0 %12406, %v10636
  %v12408 = vpop.permute.xlu0 %12407
  %12409 = vset.pattern.permute.xlu0 0
  %12410 = vperm.xlu0 %12409, %v10637
  %v12411 = vpop.permute.xlu0 %12410
  %12412 = vset.pattern.permute.xlu0 0
  %12413 = vperm.xlu0 %12412, %v10638
  %v12414 = vpop.permute.xlu0 %12413
  %12415 = vset.pattern.permute.xlu0 0
  %12416 = vperm.xlu0 %12415, %v10639
  %v12417 = vpop.permute.xlu0 %12416
  %12418 = vset.pattern.permute.xlu0 0
  %12419 = vperm.xlu0 %12418, %v10640
  %v12420 = vpop.permute.xlu0 %12419
  %12421 = vset.pattern.permute.xlu0 0
  %12422 = vperm.xlu0 %12421, %v10641
  %v12423 = vpop.permute.xlu0 %12422
  %12424 = vset.pattern.permute.xlu0 0
  %12425 = vperm.xlu0 %12424, %v10642
  %v12426 = vpop.permute.xlu0 %12425
  %12427 = vset.pattern.permute.xlu0 0
  %12428 = vperm.xlu0 %12427, %v10643
  %v12429 = vpop.permute.xlu0 %12428
  %12430 = vset.pattern.permute.xlu0 0
  %12431 = vperm.xlu0 %12430, %v10644
  %v12432 = vpop.permute.xlu0 %12431
  %12433 = vset.pattern.permute.xlu0 0
  %12434 = vperm.xlu0 %12433, %v10645
  %v12435 = vpop.permute.xlu0 %12434
  %12436 = vset.pattern.permute.xlu0 0
  %12437 = vperm.xlu0 %12436, %v10646
  %v12438 = vpop.permute.xlu0 %12437
  %12439 = vset.pattern.permute.xlu0 0
  %12440 = vperm.xlu0 %12439, %v10647
  %v12441 = vpop.permute.xlu0 %12440
  %12442 = vset.pattern.permute.xlu0 0
  %12443 = vperm.xlu0 %12442, %v10648
  %v12444 = vpop.permute.xlu0 %12443
  %12445 = vset.pattern.permute.xlu0 0
  %12446 = vperm.xlu0 %12445, %v10649
  %v12447 = vpop.permute.xlu0 %12446
  %12448 = vset.pattern.permute.xlu0 0
  %12449 = vperm.xlu0 %12448, %v10650
  %v12450 = vpop.permute.xlu0 %12449
  %12451 = vset.pattern.permute.xlu0 0
  %12452 = vperm.xlu0 %12451, %v10651
  %v12453 = vpop.permute.xlu0 %12452
  %12454 = vset.pattern.permute.xlu0 0
  %12455 = vperm.xlu0 %12454, %v10652
  %v12456 = vpop.permute.xlu0 %12455
  %12457 = vset.pattern.permute.xlu0 0
  %12458 = vperm.xlu0 %12457, %v10653
  %v12459 = vpop.permute.xlu0 %12458
  %12460 = vset.pattern.permute.xlu0 0
  %12461 = vperm.xlu0 %12460, %v10654
  %v12462 = vpop.permute.xlu0 %12461
  %12463 = vset.pattern.permute.xlu0 0
  %12464 = vperm.xlu0 %12463, %v10655
  %v12465 = vpop.permute.xlu0 %12464
  %12466 = vset.pattern.permute.xlu0 0
  %12467 = vperm.xlu0 %12466, %v10656
  %v12468 = vpop.permute.xlu0 %12467
  %12469 = vset.pattern.permute.xlu0 0
  %12470 = vperm.xlu0 %12469, %v10657
  %v12471 = vpop.permute.xlu0 %12470
  %12472 = vset.pattern.permute.xlu0 0
  %12473 = vperm.xlu0 %12472, %v10658
  %v12474 = vpop.permute.xlu0 %12473
  %12475 = vset.pattern.permute.xlu0 0
  %12476 = vperm.xlu0 %12475, %v10659
  %v12477 = vpop.permute.xlu0 %12476
  %12478 = vset.pattern.permute.xlu0 0
  %12479 = vperm.xlu0 %12478, %v10660
  %v12480 = vpop.permute.xlu0 %12479
  %12481 = vset.pattern.permute.xlu0 0
  %12482 = vperm.xlu0 %12481, %v10661
  %v12483 = vpop.permute.xlu0 %12482
  %12484 = vset.pattern.permute.xlu0 0
  %12485 = vperm.xlu0 %12484, %v10662
  %v12486 = vpop.permute.xlu0 %12485
  %12487 = vset.pattern.permute.xlu0 0
  %12488 = vperm.xlu0 %12487, %v10663
  %v12489 = vpop.permute.xlu0 %12488
  %12490 = vset.pattern.permute.xlu0 0
  %12491 = vperm.xlu0 %12490, %v10664
  %v12492 = vpop.permute.xlu0 %12491
  %12493 = vset.pattern.permute.xlu0 0
  %12494 = vperm.xlu0 %12493, %v10665
  %v12495 = vpop.permute.xlu0 %12494
  %12496 = vset.pattern.permute.xlu0 0
  %12497 = vperm.xlu0 %12496, %v10666
  %v12498 = vpop.permute.xlu0 %12497
  %12499 = vset.pattern.permute.xlu0 0
  %12500 = vperm.xlu0 %12499, %v10667
  %v12501 = vpop.permute.xlu0 %12500
  %12502 = vset.pattern.permute.xlu0 0
  %12503 = vperm.xlu0 %12502, %v10668
  %v12504 = vpop.permute.xlu0 %12503
  %12505 = vset.pattern.permute.xlu0 0
  %12506 = vperm.xlu0 %12505, %v10669
  %v12507 = vpop.permute.xlu0 %12506
  %12508 = vset.pattern.permute.xlu0 0
  %12509 = vperm.xlu0 %12508, %v10670
  %v12510 = vpop.permute.xlu0 %12509
  %12511 = vset.pattern.permute.xlu0 0
  %12512 = vperm.xlu0 %12511, %v10671
  %v12513 = vpop.permute.xlu0 %12512
  %12514 = vset.pattern.permute.xlu0 0
  %12515 = vperm.xlu0 %12514, %v10672
  %v12516 = vpop.permute.xlu0 %12515
  %12517 = vset.pattern.permute.xlu0 0
  %12518 = vperm.xlu0 %12517, %v10673
  %v12519 = vpop.permute.xlu0 %12518
  %12520 = vset.pattern.permute.xlu0 0
  %12521 = vperm.xlu0 %12520, %v10674
  %v12522 = vpop.permute.xlu0 %12521
  %12523 = vset.pattern.permute.xlu0 0
  %12524 = vperm.xlu0 %12523, %v10675
  %v12525 = vpop.permute.xlu0 %12524
  %12526 = vset.pattern.permute.xlu0 0
  %12527 = vperm.xlu0 %12526, %v10676
  %v12528 = vpop.permute.xlu0 %12527
  %12529 = vset.pattern.permute.xlu0 0
  %12530 = vperm.xlu0 %12529, %v10677
  %v12531 = vpop.permute.xlu0 %12530
  %12532 = vset.pattern.permute.xlu0 0
  %12533 = vperm.xlu0 %12532, %v10678
  %v12534 = vpop.permute.xlu0 %12533
  %12535 = vset.pattern.permute.xlu0 0
  %12536 = vperm.xlu0 %12535, %v10679
  %v12537 = vpop.permute.xlu0 %12536
  %12538 = vset.pattern.permute.xlu0 0
  %12539 = vperm.xlu0 %12538, %v10680
  %v12540 = vpop.permute.xlu0 %12539
  %12541 = vset.pattern.permute.xlu0 0
  %12542 = vperm.xlu0 %12541, %v10681
  %v12543 = vpop.permute.xlu0 %12542
  %12544 = vset.pattern.permute.xlu0 0
  %12545 = vperm.xlu0 %12544, %v10682
  %v12546 = vpop.permute.xlu0 %12545
  %12547 = vset.pattern.permute.xlu0 0
  %12548 = vperm.xlu0 %12547, %v10683
  %v12549 = vpop.permute.xlu0 %12548
  %12550 = vset.pattern.permute.xlu0 0
  %12551 = vperm.xlu0 %12550, %v10684
  %v12552 = vpop.permute.xlu0 %12551
  %12553 = vset.pattern.permute.xlu0 0
  %12554 = vperm.xlu0 %12553, %v10685
  %v12555 = vpop.permute.xlu0 %12554
  %12556 = vset.pattern.permute.xlu0 0
  %12557 = vperm.xlu0 %12556, %v10686
  %v12558 = vpop.permute.xlu0 %12557
  %12559 = vset.pattern.permute.xlu0 0
  %12560 = vperm.xlu0 %12559, %v10687
  %v12561 = vpop.permute.xlu0 %12560
  %12562 = vset.pattern.permute.xlu0 0
  %12563 = vperm.xlu0 %12562, %v10688
  %v12564 = vpop.permute.xlu0 %12563
  %12565 = vset.pattern.permute.xlu0 0
  %12566 = vperm.xlu0 %12565, %v10689
  %v12567 = vpop.permute.xlu0 %12566
  %12568 = vset.pattern.permute.xlu0 0
  %12569 = vperm.xlu0 %12568, %v10690
  %v12570 = vpop.permute.xlu0 %12569
  %12571 = vset.pattern.permute.xlu0 0
  %12572 = vperm.xlu0 %12571, %v10691
  %v12573 = vpop.permute.xlu0 %12572
  %12574 = vset.pattern.permute.xlu0 0
  %12575 = vperm.xlu0 %12574, %v10692
  %v12576 = vpop.permute.xlu0 %12575
  %12577 = vset.pattern.permute.xlu0 0
  %12578 = vperm.xlu0 %12577, %v10693
  %v12579 = vpop.permute.xlu0 %12578
  %12580 = vset.pattern.permute.xlu0 0
  %12581 = vperm.xlu0 %12580, %v10694
  %v12582 = vpop.permute.xlu0 %12581
  %12583 = vset.pattern.permute.xlu0 0
  %12584 = vperm.xlu0 %12583, %v10695
  %v12585 = vpop.permute.xlu0 %12584
  %12586 = vset.pattern.permute.xlu0 0
  %12587 = vperm.xlu0 %12586, %v10696
  %v12588 = vpop.permute.xlu0 %12587
  %12589 = vset.pattern.permute.xlu0 0
  %12590 = vperm.xlu0 %12589, %v10697
  %v12591 = vpop.permute.xlu0 %12590
  %12592 = vset.pattern.permute.xlu0 0
  %12593 = vperm.xlu0 %12592, %v10698
  %v12594 = vpop.permute.xlu0 %12593
  %12595 = vset.pattern.permute.xlu0 0
  %12596 = vperm.xlu0 %12595, %v10699
  %v12597 = vpop.permute.xlu0 %12596
  %12598 = vset.pattern.permute.xlu0 0
  %12599 = vperm.xlu0 %12598, %v10700
  %v12600 = vpop.permute.xlu0 %12599
  %12601 = vset.pattern.permute.xlu0 0
  %12602 = vperm.xlu0 %12601, %v10701
  %v12603 = vpop.permute.xlu0 %12602
  %12604 = vset.pattern.permute.xlu0 0
  %12605 = vperm.xlu0 %12604, %v10702
  %v12606 = vpop.permute.xlu0 %12605
  %12607 = vset.pattern.permute.xlu0 0
  %12608 = vperm.xlu0 %12607, %v10703
  %v12609 = vpop.permute.xlu0 %12608
  %12610 = vset.pattern.permute.xlu0 0
  %12611 = vperm.xlu0 %12610, %v10704
  %v12612 = vpop.permute.xlu0 %12611
  %12613 = vset.pattern.permute.xlu0 0
  %12614 = vperm.xlu0 %12613, %v10705
  %v12615 = vpop.permute.xlu0 %12614
  %12616 = vset.pattern.permute.xlu0 0
  %12617 = vperm.xlu0 %12616, %v10706
  %v12618 = vpop.permute.xlu0 %12617
  %12619 = vset.pattern.permute.xlu0 0
  %12620 = vperm.xlu0 %12619, %v10707
  %v12621 = vpop.permute.xlu0 %12620
  %12622 = vset.pattern.permute.xlu0 0
  %12623 = vperm.xlu0 %12622, %v10708
  %v12624 = vpop.permute.xlu0 %12623
  %12625 = vset.pattern.permute.xlu0 0
  %12626 = vperm.xlu0 %12625, %v10709
  %v12627 = vpop.permute.xlu0 %12626
  %12628 = vset.pattern.permute.xlu0 0
  %12629 = vperm.xlu0 %12628, %v10710
  %v12630 = vpop.permute.xlu0 %12629
  %12631 = vset.pattern.permute.xlu0 0
  %12632 = vperm.xlu0 %12631, %v10711
  %v12633 = vpop.permute.xlu0 %12632
  %12634 = vset.pattern.permute.xlu0 0
  %12635 = vperm.xlu0 %12634, %v10712
  %v12636 = vpop.permute.xlu0 %12635
  %12637 = vset.pattern.permute.xlu0 0
  %12638 = vperm.xlu0 %12637, %v10713
  %v12639 = vpop.permute.xlu0 %12638
  %12640 = vset.pattern.permute.xlu0 0
  %12641 = vperm.xlu0 %12640, %v10714
  %v12642 = vpop.permute.xlu0 %12641
  %12643 = vset.pattern.permute.xlu0 0
  %12644 = vperm.xlu0 %12643, %v10715
  %v12645 = vpop.permute.xlu0 %12644
  %12646 = vset.pattern.permute.xlu0 0
  %12647 = vperm.xlu0 %12646, %v10716
  %v12648 = vpop.permute.xlu0 %12647
  %12649 = vset.pattern.permute.xlu0 0
  %12650 = vperm.xlu0 %12649, %v10717
  %v12651 = vpop.permute.xlu0 %12650
  %12652 = vset.pattern.permute.xlu0 0
  %12653 = vperm.xlu0 %12652, %v10718
  %v12654 = vpop.permute.xlu0 %12653
  %12655 = vset.pattern.permute.xlu0 0
  %12656 = vperm.xlu0 %12655, %v10719
  %v12657 = vpop.permute.xlu0 %12656
  %12658 = vset.pattern.permute.xlu0 0
  %12659 = vperm.xlu0 %12658, %v10720
  %v12660 = vpop.permute.xlu0 %12659
  %12661 = vset.pattern.permute.xlu0 0
  %12662 = vperm.xlu0 %12661, %v10721
  %v12663 = vpop.permute.xlu0 %12662
  %12664 = vset.pattern.permute.xlu0 0
  %12665 = vperm.xlu0 %12664, %v10722
  %v12666 = vpop.permute.xlu0 %12665
  %12667 = vset.pattern.permute.xlu0 0
  %12668 = vperm.xlu0 %12667, %v10723
  %v12669 = vpop.permute.xlu0 %12668
  %12670 = vset.pattern.permute.xlu0 0
  %12671 = vperm.xlu0 %12670, %v10724
  %v12672 = vpop.permute.xlu0 %12671
  %12673 = vset.pattern.permute.xlu0 0
  %12674 = vperm.xlu0 %12673, %v10725
  %v12675 = vpop.permute.xlu0 %12674
  %12676 = vset.pattern.permute.xlu0 0
  %12677 = vperm.xlu0 %12676, %v10726
  %v12678 = vpop.permute.xlu0 %12677
  %12679 = vset.pattern.permute.xlu0 0
  %12680 = vperm.xlu0 %12679, %v10727
  %v12681 = vpop.permute.xlu0 %12680
  %12682 = vset.pattern.permute.xlu0 0
  %12683 = vperm.xlu0 %12682, %v10728
  %v12684 = vpop.permute.xlu0 %12683
  %12685 = vset.pattern.permute.xlu0 0
  %12686 = vperm.xlu0 %12685, %v10729
  %v12687 = vpop.permute.xlu0 %12686
  %12688 = vset.pattern.permute.xlu0 0
  %12689 = vperm.xlu0 %12688, %v10730
  %v12690 = vpop.permute.xlu0 %12689
  %12691 = vset.pattern.permute.xlu0 0
  %12692 = vperm.xlu0 %12691, %v10731
  %v12693 = vpop.permute.xlu0 %12692
  %12694 = vset.pattern.permute.xlu0 0
  %12695 = vperm.xlu0 %12694, %v10732
  %v12696 = vpop.permute.xlu0 %12695
  %12697 = vset.pattern.permute.xlu0 0
  %12698 = vperm.xlu0 %12697, %v10733
  %v12699 = vpop.permute.xlu0 %12698
  %12700 = vset.pattern.permute.xlu0 0
  %12701 = vperm.xlu0 %12700, %v10734
  %v12702 = vpop.permute.xlu0 %12701
  %12703 = vset.pattern.permute.xlu0 0
  %12704 = vperm.xlu0 %12703, %v10735
  %v12705 = vpop.permute.xlu0 %12704
  %12706 = vset.pattern.permute.xlu0 0
  %12707 = vperm.xlu0 %12706, %v10736
  %v12708 = vpop.permute.xlu0 %12707
  %12709 = vset.pattern.permute.xlu0 0
  %12710 = vperm.xlu0 %12709, %v10737
  %v12711 = vpop.permute.xlu0 %12710
  %12712 = vset.pattern.permute.xlu0 0
  %12713 = vperm.xlu0 %12712, %v10738
  %v12714 = vpop.permute.xlu0 %12713
  %12715 = vset.pattern.permute.xlu0 0
  %12716 = vperm.xlu0 %12715, %v10739
  %v12717 = vpop.permute.xlu0 %12716
  %12718 = vset.pattern.permute.xlu0 0
  %12719 = vperm.xlu0 %12718, %v10740
  %v12720 = vpop.permute.xlu0 %12719
  %12721 = vset.pattern.permute.xlu0 0
  %12722 = vperm.xlu0 %12721, %v10741
  %v12723 = vpop.permute.xlu0 %12722
  %12724 = vset.pattern.permute.xlu0 0
  %12725 = vperm.xlu0 %12724, %v10742
  %v12726 = vpop.permute.xlu0 %12725
  %12727 = vset.pattern.permute.xlu0 0
  %12728 = vperm.xlu0 %12727, %v10743
  %v12729 = vpop.permute.xlu0 %12728
  %12730 = vset.pattern.permute.xlu0 0
  %12731 = vperm.xlu0 %12730, %v10744
  %v12732 = vpop.permute.xlu0 %12731
  %12733 = vset.pattern.permute.xlu0 0
  %12734 = vperm.xlu0 %12733, %v10745
  %v12735 = vpop.permute.xlu0 %12734
  %12736 = vset.pattern.permute.xlu0 0
  %12737 = vperm.xlu0 %12736, %v10746
  %v12738 = vpop.permute.xlu0 %12737
  %12739 = vset.pattern.permute.xlu0 0
  %12740 = vperm.xlu0 %12739, %v10747
  %v12741 = vpop.permute.xlu0 %12740
  %12742 = vset.pattern.permute.xlu0 0
  %12743 = vperm.xlu0 %12742, %v10748
  %v12744 = vpop.permute.xlu0 %12743
  %12745 = vset.pattern.permute.xlu0 0
  %12746 = vperm.xlu0 %12745, %v10749
  %v12747 = vpop.permute.xlu0 %12746
  %12748 = vset.pattern.permute.xlu0 0
  %12749 = vperm.xlu0 %12748, %v10750
  %v12750 = vpop.permute.xlu0 %12749
  %12751 = vset.pattern.permute.xlu0 0
  %12752 = vperm.xlu0 %12751, %v10751
  %v12753 = vpop.permute.xlu0 %12752
  %12754 = vset.pattern.permute.xlu0 0
  %12755 = vperm.xlu0 %12754, %v10752
  %v12756 = vpop.permute.xlu0 %12755
  %12757 = vset.pattern.permute.xlu0 0
  %12758 = vperm.xlu0 %12757, %v10753
  %v12759 = vpop.permute.xlu0 %12758
  %12760 = vset.pattern.permute.xlu0 0
  %12761 = vperm.xlu0 %12760, %v10754
  %v12762 = vpop.permute.xlu0 %12761
  %12763 = vset.pattern.permute.xlu0 0
  %12764 = vperm.xlu0 %12763, %v10755
  %v12765 = vpop.permute.xlu0 %12764
  %12766 = vset.pattern.permute.xlu0 0
  %12767 = vperm.xlu0 %12766, %v10756
  %v12768 = vpop.permute.xlu0 %12767
  %12769 = vset.pattern.permute.xlu0 0
  %12770 = vperm.xlu0 %12769, %v10757
  %v12771 = vpop.permute.xlu0 %12770
  %12772 = vset.pattern.permute.xlu0 0
  %12773 = vperm.xlu0 %12772, %v10758
  %v12774 = vpop.permute.xlu0 %12773
  %12775 = vset.pattern.permute.xlu0 0
  %12776 = vperm.xlu0 %12775, %v10759
  %v12777 = vpop.permute.xlu0 %12776
  %12778 = vset.pattern.permute.xlu0 0
  %12779 = vperm.xlu0 %12778, %v10760
  %v12780 = vpop.permute.xlu0 %12779
  %12781 = vset.pattern.permute.xlu0 0
  %12782 = vperm.xlu0 %12781, %v10761
  %v12783 = vpop.permute.xlu0 %12782
  %12784 = vset.pattern.permute.xlu0 0
  %12785 = vperm.xlu0 %12784, %v10762
  %v12786 = vpop.permute.xlu0 %12785
  %12787 = vset.pattern.permute.xlu0 0
  %12788 = vperm.xlu0 %12787, %v10763
  %v12789 = vpop.permute.xlu0 %12788
  %12790 = vset.pattern.permute.xlu0 0
  %12791 = vperm.xlu0 %12790, %v10764
  %v12792 = vpop.permute.xlu0 %12791
  %12793 = vset.pattern.permute.xlu0 0
  %12794 = vperm.xlu0 %12793, %v10765
  %v12795 = vpop.permute.xlu0 %12794
  %12796 = vset.pattern.permute.xlu0 0
  %12797 = vperm.xlu0 %12796, %v10766
  %v12798 = vpop.permute.xlu0 %12797
  %12799 = vset.pattern.permute.xlu0 0
  %12800 = vperm.xlu0 %12799, %v10767
  %v12801 = vpop.permute.xlu0 %12800
  %12802 = vset.pattern.permute.xlu0 0
  %12803 = vperm.xlu0 %12802, %v10768
  %v12804 = vpop.permute.xlu0 %12803
  %12805 = vset.pattern.permute.xlu0 0
  %12806 = vperm.xlu0 %12805, %v10769
  %v12807 = vpop.permute.xlu0 %12806
  %12808 = vset.pattern.permute.xlu0 0
  %12809 = vperm.xlu0 %12808, %v10770
  %v12810 = vpop.permute.xlu0 %12809
  %12811 = vset.pattern.permute.xlu0 0
  %12812 = vperm.xlu0 %12811, %v10771
  %v12813 = vpop.permute.xlu0 %12812
  %12814 = vset.pattern.permute.xlu0 0
  %12815 = vperm.xlu0 %12814, %v10772
  %v12816 = vpop.permute.xlu0 %12815
  %12817 = vset.pattern.permute.xlu0 0
  %12818 = vperm.xlu0 %12817, %v10773
  %v12819 = vpop.permute.xlu0 %12818
  %12820 = vset.pattern.permute.xlu0 0
  %12821 = vperm.xlu0 %12820, %v10774
  %v12822 = vpop.permute.xlu0 %12821
  %12823 = vset.pattern.permute.xlu0 0
  %12824 = vperm.xlu0 %12823, %v10775
  %v12825 = vpop.permute.xlu0 %12824
  %12826 = vset.pattern.permute.xlu0 0
  %12827 = vperm.xlu0 %12826, %v10776
  %v12828 = vpop.permute.xlu0 %12827
  %12829 = vset.pattern.permute.xlu0 0
  %12830 = vperm.xlu0 %12829, %v10777
  %v12831 = vpop.permute.xlu0 %12830
  %12832 = vset.pattern.permute.xlu0 0
  %12833 = vperm.xlu0 %12832, %v10778
  %v12834 = vpop.permute.xlu0 %12833
  %12835 = vset.pattern.permute.xlu0 0
  %12836 = vperm.xlu0 %12835, %v10779
  %v12837 = vpop.permute.xlu0 %12836
  %12838 = vset.pattern.permute.xlu0 0
  %12839 = vperm.xlu0 %12838, %v10780
  %v12840 = vpop.permute.xlu0 %12839
  %12841 = vset.pattern.permute.xlu0 0
  %12842 = vperm.xlu0 %12841, %v10781
  %v12843 = vpop.permute.xlu0 %12842
  %12844 = vset.pattern.permute.xlu0 0
  %12845 = vperm.xlu0 %12844, %v10782
  %v12846 = vpop.permute.xlu0 %12845
  %12847 = vset.pattern.permute.xlu0 0
  %12848 = vperm.xlu0 %12847, %v10783
  %v12849 = vpop.permute.xlu0 %12848
  %12850 = vset.pattern.permute.xlu0 0
  %12851 = vperm.xlu0 %12850, %v10784
  %v12852 = vpop.permute.xlu0 %12851
  %12853 = vset.pattern.permute.xlu0 0
  %12854 = vperm.xlu0 %12853, %v10785
  %v12855 = vpop.permute.xlu0 %12854
  %12856 = vset.pattern.permute.xlu0 0
  %12857 = vperm.xlu0 %12856, %v10786
  %v12858 = vpop.permute.xlu0 %12857
  %12859 = vset.pattern.permute.xlu0 0
  %12860 = vperm.xlu0 %12859, %v10787
  %v12861 = vpop.permute.xlu0 %12860
  %12862 = vset.pattern.permute.xlu0 0
  %12863 = vperm.xlu0 %12862, %v10788
  %v12864 = vpop.permute.xlu0 %12863
  %12865 = vset.pattern.permute.xlu0 0
  %12866 = vperm.xlu0 %12865, %v10789
  %v12867 = vpop.permute.xlu0 %12866
  %12868 = vset.pattern.permute.xlu0 0
  %12869 = vperm.xlu0 %12868, %v10790
  %v12870 = vpop.permute.xlu0 %12869
  %12871 = vset.pattern.permute.xlu0 0
  %12872 = vperm.xlu0 %12871, %v10791
  %v12873 = vpop.permute.xlu0 %12872
  %12874 = vset.pattern.permute.xlu0 0
  %12875 = vperm.xlu0 %12874, %v10792
  %v12876 = vpop.permute.xlu0 %12875
  %12877 = vset.pattern.permute.xlu0 0
  %12878 = vperm.xlu0 %12877, %v10793
  %v12879 = vpop.permute.xlu0 %12878
  %12880 = vset.pattern.permute.xlu0 0
  %12881 = vperm.xlu0 %12880, %v10794
  %v12882 = vpop.permute.xlu0 %12881
  %12883 = vset.pattern.permute.xlu0 0
  %12884 = vperm.xlu0 %12883, %v10795
  %v12885 = vpop.permute.xlu0 %12884
  %12886 = vset.pattern.permute.xlu0 0
  %12887 = vperm.xlu0 %12886, %v10796
  %v12888 = vpop.permute.xlu0 %12887
  %12889 = vset.pattern.permute.xlu0 0
  %12890 = vperm.xlu0 %12889, %v10797
  %v12891 = vpop.permute.xlu0 %12890
  %12892 = vset.pattern.permute.xlu0 0
  %12893 = vperm.xlu0 %12892, %v10798
  %v12894 = vpop.permute.xlu0 %12893
  %12895 = vset.pattern.permute.xlu0 0
  %12896 = vperm.xlu0 %12895, %v10799
  %v12897 = vpop.permute.xlu0 %12896
  %12898 = vset.pattern.permute.xlu0 0
  %12899 = vperm.xlu0 %12898, %v10800
  %v12900 = vpop.permute.xlu0 %12899
  %12901 = vset.pattern.permute.xlu0 0
  %12902 = vperm.xlu0 %12901, %v10801
  %v12903 = vpop.permute.xlu0 %12902
  %12904 = vset.pattern.permute.xlu0 0
  %12905 = vperm.xlu0 %12904, %v10802
  %v12906 = vpop.permute.xlu0 %12905
  %12907 = vset.pattern.permute.xlu0 0
  %12908 = vperm.xlu0 %12907, %v10803
  %v12909 = vpop.permute.xlu0 %12908
  %12910 = vset.pattern.permute.xlu0 0
  %12911 = vperm.xlu0 %12910, %v10804
  %v12912 = vpop.permute.xlu0 %12911
  %12913 = vset.pattern.permute.xlu0 0
  %12914 = vperm.xlu0 %12913, %v10805
  %v12915 = vpop.permute.xlu0 %12914
  %12916 = vset.pattern.permute.xlu0 0
  %12917 = vperm.xlu0 %12916, %v10806
  %v12918 = vpop.permute.xlu0 %12917
  %12919 = vset.pattern.permute.xlu0 0
  %12920 = vperm.xlu0 %12919, %v10807
  %v12921 = vpop.permute.xlu0 %12920
  %12922 = vset.pattern.permute.xlu0 0
  %12923 = vperm.xlu0 %12922, %v10808
  %v12924 = vpop.permute.xlu0 %12923
  %12925 = vset.pattern.permute.xlu0 0
  %12926 = vperm.xlu0 %12925, %v10809
  %v12927 = vpop.permute.xlu0 %12926
  %12928 = vset.pattern.permute.xlu0 0
  %12929 = vperm.xlu0 %12928, %v10810
  %v12930 = vpop.permute.xlu0 %12929
  %12931 = vset.pattern.permute.xlu0 0
  %12932 = vperm.xlu0 %12931, %v10811
  %v12933 = vpop.permute.xlu0 %12932
  %12934 = vset.pattern.permute.xlu0 0
  %12935 = vperm.xlu0 %12934, %v10812
  %v12936 = vpop.permute.xlu0 %12935
  %12937 = vset.pattern.permute.xlu0 0
  %12938 = vperm.xlu0 %12937, %v10813
  %v12939 = vpop.permute.xlu0 %12938
  %12940 = vset.pattern.permute.xlu0 0
  %12941 = vperm.xlu0 %12940, %v10814
  %v12942 = vpop.permute.xlu0 %12941
  %12943 = vset.pattern.permute.xlu0 0
  %12944 = vperm.xlu0 %12943, %v10815
  %v12945 = vpop.permute.xlu0 %12944
  %12946 = vset.pattern.permute.xlu0 0
  %12947 = vperm.xlu0 %12946, %v10816
  %v12948 = vpop.permute.xlu0 %12947
  %12949 = vset.pattern.permute.xlu0 0
  %12950 = vperm.xlu0 %12949, %v10817
  %v12951 = vpop.permute.xlu0 %12950
  %12952 = vset.pattern.permute.xlu0 0
  %12953 = vperm.xlu0 %12952, %v10818
  %v12954 = vpop.permute.xlu0 %12953
  %12955 = vset.pattern.permute.xlu0 0
  %12956 = vperm.xlu0 %12955, %v10819
  %v12957 = vpop.permute.xlu0 %12956
  %12958 = vset.pattern.permute.xlu0 0
  %12959 = vperm.xlu0 %12958, %v10820
  %v12960 = vpop.permute.xlu0 %12959
  %12961 = vset.pattern.permute.xlu0 0
  %12962 = vperm.xlu0 %12961, %v10821
  %v12963 = vpop.permute.xlu0 %12962
  %12964 = vset.pattern.permute.xlu0 0
  %12965 = vperm.xlu0 %12964, %v10822
  %v12966 = vpop.permute.xlu0 %12965
  %12967 = vset.pattern.permute.xlu0 0
  %12968 = vperm.xlu0 %12967, %v10823
  %v12969 = vpop.permute.xlu0 %12968
  %12970 = vset.pattern.permute.xlu0 0
  %12971 = vperm.xlu0 %12970, %v10824
  %v12972 = vpop.permute.xlu0 %12971
  %12973 = vset.pattern.permute.xlu0 0
  %12974 = vperm.xlu0 %12973, %v10825
  %v12975 = vpop.permute.xlu0 %12974
  %12976 = vset.pattern.permute.xlu0 0
  %12977 = vperm.xlu0 %12976, %v10826
  %v12978 = vpop.permute.xlu0 %12977
  %12979 = vset.pattern.permute.xlu0 0
  %12980 = vperm.xlu0 %12979, %v10827
  %v12981 = vpop.permute.xlu0 %12980
  %12982 = vset.pattern.permute.xlu0 0
  %12983 = vperm.xlu0 %12982, %v10828
  %v12984 = vpop.permute.xlu0 %12983
  %12985 = vset.pattern.permute.xlu0 0
  %12986 = vperm.xlu0 %12985, %v10829
  %v12987 = vpop.permute.xlu0 %12986
  %12988 = vset.pattern.permute.xlu0 0
  %12989 = vperm.xlu0 %12988, %v10830
  %v12990 = vpop.permute.xlu0 %12989
  %12991 = vset.pattern.permute.xlu0 0
  %12992 = vperm.xlu0 %12991, %v10831
  %v12993 = vpop.permute.xlu0 %12992
  %12994 = vset.pattern.permute.xlu0 0
  %12995 = vperm.xlu0 %12994, %v10832
  %v12996 = vpop.permute.xlu0 %12995
  %12997 = vset.pattern.permute.xlu0 0
  %12998 = vperm.xlu0 %12997, %v10833
  %v12999 = vpop.permute.xlu0 %12998
  %13000 = vset.pattern.permute.xlu0 0
  %13001 = vperm.xlu0 %13000, %v10834
  %v13002 = vpop.permute.xlu0 %13001
  %13003 = vset.pattern.permute.xlu0 0
  %13004 = vperm.xlu0 %13003, %v10835
  %v13005 = vpop.permute.xlu0 %13004
  %13006 = vset.pattern.permute.xlu0 0
  %13007 = vperm.xlu0 %13006, %v10836
  %v13008 = vpop.permute.xlu0 %13007
  %13009 = vset.pattern.permute.xlu0 0
  %13010 = vperm.xlu0 %13009, %v10837
  %v13011 = vpop.permute.xlu0 %13010
  %13012 = vset.pattern.permute.xlu0 0
  %13013 = vperm.xlu0 %13012, %v10838
  %v13014 = vpop.permute.xlu0 %13013
  %13015 = vset.pattern.permute.xlu0 0
  %13016 = vperm.xlu0 %13015, %v10839
  %v13017 = vpop.permute.xlu0 %13016
  %13018 = vset.pattern.permute.xlu0 0
  %13019 = vperm.xlu0 %13018, %v10840
  %v13020 = vpop.permute.xlu0 %13019
  %13021 = vset.pattern.permute.xlu0 0
  %13022 = vperm.xlu0 %13021, %v10841
  %v13023 = vpop.permute.xlu0 %13022
  %13024 = vset.pattern.permute.xlu0 0
  %13025 = vperm.xlu0 %13024, %v10842
  %v13026 = vpop.permute.xlu0 %13025
  %13027 = vset.pattern.permute.xlu0 0
  %13028 = vperm.xlu0 %13027, %v10843
  %v13029 = vpop.permute.xlu0 %13028
  %13030 = vset.pattern.permute.xlu0 0
  %13031 = vperm.xlu0 %13030, %v10844
  %v13032 = vpop.permute.xlu0 %13031
  %13033 = vset.pattern.permute.xlu0 0
  %13034 = vperm.xlu0 %13033, %v10845
  %v13035 = vpop.permute.xlu0 %13034
  %13036 = vset.pattern.permute.xlu0 0
  %13037 = vperm.xlu0 %13036, %v10846
  %v13038 = vpop.permute.xlu0 %13037
  %13039 = vset.pattern.permute.xlu0 0
  %13040 = vperm.xlu0 %13039, %v10847
  %v13041 = vpop.permute.xlu0 %13040
  %13042 = vset.pattern.permute.xlu0 0
  %13043 = vperm.xlu0 %13042, %v10848
  %v13044 = vpop.permute.xlu0 %13043
  %13045 = vset.pattern.permute.xlu0 0
  %13046 = vperm.xlu0 %13045, %v10849
  %v13047 = vpop.permute.xlu0 %13046
  %13048 = vset.pattern.permute.xlu0 0
  %13049 = vperm.xlu0 %13048, %v10850
  %v13050 = vpop.permute.xlu0 %13049
  %13051 = vset.pattern.permute.xlu0 0
  %13052 = vperm.xlu0 %13051, %v10851
  %v13053 = vpop.permute.xlu0 %13052
  %13054 = vset.pattern.permute.xlu0 0
  %13055 = vperm.xlu0 %13054, %v10852
  %v13056 = vpop.permute.xlu0 %13055
  %13057 = vset.pattern.permute.xlu0 0
  %13058 = vperm.xlu0 %13057, %v10853
  %v13059 = vpop.permute.xlu0 %13058
  %13060 = vset.pattern.permute.xlu0 0
  %13061 = vperm.xlu0 %13060, %v10854
  %v13062 = vpop.permute.xlu0 %13061
  %13063 = vset.pattern.permute.xlu0 0
  %13064 = vperm.xlu0 %13063, %v10855
  %v13065 = vpop.permute.xlu0 %13064
  %13066 = vset.pattern.permute.xlu0 0
  %13067 = vperm.xlu0 %13066, %v10856
  %v13068 = vpop.permute.xlu0 %13067
  %13069 = vset.pattern.permute.xlu0 0
  %13070 = vperm.xlu0 %13069, %v10857
  %v13071 = vpop.permute.xlu0 %13070
  %13072 = vset.pattern.permute.xlu0 0
  %13073 = vperm.xlu0 %13072, %v10858
  %v13074 = vpop.permute.xlu0 %13073
  %13075 = vset.pattern.permute.xlu0 0
  %13076 = vperm.xlu0 %13075, %v10859
  %v13077 = vpop.permute.xlu0 %13076
  %13078 = vset.pattern.permute.xlu0 0
  %13079 = vperm.xlu0 %13078, %v10860
  %v13080 = vpop.permute.xlu0 %13079
  %13081 = vset.pattern.permute.xlu0 0
  %13082 = vperm.xlu0 %13081, %v10861
  %v13083 = vpop.permute.xlu0 %13082
  %13084 = vset.pattern.permute.xlu0 0
  %13085 = vperm.xlu0 %13084, %v10862
  %v13086 = vpop.permute.xlu0 %13085
  %13087 = vset.pattern.permute.xlu0 0
  %13088 = vperm.xlu0 %13087, %v10863
  %v13089 = vpop.permute.xlu0 %13088
  %13090 = vset.pattern.permute.xlu0 0
  %13091 = vperm.xlu0 %13090, %v10864
  %v13092 = vpop.permute.xlu0 %13091
  %13093 = vset.pattern.permute.xlu0 0
  %13094 = vperm.xlu0 %13093, %v10865
  %v13095 = vpop.permute.xlu0 %13094
  %13096 = vset.pattern.permute.xlu0 0
  %13097 = vperm.xlu0 %13096, %v10866
  %v13098 = vpop.permute.xlu0 %13097
  %13099 = vset.pattern.permute.xlu0 0
  %13100 = vperm.xlu0 %13099, %v10867
  %v13101 = vpop.permute.xlu0 %13100
  %13102 = vset.pattern.permute.xlu0 0
  %13103 = vperm.xlu0 %13102, %v10868
  %v13104 = vpop.permute.xlu0 %13103
  %13105 = vset.pattern.permute.xlu0 0
  %13106 = vperm.xlu0 %13105, %v10869
  %v13107 = vpop.permute.xlu0 %13106
  %13108 = vset.pattern.permute.xlu0 0
  %13109 = vperm.xlu0 %13108, %v10870
  %v13110 = vpop.permute.xlu0 %13109
  %13111 = vset.pattern.permute.xlu0 0
  %13112 = vperm.xlu0 %13111, %v10871
  %v13113 = vpop.permute.xlu0 %13112
  %13114 = vset.pattern.permute.xlu0 0
  %13115 = vperm.xlu0 %13114, %v10872
  %v13116 = vpop.permute.xlu0 %13115
  %13117 = vset.pattern.permute.xlu0 0
  %13118 = vperm.xlu0 %13117, %v10873
  %v13119 = vpop.permute.xlu0 %13118
  %13120 = vset.pattern.permute.xlu0 0
  %13121 = vperm.xlu0 %13120, %v10874
  %v13122 = vpop.permute.xlu0 %13121
  %13123 = vset.pattern.permute.xlu0 0
  %13124 = vperm.xlu0 %13123, %v10875
  %v13125 = vpop.permute.xlu0 %13124
  %13126 = vset.pattern.permute.xlu0 0
  %13127 = vperm.xlu0 %13126, %v10876
  %v13128 = vpop.permute.xlu0 %13127
  %13129 = vset.pattern.permute.xlu0 0
  %13130 = vperm.xlu0 %13129, %v10877
  %v13131 = vpop.permute.xlu0 %13130
  %13132 = vset.pattern.permute.xlu0 0
  %13133 = vperm.xlu0 %13132, %v10878
  %v13134 = vpop.permute.xlu0 %13133
  %13135 = vset.pattern.permute.xlu0 0
  %13136 = vperm.xlu0 %13135, %v10879
  %v13137 = vpop.permute.xlu0 %13136
  %13138 = vset.pattern.permute.xlu0 0
  %13139 = vperm.xlu0 %13138, %v10880
  %v13140 = vpop.permute.xlu0 %13139
  %13141 = vset.pattern.permute.xlu0 0
  %13142 = vperm.xlu0 %13141, %v10881
  %v13143 = vpop.permute.xlu0 %13142
  %13144 = vset.pattern.permute.xlu0 0
  %13145 = vperm.xlu0 %13144, %v10882
  %v13146 = vpop.permute.xlu0 %13145
  %13147 = vset.pattern.permute.xlu0 0
  %13148 = vperm.xlu0 %13147, %v10883
  %v13149 = vpop.permute.xlu0 %13148
  %13150 = vset.pattern.permute.xlu0 0
  %13151 = vperm.xlu0 %13150, %v10884
  %v13152 = vpop.permute.xlu0 %13151
  %13153 = vset.pattern.permute.xlu0 0
  %13154 = vperm.xlu0 %13153, %v10885
  %v13155 = vpop.permute.xlu0 %13154
  %13156 = vset.pattern.permute.xlu0 0
  %13157 = vperm.xlu0 %13156, %v10886
  %v13158 = vpop.permute.xlu0 %13157
  %13159 = vset.pattern.permute.xlu0 0
  %13160 = vperm.xlu0 %13159, %v10887
  %v13161 = vpop.permute.xlu0 %13160
  %13162 = vset.pattern.permute.xlu0 0
  %13163 = vperm.xlu0 %13162, %v10888
  %v13164 = vpop.permute.xlu0 %13163
  %13165 = vset.pattern.permute.xlu0 0
  %13166 = vperm.xlu0 %13165, %v10889
  %v13167 = vpop.permute.xlu0 %13166
  %13168 = vset.pattern.permute.xlu0 0
  %13169 = vperm.xlu0 %13168, %v10890
  %v13170 = vpop.permute.xlu0 %13169
  %13171 = vset.pattern.permute.xlu0 0
  %13172 = vperm.xlu0 %13171, %v10891
  %v13173 = vpop.permute.xlu0 %13172
  %13174 = vset.pattern.permute.xlu0 0
  %13175 = vperm.xlu0 %13174, %v10892
  %v13176 = vpop.permute.xlu0 %13175
  %13177 = vset.pattern.permute.xlu0 0
  %13178 = vperm.xlu0 %13177, %v10893
  %v13179 = vpop.permute.xlu0 %13178
  %13180 = vset.pattern.permute.xlu0 0
  %13181 = vperm.xlu0 %13180, %v10894
  %v13182 = vpop.permute.xlu0 %13181
  %13183 = vset.pattern.permute.xlu0 0
  %13184 = vperm.xlu0 %13183, %v10895
  %v13185 = vpop.permute.xlu0 %13184
  %13186 = vset.pattern.permute.xlu0 0
  %13187 = vperm.xlu0 %13186, %v10896
  %v13188 = vpop.permute.xlu0 %13187
  %13189 = vset.pattern.permute.xlu0 0
  %13190 = vperm.xlu0 %13189, %v10897
  %v13191 = vpop.permute.xlu0 %13190
  %13192 = vset.pattern.permute.xlu0 0
  %13193 = vperm.xlu0 %13192, %v10898
  %v13194 = vpop.permute.xlu0 %13193
  %13195 = vset.pattern.permute.xlu0 0
  %13196 = vperm.xlu0 %13195, %v10899
  %v13197 = vpop.permute.xlu0 %13196
  %13198 = vset.pattern.permute.xlu0 0
  %13199 = vperm.xlu0 %13198, %v10900
  %v13200 = vpop.permute.xlu0 %13199
  %13201 = vset.pattern.permute.xlu0 0
  %13202 = vperm.xlu0 %13201, %v10901
  %v13203 = vpop.permute.xlu0 %13202
  %13204 = vset.pattern.permute.xlu0 0
  %13205 = vperm.xlu0 %13204, %v10902
  %v13206 = vpop.permute.xlu0 %13205
  %13207 = vset.pattern.permute.xlu0 0
  %13208 = vperm.xlu0 %13207, %v10903
  %v13209 = vpop.permute.xlu0 %13208
  %13210 = vset.pattern.permute.xlu0 0
  %13211 = vperm.xlu0 %13210, %v10904
  %v13212 = vpop.permute.xlu0 %13211
  %v13213 = vlaneseq
  %v13214 = vand.u32 %v13213, 127
  %v13215 = vperm.slane %v11679, %v13214
  %v13216 = vadd.s32 %v13214, 4294967288
  %v13217 = vperm.slane %v11682, %v13216
  %vm13218 = vcmask 130112
  %v13219 = vsel %vm13218, %v13217, %v13215
  %v13220 = vadd.s32 %v13214, 4294967280
  %v13221 = vperm.slane %v11685, %v13220
  %vm13222 = vcmask 195712
  %v13223 = vsel %vm13222, %v13221, %v13219
  %v13224 = vadd.s32 %v13214, 4294967272
  %v13225 = vperm.slane %v11688, %v13224
  %vm13226 = vcmask 261312
  %v13227 = vsel %vm13226, %v13225, %v13223
  %v13228 = vadd.s32 %v13214, 4294967264
  %v13229 = vperm.slane %v11691, %v13228
  %vm13230 = vcmask 326912
  %v13231 = vsel %vm13230, %v13229, %v13227
  %v13232 = vadd.s32 %v13214, 4294967256
  %v13233 = vperm.slane %v11694, %v13232
  %vm13234 = vcmask 392512
  %v13235 = vsel %vm13234, %v13233, %v13231
  %v13236 = vadd.s32 %v13214, 4294967248
  %v13237 = vperm.slane %v11697, %v13236
  %vm13238 = vcmask 458112
  %v13239 = vsel %vm13238, %v13237, %v13235
  %v13240 = vadd.s32 %v13214, 4294967240
  %v13241 = vperm.slane %v11700, %v13240
  %vm13242 = vcmask 523712
  %v13243 = vsel %vm13242, %v13241, %v13239
  %v13244 = vadd.s32 %v13214, 4294967232
  %v13245 = vperm.slane %v11703, %v13244
  %vm13246 = vcmask 589312
  %v13247 = vsel %vm13246, %v13245, %v13243
  %v13248 = vadd.s32 %v13214, 4294967224
  %v13249 = vperm.slane %v11706, %v13248
  %vm13250 = vcmask 654912
  %v13251 = vsel %vm13250, %v13249, %v13247
  %v13252 = vadd.s32 %v13214, 4294967216
  %v13253 = vperm.slane %v11709, %v13252
  %vm13254 = vcmask 720512
  %v13255 = vsel %vm13254, %v13253, %v13251
  %v13256 = vadd.s32 %v13214, 4294967208
  %v13257 = vperm.slane %v11712, %v13256
  %vm13258 = vcmask 786112
  %v13259 = vsel %vm13258, %v13257, %v13255
  %v13260 = vadd.s32 %v13214, 4294967200
  %v13261 = vperm.slane %v11715, %v13260
  %vm13262 = vcmask 851712
  %v13263 = vsel %vm13262, %v13261, %v13259
  %v13264 = vadd.s32 %v13214, 4294967192
  %v13265 = vperm.slane %v11718, %v13264
  %vm13266 = vcmask 917312
  %v13267 = vsel %vm13266, %v13265, %v13263
  %v13268 = vadd.s32 %v13214, 4294967184
  %v13269 = vperm.slane %v11721, %v13268
  %vm13270 = vcmask 982912
  %v13271 = vsel %vm13270, %v13269, %v13267
  %v13272 = vadd.s32 %v13214, 4294967176
  %v13273 = vperm.slane %v11724, %v13272
  %vm13274 = vcmask 1048512
  %v13275 = vsel %vm13274, %v13273, %v13271
  %v13276 = vperm.slane %v11727, %v13214
  %v13277 = vperm.slane %v11730, %v13216
  %v13278 = vsel %vm13218, %v13277, %v13276
  %v13279 = vperm.slane %v11733, %v13220
  %v13280 = vsel %vm13222, %v13279, %v13278
  %v13281 = vperm.slane %v11736, %v13224
  %v13282 = vsel %vm13226, %v13281, %v13280
  %v13283 = vperm.slane %v11739, %v13228
  %v13284 = vsel %vm13230, %v13283, %v13282
  %v13285 = vperm.slane %v11742, %v13232
  %v13286 = vsel %vm13234, %v13285, %v13284
  %v13287 = vperm.slane %v11745, %v13236
  %v13288 = vsel %vm13238, %v13287, %v13286
  %v13289 = vperm.slane %v11748, %v13240
  %v13290 = vsel %vm13242, %v13289, %v13288
  %v13291 = vperm.slane %v11751, %v13244
  %v13292 = vsel %vm13246, %v13291, %v13290
  %v13293 = vperm.slane %v11754, %v13248
  %v13294 = vsel %vm13250, %v13293, %v13292
  %v13295 = vperm.slane %v11757, %v13252
  %v13296 = vsel %vm13254, %v13295, %v13294
  %v13297 = vperm.slane %v11760, %v13256
  %v13298 = vsel %vm13258, %v13297, %v13296
  %v13299 = vperm.slane %v11763, %v13260
  %v13300 = vsel %vm13262, %v13299, %v13298
  %v13301 = vperm.slane %v11766, %v13264
  %v13302 = vsel %vm13266, %v13301, %v13300
  %v13303 = vperm.slane %v11769, %v13268
  %v13304 = vsel %vm13270, %v13303, %v13302
  %v13305 = vperm.slane %v11772, %v13272
  %v13306 = vsel %vm13274, %v13305, %v13304
  %v13307 = vperm.slane %v11775, %v13214
  %v13308 = vperm.slane %v11778, %v13216
  %v13309 = vsel %vm13218, %v13308, %v13307
  %v13310 = vperm.slane %v11781, %v13220
  %v13311 = vsel %vm13222, %v13310, %v13309
  %v13312 = vperm.slane %v11784, %v13224
  %v13313 = vsel %vm13226, %v13312, %v13311
  %v13314 = vperm.slane %v11787, %v13228
  %v13315 = vsel %vm13230, %v13314, %v13313
  %v13316 = vperm.slane %v11790, %v13232
  %v13317 = vsel %vm13234, %v13316, %v13315
  %v13318 = vperm.slane %v11793, %v13236
  %v13319 = vsel %vm13238, %v13318, %v13317
  %v13320 = vperm.slane %v11796, %v13240
  %v13321 = vsel %vm13242, %v13320, %v13319
  %v13322 = vperm.slane %v11799, %v13244
  %v13323 = vsel %vm13246, %v13322, %v13321
  %v13324 = vperm.slane %v11802, %v13248
  %v13325 = vsel %vm13250, %v13324, %v13323
  %v13326 = vperm.slane %v11805, %v13252
  %v13327 = vsel %vm13254, %v13326, %v13325
  %v13328 = vperm.slane %v11808, %v13256
  %v13329 = vsel %vm13258, %v13328, %v13327
  %v13330 = vperm.slane %v11811, %v13260
  %v13331 = vsel %vm13262, %v13330, %v13329
  %v13332 = vperm.slane %v11814, %v13264
  %v13333 = vsel %vm13266, %v13332, %v13331
  %v13334 = vperm.slane %v11817, %v13268
  %v13335 = vsel %vm13270, %v13334, %v13333
  %v13336 = vperm.slane %v11820, %v13272
  %v13337 = vsel %vm13274, %v13336, %v13335
  %v13338 = vperm.slane %v11823, %v13214
  %v13339 = vperm.slane %v11826, %v13216
  %v13340 = vsel %vm13218, %v13339, %v13338
  %v13341 = vperm.slane %v11829, %v13220
  %v13342 = vsel %vm13222, %v13341, %v13340
  %v13343 = vperm.slane %v11832, %v13224
  %v13344 = vsel %vm13226, %v13343, %v13342
  %v13345 = vperm.slane %v11835, %v13228
  %v13346 = vsel %vm13230, %v13345, %v13344
  %v13347 = vperm.slane %v11838, %v13232
  %v13348 = vsel %vm13234, %v13347, %v13346
  %v13349 = vperm.slane %v11841, %v13236
  %v13350 = vsel %vm13238, %v13349, %v13348
  %v13351 = vperm.slane %v11844, %v13240
  %v13352 = vsel %vm13242, %v13351, %v13350
  %v13353 = vperm.slane %v11847, %v13244
  %v13354 = vsel %vm13246, %v13353, %v13352
  %v13355 = vperm.slane %v11850, %v13248
  %v13356 = vsel %vm13250, %v13355, %v13354
  %v13357 = vperm.slane %v11853, %v13252
  %v13358 = vsel %vm13254, %v13357, %v13356
  %v13359 = vperm.slane %v11856, %v13256
  %v13360 = vsel %vm13258, %v13359, %v13358
  %v13361 = vperm.slane %v11859, %v13260
  %v13362 = vsel %vm13262, %v13361, %v13360
  %v13363 = vperm.slane %v11862, %v13264
  %v13364 = vsel %vm13266, %v13363, %v13362
  %v13365 = vperm.slane %v11865, %v13268
  %v13366 = vsel %vm13270, %v13365, %v13364
  %v13367 = vperm.slane %v11868, %v13272
  %v13368 = vsel %vm13274, %v13367, %v13366
  %v13369 = vperm.slane %v11871, %v13214
  %v13370 = vperm.slane %v11874, %v13216
  %v13371 = vsel %vm13218, %v13370, %v13369
  %v13372 = vperm.slane %v11877, %v13220
  %v13373 = vsel %vm13222, %v13372, %v13371
  %v13374 = vperm.slane %v11880, %v13224
  %v13375 = vsel %vm13226, %v13374, %v13373
  %v13376 = vperm.slane %v11883, %v13228
  %v13377 = vsel %vm13230, %v13376, %v13375
  %v13378 = vperm.slane %v11886, %v13232
  %v13379 = vsel %vm13234, %v13378, %v13377
  %v13380 = vperm.slane %v11889, %v13236
  %v13381 = vsel %vm13238, %v13380, %v13379
  %v13382 = vperm.slane %v11892, %v13240
  %v13383 = vsel %vm13242, %v13382, %v13381
  %v13384 = vperm.slane %v11895, %v13244
  %v13385 = vsel %vm13246, %v13384, %v13383
  %v13386 = vperm.slane %v11898, %v13248
  %v13387 = vsel %vm13250, %v13386, %v13385
  %v13388 = vperm.slane %v11901, %v13252
  %v13389 = vsel %vm13254, %v13388, %v13387
  %v13390 = vperm.slane %v11904, %v13256
  %v13391 = vsel %vm13258, %v13390, %v13389
  %v13392 = vperm.slane %v11907, %v13260
  %v13393 = vsel %vm13262, %v13392, %v13391
  %v13394 = vperm.slane %v11910, %v13264
  %v13395 = vsel %vm13266, %v13394, %v13393
  %v13396 = vperm.slane %v11913, %v13268
  %v13397 = vsel %vm13270, %v13396, %v13395
  %v13398 = vperm.slane %v11916, %v13272
  %v13399 = vsel %vm13274, %v13398, %v13397
  %v13400 = vperm.slane %v11919, %v13214
  %v13401 = vperm.slane %v11922, %v13216
  %v13402 = vsel %vm13218, %v13401, %v13400
  %v13403 = vperm.slane %v11925, %v13220
  %v13404 = vsel %vm13222, %v13403, %v13402
  %v13405 = vperm.slane %v11928, %v13224
  %v13406 = vsel %vm13226, %v13405, %v13404
  %v13407 = vperm.slane %v11931, %v13228
  %v13408 = vsel %vm13230, %v13407, %v13406
  %v13409 = vperm.slane %v11934, %v13232
  %v13410 = vsel %vm13234, %v13409, %v13408
  %v13411 = vperm.slane %v11937, %v13236
  %v13412 = vsel %vm13238, %v13411, %v13410
  %v13413 = vperm.slane %v11940, %v13240
  %v13414 = vsel %vm13242, %v13413, %v13412
  %v13415 = vperm.slane %v11943, %v13244
  %v13416 = vsel %vm13246, %v13415, %v13414
  %v13417 = vperm.slane %v11946, %v13248
  %v13418 = vsel %vm13250, %v13417, %v13416
  %v13419 = vperm.slane %v11949, %v13252
  %v13420 = vsel %vm13254, %v13419, %v13418
  %v13421 = vperm.slane %v11952, %v13256
  %v13422 = vsel %vm13258, %v13421, %v13420
  %v13423 = vperm.slane %v11955, %v13260
  %v13424 = vsel %vm13262, %v13423, %v13422
  %v13425 = vperm.slane %v11958, %v13264
  %v13426 = vsel %vm13266, %v13425, %v13424
  %v13427 = vperm.slane %v11961, %v13268
  %v13428 = vsel %vm13270, %v13427, %v13426
  %v13429 = vperm.slane %v11964, %v13272
  %v13430 = vsel %vm13274, %v13429, %v13428
  %v13431 = vperm.slane %v11967, %v13214
  %v13432 = vperm.slane %v11970, %v13216
  %v13433 = vsel %vm13218, %v13432, %v13431
  %v13434 = vperm.slane %v11973, %v13220
  %v13435 = vsel %vm13222, %v13434, %v13433
  %v13436 = vperm.slane %v11976, %v13224
  %v13437 = vsel %vm13226, %v13436, %v13435
  %v13438 = vperm.slane %v11979, %v13228
  %v13439 = vsel %vm13230, %v13438, %v13437
  %v13440 = vperm.slane %v11982, %v13232
  %v13441 = vsel %vm13234, %v13440, %v13439
  %v13442 = vperm.slane %v11985, %v13236
  %v13443 = vsel %vm13238, %v13442, %v13441
  %v13444 = vperm.slane %v11988, %v13240
  %v13445 = vsel %vm13242, %v13444, %v13443
  %v13446 = vperm.slane %v11991, %v13244
  %v13447 = vsel %vm13246, %v13446, %v13445
  %v13448 = vperm.slane %v11994, %v13248
  %v13449 = vsel %vm13250, %v13448, %v13447
  %v13450 = vperm.slane %v11997, %v13252
  %v13451 = vsel %vm13254, %v13450, %v13449
  %v13452 = vperm.slane %v12000, %v13256
  %v13453 = vsel %vm13258, %v13452, %v13451
  %v13454 = vperm.slane %v12003, %v13260
  %v13455 = vsel %vm13262, %v13454, %v13453
  %v13456 = vperm.slane %v12006, %v13264
  %v13457 = vsel %vm13266, %v13456, %v13455
  %v13458 = vperm.slane %v12009, %v13268
  %v13459 = vsel %vm13270, %v13458, %v13457
  %v13460 = vperm.slane %v12012, %v13272
  %v13461 = vsel %vm13274, %v13460, %v13459
  %v13462 = vperm.slane %v12015, %v13214
  %v13463 = vperm.slane %v12018, %v13216
  %v13464 = vsel %vm13218, %v13463, %v13462
  %v13465 = vperm.slane %v12021, %v13220
  %v13466 = vsel %vm13222, %v13465, %v13464
  %v13467 = vperm.slane %v12024, %v13224
  %v13468 = vsel %vm13226, %v13467, %v13466
  %v13469 = vperm.slane %v12027, %v13228
  %v13470 = vsel %vm13230, %v13469, %v13468
  %v13471 = vperm.slane %v12030, %v13232
  %v13472 = vsel %vm13234, %v13471, %v13470
  %v13473 = vperm.slane %v12033, %v13236
  %v13474 = vsel %vm13238, %v13473, %v13472
  %v13475 = vperm.slane %v12036, %v13240
  %v13476 = vsel %vm13242, %v13475, %v13474
  %v13477 = vperm.slane %v12039, %v13244
  %v13478 = vsel %vm13246, %v13477, %v13476
  %v13479 = vperm.slane %v12042, %v13248
  %v13480 = vsel %vm13250, %v13479, %v13478
  %v13481 = vperm.slane %v12045, %v13252
  %v13482 = vsel %vm13254, %v13481, %v13480
  %v13483 = vperm.slane %v12048, %v13256
  %v13484 = vsel %vm13258, %v13483, %v13482
  %v13485 = vperm.slane %v12051, %v13260
  %v13486 = vsel %vm13262, %v13485, %v13484
  %v13487 = vperm.slane %v12054, %v13264
  %v13488 = vsel %vm13266, %v13487, %v13486
  %v13489 = vperm.slane %v12057, %v13268
  %v13490 = vsel %vm13270, %v13489, %v13488
  %v13491 = vperm.slane %v12060, %v13272
  %v13492 = vsel %vm13274, %v13491, %v13490
  %v13493 = vperm.slane %v12063, %v13214
  %v13494 = vperm.slane %v12066, %v13216
  %v13495 = vsel %vm13218, %v13494, %v13493
  %v13496 = vperm.slane %v12069, %v13220
  %v13497 = vsel %vm13222, %v13496, %v13495
  %v13498 = vperm.slane %v12072, %v13224
  %v13499 = vsel %vm13226, %v13498, %v13497
  %v13500 = vperm.slane %v12075, %v13228
  %v13501 = vsel %vm13230, %v13500, %v13499
  %v13502 = vperm.slane %v12078, %v13232
  %v13503 = vsel %vm13234, %v13502, %v13501
  %v13504 = vperm.slane %v12081, %v13236
  %v13505 = vsel %vm13238, %v13504, %v13503
  %v13506 = vperm.slane %v12084, %v13240
  %v13507 = vsel %vm13242, %v13506, %v13505
  %v13508 = vperm.slane %v12087, %v13244
  %v13509 = vsel %vm13246, %v13508, %v13507
  %v13510 = vperm.slane %v12090, %v13248
  %v13511 = vsel %vm13250, %v13510, %v13509
  %v13512 = vperm.slane %v12093, %v13252
  %v13513 = vsel %vm13254, %v13512, %v13511
  %v13514 = vperm.slane %v12096, %v13256
  %v13515 = vsel %vm13258, %v13514, %v13513
  %v13516 = vperm.slane %v12099, %v13260
  %v13517 = vsel %vm13262, %v13516, %v13515
  %v13518 = vperm.slane %v12102, %v13264
  %v13519 = vsel %vm13266, %v13518, %v13517
  %v13520 = vperm.slane %v12105, %v13268
  %v13521 = vsel %vm13270, %v13520, %v13519
  %v13522 = vperm.slane %v12108, %v13272
  %v13523 = vsel %vm13274, %v13522, %v13521
  %v13524 = vperm.slane %v12111, %v13214
  %v13525 = vperm.slane %v12114, %v13216
  %v13526 = vsel %vm13218, %v13525, %v13524
  %v13527 = vperm.slane %v12117, %v13220
  %v13528 = vsel %vm13222, %v13527, %v13526
  %v13529 = vperm.slane %v12120, %v13224
  %v13530 = vsel %vm13226, %v13529, %v13528
  %v13531 = vperm.slane %v12123, %v13228
  %v13532 = vsel %vm13230, %v13531, %v13530
  %v13533 = vperm.slane %v12126, %v13232
  %v13534 = vsel %vm13234, %v13533, %v13532
  %v13535 = vperm.slane %v12129, %v13236
  %v13536 = vsel %vm13238, %v13535, %v13534
  %v13537 = vperm.slane %v12132, %v13240
  %v13538 = vsel %vm13242, %v13537, %v13536
  %v13539 = vperm.slane %v12135, %v13244
  %v13540 = vsel %vm13246, %v13539, %v13538
  %v13541 = vperm.slane %v12138, %v13248
  %v13542 = vsel %vm13250, %v13541, %v13540
  %v13543 = vperm.slane %v12141, %v13252
  %v13544 = vsel %vm13254, %v13543, %v13542
  %v13545 = vperm.slane %v12144, %v13256
  %v13546 = vsel %vm13258, %v13545, %v13544
  %v13547 = vperm.slane %v12147, %v13260
  %v13548 = vsel %vm13262, %v13547, %v13546
  %v13549 = vperm.slane %v12150, %v13264
  %v13550 = vsel %vm13266, %v13549, %v13548
  %v13551 = vperm.slane %v12153, %v13268
  %v13552 = vsel %vm13270, %v13551, %v13550
  %v13553 = vperm.slane %v12156, %v13272
  %v13554 = vsel %vm13274, %v13553, %v13552
  %v13555 = vperm.slane %v12159, %v13214
  %v13556 = vperm.slane %v12162, %v13216
  %v13557 = vsel %vm13218, %v13556, %v13555
  %v13558 = vperm.slane %v12165, %v13220
  %v13559 = vsel %vm13222, %v13558, %v13557
  %v13560 = vperm.slane %v12168, %v13224
  %v13561 = vsel %vm13226, %v13560, %v13559
  %v13562 = vperm.slane %v12171, %v13228
  %v13563 = vsel %vm13230, %v13562, %v13561
  %v13564 = vperm.slane %v12174, %v13232
  %v13565 = vsel %vm13234, %v13564, %v13563
  %v13566 = vperm.slane %v12177, %v13236
  %v13567 = vsel %vm13238, %v13566, %v13565
  %v13568 = vperm.slane %v12180, %v13240
  %v13569 = vsel %vm13242, %v13568, %v13567
  %v13570 = vperm.slane %v12183, %v13244
  %v13571 = vsel %vm13246, %v13570, %v13569
  %v13572 = vperm.slane %v12186, %v13248
  %v13573 = vsel %vm13250, %v13572, %v13571
  %v13574 = vperm.slane %v12189, %v13252
  %v13575 = vsel %vm13254, %v13574, %v13573
  %v13576 = vperm.slane %v12192, %v13256
  %v13577 = vsel %vm13258, %v13576, %v13575
  %v13578 = vperm.slane %v12195, %v13260
  %v13579 = vsel %vm13262, %v13578, %v13577
  %v13580 = vperm.slane %v12198, %v13264
  %v13581 = vsel %vm13266, %v13580, %v13579
  %v13582 = vperm.slane %v12201, %v13268
  %v13583 = vsel %vm13270, %v13582, %v13581
  %v13584 = vperm.slane %v12204, %v13272
  %v13585 = vsel %vm13274, %v13584, %v13583
  %v13586 = vperm.slane %v12207, %v13214
  %v13587 = vperm.slane %v12210, %v13216
  %v13588 = vsel %vm13218, %v13587, %v13586
  %v13589 = vperm.slane %v12213, %v13220
  %v13590 = vsel %vm13222, %v13589, %v13588
  %v13591 = vperm.slane %v12216, %v13224
  %v13592 = vsel %vm13226, %v13591, %v13590
  %v13593 = vperm.slane %v12219, %v13228
  %v13594 = vsel %vm13230, %v13593, %v13592
  %v13595 = vperm.slane %v12222, %v13232
  %v13596 = vsel %vm13234, %v13595, %v13594
  %v13597 = vperm.slane %v12225, %v13236
  %v13598 = vsel %vm13238, %v13597, %v13596
  %v13599 = vperm.slane %v12228, %v13240
  %v13600 = vsel %vm13242, %v13599, %v13598
  %v13601 = vperm.slane %v12231, %v13244
  %v13602 = vsel %vm13246, %v13601, %v13600
  %v13603 = vperm.slane %v12234, %v13248
  %v13604 = vsel %vm13250, %v13603, %v13602
  %v13605 = vperm.slane %v12237, %v13252
  %v13606 = vsel %vm13254, %v13605, %v13604
  %v13607 = vperm.slane %v12240, %v13256
  %v13608 = vsel %vm13258, %v13607, %v13606
  %v13609 = vperm.slane %v12243, %v13260
  %v13610 = vsel %vm13262, %v13609, %v13608
  %v13611 = vperm.slane %v12246, %v13264
  %v13612 = vsel %vm13266, %v13611, %v13610
  %v13613 = vperm.slane %v12249, %v13268
  %v13614 = vsel %vm13270, %v13613, %v13612
  %v13615 = vperm.slane %v12252, %v13272
  %v13616 = vsel %vm13274, %v13615, %v13614
  %v13617 = vperm.slane %v12255, %v13214
  %v13618 = vperm.slane %v12258, %v13216
  %v13619 = vsel %vm13218, %v13618, %v13617
  %v13620 = vperm.slane %v12261, %v13220
  %v13621 = vsel %vm13222, %v13620, %v13619
  %v13622 = vperm.slane %v12264, %v13224
  %v13623 = vsel %vm13226, %v13622, %v13621
  %v13624 = vperm.slane %v12267, %v13228
  %v13625 = vsel %vm13230, %v13624, %v13623
  %v13626 = vperm.slane %v12270, %v13232
  %v13627 = vsel %vm13234, %v13626, %v13625
  %v13628 = vperm.slane %v12273, %v13236
  %v13629 = vsel %vm13238, %v13628, %v13627
  %v13630 = vperm.slane %v12276, %v13240
  %v13631 = vsel %vm13242, %v13630, %v13629
  %v13632 = vperm.slane %v12279, %v13244
  %v13633 = vsel %vm13246, %v13632, %v13631
  %v13634 = vperm.slane %v12282, %v13248
  %v13635 = vsel %vm13250, %v13634, %v13633
  %v13636 = vperm.slane %v12285, %v13252
  %v13637 = vsel %vm13254, %v13636, %v13635
  %v13638 = vperm.slane %v12288, %v13256
  %v13639 = vsel %vm13258, %v13638, %v13637
  %v13640 = vperm.slane %v12291, %v13260
  %v13641 = vsel %vm13262, %v13640, %v13639
  %v13642 = vperm.slane %v12294, %v13264
  %v13643 = vsel %vm13266, %v13642, %v13641
  %v13644 = vperm.slane %v12297, %v13268
  %v13645 = vsel %vm13270, %v13644, %v13643
  %v13646 = vperm.slane %v12300, %v13272
  %v13647 = vsel %vm13274, %v13646, %v13645
  %v13648 = vperm.slane %v12303, %v13214
  %v13649 = vperm.slane %v12306, %v13216
  %v13650 = vsel %vm13218, %v13649, %v13648
  %v13651 = vperm.slane %v12309, %v13220
  %v13652 = vsel %vm13222, %v13651, %v13650
  %v13653 = vperm.slane %v12312, %v13224
  %v13654 = vsel %vm13226, %v13653, %v13652
  %v13655 = vperm.slane %v12315, %v13228
  %v13656 = vsel %vm13230, %v13655, %v13654
  %v13657 = vperm.slane %v12318, %v13232
  %v13658 = vsel %vm13234, %v13657, %v13656
  %v13659 = vperm.slane %v12321, %v13236
  %v13660 = vsel %vm13238, %v13659, %v13658
  %v13661 = vperm.slane %v12324, %v13240
  %v13662 = vsel %vm13242, %v13661, %v13660
  %v13663 = vperm.slane %v12327, %v13244
  %v13664 = vsel %vm13246, %v13663, %v13662
  %v13665 = vperm.slane %v12330, %v13248
  %v13666 = vsel %vm13250, %v13665, %v13664
  %v13667 = vperm.slane %v12333, %v13252
  %v13668 = vsel %vm13254, %v13667, %v13666
  %v13669 = vperm.slane %v12336, %v13256
  %v13670 = vsel %vm13258, %v13669, %v13668
  %v13671 = vperm.slane %v12339, %v13260
  %v13672 = vsel %vm13262, %v13671, %v13670
  %v13673 = vperm.slane %v12342, %v13264
  %v13674 = vsel %vm13266, %v13673, %v13672
  %v13675 = vperm.slane %v12345, %v13268
  %v13676 = vsel %vm13270, %v13675, %v13674
  %v13677 = vperm.slane %v12348, %v13272
  %v13678 = vsel %vm13274, %v13677, %v13676
  %v13679 = vperm.slane %v12351, %v13214
  %v13680 = vperm.slane %v12354, %v13216
  %v13681 = vsel %vm13218, %v13680, %v13679
  %v13682 = vperm.slane %v12357, %v13220
  %v13683 = vsel %vm13222, %v13682, %v13681
  %v13684 = vperm.slane %v12360, %v13224
  %v13685 = vsel %vm13226, %v13684, %v13683
  %v13686 = vperm.slane %v12363, %v13228
  %v13687 = vsel %vm13230, %v13686, %v13685
  %v13688 = vperm.slane %v12366, %v13232
  %v13689 = vsel %vm13234, %v13688, %v13687
  %v13690 = vperm.slane %v12369, %v13236
  %v13691 = vsel %vm13238, %v13690, %v13689
  %v13692 = vperm.slane %v12372, %v13240
  %v13693 = vsel %vm13242, %v13692, %v13691
  %v13694 = vperm.slane %v12375, %v13244
  %v13695 = vsel %vm13246, %v13694, %v13693
  %v13696 = vperm.slane %v12378, %v13248
  %v13697 = vsel %vm13250, %v13696, %v13695
  %v13698 = vperm.slane %v12381, %v13252
  %v13699 = vsel %vm13254, %v13698, %v13697
  %v13700 = vperm.slane %v12384, %v13256
  %v13701 = vsel %vm13258, %v13700, %v13699
  %v13702 = vperm.slane %v12387, %v13260
  %v13703 = vsel %vm13262, %v13702, %v13701
  %v13704 = vperm.slane %v12390, %v13264
  %v13705 = vsel %vm13266, %v13704, %v13703
  %v13706 = vperm.slane %v12393, %v13268
  %v13707 = vsel %vm13270, %v13706, %v13705
  %v13708 = vperm.slane %v12396, %v13272
  %v13709 = vsel %vm13274, %v13708, %v13707
  %v13710 = vperm.slane %v12399, %v13214
  %v13711 = vperm.slane %v12402, %v13216
  %v13712 = vsel %vm13218, %v13711, %v13710
  %v13713 = vperm.slane %v12405, %v13220
  %v13714 = vsel %vm13222, %v13713, %v13712
  %v13715 = vperm.slane %v12408, %v13224
  %v13716 = vsel %vm13226, %v13715, %v13714
  %v13717 = vperm.slane %v12411, %v13228
  %v13718 = vsel %vm13230, %v13717, %v13716
  %v13719 = vperm.slane %v12414, %v13232
  %v13720 = vsel %vm13234, %v13719, %v13718
  %v13721 = vperm.slane %v12417, %v13236
  %v13722 = vsel %vm13238, %v13721, %v13720
  %v13723 = vperm.slane %v12420, %v13240
  %v13724 = vsel %vm13242, %v13723, %v13722
  %v13725 = vperm.slane %v12423, %v13244
  %v13726 = vsel %vm13246, %v13725, %v13724
  %v13727 = vperm.slane %v12426, %v13248
  %v13728 = vsel %vm13250, %v13727, %v13726
  %v13729 = vperm.slane %v12429, %v13252
  %v13730 = vsel %vm13254, %v13729, %v13728
  %v13731 = vperm.slane %v12432, %v13256
  %v13732 = vsel %vm13258, %v13731, %v13730
  %v13733 = vperm.slane %v12435, %v13260
  %v13734 = vsel %vm13262, %v13733, %v13732
  %v13735 = vperm.slane %v12438, %v13264
  %v13736 = vsel %vm13266, %v13735, %v13734
  %v13737 = vperm.slane %v12441, %v13268
  %v13738 = vsel %vm13270, %v13737, %v13736
  %v13739 = vperm.slane %v12444, %v13272
  %v13740 = vsel %vm13274, %v13739, %v13738
  %v13741 = vperm.slane %v12447, %v13214
  %v13742 = vperm.slane %v12450, %v13216
  %v13743 = vsel %vm13218, %v13742, %v13741
  %v13744 = vperm.slane %v12453, %v13220
  %v13745 = vsel %vm13222, %v13744, %v13743
  %v13746 = vperm.slane %v12456, %v13224
  %v13747 = vsel %vm13226, %v13746, %v13745
  %v13748 = vperm.slane %v12459, %v13228
  %v13749 = vsel %vm13230, %v13748, %v13747
  %v13750 = vperm.slane %v12462, %v13232
  %v13751 = vsel %vm13234, %v13750, %v13749
  %v13752 = vperm.slane %v12465, %v13236
  %v13753 = vsel %vm13238, %v13752, %v13751
  %v13754 = vperm.slane %v12468, %v13240
  %v13755 = vsel %vm13242, %v13754, %v13753
  %v13756 = vperm.slane %v12471, %v13244
  %v13757 = vsel %vm13246, %v13756, %v13755
  %v13758 = vperm.slane %v12474, %v13248
  %v13759 = vsel %vm13250, %v13758, %v13757
  %v13760 = vperm.slane %v12477, %v13252
  %v13761 = vsel %vm13254, %v13760, %v13759
  %v13762 = vperm.slane %v12480, %v13256
  %v13763 = vsel %vm13258, %v13762, %v13761
  %v13764 = vperm.slane %v12483, %v13260
  %v13765 = vsel %vm13262, %v13764, %v13763
  %v13766 = vperm.slane %v12486, %v13264
  %v13767 = vsel %vm13266, %v13766, %v13765
  %v13768 = vperm.slane %v12489, %v13268
  %v13769 = vsel %vm13270, %v13768, %v13767
  %v13770 = vperm.slane %v12492, %v13272
  %v13771 = vsel %vm13274, %v13770, %v13769
  %v13772 = vperm.slane %v12495, %v13214
  %v13773 = vperm.slane %v12498, %v13216
  %v13774 = vsel %vm13218, %v13773, %v13772
  %v13775 = vperm.slane %v12501, %v13220
  %v13776 = vsel %vm13222, %v13775, %v13774
  %v13777 = vperm.slane %v12504, %v13224
  %v13778 = vsel %vm13226, %v13777, %v13776
  %v13779 = vperm.slane %v12507, %v13228
  %v13780 = vsel %vm13230, %v13779, %v13778
  %v13781 = vperm.slane %v12510, %v13232
  %v13782 = vsel %vm13234, %v13781, %v13780
  %v13783 = vperm.slane %v12513, %v13236
  %v13784 = vsel %vm13238, %v13783, %v13782
  %v13785 = vperm.slane %v12516, %v13240
  %v13786 = vsel %vm13242, %v13785, %v13784
  %v13787 = vperm.slane %v12519, %v13244
  %v13788 = vsel %vm13246, %v13787, %v13786
  %v13789 = vperm.slane %v12522, %v13248
  %v13790 = vsel %vm13250, %v13789, %v13788
  %v13791 = vperm.slane %v12525, %v13252
  %v13792 = vsel %vm13254, %v13791, %v13790
  %v13793 = vperm.slane %v12528, %v13256
  %v13794 = vsel %vm13258, %v13793, %v13792
  %v13795 = vperm.slane %v12531, %v13260
  %v13796 = vsel %vm13262, %v13795, %v13794
  %v13797 = vperm.slane %v12534, %v13264
  %v13798 = vsel %vm13266, %v13797, %v13796
  %v13799 = vperm.slane %v12537, %v13268
  %v13800 = vsel %vm13270, %v13799, %v13798
  %v13801 = vperm.slane %v12540, %v13272
  %v13802 = vsel %vm13274, %v13801, %v13800
  %v13803 = vperm.slane %v12543, %v13214
  %v13804 = vperm.slane %v12546, %v13216
  %v13805 = vsel %vm13218, %v13804, %v13803
  %v13806 = vperm.slane %v12549, %v13220
  %v13807 = vsel %vm13222, %v13806, %v13805
  %v13808 = vperm.slane %v12552, %v13224
  %v13809 = vsel %vm13226, %v13808, %v13807
  %v13810 = vperm.slane %v12555, %v13228
  %v13811 = vsel %vm13230, %v13810, %v13809
  %v13812 = vperm.slane %v12558, %v13232
  %v13813 = vsel %vm13234, %v13812, %v13811
  %v13814 = vperm.slane %v12561, %v13236
  %v13815 = vsel %vm13238, %v13814, %v13813
  %v13816 = vperm.slane %v12564, %v13240
  %v13817 = vsel %vm13242, %v13816, %v13815
  %v13818 = vperm.slane %v12567, %v13244
  %v13819 = vsel %vm13246, %v13818, %v13817
  %v13820 = vperm.slane %v12570, %v13248
  %v13821 = vsel %vm13250, %v13820, %v13819
  %v13822 = vperm.slane %v12573, %v13252
  %v13823 = vsel %vm13254, %v13822, %v13821
  %v13824 = vperm.slane %v12576, %v13256
  %v13825 = vsel %vm13258, %v13824, %v13823
  %v13826 = vperm.slane %v12579, %v13260
  %v13827 = vsel %vm13262, %v13826, %v13825
  %v13828 = vperm.slane %v12582, %v13264
  %v13829 = vsel %vm13266, %v13828, %v13827
  %v13830 = vperm.slane %v12585, %v13268
  %v13831 = vsel %vm13270, %v13830, %v13829
  %v13832 = vperm.slane %v12588, %v13272
  %v13833 = vsel %vm13274, %v13832, %v13831
  %v13834 = vperm.slane %v12591, %v13214
  %v13835 = vperm.slane %v12594, %v13216
  %v13836 = vsel %vm13218, %v13835, %v13834
  %v13837 = vperm.slane %v12597, %v13220
  %v13838 = vsel %vm13222, %v13837, %v13836
  %v13839 = vperm.slane %v12600, %v13224
  %v13840 = vsel %vm13226, %v13839, %v13838
  %v13841 = vperm.slane %v12603, %v13228
  %v13842 = vsel %vm13230, %v13841, %v13840
  %v13843 = vperm.slane %v12606, %v13232
  %v13844 = vsel %vm13234, %v13843, %v13842
  %v13845 = vperm.slane %v12609, %v13236
  %v13846 = vsel %vm13238, %v13845, %v13844
  %v13847 = vperm.slane %v12612, %v13240
  %v13848 = vsel %vm13242, %v13847, %v13846
  %v13849 = vperm.slane %v12615, %v13244
  %v13850 = vsel %vm13246, %v13849, %v13848
  %v13851 = vperm.slane %v12618, %v13248
  %v13852 = vsel %vm13250, %v13851, %v13850
  %v13853 = vperm.slane %v12621, %v13252
  %v13854 = vsel %vm13254, %v13853, %v13852
  %v13855 = vperm.slane %v12624, %v13256
  %v13856 = vsel %vm13258, %v13855, %v13854
  %v13857 = vperm.slane %v12627, %v13260
  %v13858 = vsel %vm13262, %v13857, %v13856
  %v13859 = vperm.slane %v12630, %v13264
  %v13860 = vsel %vm13266, %v13859, %v13858
  %v13861 = vperm.slane %v12633, %v13268
  %v13862 = vsel %vm13270, %v13861, %v13860
  %v13863 = vperm.slane %v12636, %v13272
  %v13864 = vsel %vm13274, %v13863, %v13862
  %v13865 = vperm.slane %v12639, %v13214
  %v13866 = vperm.slane %v12642, %v13216
  %v13867 = vsel %vm13218, %v13866, %v13865
  %v13868 = vperm.slane %v12645, %v13220
  %v13869 = vsel %vm13222, %v13868, %v13867
  %v13870 = vperm.slane %v12648, %v13224
  %v13871 = vsel %vm13226, %v13870, %v13869
  %v13872 = vperm.slane %v12651, %v13228
  %v13873 = vsel %vm13230, %v13872, %v13871
  %v13874 = vperm.slane %v12654, %v13232
  %v13875 = vsel %vm13234, %v13874, %v13873
  %v13876 = vperm.slane %v12657, %v13236
  %v13877 = vsel %vm13238, %v13876, %v13875
  %v13878 = vperm.slane %v12660, %v13240
  %v13879 = vsel %vm13242, %v13878, %v13877
  %v13880 = vperm.slane %v12663, %v13244
  %v13881 = vsel %vm13246, %v13880, %v13879
  %v13882 = vperm.slane %v12666, %v13248
  %v13883 = vsel %vm13250, %v13882, %v13881
  %v13884 = vperm.slane %v12669, %v13252
  %v13885 = vsel %vm13254, %v13884, %v13883
  %v13886 = vperm.slane %v12672, %v13256
  %v13887 = vsel %vm13258, %v13886, %v13885
  %v13888 = vperm.slane %v12675, %v13260
  %v13889 = vsel %vm13262, %v13888, %v13887
  %v13890 = vperm.slane %v12678, %v13264
  %v13891 = vsel %vm13266, %v13890, %v13889
  %v13892 = vperm.slane %v12681, %v13268
  %v13893 = vsel %vm13270, %v13892, %v13891
  %v13894 = vperm.slane %v12684, %v13272
  %v13895 = vsel %vm13274, %v13894, %v13893
  %v13896 = vperm.slane %v12687, %v13214
  %v13897 = vperm.slane %v12690, %v13216
  %v13898 = vsel %vm13218, %v13897, %v13896
  %v13899 = vperm.slane %v12693, %v13220
  %v13900 = vsel %vm13222, %v13899, %v13898
  %v13901 = vperm.slane %v12696, %v13224
  %v13902 = vsel %vm13226, %v13901, %v13900
  %v13903 = vperm.slane %v12699, %v13228
  %v13904 = vsel %vm13230, %v13903, %v13902
  %v13905 = vperm.slane %v12702, %v13232
  %v13906 = vsel %vm13234, %v13905, %v13904
  %v13907 = vperm.slane %v12705, %v13236
  %v13908 = vsel %vm13238, %v13907, %v13906
  %v13909 = vperm.slane %v12708, %v13240
  %v13910 = vsel %vm13242, %v13909, %v13908
  %v13911 = vperm.slane %v12711, %v13244
  %v13912 = vsel %vm13246, %v13911, %v13910
  %v13913 = vperm.slane %v12714, %v13248
  %v13914 = vsel %vm13250, %v13913, %v13912
  %v13915 = vperm.slane %v12717, %v13252
  %v13916 = vsel %vm13254, %v13915, %v13914
  %v13917 = vperm.slane %v12720, %v13256
  %v13918 = vsel %vm13258, %v13917, %v13916
  %v13919 = vperm.slane %v12723, %v13260
  %v13920 = vsel %vm13262, %v13919, %v13918
  %v13921 = vperm.slane %v12726, %v13264
  %v13922 = vsel %vm13266, %v13921, %v13920
  %v13923 = vperm.slane %v12729, %v13268
  %v13924 = vsel %vm13270, %v13923, %v13922
  %v13925 = vperm.slane %v12732, %v13272
  %v13926 = vsel %vm13274, %v13925, %v13924
  %v13927 = vperm.slane %v12735, %v13214
  %v13928 = vperm.slane %v12738, %v13216
  %v13929 = vsel %vm13218, %v13928, %v13927
  %v13930 = vperm.slane %v12741, %v13220
  %v13931 = vsel %vm13222, %v13930, %v13929
  %v13932 = vperm.slane %v12744, %v13224
  %v13933 = vsel %vm13226, %v13932, %v13931
  %v13934 = vperm.slane %v12747, %v13228
  %v13935 = vsel %vm13230, %v13934, %v13933
  %v13936 = vperm.slane %v12750, %v13232
  %v13937 = vsel %vm13234, %v13936, %v13935
  %v13938 = vperm.slane %v12753, %v13236
  %v13939 = vsel %vm13238, %v13938, %v13937
  %v13940 = vperm.slane %v12756, %v13240
  %v13941 = vsel %vm13242, %v13940, %v13939
  %v13942 = vperm.slane %v12759, %v13244
  %v13943 = vsel %vm13246, %v13942, %v13941
  %v13944 = vperm.slane %v12762, %v13248
  %v13945 = vsel %vm13250, %v13944, %v13943
  %v13946 = vperm.slane %v12765, %v13252
  %v13947 = vsel %vm13254, %v13946, %v13945
  %v13948 = vperm.slane %v12768, %v13256
  %v13949 = vsel %vm13258, %v13948, %v13947
  %v13950 = vperm.slane %v12771, %v13260
  %v13951 = vsel %vm13262, %v13950, %v13949
  %v13952 = vperm.slane %v12774, %v13264
  %v13953 = vsel %vm13266, %v13952, %v13951
  %v13954 = vperm.slane %v12777, %v13268
  %v13955 = vsel %vm13270, %v13954, %v13953
  %v13956 = vperm.slane %v12780, %v13272
  %v13957 = vsel %vm13274, %v13956, %v13955
  %v13958 = vperm.slane %v12783, %v13214
  %v13959 = vperm.slane %v12786, %v13216
  %v13960 = vsel %vm13218, %v13959, %v13958
  %v13961 = vperm.slane %v12789, %v13220
  %v13962 = vsel %vm13222, %v13961, %v13960
  %v13963 = vperm.slane %v12792, %v13224
  %v13964 = vsel %vm13226, %v13963, %v13962
  %v13965 = vperm.slane %v12795, %v13228
  %v13966 = vsel %vm13230, %v13965, %v13964
  %v13967 = vperm.slane %v12798, %v13232
  %v13968 = vsel %vm13234, %v13967, %v13966
  %v13969 = vperm.slane %v12801, %v13236
  %v13970 = vsel %vm13238, %v13969, %v13968
  %v13971 = vperm.slane %v12804, %v13240
  %v13972 = vsel %vm13242, %v13971, %v13970
  %v13973 = vperm.slane %v12807, %v13244
  %v13974 = vsel %vm13246, %v13973, %v13972
  %v13975 = vperm.slane %v12810, %v13248
  %v13976 = vsel %vm13250, %v13975, %v13974
  %v13977 = vperm.slane %v12813, %v13252
  %v13978 = vsel %vm13254, %v13977, %v13976
  %v13979 = vperm.slane %v12816, %v13256
  %v13980 = vsel %vm13258, %v13979, %v13978
  %v13981 = vperm.slane %v12819, %v13260
  %v13982 = vsel %vm13262, %v13981, %v13980
  %v13983 = vperm.slane %v12822, %v13264
  %v13984 = vsel %vm13266, %v13983, %v13982
  %v13985 = vperm.slane %v12825, %v13268
  %v13986 = vsel %vm13270, %v13985, %v13984
  %v13987 = vperm.slane %v12828, %v13272
  %v13988 = vsel %vm13274, %v13987, %v13986
  %v13989 = vperm.slane %v12831, %v13214
  %v13990 = vperm.slane %v12834, %v13216
  %v13991 = vsel %vm13218, %v13990, %v13989
  %v13992 = vperm.slane %v12837, %v13220
  %v13993 = vsel %vm13222, %v13992, %v13991
  %v13994 = vperm.slane %v12840, %v13224
  %v13995 = vsel %vm13226, %v13994, %v13993
  %v13996 = vperm.slane %v12843, %v13228
  %v13997 = vsel %vm13230, %v13996, %v13995
  %v13998 = vperm.slane %v12846, %v13232
  %v13999 = vsel %vm13234, %v13998, %v13997
  %v14000 = vperm.slane %v12849, %v13236
  %v14001 = vsel %vm13238, %v14000, %v13999
  %v14002 = vperm.slane %v12852, %v13240
  %v14003 = vsel %vm13242, %v14002, %v14001
  %v14004 = vperm.slane %v12855, %v13244
  %v14005 = vsel %vm13246, %v14004, %v14003
  %v14006 = vperm.slane %v12858, %v13248
  %v14007 = vsel %vm13250, %v14006, %v14005
  %v14008 = vperm.slane %v12861, %v13252
  %v14009 = vsel %vm13254, %v14008, %v14007
  %v14010 = vperm.slane %v12864, %v13256
  %v14011 = vsel %vm13258, %v14010, %v14009
  %v14012 = vperm.slane %v12867, %v13260
  %v14013 = vsel %vm13262, %v14012, %v14011
  %v14014 = vperm.slane %v12870, %v13264
  %v14015 = vsel %vm13266, %v14014, %v14013
  %v14016 = vperm.slane %v12873, %v13268
  %v14017 = vsel %vm13270, %v14016, %v14015
  %v14018 = vperm.slane %v12876, %v13272
  %v14019 = vsel %vm13274, %v14018, %v14017
  %v14020 = vperm.slane %v12879, %v13214
  %v14021 = vperm.slane %v12882, %v13216
  %v14022 = vsel %vm13218, %v14021, %v14020
  %v14023 = vperm.slane %v12885, %v13220
  %v14024 = vsel %vm13222, %v14023, %v14022
  %v14025 = vperm.slane %v12888, %v13224
  %v14026 = vsel %vm13226, %v14025, %v14024
  %v14027 = vperm.slane %v12891, %v13228
  %v14028 = vsel %vm13230, %v14027, %v14026
  %v14029 = vperm.slane %v12894, %v13232
  %v14030 = vsel %vm13234, %v14029, %v14028
  %v14031 = vperm.slane %v12897, %v13236
  %v14032 = vsel %vm13238, %v14031, %v14030
  %v14033 = vperm.slane %v12900, %v13240
  %v14034 = vsel %vm13242, %v14033, %v14032
  %v14035 = vperm.slane %v12903, %v13244
  %v14036 = vsel %vm13246, %v14035, %v14034
  %v14037 = vperm.slane %v12906, %v13248
  %v14038 = vsel %vm13250, %v14037, %v14036
  %v14039 = vperm.slane %v12909, %v13252
  %v14040 = vsel %vm13254, %v14039, %v14038
  %v14041 = vperm.slane %v12912, %v13256
  %v14042 = vsel %vm13258, %v14041, %v14040
  %v14043 = vperm.slane %v12915, %v13260
  %v14044 = vsel %vm13262, %v14043, %v14042
  %v14045 = vperm.slane %v12918, %v13264
  %v14046 = vsel %vm13266, %v14045, %v14044
  %v14047 = vperm.slane %v12921, %v13268
  %v14048 = vsel %vm13270, %v14047, %v14046
  %v14049 = vperm.slane %v12924, %v13272
  %v14050 = vsel %vm13274, %v14049, %v14048
  %v14051 = vperm.slane %v12927, %v13214
  %v14052 = vperm.slane %v12930, %v13216
  %v14053 = vsel %vm13218, %v14052, %v14051
  %v14054 = vperm.slane %v12933, %v13220
  %v14055 = vsel %vm13222, %v14054, %v14053
  %v14056 = vperm.slane %v12936, %v13224
  %v14057 = vsel %vm13226, %v14056, %v14055
  %v14058 = vperm.slane %v12939, %v13228
  %v14059 = vsel %vm13230, %v14058, %v14057
  %v14060 = vperm.slane %v12942, %v13232
  %v14061 = vsel %vm13234, %v14060, %v14059
  %v14062 = vperm.slane %v12945, %v13236
  %v14063 = vsel %vm13238, %v14062, %v14061
  %v14064 = vperm.slane %v12948, %v13240
  %v14065 = vsel %vm13242, %v14064, %v14063
  %v14066 = vperm.slane %v12951, %v13244
  %v14067 = vsel %vm13246, %v14066, %v14065
  %v14068 = vperm.slane %v12954, %v13248
  %v14069 = vsel %vm13250, %v14068, %v14067
  %v14070 = vperm.slane %v12957, %v13252
  %v14071 = vsel %vm13254, %v14070, %v14069
  %v14072 = vperm.slane %v12960, %v13256
  %v14073 = vsel %vm13258, %v14072, %v14071
  %v14074 = vperm.slane %v12963, %v13260
  %v14075 = vsel %vm13262, %v14074, %v14073
  %v14076 = vperm.slane %v12966, %v13264
  %v14077 = vsel %vm13266, %v14076, %v14075
  %v14078 = vperm.slane %v12969, %v13268
  %v14079 = vsel %vm13270, %v14078, %v14077
  %v14080 = vperm.slane %v12972, %v13272
  %v14081 = vsel %vm13274, %v14080, %v14079
  %v14082 = vperm.slane %v12975, %v13214
  %v14083 = vperm.slane %v12978, %v13216
  %v14084 = vsel %vm13218, %v14083, %v14082
  %v14085 = vperm.slane %v12981, %v13220
  %v14086 = vsel %vm13222, %v14085, %v14084
  %v14087 = vperm.slane %v12984, %v13224
  %v14088 = vsel %vm13226, %v14087, %v14086
  %v14089 = vperm.slane %v12987, %v13228
  %v14090 = vsel %vm13230, %v14089, %v14088
  %v14091 = vperm.slane %v12990, %v13232
  %v14092 = vsel %vm13234, %v14091, %v14090
  %v14093 = vperm.slane %v12993, %v13236
  %v14094 = vsel %vm13238, %v14093, %v14092
  %v14095 = vperm.slane %v12996, %v13240
  %v14096 = vsel %vm13242, %v14095, %v14094
  %v14097 = vperm.slane %v12999, %v13244
  %v14098 = vsel %vm13246, %v14097, %v14096
  %v14099 = vperm.slane %v13002, %v13248
  %v14100 = vsel %vm13250, %v14099, %v14098
  %v14101 = vperm.slane %v13005, %v13252
  %v14102 = vsel %vm13254, %v14101, %v14100
  %v14103 = vperm.slane %v13008, %v13256
  %v14104 = vsel %vm13258, %v14103, %v14102
  %v14105 = vperm.slane %v13011, %v13260
  %v14106 = vsel %vm13262, %v14105, %v14104
  %v14107 = vperm.slane %v13014, %v13264
  %v14108 = vsel %vm13266, %v14107, %v14106
  %v14109 = vperm.slane %v13017, %v13268
  %v14110 = vsel %vm13270, %v14109, %v14108
  %v14111 = vperm.slane %v13020, %v13272
  %v14112 = vsel %vm13274, %v14111, %v14110
  %v14113 = vperm.slane %v13023, %v13214
  %v14114 = vperm.slane %v13026, %v13216
  %v14115 = vsel %vm13218, %v14114, %v14113
  %v14116 = vperm.slane %v13029, %v13220
  %v14117 = vsel %vm13222, %v14116, %v14115
  %v14118 = vperm.slane %v13032, %v13224
  %v14119 = vsel %vm13226, %v14118, %v14117
  %v14120 = vperm.slane %v13035, %v13228
  %v14121 = vsel %vm13230, %v14120, %v14119
  %v14122 = vperm.slane %v13038, %v13232
  %v14123 = vsel %vm13234, %v14122, %v14121
  %v14124 = vperm.slane %v13041, %v13236
  %v14125 = vsel %vm13238, %v14124, %v14123
  %v14126 = vperm.slane %v13044, %v13240
  %v14127 = vsel %vm13242, %v14126, %v14125
  %v14128 = vperm.slane %v13047, %v13244
  %v14129 = vsel %vm13246, %v14128, %v14127
  %v14130 = vperm.slane %v13050, %v13248
  %v14131 = vsel %vm13250, %v14130, %v14129
  %v14132 = vperm.slane %v13053, %v13252
  %v14133 = vsel %vm13254, %v14132, %v14131
  %v14134 = vperm.slane %v13056, %v13256
  %v14135 = vsel %vm13258, %v14134, %v14133
  %v14136 = vperm.slane %v13059, %v13260
  %v14137 = vsel %vm13262, %v14136, %v14135
  %v14138 = vperm.slane %v13062, %v13264
  %v14139 = vsel %vm13266, %v14138, %v14137
  %v14140 = vperm.slane %v13065, %v13268
  %v14141 = vsel %vm13270, %v14140, %v14139
  %v14142 = vperm.slane %v13068, %v13272
  %v14143 = vsel %vm13274, %v14142, %v14141
  %v14144 = vperm.slane %v13071, %v13214
  %v14145 = vperm.slane %v13074, %v13216
  %v14146 = vsel %vm13218, %v14145, %v14144
  %v14147 = vperm.slane %v13077, %v13220
  %v14148 = vsel %vm13222, %v14147, %v14146
  %v14149 = vperm.slane %v13080, %v13224
  %v14150 = vsel %vm13226, %v14149, %v14148
  %v14151 = vperm.slane %v13083, %v13228
  %v14152 = vsel %vm13230, %v14151, %v14150
  %v14153 = vperm.slane %v13086, %v13232
  %v14154 = vsel %vm13234, %v14153, %v14152
  %v14155 = vperm.slane %v13089, %v13236
  %v14156 = vsel %vm13238, %v14155, %v14154
  %v14157 = vperm.slane %v13092, %v13240
  %v14158 = vsel %vm13242, %v14157, %v14156
  %v14159 = vperm.slane %v13095, %v13244
  %v14160 = vsel %vm13246, %v14159, %v14158
  %v14161 = vperm.slane %v13098, %v13248
  %v14162 = vsel %vm13250, %v14161, %v14160
  %v14163 = vperm.slane %v13101, %v13252
  %v14164 = vsel %vm13254, %v14163, %v14162
  %v14165 = vperm.slane %v13104, %v13256
  %v14166 = vsel %vm13258, %v14165, %v14164
  %v14167 = vperm.slane %v13107, %v13260
  %v14168 = vsel %vm13262, %v14167, %v14166
  %v14169 = vperm.slane %v13110, %v13264
  %v14170 = vsel %vm13266, %v14169, %v14168
  %v14171 = vperm.slane %v13113, %v13268
  %v14172 = vsel %vm13270, %v14171, %v14170
  %v14173 = vperm.slane %v13116, %v13272
  %v14174 = vsel %vm13274, %v14173, %v14172
  %v14175 = vperm.slane %v13119, %v13214
  %v14176 = vperm.slane %v13122, %v13216
  %v14177 = vsel %vm13218, %v14176, %v14175
  %v14178 = vperm.slane %v13125, %v13220
  %v14179 = vsel %vm13222, %v14178, %v14177
  %v14180 = vperm.slane %v13128, %v13224
  %v14181 = vsel %vm13226, %v14180, %v14179
  %v14182 = vperm.slane %v13131, %v13228
  %v14183 = vsel %vm13230, %v14182, %v14181
  %v14184 = vperm.slane %v13134, %v13232
  %v14185 = vsel %vm13234, %v14184, %v14183
  %v14186 = vperm.slane %v13137, %v13236
  %v14187 = vsel %vm13238, %v14186, %v14185
  %v14188 = vperm.slane %v13140, %v13240
  %v14189 = vsel %vm13242, %v14188, %v14187
  %v14190 = vperm.slane %v13143, %v13244
  %v14191 = vsel %vm13246, %v14190, %v14189
  %v14192 = vperm.slane %v13146, %v13248
  %v14193 = vsel %vm13250, %v14192, %v14191
  %v14194 = vperm.slane %v13149, %v13252
  %v14195 = vsel %vm13254, %v14194, %v14193
  %v14196 = vperm.slane %v13152, %v13256
  %v14197 = vsel %vm13258, %v14196, %v14195
  %v14198 = vperm.slane %v13155, %v13260
  %v14199 = vsel %vm13262, %v14198, %v14197
  %v14200 = vperm.slane %v13158, %v13264
  %v14201 = vsel %vm13266, %v14200, %v14199
  %v14202 = vperm.slane %v13161, %v13268
  %v14203 = vsel %vm13270, %v14202, %v14201
  %v14204 = vperm.slane %v13164, %v13272
  %v14205 = vsel %vm13274, %v14204, %v14203
  %v14206 = vperm.slane %v13167, %v13214
  %v14207 = vperm.slane %v13170, %v13216
  %v14208 = vsel %vm13218, %v14207, %v14206
  %v14209 = vperm.slane %v13173, %v13220
  %v14210 = vsel %vm13222, %v14209, %v14208
  %v14211 = vperm.slane %v13176, %v13224
  %v14212 = vsel %vm13226, %v14211, %v14210
  %v14213 = vperm.slane %v13179, %v13228
  %v14214 = vsel %vm13230, %v14213, %v14212
  %v14215 = vperm.slane %v13182, %v13232
  %v14216 = vsel %vm13234, %v14215, %v14214
  %v14217 = vperm.slane %v13185, %v13236
  %v14218 = vsel %vm13238, %v14217, %v14216
  %v14219 = vperm.slane %v13188, %v13240
  %v14220 = vsel %vm13242, %v14219, %v14218
  %v14221 = vperm.slane %v13191, %v13244
  %v14222 = vsel %vm13246, %v14221, %v14220
  %v14223 = vperm.slane %v13194, %v13248
  %v14224 = vsel %vm13250, %v14223, %v14222
  %v14225 = vperm.slane %v13197, %v13252
  %v14226 = vsel %vm13254, %v14225, %v14224
  %v14227 = vperm.slane %v13200, %v13256
  %v14228 = vsel %vm13258, %v14227, %v14226
  %v14229 = vperm.slane %v13203, %v13260
  %v14230 = vsel %vm13262, %v14229, %v14228
  %v14231 = vperm.slane %v13206, %v13264
  %v14232 = vsel %vm13266, %v14231, %v14230
  %v14233 = vperm.slane %v13209, %v13268
  %v14234 = vsel %vm13270, %v14233, %v14232
  %v14235 = vperm.slane %v13212, %v13272
  %v14236 = vsel %vm13274, %v14235, %v14234
  %vm14237 = vcmask 1041409
  %v14238 = vsel %vm14237, %v13771, %v13275
  %v14239 = vsel %vm14237, %v13802, %v13306
  %v14240 = vsel %vm14237, %v13833, %v13337
  %v14241 = vsel %vm14237, %v13864, %v13368
  %v14242 = vsel %vm14237, %v13895, %v13399
  %v14243 = vsel %vm14237, %v13926, %v13430
  %v14244 = vsel %vm14237, %v13957, %v13461
  %v14245 = vsel %vm14237, %v13988, %v13492
  %v14246 = vsel %vm14237, %v14019, %v13523
  %v14247 = vsel %vm14237, %v14050, %v13554
  %v14248 = vsel %vm14237, %v14081, %v13585
  %v14249 = vsel %vm14237, %v14112, %v13616
  %v14250 = vsel %vm14237, %v14143, %v13647
  %v14251 = vsel %vm14237, %v14174, %v13678
  %v14252 = vsel %vm14237, %v14205, %v13709
  %v14253 = vsel %vm14237, %v14236, %v13740
  %14270 = vmatpush.msra.mxu0 %v10920
  %14271 = vmatpush.msra.mxu0 %v10919
  %14272 = vmatpush.msra.mxu0 %v10918
  %14273 = vmatpush.msra.mxu0 %v10917
  %14274 = vmatpush.msra.mxu0 %v10916
  %14275 = vmatpush.msra.mxu0 %v10915
  %14276 = vmatpush.msra.mxu0 %v10914
  %14277 = vmatpush.msra.mxu0 %v10913
  %14278 = vmatpush.msra.mxu0 %v10912
  %14279 = vmatpush.msra.mxu0 %v10911
  %14280 = vmatpush.msra.mxu0 %v10910
  %14281 = vmatpush.msra.mxu0 %v10909
  %14282 = vmatpush.msra.mxu0 %v10908
  %14283 = vmatpush.msra.mxu0 %v10907
  %14284 = vmatpush.msra.mxu0 %v10906
  %14285 = vmatpush.msra.mxu0 %v10905
  %14286 = vmatmul.f32.gmra.mxu0 %v14238
  %v14287 = vpop.f32.mrf.mxu0
  %v14288 = vadd.f32 %v11163, %v14287
  %14289 = vdwg.mxu0
  %14290 = vmatpush.msra.mxu0 %v10936
  %14291 = vmatpush.msra.mxu0 %v10935
  %14292 = vmatpush.msra.mxu0 %v10934
  %14293 = vmatpush.msra.mxu0 %v10933
  %14294 = vmatpush.msra.mxu0 %v10932
  %14295 = vmatpush.msra.mxu0 %v10931
  %14296 = vmatpush.msra.mxu0 %v10930
  %14297 = vmatpush.msra.mxu0 %v10929
  %14298 = vmatpush.msra.mxu0 %v10928
  %14299 = vmatpush.msra.mxu0 %v10927
  %14300 = vmatpush.msra.mxu0 %v10926
  %14301 = vmatpush.msra.mxu0 %v10925
  %14302 = vmatpush.msra.mxu0 %v10924
  %14303 = vmatpush.msra.mxu0 %v10923
  %14304 = vmatpush.msra.mxu0 %v10922
  %14305 = vmatpush.msra.mxu0 %v10921
  %14306 = vmatmul.f32.gmra.mxu0 %v14239
  %v14307 = vpop.f32.mrf.mxu0
  %v14308 = vadd.f32 %v14288, %v14307
  %14309 = vdwg.mxu0
  %14310 = vmatpush.msra.mxu0 %v10952
  %14311 = vmatpush.msra.mxu0 %v10951
  %14312 = vmatpush.msra.mxu0 %v10950
  %14313 = vmatpush.msra.mxu0 %v10949
  %14314 = vmatpush.msra.mxu0 %v10948
  %14315 = vmatpush.msra.mxu0 %v10947
  %14316 = vmatpush.msra.mxu0 %v10946
  %14317 = vmatpush.msra.mxu0 %v10945
  %14318 = vmatpush.msra.mxu0 %v10944
  %14319 = vmatpush.msra.mxu0 %v10943
  %14320 = vmatpush.msra.mxu0 %v10942
  %14321 = vmatpush.msra.mxu0 %v10941
  %14322 = vmatpush.msra.mxu0 %v10940
  %14323 = vmatpush.msra.mxu0 %v10939
  %14324 = vmatpush.msra.mxu0 %v10938
  %14325 = vmatpush.msra.mxu0 %v10937
  %14326 = vmatmul.f32.gmra.mxu0 %v14240
  %v14327 = vpop.f32.mrf.mxu0
  %v14328 = vadd.f32 %v14308, %v14327
  %14329 = vdwg.mxu0
  %14330 = vmatpush.msra.mxu0 %v10968
  %14331 = vmatpush.msra.mxu0 %v10967
  %14332 = vmatpush.msra.mxu0 %v10966
  %14333 = vmatpush.msra.mxu0 %v10965
  %14334 = vmatpush.msra.mxu0 %v10964
  %14335 = vmatpush.msra.mxu0 %v10963
  %14336 = vmatpush.msra.mxu0 %v10962
  %14337 = vmatpush.msra.mxu0 %v10961
  %14338 = vmatpush.msra.mxu0 %v10960
  %14339 = vmatpush.msra.mxu0 %v10959
  %14340 = vmatpush.msra.mxu0 %v10958
  %14341 = vmatpush.msra.mxu0 %v10957
  %14342 = vmatpush.msra.mxu0 %v10956
  %14343 = vmatpush.msra.mxu0 %v10955
  %14344 = vmatpush.msra.mxu0 %v10954
  %14345 = vmatpush.msra.mxu0 %v10953
  %14346 = vmatmul.f32.gmra.mxu0 %v14241
  %v14347 = vpop.f32.mrf.mxu0
  %v14348 = vadd.f32 %v14328, %v14347
  %14349 = vdwg.mxu0
  %14350 = vmatpush.msra.mxu0 %v10984
  %14351 = vmatpush.msra.mxu0 %v10983
  %14352 = vmatpush.msra.mxu0 %v10982
  %14353 = vmatpush.msra.mxu0 %v10981
  %14354 = vmatpush.msra.mxu0 %v10980
  %14355 = vmatpush.msra.mxu0 %v10979
  %14356 = vmatpush.msra.mxu0 %v10978
  %14357 = vmatpush.msra.mxu0 %v10977
  %14358 = vmatpush.msra.mxu0 %v10976
  %14359 = vmatpush.msra.mxu0 %v10975
  %14360 = vmatpush.msra.mxu0 %v10974
  %14361 = vmatpush.msra.mxu0 %v10973
  %14362 = vmatpush.msra.mxu0 %v10972
  %14363 = vmatpush.msra.mxu0 %v10971
  %14364 = vmatpush.msra.mxu0 %v10970
  %14365 = vmatpush.msra.mxu0 %v10969
  %14366 = vmatmul.f32.gmra.mxu0 %v14242
  %v14367 = vpop.f32.mrf.mxu0
  %v14368 = vadd.f32 %v14348, %v14367
  %14369 = vdwg.mxu0
  %14370 = vmatpush.msra.mxu0 %v11000
  %14371 = vmatpush.msra.mxu0 %v10999
  %14372 = vmatpush.msra.mxu0 %v10998
  %14373 = vmatpush.msra.mxu0 %v10997
  %14374 = vmatpush.msra.mxu0 %v10996
  %14375 = vmatpush.msra.mxu0 %v10995
  %14376 = vmatpush.msra.mxu0 %v10994
  %14377 = vmatpush.msra.mxu0 %v10993
  %14378 = vmatpush.msra.mxu0 %v10992
  %14379 = vmatpush.msra.mxu0 %v10991
  %14380 = vmatpush.msra.mxu0 %v10990
  %14381 = vmatpush.msra.mxu0 %v10989
  %14382 = vmatpush.msra.mxu0 %v10988
  %14383 = vmatpush.msra.mxu0 %v10987
  %14384 = vmatpush.msra.mxu0 %v10986
  %14385 = vmatpush.msra.mxu0 %v10985
  %14386 = vmatmul.f32.gmra.mxu0 %v14243
  %v14387 = vpop.f32.mrf.mxu0
  %v14388 = vadd.f32 %v14368, %v14387
  %14389 = vdwg.mxu0
  %14390 = vmatpush.msra.mxu0 %v11016
  %14391 = vmatpush.msra.mxu0 %v11015
  %14392 = vmatpush.msra.mxu0 %v11014
  %14393 = vmatpush.msra.mxu0 %v11013
  %14394 = vmatpush.msra.mxu0 %v11012
  %14395 = vmatpush.msra.mxu0 %v11011
  %14396 = vmatpush.msra.mxu0 %v11010
  %14397 = vmatpush.msra.mxu0 %v11009
  %14398 = vmatpush.msra.mxu0 %v11008
  %14399 = vmatpush.msra.mxu0 %v11007
  %14400 = vmatpush.msra.mxu0 %v11006
  %14401 = vmatpush.msra.mxu0 %v11005
  %14402 = vmatpush.msra.mxu0 %v11004
  %14403 = vmatpush.msra.mxu0 %v11003
  %14404 = vmatpush.msra.mxu0 %v11002
  %14405 = vmatpush.msra.mxu0 %v11001
  %14406 = vmatmul.f32.gmra.mxu0 %v14244
  %v14407 = vpop.f32.mrf.mxu0
  %v14408 = vadd.f32 %v14388, %v14407
  %14409 = vdwg.mxu0
  %14410 = vmatpush.msra.mxu0 %v11032
  %14411 = vmatpush.msra.mxu0 %v11031
  %14412 = vmatpush.msra.mxu0 %v11030
  %14413 = vmatpush.msra.mxu0 %v11029
  %14414 = vmatpush.msra.mxu0 %v11028
  %14415 = vmatpush.msra.mxu0 %v11027
  %14416 = vmatpush.msra.mxu0 %v11026
  %14417 = vmatpush.msra.mxu0 %v11025
  %14418 = vmatpush.msra.mxu0 %v11024
  %14419 = vmatpush.msra.mxu0 %v11023
  %14420 = vmatpush.msra.mxu0 %v11022
  %14421 = vmatpush.msra.mxu0 %v11021
  %14422 = vmatpush.msra.mxu0 %v11020
  %14423 = vmatpush.msra.mxu0 %v11019
  %14424 = vmatpush.msra.mxu0 %v11018
  %14425 = vmatpush.msra.mxu0 %v11017
  %14426 = vmatmul.f32.gmra.mxu0 %v14245
  %v14427 = vpop.f32.mrf.mxu0
  %v14428 = vadd.f32 %v14408, %v14427
  %14429 = vdwg.mxu0
  %14430 = vmatpush.msra.mxu0 %v11048
  %14431 = vmatpush.msra.mxu0 %v11047
  %14432 = vmatpush.msra.mxu0 %v11046
  %14433 = vmatpush.msra.mxu0 %v11045
  %14434 = vmatpush.msra.mxu0 %v11044
  %14435 = vmatpush.msra.mxu0 %v11043
  %14436 = vmatpush.msra.mxu0 %v11042
  %14437 = vmatpush.msra.mxu0 %v11041
  %14438 = vmatpush.msra.mxu0 %v11040
  %14439 = vmatpush.msra.mxu0 %v11039
  %14440 = vmatpush.msra.mxu0 %v11038
  %14441 = vmatpush.msra.mxu0 %v11037
  %14442 = vmatpush.msra.mxu0 %v11036
  %14443 = vmatpush.msra.mxu0 %v11035
  %14444 = vmatpush.msra.mxu0 %v11034
  %14445 = vmatpush.msra.mxu0 %v11033
  %14446 = vmatmul.f32.gmra.mxu0 %v14246
  %v14447 = vpop.f32.mrf.mxu0
  %v14448 = vadd.f32 %v14428, %v14447
  %14449 = vdwg.mxu0
  %14450 = vmatpush.msra.mxu0 %v11064
  %14451 = vmatpush.msra.mxu0 %v11063
  %14452 = vmatpush.msra.mxu0 %v11062
  %14453 = vmatpush.msra.mxu0 %v11061
  %14454 = vmatpush.msra.mxu0 %v11060
  %14455 = vmatpush.msra.mxu0 %v11059
  %14456 = vmatpush.msra.mxu0 %v11058
  %14457 = vmatpush.msra.mxu0 %v11057
  %14458 = vmatpush.msra.mxu0 %v11056
  %14459 = vmatpush.msra.mxu0 %v11055
  %14460 = vmatpush.msra.mxu0 %v11054
  %14461 = vmatpush.msra.mxu0 %v11053
  %14462 = vmatpush.msra.mxu0 %v11052
  %14463 = vmatpush.msra.mxu0 %v11051
  %14464 = vmatpush.msra.mxu0 %v11050
  %14465 = vmatpush.msra.mxu0 %v11049
  %14466 = vmatmul.f32.gmra.mxu0 %v14247
  %v14467 = vpop.f32.mrf.mxu0
  %v14468 = vadd.f32 %v14448, %v14467
  %14469 = vdwg.mxu0
  %14470 = vmatpush.msra.mxu0 %v11080
  %14471 = vmatpush.msra.mxu0 %v11079
  %14472 = vmatpush.msra.mxu0 %v11078
  %14473 = vmatpush.msra.mxu0 %v11077
  %14474 = vmatpush.msra.mxu0 %v11076
  %14475 = vmatpush.msra.mxu0 %v11075
  %14476 = vmatpush.msra.mxu0 %v11074
  %14477 = vmatpush.msra.mxu0 %v11073
  %14478 = vmatpush.msra.mxu0 %v11072
  %14479 = vmatpush.msra.mxu0 %v11071
  %14480 = vmatpush.msra.mxu0 %v11070
  %14481 = vmatpush.msra.mxu0 %v11069
  %14482 = vmatpush.msra.mxu0 %v11068
  %14483 = vmatpush.msra.mxu0 %v11067
  %14484 = vmatpush.msra.mxu0 %v11066
  %14485 = vmatpush.msra.mxu0 %v11065
  %14486 = vmatmul.f32.gmra.mxu0 %v14248
  %v14487 = vpop.f32.mrf.mxu0
  %v14488 = vadd.f32 %v14468, %v14487
  %14489 = vdwg.mxu0
  %14490 = vmatpush.msra.mxu0 %v11096
  %14491 = vmatpush.msra.mxu0 %v11095
  %14492 = vmatpush.msra.mxu0 %v11094
  %14493 = vmatpush.msra.mxu0 %v11093
  %14494 = vmatpush.msra.mxu0 %v11092
  %14495 = vmatpush.msra.mxu0 %v11091
  %14496 = vmatpush.msra.mxu0 %v11090
  %14497 = vmatpush.msra.mxu0 %v11089
  %14498 = vmatpush.msra.mxu0 %v11088
  %14499 = vmatpush.msra.mxu0 %v11087
  %14500 = vmatpush.msra.mxu0 %v11086
  %14501 = vmatpush.msra.mxu0 %v11085
  %14502 = vmatpush.msra.mxu0 %v11084
  %14503 = vmatpush.msra.mxu0 %v11083
  %14504 = vmatpush.msra.mxu0 %v11082
  %14505 = vmatpush.msra.mxu0 %v11081
  %14506 = vmatmul.f32.gmra.mxu0 %v14249
  %v14507 = vpop.f32.mrf.mxu0
  %v14508 = vadd.f32 %v14488, %v14507
  %14509 = vdwg.mxu0
  %14510 = vmatpush.msra.mxu0 %v11112
  %14511 = vmatpush.msra.mxu0 %v11111
  %14512 = vmatpush.msra.mxu0 %v11110
  %14513 = vmatpush.msra.mxu0 %v11109
  %14514 = vmatpush.msra.mxu0 %v11108
  %14515 = vmatpush.msra.mxu0 %v11107
  %14516 = vmatpush.msra.mxu0 %v11106
  %14517 = vmatpush.msra.mxu0 %v11105
  %14518 = vmatpush.msra.mxu0 %v11104
  %14519 = vmatpush.msra.mxu0 %v11103
  %14520 = vmatpush.msra.mxu0 %v11102
  %14521 = vmatpush.msra.mxu0 %v11101
  %14522 = vmatpush.msra.mxu0 %v11100
  %14523 = vmatpush.msra.mxu0 %v11099
  %14524 = vmatpush.msra.mxu0 %v11098
  %14525 = vmatpush.msra.mxu0 %v11097
  %14526 = vmatmul.f32.gmra.mxu0 %v14250
  %v14527 = vpop.f32.mrf.mxu0
  %v14528 = vadd.f32 %v14508, %v14527
  %14529 = vdwg.mxu0
  %14530 = vmatpush.msra.mxu0 %v11128
  %14531 = vmatpush.msra.mxu0 %v11127
  %14532 = vmatpush.msra.mxu0 %v11126
  %14533 = vmatpush.msra.mxu0 %v11125
  %14534 = vmatpush.msra.mxu0 %v11124
  %14535 = vmatpush.msra.mxu0 %v11123
  %14536 = vmatpush.msra.mxu0 %v11122
  %14537 = vmatpush.msra.mxu0 %v11121
  %14538 = vmatpush.msra.mxu0 %v11120
  %14539 = vmatpush.msra.mxu0 %v11119
  %14540 = vmatpush.msra.mxu0 %v11118
  %14541 = vmatpush.msra.mxu0 %v11117
  %14542 = vmatpush.msra.mxu0 %v11116
  %14543 = vmatpush.msra.mxu0 %v11115
  %14544 = vmatpush.msra.mxu0 %v11114
  %14545 = vmatpush.msra.mxu0 %v11113
  %14546 = vmatmul.f32.gmra.mxu0 %v14251
  %v14547 = vpop.f32.mrf.mxu0
  %v14548 = vadd.f32 %v14528, %v14547
  %14549 = vdwg.mxu0
  %14550 = vmatpush.msra.mxu0 %v11144
  %14551 = vmatpush.msra.mxu0 %v11143
  %14552 = vmatpush.msra.mxu0 %v11142
  %14553 = vmatpush.msra.mxu0 %v11141
  %14554 = vmatpush.msra.mxu0 %v11140
  %14555 = vmatpush.msra.mxu0 %v11139
  %14556 = vmatpush.msra.mxu0 %v11138
  %14557 = vmatpush.msra.mxu0 %v11137
  %14558 = vmatpush.msra.mxu0 %v11136
  %14559 = vmatpush.msra.mxu0 %v11135
  %14560 = vmatpush.msra.mxu0 %v11134
  %14561 = vmatpush.msra.mxu0 %v11133
  %14562 = vmatpush.msra.mxu0 %v11132
  %14563 = vmatpush.msra.mxu0 %v11131
  %14564 = vmatpush.msra.mxu0 %v11130
  %14565 = vmatpush.msra.mxu0 %v11129
  %14566 = vmatmul.f32.gmra.mxu0 %v14252
  %v14567 = vpop.f32.mrf.mxu0
  %v14568 = vadd.f32 %v14548, %v14567
  %14569 = vdwg.mxu0
  %14570 = vmatpush.msra.mxu0 %v11160
  %14571 = vmatpush.msra.mxu0 %v11159
  %14572 = vmatpush.msra.mxu0 %v11158
  %14573 = vmatpush.msra.mxu0 %v11157
  %14574 = vmatpush.msra.mxu0 %v11156
  %14575 = vmatpush.msra.mxu0 %v11155
  %14576 = vmatpush.msra.mxu0 %v11154
  %14577 = vmatpush.msra.mxu0 %v11153
  %14578 = vmatpush.msra.mxu0 %v11152
  %14579 = vmatpush.msra.mxu0 %v11151
  %14580 = vmatpush.msra.mxu0 %v11150
  %14581 = vmatpush.msra.mxu0 %v11149
  %14582 = vmatpush.msra.mxu0 %v11148
  %14583 = vmatpush.msra.mxu0 %v11147
  %14584 = vmatpush.msra.mxu0 %v11146
  %14585 = vmatpush.msra.mxu0 %v11145
  %14586 = vmatmul.f32.gmra.mxu0 %v14253
  %v14587 = vpop.f32.mrf.mxu0
  %v14588 = vadd.f32 %v14568, %v14587
  %14589 = vdwg.mxu0
  %v14590 = vmax.f32 %v14588, 0.0
  %v14591 = vld [vmem:[%s4] sm:$0xff]
  %v14592 = vld [vmem:[%s4 + $0x8] sm:$0xff]
  %v14593 = vld [vmem:[%s4 + $0x10] sm:$0xff]
  %v14594 = vld [vmem:[%s4 + $0x18] sm:$0xff]
  %v14595 = vld [vmem:[%s5] sm:$0x1]
  %v14597 = vperm.slane %v14595, 0
  %vm14599 = vcmask 261120
  %v14601 = vsel %vm14599, %v14590, 0
  %14603 = vmatpush.msra.mxu0 0.0
  %14604 = vmatpush.msra.mxu0 0.0
  %14605 = vmatpush.msra.mxu0 0.0
  %14606 = vmatpush.msra.mxu0 0.0
  %14607 = vmatpush.msra.mxu0 0.0
  %14608 = vmatpush.msra.mxu0 0.0
  %14609 = vmatpush.msra.mxu0 0.0
  %14610 = vmatpush.msra.mxu0 0.0
  %14611 = vmatpush.msra.mxu0 0.0
  %14612 = vmatpush.msra.mxu0 0.0
  %14613 = vmatpush.msra.mxu0 0.0
  %14614 = vmatpush.msra.mxu0 0.0
  %14615 = vmatpush.msra.mxu0 %v14594
  %14616 = vmatpush.msra.mxu0 %v14593
  %14617 = vmatpush.msra.mxu0 %v14592
  %14618 = vmatpush.msra.mxu0 %v14591
  %14619 = vmatmul.f32.gmra.mxu0 %v14601
  %v14620 = vpop.f32.mrf.mxu0
  %v14621 = vadd.f32 %v14597, %v14620
  %14622 = vdwg.mxu0
  %vm14623 = vcmask 386048
  %14624 = vst.msk [vmem:[%s6] sm:$0x3] %vm14623, %v14621
  // Predicated region
  $region26: #{_forward_tasks.1} parent=0 // pred_check
    _
  $region27: #{_forward_tasks.1} parent=0 // pred_check_branch
    %14626 = sbr.rel (0) target = $region29
  $region28: #{_forward_tasks.1} parent=0 // pred_region
    _
  $region29: #{_forward_tasks.1} parent=0 // pred_fallthru
    _
  // Predicated region
  $region30: #{_forward_tasks.1} parent=0 // pred_check
    _
  $region31: #{_forward_tasks.1} parent=0 // pred_check_branch
    %14628 = sbr.rel (0) target = $region33
  $region32: #{_forward_tasks.1} parent=0 // pred_region
    _
  $region33: #{_forward_tasks.1} parent=0 // pred_fallthru
    _

</llo_original>
